<compile_context>
chip_gen: v6e
topology: v6e:2x2x1
jax: 0.10.0
libtpu: 0.0.40
codegen_flags: <defaults>
</compile_context>

<pallas_src>
import functools

import jax
import jax.numpy as jnp
from jax.experimental import pallas as pl
from jax.experimental.pallas import tpu as pltpu

N_CONV = 7  # conv1, conv2, conv3, conv4, conv41, conv42, conv5


# ----------------------------------------------------------------------------
# Shared conv chain (channels-first tile): (3, TN) f32 -> (1024, TN) f32
# ----------------------------------------------------------------------------
def _conv_chain(x_tile_f32, wb_refs):
    h = x_tile_f32.astype(jnp.bfloat16)                  # (3, TN)
    for i in range(N_CONV):
        w = wb_refs[2 * i][...]                          # (Cout, Cin) bf16
        b = wb_refs[2 * i + 1][...]                      # (Cout, 1)   f32
        y = jnp.dot(w, h, preferred_element_type=jnp.float32)   # MXU, f32 acc
        y = jnp.maximum(y + b, 0.0)                      # bias + ReLU on VPU (f32)
        h = y.astype(jnp.bfloat16) if i + 1 < N_CONV else y
    return h                                             # (1024, TN) f32


# ----------------------------------------------------------------------------
# Kernel 1: conv chain + running global max-pool over the point axis
# ----------------------------------------------------------------------------
def _make_max_kernel(n_valid, tile_n):
    need_mask = (n_valid % tile_n) != 0

    def kernel(x_ref, *refs):
        # refs = 14 weight/bias refs, then the (1, 1024, 1) resident max output.
        wb_refs = refs[: 2 * N_CONV]
        mx_ref = refs[2 * N_CONV]
        k = pl.program_id(1)

        pf = _conv_chain(x_ref[0], wb_refs)              # (1024, TN) f32

        @pl.when(k == 0)
        def _init():
            mx_ref[...] = jnp.full(mx_ref.shape, -jnp.inf, mx_ref.dtype)

        if need_mask:
            lane = jax.lax.broadcasted_iota(jnp.int32, pf.shape, 1)
            valid = (k * tile_n + lane) < n_valid
            pf = jnp.where(valid, pf, -jnp.inf)

        tile_max = jnp.max(pf, axis=1, keepdims=True)    # (1024, 1), XLU reduce
        mx_ref[0] = jnp.maximum(mx_ref[0], tile_max)

    return kernel


# ----------------------------------------------------------------------------
# Kernel 2: recompute conv chain + assemble final NCW output (lane-dense)
# ----------------------------------------------------------------------------
def _make_out_kernel(tile_n):
    def kernel(x_ref, g_ref, *refs):
        # refs = 14 weight/bias refs, then the (1, 1280, TN) output.
        wb_refs = refs[: 2 * N_CONV]
        out_ref = refs[2 * N_CONV]

        pf = _conv_chain(x_ref[0], wb_refs)              # (1024, TN) f32
        out_ref[0, :256, :] = jnp.broadcast_to(g_ref[0], (256, tile_n))
        out_ref[0, 256:, :] = pf

    return kernel


# ----------------------------------------------------------------------------
# Wrapper
# ----------------------------------------------------------------------------
def pointnetfeat_desc(x_ncw, conv_params, dense_params, tile_n=256):
    """x_ncw: (B, 3, N) float32.  Returns (B, 1280, N) float32 (NCW, like torch).

    tile_n: point-axis tile, multiple of 128.  256-512 is a good default; larger
    tiles (1024) are fine on v5e/v6e's 128 MiB VMEM for long point clouds.
    """
    B, cin, N = x_ncw.shape
    assert cin == 3
    assert tile_n % 128 == 0

    n_pad = pl.cdiv(N, tile_n) * tile_n
    x = x_ncw
    if n_pad != N:
        x = jnp.pad(x, ((0, 0), (0, 0), (0, n_pad - N)))
    num_tiles = n_pad // tile_n

    # Folded conv weights/biases: grid-invariant full blocks.
    wb_inputs, wb_specs = [], []
    for (w, b) in conv_params:
        wb_inputs.append(w)                                    # (Cout, Cin) bf16
        wb_specs.append(pl.BlockSpec(w.shape, lambda bb, kk: (0, 0)))
        wb_inputs.append(b)                                    # (Cout, 1) f32
        wb_specs.append(pl.BlockSpec(b.shape, lambda bb, kk: (0, 0)))

    x_spec = pl.BlockSpec((1, 3, tile_n), lambda bb, kk: (bb, 0, kk))

    # --- Pass 1: global max-pool over points (N axis is the reduction). ---
    mx = pl.pallas_call(
        _make_max_kernel(N, tile_n),
        out_shape=jax.ShapeDtypeStruct((B, 1024, 1), jnp.float32),
        grid_spec=pltpu.PrefetchScalarGridSpec(
            num_scalar_prefetch=0,
            grid=(B, num_tiles),
            in_specs=[x_spec] + wb_specs,
            out_specs=pl.BlockSpec((1, 1024, 1), lambda bb, kk: (bb, 0, 0)),
        ),
        compiler_params=pltpu.CompilerParams(
            dimension_semantics=("parallel", "arbitrary"),
            vmem_limit_bytes=32 * 1024 * 1024,
        ),
    )(x, *wb_inputs)

    # --- Tiny global-feature MLP (dense1/dense2 + folded BN) in plain JAX. ---
    g = mx[:, :, 0]                                       # (B, 1024)
    (wd1, bd1), (wd2, bd2) = dense_params
    g = jnp.maximum(g @ wd1.T + bd1, 0.0)                 # (B, 256)
    g = jnp.maximum(g @ wd2.T + bd2, 0.0)                 # (B, 256)
    g3 = g[:, :, None]                                    # (B, 256, 1)

    # --- Pass 2: recompute conv chain, write the final (B, 1280, N) slab. ---
    out = pl.pallas_call(
        _make_out_kernel(tile_n),
        out_shape=jax.ShapeDtypeStruct((B, 1280, n_pad), jnp.float32),
        grid_spec=pltpu.PrefetchScalarGridSpec(
            num_scalar_prefetch=0,
            grid=(B, num_tiles),
            in_specs=[x_spec,
                      pl.BlockSpec((1, 256, 1), lambda bb, kk: (bb, 0, 0))]
            + wb_specs,
            out_specs=pl.BlockSpec((1, 1280, tile_n), lambda bb, kk: (bb, 0, kk)),
        ),
        compiler_params=pltpu.CompilerParams(
            dimension_semantics=("parallel", "parallel"),
            vmem_limit_bytes=32 * 1024 * 1024,
        ),
    )(x, g3, *wb_inputs)

    if n_pad != N:
        out = out[:, :, :N]
    return out


# ----------------------------------------------------------------------------
# Parameter construction (deterministic, synthetic) + BN folding
# ----------------------------------------------------------------------------
def _fold_conv(w, bias, gamma, beta, mean, var, eps=1e-5):
    """w: (Cout, Cin) torch layout. Returns bf16 (Cout, Cin) weight, f32 (Cout,1) bias."""
    s = gamma / jnp.sqrt(var + eps)
    w_f = (w * s[:, None]).astype(jnp.bfloat16)
    b_f = ((bias - mean) * s + beta).astype(jnp.float32).reshape(-1, 1)
    return w_f, b_f


def _fold_dense(w, bias, gamma, beta, mean, var, eps=1e-5):
    s = gamma / jnp.sqrt(var + eps)
    w_f = (w * s[:, None]).astype(jnp.float32)            # (out, in)
    b_f = ((bias - mean) * s + beta).astype(jnp.float32)
    return w_f, b_f


def make_params(key):
    conv_dims = [
        (3, 64), (64, 64), (64, 64),          # conv1..conv3
        (64, 128), (128, 128), (128, 128),    # conv4, conv41, conv42
        (128, 1024),                          # conv5
    ]
    dense_dims = [(1024, 256), (256, 256)]    # dense1, dense2

    conv_folded, dense_folded, raw = [], [], []
    for idx, (cin, cout) in enumerate(conv_dims + dense_dims):
        key, k1, k2, k3, k4, k5, k6 = jax.random.split(key, 7)
        w = jax.random.normal(k1, (cout, cin), jnp.float32) * 0.05
        b = jax.random.normal(k2, (cout,), jnp.float32) * 0.05
        gamma = 1.0 + 0.1 * jax.random.normal(k3, (cout,), jnp.float32)
        beta = 0.1 * jax.random.normal(k4, (cout,), jnp.float32)
        mean = 0.05 * jax.random.normal(k5, (cout,), jnp.float32)
        var = 0.5 + jax.random.uniform(k6, (cout,), jnp.float32)
        raw.append((w, b, gamma, beta, mean, var))
        if idx < len(conv_dims):
            conv_folded.append(_fold_conv(w, b, gamma, beta, mean, var))
        else:
            dense_folded.append(_fold_dense(w, b, gamma, beta, mean, var))
    return conv_folded, dense_folded, raw


# ----------------------------------------------------------------------------
# Pure-JAX reference (mirrors the torch forward, BN in eval mode, f32)
# ----------------------------------------------------------------------------
def reference(x_ncw, raw_params, eps=1e-5):
    def conv_bn_relu(h, p):      # h: (B, C, N)
        w, b, gamma, beta, mean, var = p
        y = jnp.einsum("oc,bcn->bon", w, h) + b[None, :, None]
        y = (y - mean[None, :, None]) / jnp.sqrt(var + eps)[None, :, None]
        y = gamma[None, :, None] * y + beta[None, :, None]
        return jnp.maximum(y, 0.0)

    def dense_bn_relu(h, p):     # h: (B, C)
        w, b, gamma, beta, mean, var = p
        y = h @ w.T + b
        y = gamma * (y - mean) / jnp.sqrt(var + eps) + beta
        return jnp.maximum(y, 0.0)

    h = x_ncw
    for p in raw_params[:7]:
        h = conv_bn_relu(h, p)
    pointfeat = h                                 # (B, 1024, N)
    g = jnp.max(h, axis=2)                        # (B, 1024)
    g = dense_bn_relu(g, raw_params[7])
    g = dense_bn_relu(g, raw_params[8])           # (B, 256)
    n_pts = x_ncw.shape[2]
    g = jnp.repeat(g[:, :, None], n_pts, axis=2)  # (B, 256, N)
    return jnp.concatenate([g, pointfeat], axis=1)


# ----------------------------------------------------------------------------
if __name__ == "__main__":
    key = jax.random.PRNGKey(0)
    kx, kp = jax.random.split(key)

    B, N = 2, 512
    x = jax.random.normal(kx, (B, 3, N), jnp.float32)   # NCW, like torch Conv1d input

    conv_f, dense_f, raw = make_params(kp)

    run = jax.jit(functools.partial(
        pointnetfeat_desc, conv_params=conv_f, dense_params=dense_f, tile_n=256))
    out = jax.block_until_ready(run(x))

    ref = reference(x, raw)
    assert out.shape == (B, 1280, N), out.shape
    max_err = float(jnp.max(jnp.abs(out - ref)))
    # bf16 MXU matmuls (f32 accumulation) -> tolerance relaxed vs. the pure-f32 reference.
    assert jnp.allclose(out, ref, atol=3e-2, rtol=3e-2), max_err

    # The torch module returns (features, None, None); trans/trans_feat are None.
    result = (out, None, None)
    print("KERNEL_OK")
</pallas_src>

<mosaic_0001>
module attributes {stable_mosaic.version = 11 : i64} {
  func.func @kernel(%arg0: i32, %arg1: i32, %arg2: memref<1x3x256xf32, #tpu.memory_space<vmem>>, %arg3: memref<64x3xbf16, #tpu.memory_space<vmem>>, %arg4: memref<64x1xf32, #tpu.memory_space<vmem>>, %arg5: memref<64x64xbf16, #tpu.memory_space<vmem>>, %arg6: memref<64x1xf32, #tpu.memory_space<vmem>>, %arg7: memref<64x64xbf16, #tpu.memory_space<vmem>>, %arg8: memref<64x1xf32, #tpu.memory_space<vmem>>, %arg9: memref<128x64xbf16, #tpu.memory_space<vmem>>, %arg10: memref<128x1xf32, #tpu.memory_space<vmem>>, %arg11: memref<128x128xbf16, #tpu.memory_space<vmem>>, %arg12: memref<128x1xf32, #tpu.memory_space<vmem>>, %arg13: memref<128x128xbf16, #tpu.memory_space<vmem>>, %arg14: memref<128x1xf32, #tpu.memory_space<vmem>>, %arg15: memref<1024x128xbf16, #tpu.memory_space<vmem>>, %arg16: memref<1024x1xf32, #tpu.memory_space<vmem>>, %arg17: memref<1x1024x1xf32, #tpu.memory_space<vmem>>) attributes {dimension_semantics = [#tpu.dimension_semantics<parallel>, #tpu.dimension_semantics<arbitrary>], iteration_bounds = array<i64: 2, 2>, scalar_prefetch = 0 : i64, scratch_operands = 0 : i64, tpu.core_type = #tpu.core_type<tc>, window_params = [{transform_indices = @transform_0, window_bounds = array<i64: 1, 3, 256>}, {pipeline_mode = #tpu.pipeline_mode<synchronous>, transform_indices = @transform_1, window_bounds = array<i64: 64, 3>}, {pipeline_mode = #tpu.pipeline_mode<synchronous>, transform_indices = @transform_2, window_bounds = array<i64: 64, 1>}, {pipeline_mode = #tpu.pipeline_mode<synchronous>, transform_indices = @transform_3, window_bounds = array<i64: 64, 64>}, {pipeline_mode = #tpu.pipeline_mode<synchronous>, transform_indices = @transform_4, window_bounds = array<i64: 64, 1>}, {pipeline_mode = #tpu.pipeline_mode<synchronous>, transform_indices = @transform_5, window_bounds = array<i64: 64, 64>}, {pipeline_mode = #tpu.pipeline_mode<synchronous>, transform_indices = @transform_6, window_bounds = array<i64: 64, 1>}, {pipeline_mode = #tpu.pipeline_mode<synchronous>, transform_indices = @transform_7, window_bounds = array<i64: 128, 64>}, {pipeline_mode = #tpu.pipeline_mode<synchronous>, transform_indices = @transform_8, window_bounds = array<i64: 128, 1>}, {pipeline_mode = #tpu.pipeline_mode<synchronous>, transform_indices = @transform_9, window_bounds = array<i64: 128, 128>}, {pipeline_mode = #tpu.pipeline_mode<synchronous>, transform_indices = @transform_10, window_bounds = array<i64: 128, 1>}, {pipeline_mode = #tpu.pipeline_mode<synchronous>, transform_indices = @transform_11, window_bounds = array<i64: 128, 128>}, {pipeline_mode = #tpu.pipeline_mode<synchronous>, transform_indices = @transform_12, window_bounds = array<i64: 128, 1>}, {pipeline_mode = #tpu.pipeline_mode<synchronous>, transform_indices = @transform_13, window_bounds = array<i64: 1024, 128>}, {pipeline_mode = #tpu.pipeline_mode<synchronous>, transform_indices = @transform_14, window_bounds = array<i64: 1024, 1>}, {transform_indices = @transform_15, window_bounds = array<i64: 1, 1024, 1>}]} {
    %c0 = arith.constant 0 : index
    %c0_0 = arith.constant 0 : index
    %c0_1 = arith.constant 0 : index
    %0 = vector.load %arg2[%c0, %c0_0, %c0_1] : memref<1x3x256xf32, #tpu.memory_space<vmem>>, vector<1x3x256xf32>
    %1 = vector.shape_cast %0 : vector<1x3x256xf32> to vector<3x256xf32>
    %2 = arith.truncf %1 : vector<3x256xf32> to vector<3x256xbf16>
    %c0_2 = arith.constant 0 : index
    %c0_3 = arith.constant 0 : index
    %3 = vector.load %arg3[%c0_2, %c0_3] : memref<64x3xbf16, #tpu.memory_space<vmem>>, vector<64x3xbf16>
    %c0_4 = arith.constant 0 : index
    %c0_5 = arith.constant 0 : index
    %4 = vector.load %arg4[%c0_4, %c0_5] : memref<64x1xf32, #tpu.memory_space<vmem>>, vector<64x1xf32>
    %cst = arith.constant dense<0.000000e+00> : vector<64x256xf32>
    %5 = tpu.matmul %3, %2, %cst {dimension_numbers = #tpu.dot_dimension_numbers<[1], [0], [0], [1], [0, 0, 1, 1], [], []>} : vector<64x3xbf16>, vector<3x256xbf16>, vector<64x256xf32> -> vector<64x256xf32>
    %6 = vector.broadcast %4 : vector<64x1xf32> to vector<64x256xf32>
    %7 = arith.addf %5, %6 : vector<64x256xf32>
    %cst_6 = arith.constant 0.000000e+00 : f32
    %8 = vector.broadcast %cst_6 : f32 to vector<64x256xf32>
    %9 = arith.maximumf %7, %8 : vector<64x256xf32>
    %10 = arith.truncf %9 : vector<64x256xf32> to vector<64x256xbf16>
    %c0_7 = arith.constant 0 : index
    %c0_8 = arith.constant 0 : index
    %11 = vector.load %arg5[%c0_7, %c0_8] : memref<64x64xbf16, #tpu.memory_space<vmem>>, vector<64x64xbf16>
    %c0_9 = arith.constant 0 : index
    %c0_10 = arith.constant 0 : index
    %12 = vector.load %arg6[%c0_9, %c0_10] : memref<64x1xf32, #tpu.memory_space<vmem>>, vector<64x1xf32>
    %cst_11 = arith.constant dense<0.000000e+00> : vector<64x256xf32>
    %13 = tpu.matmul %11, %10, %cst_11 {dimension_numbers = #tpu.dot_dimension_numbers<[1], [0], [0], [1], [0, 0, 1, 1], [], []>} : vector<64x64xbf16>, vector<64x256xbf16>, vector<64x256xf32> -> vector<64x256xf32>
    %14 = vector.broadcast %12 : vector<64x1xf32> to vector<64x256xf32>
    %15 = arith.addf %13, %14 : vector<64x256xf32>
    %cst_12 = arith.constant 0.000000e+00 : f32
    %16 = vector.broadcast %cst_12 : f32 to vector<64x256xf32>
    %17 = arith.maximumf %15, %16 : vector<64x256xf32>
    %18 = arith.truncf %17 : vector<64x256xf32> to vector<64x256xbf16>
    %c0_13 = arith.constant 0 : index
    %c0_14 = arith.constant 0 : index
    %19 = vector.load %arg7[%c0_13, %c0_14] : memref<64x64xbf16, #tpu.memory_space<vmem>>, vector<64x64xbf16>
    %c0_15 = arith.constant 0 : index
    %c0_16 = arith.constant 0 : index
    %20 = vector.load %arg8[%c0_15, %c0_16] : memref<64x1xf32, #tpu.memory_space<vmem>>, vector<64x1xf32>
    %cst_17 = arith.constant dense<0.000000e+00> : vector<64x256xf32>
    %21 = tpu.matmul %19, %18, %cst_17 {dimension_numbers = #tpu.dot_dimension_numbers<[1], [0], [0], [1], [0, 0, 1, 1], [], []>} : vector<64x64xbf16>, vector<64x256xbf16>, vector<64x256xf32> -> vector<64x256xf32>
    %22 = vector.broadcast %20 : vector<64x1xf32> to vector<64x256xf32>
    %23 = arith.addf %21, %22 : vector<64x256xf32>
    %cst_18 = arith.constant 0.000000e+00 : f32
    %24 = vector.broadcast %cst_18 : f32 to vector<64x256xf32>
    %25 = arith.maximumf %23, %24 : vector<64x256xf32>
    %26 = arith.truncf %25 : vector<64x256xf32> to vector<64x256xbf16>
    %c0_19 = arith.constant 0 : index
    %c0_20 = arith.constant 0 : index
    %27 = vector.load %arg9[%c0_19, %c0_20] : memref<128x64xbf16, #tpu.memory_space<vmem>>, vector<128x64xbf16>
    %c0_21 = arith.constant 0 : index
    %c0_22 = arith.constant 0 : index
    %28 = vector.load %arg10[%c0_21, %c0_22] : memref<128x1xf32, #tpu.memory_space<vmem>>, vector<128x1xf32>
    %cst_23 = arith.constant dense<0.000000e+00> : vector<128x256xf32>
    %29 = tpu.matmul %27, %26, %cst_23 {dimension_numbers = #tpu.dot_dimension_numbers<[1], [0], [0], [1], [0, 0, 1, 1], [], []>} : vector<128x64xbf16>, vector<64x256xbf16>, vector<128x256xf32> -> vector<128x256xf32>
    %30 = vector.broadcast %28 : vector<128x1xf32> to vector<128x256xf32>
    %31 = arith.addf %29, %30 : vector<128x256xf32>
    %cst_24 = arith.constant 0.000000e+00 : f32
    %32 = vector.broadcast %cst_24 : f32 to vector<128x256xf32>
    %33 = arith.maximumf %31, %32 : vector<128x256xf32>
    %34 = arith.truncf %33 : vector<128x256xf32> to vector<128x256xbf16>
    %c0_25 = arith.constant 0 : index
    %c0_26 = arith.constant 0 : index
    %35 = vector.load %arg11[%c0_25, %c0_26] : memref<128x128xbf16, #tpu.memory_space<vmem>>, vector<128x128xbf16>
    %c0_27 = arith.constant 0 : index
    %c0_28 = arith.constant 0 : index
    %36 = vector.load %arg12[%c0_27, %c0_28] : memref<128x1xf32, #tpu.memory_space<vmem>>, vector<128x1xf32>
    %cst_29 = arith.constant dense<0.000000e+00> : vector<128x256xf32>
    %37 = tpu.matmul %35, %34, %cst_29 {dimension_numbers = #tpu.dot_dimension_numbers<[1], [0], [0], [1], [0, 0, 1, 1], [], []>} : vector<128x128xbf16>, vector<128x256xbf16>, vector<128x256xf32> -> vector<128x256xf32>
    %38 = vector.broadcast %36 : vector<128x1xf32> to vector<128x256xf32>
    %39 = arith.addf %37, %38 : vector<128x256xf32>
    %cst_30 = arith.constant 0.000000e+00 : f32
    %40 = vector.broadcast %cst_30 : f32 to vector<128x256xf32>
    %41 = arith.maximumf %39, %40 : vector<128x256xf32>
    %42 = arith.truncf %41 : vector<128x256xf32> to vector<128x256xbf16>
    %c0_31 = arith.constant 0 : index
    %c0_32 = arith.constant 0 : index
    %43 = vector.load %arg13[%c0_31, %c0_32] : memref<128x128xbf16, #tpu.memory_space<vmem>>, vector<128x128xbf16>
    %c0_33 = arith.constant 0 : index
    %c0_34 = arith.constant 0 : index
    %44 = vector.load %arg14[%c0_33, %c0_34] : memref<128x1xf32, #tpu.memory_space<vmem>>, vector<128x1xf32>
    %cst_35 = arith.constant dense<0.000000e+00> : vector<128x256xf32>
    %45 = tpu.matmul %43, %42, %cst_35 {dimension_numbers = #tpu.dot_dimension_numbers<[1], [0], [0], [1], [0, 0, 1, 1], [], []>} : vector<128x128xbf16>, vector<128x256xbf16>, vector<128x256xf32> -> vector<128x256xf32>
    %46 = vector.broadcast %44 : vector<128x1xf32> to vector<128x256xf32>
    %47 = arith.addf %45, %46 : vector<128x256xf32>
    %cst_36 = arith.constant 0.000000e+00 : f32
    %48 = vector.broadcast %cst_36 : f32 to vector<128x256xf32>
    %49 = arith.maximumf %47, %48 : vector<128x256xf32>
    %50 = arith.truncf %49 : vector<128x256xf32> to vector<128x256xbf16>
    %c0_37 = arith.constant 0 : index
    %c0_38 = arith.constant 0 : index
    %51 = vector.load %arg15[%c0_37, %c0_38] : memref<1024x128xbf16, #tpu.memory_space<vmem>>, vector<1024x128xbf16>
    %c0_39 = arith.constant 0 : index
    %c0_40 = arith.constant 0 : index
    %52 = vector.load %arg16[%c0_39, %c0_40] : memref<1024x1xf32, #tpu.memory_space<vmem>>, vector<1024x1xf32>
    %cst_41 = arith.constant dense<0.000000e+00> : vector<1024x256xf32>
    %53 = tpu.matmul %51, %50, %cst_41 {dimension_numbers = #tpu.dot_dimension_numbers<[1], [0], [0], [1], [0, 0, 1, 1], [], []>} : vector<1024x128xbf16>, vector<128x256xbf16>, vector<1024x256xf32> -> vector<1024x256xf32>
    %54 = vector.broadcast %52 : vector<1024x1xf32> to vector<1024x256xf32>
    %55 = arith.addf %53, %54 : vector<1024x256xf32>
    %cst_42 = arith.constant 0.000000e+00 : f32
    %56 = vector.broadcast %cst_42 : f32 to vector<1024x256xf32>
    %57 = arith.maximumf %55, %56 : vector<1024x256xf32>
    %c0_i32 = arith.constant 0 : i32
    %58 = arith.cmpi eq, %arg1, %c0_i32 : i32
    %59 = arith.extui %58 : i1 to i32
    %c0_i32_43 = arith.constant 0 : i32
    %60 = arith.cmpi ne, %59, %c0_i32_43 : i32
    scf.if %60 {
      %cst_51 = arith.constant 0xFF800000 : f32
      %69 = vector.broadcast %cst_51 : f32 to vector<1x1024x1xf32>
      %c0_52 = arith.constant 0 : index
      %c0_53 = arith.constant 0 : index
      %c0_54 = arith.constant 0 : index
      %70 = vector.load %arg17[%c0_52, %c0_53, %c0_54] : memref<1x1024x1xf32, #tpu.memory_space<vmem>>, vector<1x1024x1xf32>
      tpu.vector_store %arg17[%c0_52, %c0_53, %c0_54], %69 {strides = array<i32>} : memref<1x1024x1xf32, #tpu.memory_space<vmem>>, vector<1x1024x1xf32>,
    } else {
    }
    %cst_44 = arith.constant dense<0xFF800000> : vector<1024xf32>
    %61 = vector.multi_reduction <maximumf>, %57, %cst_44 [1] : vector<1024x256xf32> to vector<1024xf32>
    %62 = vector.shape_cast %61 : vector<1024xf32> to vector<1024x1xf32>
    %c0_45 = arith.constant 0 : index
    %c0_46 = arith.constant 0 : index
    %c0_47 = arith.constant 0 : index
    %63 = vector.load %arg17[%c0_45, %c0_46, %c0_47] : memref<1x1024x1xf32, #tpu.memory_space<vmem>>, vector<1x1024x1xf32>
    %64 = vector.shape_cast %63 : vector<1x1024x1xf32> to vector<1024x1xf32>
    %65 = arith.maximumf %64, %62 : vector<1024x1xf32>
    %c0_48 = arith.constant 0 : index
    %c0_49 = arith.constant 0 : index
    %c0_50 = arith.constant 0 : index
    %66 = vector.load %arg17[%c0_48, %c0_49, %c0_50] : memref<1x1024x1xf32, #tpu.memory_space<vmem>>, vector<1x1024x1xf32>
    %67 = vector.shape_cast %66 : vector<1x1024x1xf32> to vector<1024x1xf32>
    %68 = vector.shape_cast %65 : vector<1024x1xf32> to vector<1x1024x1xf32>
    tpu.vector_store %arg17[%c0_48, %c0_49, %c0_50], %68 {strides = array<i32>} : memref<1x1024x1xf32, #tpu.memory_space<vmem>>, vector<1x1024x1xf32>,
    return
  }
  func.func @transform_0(%arg0: i32, %arg1: i32) -> (i32, i32, i32) {
    %c0_i32 = arith.constant 0 : i32
    %c0_i32_0 = arith.constant 0 : i32
    return %arg0, %c0_i32, %arg1 : i32, i32, i32
  }
  func.func @transform_1(%arg0: i32, %arg1: i32) -> (i32, i32) {
    %c0_i32 = arith.constant 0 : i32
    %c0_i32_0 = arith.constant 0 : i32
    %c0_i32_1 = arith.constant 0 : i32
    return %c0_i32, %c0_i32_0 : i32, i32
  }
  func.func @transform_2(%arg0: i32, %arg1: i32) -> (i32, i32) {
    %c0_i32 = arith.constant 0 : i32
    %c0_i32_0 = arith.constant 0 : i32
    %c0_i32_1 = arith.constant 0 : i32
    return %c0_i32, %c0_i32_0 : i32, i32
  }
  func.func @transform_3(%arg0: i32, %arg1: i32) -> (i32, i32) {
    %c0_i32 = arith.constant 0 : i32
    %c0_i32_0 = arith.constant 0 : i32
    %c0_i32_1 = arith.constant 0 : i32
    return %c0_i32, %c0_i32_0 : i32, i32
  }
  func.func @transform_4(%arg0: i32, %arg1: i32) -> (i32, i32) {
    %c0_i32 = arith.constant 0 : i32
    %c0_i32_0 = arith.constant 0 : i32
    %c0_i32_1 = arith.constant 0 : i32
    return %c0_i32, %c0_i32_0 : i32, i32
  }
  func.func @transform_5(%arg0: i32, %arg1: i32) -> (i32, i32) {
    %c0_i32 = arith.constant 0 : i32
    %c0_i32_0 = arith.constant 0 : i32
    %c0_i32_1 = arith.constant 0 : i32
    return %c0_i32, %c0_i32_0 : i32, i32
  }
  func.func @transform_6(%arg0: i32, %arg1: i32) -> (i32, i32) {
    %c0_i32 = arith.constant 0 : i32
    %c0_i32_0 = arith.constant 0 : i32
    %c0_i32_1 = arith.constant 0 : i32
    return %c0_i32, %c0_i32_0 : i32, i32
  }
  func.func @transform_7(%arg0: i32, %arg1: i32) -> (i32, i32) {
    %c0_i32 = arith.constant 0 : i32
    %c0_i32_0 = arith.constant 0 : i32
    %c0_i32_1 = arith.constant 0 : i32
    return %c0_i32, %c0_i32_0 : i32, i32
  }
  func.func @transform_8(%arg0: i32, %arg1: i32) -> (i32, i32) {
    %c0_i32 = arith.constant 0 : i32
    %c0_i32_0 = arith.constant 0 : i32
    %c0_i32_1 = arith.constant 0 : i32
    return %c0_i32, %c0_i32_0 : i32, i32
  }
  func.func @transform_9(%arg0: i32, %arg1: i32) -> (i32, i32) {
    %c0_i32 = arith.constant 0 : i32
    %c0_i32_0 = arith.constant 0 : i32
    %c0_i32_1 = arith.constant 0 : i32
    return %c0_i32, %c0_i32_0 : i32, i32
  }
  func.func @transform_10(%arg0: i32, %arg1: i32) -> (i32, i32) {
    %c0_i32 = arith.constant 0 : i32
    %c0_i32_0 = arith.constant 0 : i32
    %c0_i32_1 = arith.constant 0 : i32
    return %c0_i32, %c0_i32_0 : i32, i32
  }
  func.func @transform_11(%arg0: i32, %arg1: i32) -> (i32, i32) {
    %c0_i32 = arith.constant 0 : i32
    %c0_i32_0 = arith.constant 0 : i32
    %c0_i32_1 = arith.constant 0 : i32
    return %c0_i32, %c0_i32_0 : i32, i32
  }
  func.func @transform_12(%arg0: i32, %arg1: i32) -> (i32, i32) {
    %c0_i32 = arith.constant 0 : i32
    %c0_i32_0 = arith.constant 0 : i32
    %c0_i32_1 = arith.constant 0 : i32
    return %c0_i32, %c0_i32_0 : i32, i32
  }
  func.func @transform_13(%arg0: i32, %arg1: i32) -> (i32, i32) {
    %c0_i32 = arith.constant 0 : i32
    %c0_i32_0 = arith.constant 0 : i32
    %c0_i32_1 = arith.constant 0 : i32
    return %c0_i32, %c0_i32_0 : i32, i32
  }
  func.func @transform_14(%arg0: i32, %arg1: i32) -> (i32, i32) {
    %c0_i32 = arith.constant 0 : i32
    %c0_i32_0 = arith.constant 0 : i32
    %c0_i32_1 = arith.constant 0 : i32
    return %c0_i32, %c0_i32_0 : i32, i32
  }
  func.func @transform_15(%arg0: i32, %arg1: i32) -> (i32, i32, i32) {
    %c0_i32 = arith.constant 0 : i32
    %c0_i32_0 = arith.constant 0 : i32
    %c0_i32_1 = arith.constant 0 : i32
    return %arg0, %c0_i32, %c0_i32_0 : i32, i32, i32
  }
}

module attributes {stable_mosaic.version = 11 : i64} {
  func.func @kernel(%arg0: i32, %arg1: i32, %arg2: memref<1x3x256xf32, #tpu.memory_space<vmem>>, %arg3: memref<1x256x1xf32, #tpu.memory_space<vmem>>, %arg4: memref<64x3xbf16, #tpu.memory_space<vmem>>, %arg5: memref<64x1xf32, #tpu.memory_space<vmem>>, %arg6: memref<64x64xbf16, #tpu.memory_space<vmem>>, %arg7: memref<64x1xf32, #tpu.memory_space<vmem>>, %arg8: memref<64x64xbf16, #tpu.memory_space<vmem>>, %arg9: memref<64x1xf32, #tpu.memory_space<vmem>>, %arg10: memref<128x64xbf16, #tpu.memory_space<vmem>>, %arg11: memref<128x1xf32, #tpu.memory_space<vmem>>, %arg12: memref<128x128xbf16, #tpu.memory_space<vmem>>, %arg13: memref<128x1xf32, #tpu.memory_space<vmem>>, %arg14: memref<128x128xbf16, #tpu.memory_space<vmem>>, %arg15: memref<128x1xf32, #tpu.memory_space<vmem>>, %arg16: memref<1024x128xbf16, #tpu.memory_space<vmem>>, %arg17: memref<1024x1xf32, #tpu.memory_space<vmem>>, %arg18: memref<1x1280x256xf32, #tpu.memory_space<vmem>>) attributes {dimension_semantics = [#tpu.dimension_semantics<parallel>, #tpu.dimension_semantics<parallel>], iteration_bounds = array<i64: 2, 2>, scalar_prefetch = 0 : i64, scratch_operands = 0 : i64, tpu.core_type = #tpu.core_type<tc>, window_params = [{transform_indices = @transform_0, window_bounds = array<i64: 1, 3, 256>}, {transform_indices = @transform_1, window_bounds = array<i64: 1, 256, 1>}, {pipeline_mode = #tpu.pipeline_mode<synchronous>, transform_indices = @transform_2, window_bounds = array<i64: 64, 3>}, {pipeline_mode = #tpu.pipeline_mode<synchronous>, transform_indices = @transform_3, window_bounds = array<i64: 64, 1>}, {pipeline_mode = #tpu.pipeline_mode<synchronous>, transform_indices = @transform_4, window_bounds = array<i64: 64, 64>}, {pipeline_mode = #tpu.pipeline_mode<synchronous>, transform_indices = @transform_5, window_bounds = array<i64: 64, 1>}, {pipeline_mode = #tpu.pipeline_mode<synchronous>, transform_indices = @transform_6, window_bounds = array<i64: 64, 64>}, {pipeline_mode = #tpu.pipeline_mode<synchronous>, transform_indices = @transform_7, window_bounds = array<i64: 64, 1>}, {pipeline_mode = #tpu.pipeline_mode<synchronous>, transform_indices = @transform_8, window_bounds = array<i64: 128, 64>}, {pipeline_mode = #tpu.pipeline_mode<synchronous>, transform_indices = @transform_9, window_bounds = array<i64: 128, 1>}, {pipeline_mode = #tpu.pipeline_mode<synchronous>, transform_indices = @transform_10, window_bounds = array<i64: 128, 128>}, {pipeline_mode = #tpu.pipeline_mode<synchronous>, transform_indices = @transform_11, window_bounds = array<i64: 128, 1>}, {pipeline_mode = #tpu.pipeline_mode<synchronous>, transform_indices = @transform_12, window_bounds = array<i64: 128, 128>}, {pipeline_mode = #tpu.pipeline_mode<synchronous>, transform_indices = @transform_13, window_bounds = array<i64: 128, 1>}, {pipeline_mode = #tpu.pipeline_mode<synchronous>, transform_indices = @transform_14, window_bounds = array<i64: 1024, 128>}, {pipeline_mode = #tpu.pipeline_mode<synchronous>, transform_indices = @transform_15, window_bounds = array<i64: 1024, 1>}, {transform_indices = @transform_16, window_bounds = array<i64: 1, 1280, 256>}]} {
    %c0 = arith.constant 0 : index
    %c0_0 = arith.constant 0 : index
    %c0_1 = arith.constant 0 : index
    %0 = vector.load %arg2[%c0, %c0_0, %c0_1] : memref<1x3x256xf32, #tpu.memory_space<vmem>>, vector<1x3x256xf32>
    %1 = vector.shape_cast %0 : vector<1x3x256xf32> to vector<3x256xf32>
    %2 = arith.truncf %1 : vector<3x256xf32> to vector<3x256xbf16>
    %c0_2 = arith.constant 0 : index
    %c0_3 = arith.constant 0 : index
    %3 = vector.load %arg4[%c0_2, %c0_3] : memref<64x3xbf16, #tpu.memory_space<vmem>>, vector<64x3xbf16>
    %c0_4 = arith.constant 0 : index
    %c0_5 = arith.constant 0 : index
    %4 = vector.load %arg5[%c0_4, %c0_5] : memref<64x1xf32, #tpu.memory_space<vmem>>, vector<64x1xf32>
    %cst = arith.constant dense<0.000000e+00> : vector<64x256xf32>
    %5 = tpu.matmul %3, %2, %cst {dimension_numbers = #tpu.dot_dimension_numbers<[1], [0], [0], [1], [0, 0, 1, 1], [], []>} : vector<64x3xbf16>, vector<3x256xbf16>, vector<64x256xf32> -> vector<64x256xf32>
    %6 = vector.broadcast %4 : vector<64x1xf32> to vector<64x256xf32>
    %7 = arith.addf %5, %6 : vector<64x256xf32>
    %cst_6 = arith.constant 0.000000e+00 : f32
    %8 = vector.broadcast %cst_6 : f32 to vector<64x256xf32>
    %9 = arith.maximumf %7, %8 : vector<64x256xf32>
    %10 = arith.truncf %9 : vector<64x256xf32> to vector<64x256xbf16>
    %c0_7 = arith.constant 0 : index
    %c0_8 = arith.constant 0 : index
    %11 = vector.load %arg6[%c0_7, %c0_8] : memref<64x64xbf16, #tpu.memory_space<vmem>>, vector<64x64xbf16>
    %c0_9 = arith.constant 0 : index
    %c0_10 = arith.constant 0 : index
    %12 = vector.load %arg7[%c0_9, %c0_10] : memref<64x1xf32, #tpu.memory_space<vmem>>, vector<64x1xf32>
    %cst_11 = arith.constant dense<0.000000e+00> : vector<64x256xf32>
    %13 = tpu.matmul %11, %10, %cst_11 {dimension_numbers = #tpu.dot_dimension_numbers<[1], [0], [0], [1], [0, 0, 1, 1], [], []>} : vector<64x64xbf16>, vector<64x256xbf16>, vector<64x256xf32> -> vector<64x256xf32>
    %14 = vector.broadcast %12 : vector<64x1xf32> to vector<64x256xf32>
    %15 = arith.addf %13, %14 : vector<64x256xf32>
    %cst_12 = arith.constant 0.000000e+00 : f32
    %16 = vector.broadcast %cst_12 : f32 to vector<64x256xf32>
    %17 = arith.maximumf %15, %16 : vector<64x256xf32>
    %18 = arith.truncf %17 : vector<64x256xf32> to vector<64x256xbf16>
    %c0_13 = arith.constant 0 : index
    %c0_14 = arith.constant 0 : index
    %19 = vector.load %arg8[%c0_13, %c0_14] : memref<64x64xbf16, #tpu.memory_space<vmem>>, vector<64x64xbf16>
    %c0_15 = arith.constant 0 : index
    %c0_16 = arith.constant 0 : index
    %20 = vector.load %arg9[%c0_15, %c0_16] : memref<64x1xf32, #tpu.memory_space<vmem>>, vector<64x1xf32>
    %cst_17 = arith.constant dense<0.000000e+00> : vector<64x256xf32>
    %21 = tpu.matmul %19, %18, %cst_17 {dimension_numbers = #tpu.dot_dimension_numbers<[1], [0], [0], [1], [0, 0, 1, 1], [], []>} : vector<64x64xbf16>, vector<64x256xbf16>, vector<64x256xf32> -> vector<64x256xf32>
    %22 = vector.broadcast %20 : vector<64x1xf32> to vector<64x256xf32>
    %23 = arith.addf %21, %22 : vector<64x256xf32>
    %cst_18 = arith.constant 0.000000e+00 : f32
    %24 = vector.broadcast %cst_18 : f32 to vector<64x256xf32>
    %25 = arith.maximumf %23, %24 : vector<64x256xf32>
    %26 = arith.truncf %25 : vector<64x256xf32> to vector<64x256xbf16>
    %c0_19 = arith.constant 0 : index
    %c0_20 = arith.constant 0 : index
    %27 = vector.load %arg10[%c0_19, %c0_20] : memref<128x64xbf16, #tpu.memory_space<vmem>>, vector<128x64xbf16>
    %c0_21 = arith.constant 0 : index
    %c0_22 = arith.constant 0 : index
    %28 = vector.load %arg11[%c0_21, %c0_22] : memref<128x1xf32, #tpu.memory_space<vmem>>, vector<128x1xf32>
    %cst_23 = arith.constant dense<0.000000e+00> : vector<128x256xf32>
    %29 = tpu.matmul %27, %26, %cst_23 {dimension_numbers = #tpu.dot_dimension_numbers<[1], [0], [0], [1], [0, 0, 1, 1], [], []>} : vector<128x64xbf16>, vector<64x256xbf16>, vector<128x256xf32> -> vector<128x256xf32>
    %30 = vector.broadcast %28 : vector<128x1xf32> to vector<128x256xf32>
    %31 = arith.addf %29, %30 : vector<128x256xf32>
    %cst_24 = arith.constant 0.000000e+00 : f32
    %32 = vector.broadcast %cst_24 : f32 to vector<128x256xf32>
    %33 = arith.maximumf %31, %32 : vector<128x256xf32>
    %34 = arith.truncf %33 : vector<128x256xf32> to vector<128x256xbf16>
    %c0_25 = arith.constant 0 : index
    %c0_26 = arith.constant 0 : index
    %35 = vector.load %arg12[%c0_25, %c0_26] : memref<128x128xbf16, #tpu.memory_space<vmem>>, vector<128x128xbf16>
    %c0_27 = arith.constant 0 : index
    %c0_28 = arith.constant 0 : index
    %36 = vector.load %arg13[%c0_27, %c0_28] : memref<128x1xf32, #tpu.memory_space<vmem>>, vector<128x1xf32>
    %cst_29 = arith.constant dense<0.000000e+00> : vector<128x256xf32>
    %37 = tpu.matmul %35, %34, %cst_29 {dimension_numbers = #tpu.dot_dimension_numbers<[1], [0], [0], [1], [0, 0, 1, 1], [], []>} : vector<128x128xbf16>, vector<128x256xbf16>, vector<128x256xf32> -> vector<128x256xf32>
    %38 = vector.broadcast %36 : vector<128x1xf32> to vector<128x256xf32>
    %39 = arith.addf %37, %38 : vector<128x256xf32>
    %cst_30 = arith.constant 0.000000e+00 : f32
    %40 = vector.broadcast %cst_30 : f32 to vector<128x256xf32>
    %41 = arith.maximumf %39, %40 : vector<128x256xf32>
    %42 = arith.truncf %41 : vector<128x256xf32> to vector<128x256xbf16>
    %c0_31 = arith.constant 0 : index
    %c0_32 = arith.constant 0 : index
    %43 = vector.load %arg14[%c0_31, %c0_32] : memref<128x128xbf16, #tpu.memory_space<vmem>>, vector<128x128xbf16>
    %c0_33 = arith.constant 0 : index
    %c0_34 = arith.constant 0 : index
    %44 = vector.load %arg15[%c0_33, %c0_34] : memref<128x1xf32, #tpu.memory_space<vmem>>, vector<128x1xf32>
    %cst_35 = arith.constant dense<0.000000e+00> : vector<128x256xf32>
    %45 = tpu.matmul %43, %42, %cst_35 {dimension_numbers = #tpu.dot_dimension_numbers<[1], [0], [0], [1], [0, 0, 1, 1], [], []>} : vector<128x128xbf16>, vector<128x256xbf16>, vector<128x256xf32> -> vector<128x256xf32>
    %46 = vector.broadcast %44 : vector<128x1xf32> to vector<128x256xf32>
    %47 = arith.addf %45, %46 : vector<128x256xf32>
    %cst_36 = arith.constant 0.000000e+00 : f32
    %48 = vector.broadcast %cst_36 : f32 to vector<128x256xf32>
    %49 = arith.maximumf %47, %48 : vector<128x256xf32>
    %50 = arith.truncf %49 : vector<128x256xf32> to vector<128x256xbf16>
    %c0_37 = arith.constant 0 : index
    %c0_38 = arith.constant 0 : index
    %51 = vector.load %arg16[%c0_37, %c0_38] : memref<1024x128xbf16, #tpu.memory_space<vmem>>, vector<1024x128xbf16>
    %c0_39 = arith.constant 0 : index
    %c0_40 = arith.constant 0 : index
    %52 = vector.load %arg17[%c0_39, %c0_40] : memref<1024x1xf32, #tpu.memory_space<vmem>>, vector<1024x1xf32>
    %cst_41 = arith.constant dense<0.000000e+00> : vector<1024x256xf32>
    %53 = tpu.matmul %51, %50, %cst_41 {dimension_numbers = #tpu.dot_dimension_numbers<[1], [0], [0], [1], [0, 0, 1, 1], [], []>} : vector<1024x128xbf16>, vector<128x256xbf16>, vector<1024x256xf32> -> vector<1024x256xf32>
    %54 = vector.broadcast %52 : vector<1024x1xf32> to vector<1024x256xf32>
    %55 = arith.addf %53, %54 : vector<1024x256xf32>
    %cst_42 = arith.constant 0.000000e+00 : f32
    %56 = vector.broadcast %cst_42 : f32 to vector<1024x256xf32>
    %57 = arith.maximumf %55, %56 : vector<1024x256xf32>
    %c0_43 = arith.constant 0 : index
    %c0_44 = arith.constant 0 : index
    %c0_45 = arith.constant 0 : index
    %58 = vector.load %arg3[%c0_43, %c0_44, %c0_45] : memref<1x256x1xf32, #tpu.memory_space<vmem>>, vector<1x256x1xf32>
    %59 = vector.shape_cast %58 : vector<1x256x1xf32> to vector<256x1xf32>
    %60 = vector.shape_cast %59 : vector<256x1xf32> to vector<256x1xf32>
    %61 = vector.broadcast %60 : vector<256x1xf32> to vector<256x256xf32>
    %c0_46 = arith.constant 0 : index
    %c0_47 = arith.constant 0 : index
    %c0_48 = arith.constant 0 : index
    %62 = vector.load %arg18[%c0_46, %c0_47, %c0_48] : memref<1x1280x256xf32, #tpu.memory_space<vmem>>, vector<1x256x256xf32>
    %63 = vector.shape_cast %62 : vector<1x256x256xf32> to vector<256x256xf32>
    %64 = vector.shape_cast %61 : vector<256x256xf32> to vector<1x256x256xf32>
    tpu.vector_store %arg18[%c0_46, %c0_47, %c0_48], %64 {strides = array<i32>} : memref<1x1280x256xf32, #tpu.memory_space<vmem>>, vector<1x256x256xf32>,
    %c0_49 = arith.constant 0 : index
    %c256 = arith.constant 256 : index
    %c0_50 = arith.constant 0 : index
    %65 = vector.load %arg18[%c0_49, %c256, %c0_50] : memref<1x1280x256xf32, #tpu.memory_space<vmem>>, vector<1x1024x256xf32>
    %66 = vector.shape_cast %65 : vector<1x1024x256xf32> to vector<1024x256xf32>
    %67 = vector.shape_cast %57 : vector<1024x256xf32> to vector<1x1024x256xf32>
    tpu.vector_store %arg18[%c0_49, %c256, %c0_50], %67 {strides = array<i32>} : memref<1x1280x256xf32, #tpu.memory_space<vmem>>, vector<1x1024x256xf32>,
    return
  }
  func.func @transform_0(%arg0: i32, %arg1: i32) -> (i32, i32, i32) {
    %c0_i32 = arith.constant 0 : i32
    %c0_i32_0 = arith.constant 0 : i32
    return %arg0, %c0_i32, %arg1 : i32, i32, i32
  }
  func.func @transform_1(%arg0: i32, %arg1: i32) -> (i32, i32, i32) {
    %c0_i32 = arith.constant 0 : i32
    %c0_i32_0 = arith.constant 0 : i32
    %c0_i32_1 = arith.constant 0 : i32
    return %arg0, %c0_i32, %c0_i32_0 : i32, i32, i32
  }
  func.func @transform_2(%arg0: i32, %arg1: i32) -> (i32, i32) {
    %c0_i32 = arith.constant 0 : i32
    %c0_i32_0 = arith.constant 0 : i32
    %c0_i32_1 = arith.constant 0 : i32
    return %c0_i32, %c0_i32_0 : i32, i32
  }
  func.func @transform_3(%arg0: i32, %arg1: i32) -> (i32, i32) {
    %c0_i32 = arith.constant 0 : i32
    %c0_i32_0 = arith.constant 0 : i32
    %c0_i32_1 = arith.constant 0 : i32
    return %c0_i32, %c0_i32_0 : i32, i32
  }
  func.func @transform_4(%arg0: i32, %arg1: i32) -> (i32, i32) {
    %c0_i32 = arith.constant 0 : i32
    %c0_i32_0 = arith.constant 0 : i32
    %c0_i32_1 = arith.constant 0 : i32
    return %c0_i32, %c0_i32_0 : i32, i32
  }
  func.func @transform_5(%arg0: i32, %arg1: i32) -> (i32, i32) {
    %c0_i32 = arith.constant 0 : i32
    %c0_i32_0 = arith.constant 0 : i32
    %c0_i32_1 = arith.constant 0 : i32
    return %c0_i32, %c0_i32_0 : i32, i32
  }
  func.func @transform_6(%arg0: i32, %arg1: i32) -> (i32, i32) {
    %c0_i32 = arith.constant 0 : i32
    %c0_i32_0 = arith.constant 0 : i32
    %c0_i32_1 = arith.constant 0 : i32
    return %c0_i32, %c0_i32_0 : i32, i32
  }
  func.func @transform_7(%arg0: i32, %arg1: i32) -> (i32, i32) {
    %c0_i32 = arith.constant 0 : i32
    %c0_i32_0 = arith.constant 0 : i32
    %c0_i32_1 = arith.constant 0 : i32
    return %c0_i32, %c0_i32_0 : i32, i32
  }
  func.func @transform_8(%arg0: i32, %arg1: i32) -> (i32, i32) {
    %c0_i32 = arith.constant 0 : i32
    %c0_i32_0 = arith.constant 0 : i32
    %c0_i32_1 = arith.constant 0 : i32
    return %c0_i32, %c0_i32_0 : i32, i32
  }
  func.func @transform_9(%arg0: i32, %arg1: i32) -> (i32, i32) {
    %c0_i32 = arith.constant 0 : i32
    %c0_i32_0 = arith.constant 0 : i32
    %c0_i32_1 = arith.constant 0 : i32
    return %c0_i32, %c0_i32_0 : i32, i32
  }
  func.func @transform_10(%arg0: i32, %arg1: i32) -> (i32, i32) {
    %c0_i32 = arith.constant 0 : i32
    %c0_i32_0 = arith.constant 0 : i32
    %c0_i32_1 = arith.constant 0 : i32
    return %c0_i32, %c0_i32_0 : i32, i32
  }
  func.func @transform_11(%arg0: i32, %arg1: i32) -> (i32, i32) {
    %c0_i32 = arith.constant 0 : i32
    %c0_i32_0 = arith.constant 0 : i32
    %c0_i32_1 = arith.constant 0 : i32
    return %c0_i32, %c0_i32_0 : i32, i32
  }
  func.func @transform_12(%arg0: i32, %arg1: i32) -> (i32, i32) {
    %c0_i32 = arith.constant 0 : i32
    %c0_i32_0 = arith.constant 0 : i32
    %c0_i32_1 = arith.constant 0 : i32
    return %c0_i32, %c0_i32_0 : i32, i32
  }
  func.func @transform_13(%arg0: i32, %arg1: i32) -> (i32, i32) {
    %c0_i32 = arith.constant 0 : i32
    %c0_i32_0 = arith.constant 0 : i32
    %c0_i32_1 = arith.constant 0 : i32
    return %c0_i32, %c0_i32_0 : i32, i32
  }
  func.func @transform_14(%arg0: i32, %arg1: i32) -> (i32, i32) {
    %c0_i32 = arith.constant 0 : i32
    %c0_i32_0 = arith.constant 0 : i32
    %c0_i32_1 = arith.constant 0 : i32
    return %c0_i32, %c0_i32_0 : i32, i32
  }
  func.func @transform_15(%arg0: i32, %arg1: i32) -> (i32, i32) {
    %c0_i32 = arith.constant 0 : i32
    %c0_i32_0 = arith.constant 0 : i32
    %c0_i32_1 = arith.constant 0 : i32
    return %c0_i32, %c0_i32_0 : i32, i32
  }
  func.func @transform_16(%arg0: i32, %arg1: i32) -> (i32, i32, i32) {
    %c0_i32 = arith.constant 0 : i32
    %c0_i32_0 = arith.constant 0 : i32
    return %arg0, %c0_i32, %arg1 : i32, i32, i32
  }
}

</mosaic_0001>

<llo_original>
// kernel: pointnetfeat_desc.2
$region0: #{pointnetfeat_desc.2}
  #allocation0 [shape = 'u32[]', space=smem, size = 0x4, offset = 0x4, fixed_abs, tag = 'smem constant byte address 0x4 - core index']
  #allocation1 [shape = 'u32[144,128]{1,0:T(1,128)}', space=vmem, size = 0x12000, scoped, tag = 'internal scratch']
  %s0 = inlined_call_operand.vmem [shape: f32[2,3,512], index: 0, kind: input, shape index: {}]
  %s1 = inlined_call_operand.hbm [shape: bf16[64,3], index: 1, kind: input, shape index: {}]
  %s2 = inlined_call_operand.hbm [shape: f32[64,1], index: 2, kind: input, shape index: {}]
  %s3 = inlined_call_operand.hbm [shape: bf16[64,64], index: 3, kind: input, shape index: {}]
  %s4 = inlined_call_operand.hbm [shape: f32[64,1], index: 4, kind: input, shape index: {}]
  %s5 = inlined_call_operand.hbm [shape: bf16[64,64], index: 5, kind: input, shape index: {}]
  %s6 = inlined_call_operand.hbm [shape: f32[64,1], index: 6, kind: input, shape index: {}]
  %s7 = inlined_call_operand.hbm [shape: bf16[128,64], index: 7, kind: input, shape index: {}]
  %s8 = inlined_call_operand.hbm [shape: f32[128,1], index: 8, kind: input, shape index: {}]
  %s9 = inlined_call_operand.hbm [shape: bf16[128,128], index: 9, kind: input, shape index: {}]
  %s10 = inlined_call_operand.hbm [shape: f32[128,1], index: 10, kind: input, shape index: {}]
  %s11 = inlined_call_operand.hbm [shape: bf16[128,128], index: 11, kind: input, shape index: {}]
  %s12 = inlined_call_operand.hbm [shape: f32[128,1], index: 12, kind: input, shape index: {}]
  %s13 = inlined_call_operand.hbm [shape: bf16[1024,128], index: 13, kind: input, shape index: {}]
  %s14 = inlined_call_operand.hbm [shape: f32[1024,1], index: 14, kind: input, shape index: {}]
  %s15 = inlined_call_operand.vmem [shape: f32[2,1024,1], index: 15, kind: output, shape index: {}]
  %s16 = sld [smem:[#allocation0]]
  $region153: #{pointnetfeat_desc.2} parent=0
    _
  %s18 = ssub.s32 1, %s16
  %s19 = scalar_select 0, %s18, %s16
  $region1: #{pointnetfeat_desc.2} parent=0
    #allocation2 [shape = 'u8[16384]{0}', space=vmem, size = 0x4000, scoped, tag = 'input window, operand 1, single buffered']
    #allocation3 [shape = 's32[2]{0}', space=sflag, size = 0x8, scoped, tag = 'scoped memory for pointnetfeat_desc.2']
    #allocation4 [shape = 'u8[32768]{0}', space=vmem, size = 0x8000, scoped, tag = 'input window, operand 2, single buffered']
    #allocation5 [shape = 's32[1]{0}', space=sflag, size = 0x4, scoped, tag = 'scoped memory for pointnetfeat_desc.2']
    #allocation6 [shape = 'u8[16384]{0}', space=vmem, size = 0x4000, scoped, tag = 'input window, operand 3, single buffered']
    #allocation7 [shape = 'u8[32768]{0}', space=vmem, size = 0x8000, scoped, tag = 'input window, operand 4, single buffered']
    #allocation8 [shape = 's32[1]{0}', space=sflag, size = 0x4, scoped, tag = 'scoped memory for pointnetfeat_desc.2']
    #allocation9 [shape = 'u8[16384]{0}', space=vmem, size = 0x4000, scoped, tag = 'input window, operand 5, single buffered']
    #allocation10 [shape = 'u8[32768]{0}', space=vmem, size = 0x8000, scoped, tag = 'input window, operand 6, single buffered']
    #allocation11 [shape = 's32[1]{0}', space=sflag, size = 0x4, scoped, tag = 'scoped memory for pointnetfeat_desc.2']
    #allocation12 [shape = 'u8[32768]{0}', space=vmem, size = 0x8000, scoped, tag = 'input window, operand 7, single buffered']
    #allocation13 [shape = 'u8[65536]{0}', space=vmem, size = 0x10000, scoped, tag = 'input window, operand 8, single buffered']
    #allocation14 [shape = 's32[1]{0}', space=sflag, size = 0x4, scoped, tag = 'scoped memory for pointnetfeat_desc.2']
    #allocation15 [shape = 'u8[32768]{0}', space=vmem, size = 0x8000, scoped, tag = 'input window, operand 9, single buffered']
    #allocation16 [shape = 'u8[65536]{0}', space=vmem, size = 0x10000, scoped, tag = 'input window, operand 10, single buffered']
    #allocation17 [shape = 's32[1]{0}', space=sflag, size = 0x4, scoped, tag = 'scoped memory for pointnetfeat_desc.2']
    #allocation18 [shape = 'u8[32768]{0}', space=vmem, size = 0x8000, scoped, tag = 'input window, operand 11, single buffered']
    #allocation19 [shape = 'u8[65536]{0}', space=vmem, size = 0x10000, scoped, tag = 'input window, operand 12, single buffered']
    #allocation20 [shape = 's32[1]{0}', space=sflag, size = 0x4, scoped, tag = 'scoped memory for pointnetfeat_desc.2']
    #allocation21 [shape = 'u8[262144]{0}', space=vmem, size = 0x40000, scoped, tag = 'input window, operand 13, single buffered']
    #allocation22 [shape = 'u8[524288]{0}', space=vmem, size = 0x80000, scoped, tag = 'input window, operand 14, single buffered']
    #allocation23 [shape = 's32[1]{0}', space=sflag, size = 0x4, scoped, tag = 'scoped memory for pointnetfeat_desc.2']
    %20 = vsyncpa [#allocation3], 0
    %21 = vsyncpa [#allocation5], 0
    %22 = vsyncpa [#allocation8], 0
    %23 = vsyncpa [#allocation11], 0
    %24 = vsyncpa [#allocation14], 0
    %25 = vsyncpa [#allocation17], 0
    %26 = vsyncpa [#allocation20], 0
    %27 = vsyncpa [#allocation23], 0
    loop: start=0, step=1, limit=6
    $region2: #{pointnetfeat_desc.2} parent=1 // loop_pre_header
      _
    $region3: #{pointnetfeat_desc.2} parent=1 // loop_header
      %s29 = sphi 0, %s33
      %p30 = scmp.ge.s32.totalorder %s29, 6
      %s36 = sphi 0, %s48
      %s37 = sphi 0, %s44
      %s38 = sphi 0, %s36
      %s39 = sphi 0, %s37
      %s40 = sphi 0, %s38
      %s41 = sphi 0, %s39
      %s53 = sphi 0, %s55
      %s56 = sphi 0, %s53
      %s57 = sphi 0, %s56
      %s73 = sphi 0, %s57
      %s77 = sphi 0, %s77
      %s79 = sphi 0, %s77
      %s80 = sphi 0, %s79
      %s94 = sphi 0, %s80
      %s98 = sphi 0, %s98
      %s100 = sphi 0, %s98
      %s101 = sphi 0, %s100
      %s115 = sphi 0, %s101
      %s119 = sphi 0, %s119
      %s121 = sphi 0, %s119
      %s122 = sphi 0, %s121
      %s136 = sphi 0, %s122
      %s140 = sphi 0, %s140
      %s142 = sphi 0, %s140
      %s143 = sphi 0, %s142
      %s157 = sphi 0, %s143
      %s161 = sphi 0, %s161
      %s163 = sphi 0, %s161
      %s164 = sphi 0, %s163
      %s178 = sphi 0, %s164
      %s182 = sphi 0, %s182
      %s184 = sphi 0, %s182
      %s185 = sphi 0, %s184
      %s199 = sphi 0, %s185
      %s203 = sphi 0, %s203
      %s205 = sphi 0, %s203
      %s206 = sphi 0, %s205
      %s220 = sphi 0, %s206
      %s224 = sphi 0, %s224
      %s226 = sphi 0, %s224
      %s227 = sphi 0, %s226
      %s241 = sphi 0, %s227
      %s245 = sphi 0, %s245
      %s247 = sphi 0, %s245
      %s248 = sphi 0, %s247
      %s262 = sphi 0, %s248
      %s266 = sphi 0, %s266
      %s268 = sphi 0, %s266
      %s269 = sphi 0, %s268
      %s283 = sphi 0, %s269
      %s287 = sphi 0, %s287
      %s289 = sphi 0, %s287
      %s290 = sphi 0, %s289
      %s304 = sphi 0, %s290
      %s308 = sphi 0, %s308
      %s310 = sphi 0, %s308
      %s311 = sphi 0, %s310
      %s325 = sphi 0, %s311
      %s329 = sphi 0, %s329
      %s331 = sphi 0, %s329
      %s332 = sphi 0, %s331
      %s346 = sphi 0, %s332
      %s350 = sphi 0, %s350
      %s352 = sphi 0, %s350
      %s353 = sphi 0, %s352
      %s367 = sphi 0, %s353
      %s373 = sphi 0, %s375
      %s376 = sphi 0, %s373
      %s377 = sphi 0, %s376
      %s393 = sphi 0, %s377
    $region4: #{pointnetfeat_desc.2} parent=1 // loop_header_branch
      %32 = sbr.rel (%p30) target = $region8
    $region5: #{pointnetfeat_desc.2} parent=1 // loop_body
      %s34 = ssub.s32 %s29, 1
      %s35 = ssub.s32 %s29, 2
      %s42 = sadd.s32 1, %s37
      %p43 = scmp.ge.s32.totalorder %s42, 2
      %s44 = scalar_select %p43, 0, %s42
      %s45 = sadd.s32 1, %s36
      %s46 = scalar_select %p43, %s45, %s36
      %p47 = scmp.ge.s32.totalorder %s46, 2
      %s48 = scalar_select %p47, 0, %s46
      %s49 = ssub.s32 %s36, %s48
      %s50 = ssub.s32 %s37, %s44
      %s51 = sor.u32 %s49, %s50
      %p52 = scmp.eq.s32.totalorder %s51, 0
      %s54 = sadd.s32 %s53, 1
      %s55 = scalar_select %p52, %s53, %s54
      %p58 = pneg %p52
      %p59 = scmp.eq.s32.totalorder %s29, 3
      %p60 = por %p58, %p59
      %p61 = scmp.ne.s32.totalorder %s53, %s56
      %p62 = scmp.eq.s32.totalorder %s29, 0
      %p63 = por %p61, %p62
      %p64 = scmp.ne.s32.totalorder %s53, %s56
      %p65 = scmp.eq.s32.totalorder %s34, 3
      %p66 = por %p64, %p65
      %p67 = scmp.ne.s32.totalorder %s56, %s57
      %p68 = scmp.eq.s32.totalorder %s34, 0
      %p69 = por %p67, %p68
      %p70 = scmp.ne.s32.totalorder %s56, %s57
      %p71 = scmp.eq.s32.totalorder %s35, 3
      %p72 = por %p70, %p71
      %p74 = scmp.ne.s32.totalorder %s57, %s73
      %p75 = scmp.eq.s32.totalorder %s35, 0
      %p76 = por %p74, %p75
      %s78 = sadd.s32 %s77, 1
      %p81 = scmp.eq.s32.totalorder %s29, 3
      %p82 = scmp.ne.s32.totalorder %s77, %s79
      %p83 = scmp.eq.s32.totalorder %s29, 0
      %p84 = por %p82, %p83
      %p85 = scmp.ne.s32.totalorder %s77, %s79
      %p86 = scmp.eq.s32.totalorder %s34, 3
      %p87 = por %p85, %p86
      %p88 = scmp.ne.s32.totalorder %s79, %s80
      %p89 = scmp.eq.s32.totalorder %s34, 0
      %p90 = por %p88, %p89
      %p91 = scmp.ne.s32.totalorder %s79, %s80
      %p92 = scmp.eq.s32.totalorder %s35, 3
      %p93 = por %p91, %p92
      %p95 = scmp.ne.s32.totalorder %s80, %s94
      %p96 = scmp.eq.s32.totalorder %s35, 0
      %p97 = por %p95, %p96
      %s99 = sadd.s32 %s98, 1
      %p102 = scmp.eq.s32.totalorder %s29, 3
      %p103 = scmp.ne.s32.totalorder %s98, %s100
      %p104 = scmp.eq.s32.totalorder %s29, 0
      %p105 = por %p103, %p104
      %p106 = scmp.ne.s32.totalorder %s98, %s100
      %p107 = scmp.eq.s32.totalorder %s34, 3
      %p108 = por %p106, %p107
      %p109 = scmp.ne.s32.totalorder %s100, %s101
      %p110 = scmp.eq.s32.totalorder %s34, 0
      %p111 = por %p109, %p110
      %p112 = scmp.ne.s32.totalorder %s100, %s101
      %p113 = scmp.eq.s32.totalorder %s35, 3
      %p114 = por %p112, %p113
      %p116 = scmp.ne.s32.totalorder %s101, %s115
      %p117 = scmp.eq.s32.totalorder %s35, 0
      %p118 = por %p116, %p117
      %s120 = sadd.s32 %s119, 1
      %p123 = scmp.eq.s32.totalorder %s29, 3
      %p124 = scmp.ne.s32.totalorder %s119, %s121
      %p125 = scmp.eq.s32.totalorder %s29, 0
      %p126 = por %p124, %p125
      %p127 = scmp.ne.s32.totalorder %s119, %s121
      %p128 = scmp.eq.s32.totalorder %s34, 3
      %p129 = por %p127, %p128
      %p130 = scmp.ne.s32.totalorder %s121, %s122
      %p131 = scmp.eq.s32.totalorder %s34, 0
      %p132 = por %p130, %p131
      %p133 = scmp.ne.s32.totalorder %s121, %s122
      %p134 = scmp.eq.s32.totalorder %s35, 3
      %p135 = por %p133, %p134
      %p137 = scmp.ne.s32.totalorder %s122, %s136
      %p138 = scmp.eq.s32.totalorder %s35, 0
      %p139 = por %p137, %p138
      %s141 = sadd.s32 %s140, 1
      %p144 = scmp.eq.s32.totalorder %s29, 3
      %p145 = scmp.ne.s32.totalorder %s140, %s142
      %p146 = scmp.eq.s32.totalorder %s29, 0
      %p147 = por %p145, %p146
      %p148 = scmp.ne.s32.totalorder %s140, %s142
      %p149 = scmp.eq.s32.totalorder %s34, 3
      %p150 = por %p148, %p149
      %p151 = scmp.ne.s32.totalorder %s142, %s143
      %p152 = scmp.eq.s32.totalorder %s34, 0
      %p153 = por %p151, %p152
      %p154 = scmp.ne.s32.totalorder %s142, %s143
      %p155 = scmp.eq.s32.totalorder %s35, 3
      %p156 = por %p154, %p155
      %p158 = scmp.ne.s32.totalorder %s143, %s157
      %p159 = scmp.eq.s32.totalorder %s35, 0
      %p160 = por %p158, %p159
      %s162 = sadd.s32 %s161, 1
      %p165 = scmp.eq.s32.totalorder %s29, 3
      %p166 = scmp.ne.s32.totalorder %s161, %s163
      %p167 = scmp.eq.s32.totalorder %s29, 0
      %p168 = por %p166, %p167
      %p169 = scmp.ne.s32.totalorder %s161, %s163
      %p170 = scmp.eq.s32.totalorder %s34, 3
      %p171 = por %p169, %p170
      %p172 = scmp.ne.s32.totalorder %s163, %s164
      %p173 = scmp.eq.s32.totalorder %s34, 0
      %p174 = por %p172, %p173
      %p175 = scmp.ne.s32.totalorder %s163, %s164
      %p176 = scmp.eq.s32.totalorder %s35, 3
      %p177 = por %p175, %p176
      %p179 = scmp.ne.s32.totalorder %s164, %s178
      %p180 = scmp.eq.s32.totalorder %s35, 0
      %p181 = por %p179, %p180
      %s183 = sadd.s32 %s182, 1
      %p186 = scmp.eq.s32.totalorder %s29, 3
      %p187 = scmp.ne.s32.totalorder %s182, %s184
      %p188 = scmp.eq.s32.totalorder %s29, 0
      %p189 = por %p187, %p188
      %p190 = scmp.ne.s32.totalorder %s182, %s184
      %p191 = scmp.eq.s32.totalorder %s34, 3
      %p192 = por %p190, %p191
      %p193 = scmp.ne.s32.totalorder %s184, %s185
      %p194 = scmp.eq.s32.totalorder %s34, 0
      %p195 = por %p193, %p194
      %p196 = scmp.ne.s32.totalorder %s184, %s185
      %p197 = scmp.eq.s32.totalorder %s35, 3
      %p198 = por %p196, %p197
      %p200 = scmp.ne.s32.totalorder %s185, %s199
      %p201 = scmp.eq.s32.totalorder %s35, 0
      %p202 = por %p200, %p201
      %s204 = sadd.s32 %s203, 1
      %p207 = scmp.eq.s32.totalorder %s29, 3
      %p208 = scmp.ne.s32.totalorder %s203, %s205
      %p209 = scmp.eq.s32.totalorder %s29, 0
      %p210 = por %p208, %p209
      %p211 = scmp.ne.s32.totalorder %s203, %s205
      %p212 = scmp.eq.s32.totalorder %s34, 3
      %p213 = por %p211, %p212
      %p214 = scmp.ne.s32.totalorder %s205, %s206
      %p215 = scmp.eq.s32.totalorder %s34, 0
      %p216 = por %p214, %p215
      %p217 = scmp.ne.s32.totalorder %s205, %s206
      %p218 = scmp.eq.s32.totalorder %s35, 3
      %p219 = por %p217, %p218
      %p221 = scmp.ne.s32.totalorder %s206, %s220
      %p222 = scmp.eq.s32.totalorder %s35, 0
      %p223 = por %p221, %p222
      %s225 = sadd.s32 %s224, 1
      %p228 = scmp.eq.s32.totalorder %s29, 3
      %p229 = scmp.ne.s32.totalorder %s224, %s226
      %p230 = scmp.eq.s32.totalorder %s29, 0
      %p231 = por %p229, %p230
      %p232 = scmp.ne.s32.totalorder %s224, %s226
      %p233 = scmp.eq.s32.totalorder %s34, 3
      %p234 = por %p232, %p233
      %p235 = scmp.ne.s32.totalorder %s226, %s227
      %p236 = scmp.eq.s32.totalorder %s34, 0
      %p237 = por %p235, %p236
      %p238 = scmp.ne.s32.totalorder %s226, %s227
      %p239 = scmp.eq.s32.totalorder %s35, 3
      %p240 = por %p238, %p239
      %p242 = scmp.ne.s32.totalorder %s227, %s241
      %p243 = scmp.eq.s32.totalorder %s35, 0
      %p244 = por %p242, %p243
      %s246 = sadd.s32 %s245, 1
      %p249 = scmp.eq.s32.totalorder %s29, 3
      %p250 = scmp.ne.s32.totalorder %s245, %s247
      %p251 = scmp.eq.s32.totalorder %s29, 0
      %p252 = por %p250, %p251
      %p253 = scmp.ne.s32.totalorder %s245, %s247
      %p254 = scmp.eq.s32.totalorder %s34, 3
      %p255 = por %p253, %p254
      %p256 = scmp.ne.s32.totalorder %s247, %s248
      %p257 = scmp.eq.s32.totalorder %s34, 0
      %p258 = por %p256, %p257
      %p259 = scmp.ne.s32.totalorder %s247, %s248
      %p260 = scmp.eq.s32.totalorder %s35, 3
      %p261 = por %p259, %p260
      %p263 = scmp.ne.s32.totalorder %s248, %s262
      %p264 = scmp.eq.s32.totalorder %s35, 0
      %p265 = por %p263, %p264
      %s267 = sadd.s32 %s266, 1
      %p270 = scmp.eq.s32.totalorder %s29, 3
      %p271 = scmp.ne.s32.totalorder %s266, %s268
      %p272 = scmp.eq.s32.totalorder %s29, 0
      %p273 = por %p271, %p272
      %p274 = scmp.ne.s32.totalorder %s266, %s268
      %p275 = scmp.eq.s32.totalorder %s34, 3
      %p276 = por %p274, %p275
      %p277 = scmp.ne.s32.totalorder %s268, %s269
      %p278 = scmp.eq.s32.totalorder %s34, 0
      %p279 = por %p277, %p278
      %p280 = scmp.ne.s32.totalorder %s268, %s269
      %p281 = scmp.eq.s32.totalorder %s35, 3
      %p282 = por %p280, %p281
      %p284 = scmp.ne.s32.totalorder %s269, %s283
      %p285 = scmp.eq.s32.totalorder %s35, 0
      %p286 = por %p284, %p285
      %s288 = sadd.s32 %s287, 1
      %p291 = scmp.eq.s32.totalorder %s29, 3
      %p292 = scmp.ne.s32.totalorder %s287, %s289
      %p293 = scmp.eq.s32.totalorder %s29, 0
      %p294 = por %p292, %p293
      %p295 = scmp.ne.s32.totalorder %s287, %s289
      %p296 = scmp.eq.s32.totalorder %s34, 3
      %p297 = por %p295, %p296
      %p298 = scmp.ne.s32.totalorder %s289, %s290
      %p299 = scmp.eq.s32.totalorder %s34, 0
      %p300 = por %p298, %p299
      %p301 = scmp.ne.s32.totalorder %s289, %s290
      %p302 = scmp.eq.s32.totalorder %s35, 3
      %p303 = por %p301, %p302
      %p305 = scmp.ne.s32.totalorder %s290, %s304
      %p306 = scmp.eq.s32.totalorder %s35, 0
      %p307 = por %p305, %p306
      %s309 = sadd.s32 %s308, 1
      %p312 = scmp.eq.s32.totalorder %s29, 3
      %p313 = scmp.ne.s32.totalorder %s308, %s310
      %p314 = scmp.eq.s32.totalorder %s29, 0
      %p315 = por %p313, %p314
      %p316 = scmp.ne.s32.totalorder %s308, %s310
      %p317 = scmp.eq.s32.totalorder %s34, 3
      %p318 = por %p316, %p317
      %p319 = scmp.ne.s32.totalorder %s310, %s311
      %p320 = scmp.eq.s32.totalorder %s34, 0
      %p321 = por %p319, %p320
      %p322 = scmp.ne.s32.totalorder %s310, %s311
      %p323 = scmp.eq.s32.totalorder %s35, 3
      %p324 = por %p322, %p323
      %p326 = scmp.ne.s32.totalorder %s311, %s325
      %p327 = scmp.eq.s32.totalorder %s35, 0
      %p328 = por %p326, %p327
      %s330 = sadd.s32 %s329, 1
      %p333 = scmp.eq.s32.totalorder %s29, 3
      %p334 = scmp.ne.s32.totalorder %s329, %s331
      %p335 = scmp.eq.s32.totalorder %s29, 0
      %p336 = por %p334, %p335
      %p337 = scmp.ne.s32.totalorder %s329, %s331
      %p338 = scmp.eq.s32.totalorder %s34, 3
      %p339 = por %p337, %p338
      %p340 = scmp.ne.s32.totalorder %s331, %s332
      %p341 = scmp.eq.s32.totalorder %s34, 0
      %p342 = por %p340, %p341
      %p343 = scmp.ne.s32.totalorder %s331, %s332
      %p344 = scmp.eq.s32.totalorder %s35, 3
      %p345 = por %p343, %p344
      %p347 = scmp.ne.s32.totalorder %s332, %s346
      %p348 = scmp.eq.s32.totalorder %s35, 0
      %p349 = por %p347, %p348
      %s351 = sadd.s32 %s350, 1
      %p354 = scmp.eq.s32.totalorder %s29, 3
      %p355 = scmp.ne.s32.totalorder %s350, %s352
      %p356 = scmp.eq.s32.totalorder %s29, 0
      %p357 = por %p355, %p356
      %p358 = scmp.ne.s32.totalorder %s350, %s352
      %p359 = scmp.eq.s32.totalorder %s34, 3
      %p360 = por %p358, %p359
      %p361 = scmp.ne.s32.totalorder %s352, %s353
      %p362 = scmp.eq.s32.totalorder %s34, 0
      %p363 = por %p361, %p362
      %p364 = scmp.ne.s32.totalorder %s352, %s353
      %p365 = scmp.eq.s32.totalorder %s35, 3
      %p366 = por %p364, %p365
      %p368 = scmp.ne.s32.totalorder %s353, %s367
      %p369 = scmp.eq.s32.totalorder %s35, 0
      %p370 = por %p368, %p369
      %s371 = ssub.s32 %s36, %s48
      %p372 = scmp.eq.s32.totalorder %s371, 0
      %s374 = sadd.s32 %s373, 1
      %s375 = scalar_select %p372, %s373, %s374
      %p378 = pneg %p372
      %p379 = scmp.eq.s32.totalorder %s29, 3
      %p380 = por %p378, %p379
      %p381 = scmp.ne.s32.totalorder %s373, %s376
      %p382 = scmp.eq.s32.totalorder %s29, 0
      %p383 = por %p381, %p382
      %p384 = scmp.ne.s32.totalorder %s373, %s376
      %p385 = scmp.eq.s32.totalorder %s34, 3
      %p386 = por %p384, %p385
      %p387 = scmp.ne.s32.totalorder %s376, %s377
      %p388 = scmp.eq.s32.totalorder %s34, 0
      %p389 = por %p387, %p388
      %p390 = scmp.ne.s32.totalorder %s376, %s377
      %p391 = scmp.eq.s32.totalorder %s35, 3
      %p392 = por %p390, %p391
      %p394 = scmp.ne.s32.totalorder %s377, %s393
      %p395 = scmp.eq.s32.totalorder %s35, 0
      %p396 = por %p394, %p395
      %p397 = scmp.le.s32.totalorder 1, %s29
      %p398 = scmp.lt.s32.totalorder %s29, 5
      %p399 = pnand %p397, %p398
      %p400 = pneg %p399
      // Predicated region
      $region9: #{pointnetfeat_desc.2} parent=5 // pred_check
        _
      $region10: #{pointnetfeat_desc.2} parent=5 // pred_check_branch
        %402 = sbr.rel (%p399) target = $region12
      $region11: #{pointnetfeat_desc.2} parent=5 // pred_region
        %s403 = ssub.s32 %s29, 1
        // Predicated region
        $region13: #{pointnetfeat_desc.2} parent=11 // pred_check
          %p404 = pneg %p90
        $region14: #{pointnetfeat_desc.2} parent=11 // pred_check_branch
          %406 = sbr.rel (%p404) target = $region16
        $region15: #{pointnetfeat_desc.2} parent=11 // pred_region
          %s408 = ssub.s32 512, 512
          %409 = vsyncadd [#allocation3], %s408
          %s410 = sshll.u32 [#allocation2], 4
          %s411 = int_to_ptr.vmem [resolvable:$true] %s410
          %416 = dma.hbm_to_vmem [thread:$0]  %s1, 512, %s411, [#allocation3], 64, 64, 4
        $region16: #{pointnetfeat_desc.2} parent=11 // pred_fallthru
          _
        // Predicated region
        $region17: #{pointnetfeat_desc.2} parent=11 // pred_check
          %p417 = pneg %p111
        $region18: #{pointnetfeat_desc.2} parent=11 // pred_check_branch
          %419 = sbr.rel (%p417) target = $region20
        $region19: #{pointnetfeat_desc.2} parent=11 // pred_region
          %s421 = ssub.s32 1024, 1024
          %422 = vsyncadd [#allocation5], %s421
          %s423 = sshll.u32 [#allocation4], 4
          %s424 = int_to_ptr.vmem [resolvable:$true] %s423
          %429 = dma.hbm_to_vmem [thread:$0]  %s2, 1024, %s424, [#allocation5], 128, 128, 8
        $region20: #{pointnetfeat_desc.2} parent=11 // pred_fallthru
          _
        // Predicated region
        $region21: #{pointnetfeat_desc.2} parent=11 // pred_check
          %p430 = pneg %p132
        $region22: #{pointnetfeat_desc.2} parent=11 // pred_check_branch
          %432 = sbr.rel (%p430) target = $region24
        $region23: #{pointnetfeat_desc.2} parent=11 // pred_region
          %s434 = ssub.s32 512, 512
          %435 = vsyncadd [#allocation5], %s434
          %s436 = sshll.u32 [#allocation6], 4
          %s437 = int_to_ptr.vmem [resolvable:$true] %s436
          %442 = dma.hbm_to_vmem [thread:$0]  %s3, 512, %s437, [#allocation5], 64, 64, 4
        $region24: #{pointnetfeat_desc.2} parent=11 // pred_fallthru
          _
        // Predicated region
        $region25: #{pointnetfeat_desc.2} parent=11 // pred_check
          %p443 = pneg %p153
        $region26: #{pointnetfeat_desc.2} parent=11 // pred_check_branch
          %445 = sbr.rel (%p443) target = $region28
        $region27: #{pointnetfeat_desc.2} parent=11 // pred_region
          %s447 = ssub.s32 1024, 1024
          %448 = vsyncadd [#allocation8], %s447
          %s449 = sshll.u32 [#allocation7], 4
          %s450 = int_to_ptr.vmem [resolvable:$true] %s449
          %455 = dma.hbm_to_vmem [thread:$0]  %s4, 1024, %s450, [#allocation8], 128, 128, 8
        $region28: #{pointnetfeat_desc.2} parent=11 // pred_fallthru
          _
        // Predicated region
        $region29: #{pointnetfeat_desc.2} parent=11 // pred_check
          %p456 = pneg %p174
        $region30: #{pointnetfeat_desc.2} parent=11 // pred_check_branch
          %458 = sbr.rel (%p456) target = $region32
        $region31: #{pointnetfeat_desc.2} parent=11 // pred_region
          %s460 = ssub.s32 512, 512
          %461 = vsyncadd [#allocation8], %s460
          %s462 = sshll.u32 [#allocation9], 4
          %s463 = int_to_ptr.vmem [resolvable:$true] %s462
          %468 = dma.hbm_to_vmem [thread:$0]  %s5, 512, %s463, [#allocation8], 64, 64, 4
        $region32: #{pointnetfeat_desc.2} parent=11 // pred_fallthru
          _
        // Predicated region
        $region33: #{pointnetfeat_desc.2} parent=11 // pred_check
          %p469 = pneg %p195
        $region34: #{pointnetfeat_desc.2} parent=11 // pred_check_branch
          %471 = sbr.rel (%p469) target = $region36
        $region35: #{pointnetfeat_desc.2} parent=11 // pred_region
          %s473 = ssub.s32 1024, 1024
          %474 = vsyncadd [#allocation11], %s473
          %s475 = sshll.u32 [#allocation10], 4
          %s476 = int_to_ptr.vmem [resolvable:$true] %s475
          %481 = dma.hbm_to_vmem [thread:$0]  %s6, 1024, %s476, [#allocation11], 128, 128, 8
        $region36: #{pointnetfeat_desc.2} parent=11 // pred_fallthru
          _
        // Predicated region
        $region37: #{pointnetfeat_desc.2} parent=11 // pred_check
          %p482 = pneg %p216
        $region38: #{pointnetfeat_desc.2} parent=11 // pred_check_branch
          %484 = sbr.rel (%p482) target = $region40
        $region39: #{pointnetfeat_desc.2} parent=11 // pred_region
          %s486 = ssub.s32 1024, 1024
          %487 = vsyncadd [#allocation11], %s486
          %s488 = sshll.u32 [#allocation12], 4
          %s489 = int_to_ptr.vmem [resolvable:$true] %s488
          %494 = dma.hbm_to_vmem [thread:$0]  %s7, 1024, %s489, [#allocation11], 64, 64, 4
        $region40: #{pointnetfeat_desc.2} parent=11 // pred_fallthru
          _
        // Predicated region
        $region41: #{pointnetfeat_desc.2} parent=11 // pred_check
          %p495 = pneg %p237
        $region42: #{pointnetfeat_desc.2} parent=11 // pred_check_branch
          %497 = sbr.rel (%p495) target = $region44
        $region43: #{pointnetfeat_desc.2} parent=11 // pred_region
          %s499 = ssub.s32 2048, 2048
          %500 = vsyncadd [#allocation14], %s499
          %s501 = sshll.u32 [#allocation13], 4
          %s502 = int_to_ptr.vmem [resolvable:$true] %s501
          %507 = dma.hbm_to_vmem [thread:$0]  %s8, 2048, %s502, [#allocation14], 128, 128, 8
        $region44: #{pointnetfeat_desc.2} parent=11 // pred_fallthru
          _
        // Predicated region
        $region45: #{pointnetfeat_desc.2} parent=11 // pred_check
          %p508 = pneg %p258
        $region46: #{pointnetfeat_desc.2} parent=11 // pred_check_branch
          %510 = sbr.rel (%p508) target = $region48
        $region47: #{pointnetfeat_desc.2} parent=11 // pred_region
          %s512 = ssub.s32 1024, 1024
          %513 = vsyncadd [#allocation14], %s512
          %s514 = sshll.u32 [#allocation15], 4
          %s515 = int_to_ptr.vmem [resolvable:$true] %s514
          %520 = dma.hbm_to_vmem [thread:$0]  %s9, 1024, %s515, [#allocation14], 64, 64, 4
        $region48: #{pointnetfeat_desc.2} parent=11 // pred_fallthru
          _
        // Predicated region
        $region49: #{pointnetfeat_desc.2} parent=11 // pred_check
          %p521 = pneg %p279
        $region50: #{pointnetfeat_desc.2} parent=11 // pred_check_branch
          %523 = sbr.rel (%p521) target = $region52
        $region51: #{pointnetfeat_desc.2} parent=11 // pred_region
          %s525 = ssub.s32 2048, 2048
          %526 = vsyncadd [#allocation17], %s525
          %s527 = sshll.u32 [#allocation16], 4
          %s528 = int_to_ptr.vmem [resolvable:$true] %s527
          %533 = dma.hbm_to_vmem [thread:$0]  %s10, 2048, %s528, [#allocation17], 128, 128, 8
        $region52: #{pointnetfeat_desc.2} parent=11 // pred_fallthru
          _
        // Predicated region
        $region53: #{pointnetfeat_desc.2} parent=11 // pred_check
          %p534 = pneg %p300
        $region54: #{pointnetfeat_desc.2} parent=11 // pred_check_branch
          %536 = sbr.rel (%p534) target = $region56
        $region55: #{pointnetfeat_desc.2} parent=11 // pred_region
          %s538 = ssub.s32 1024, 1024
          %539 = vsyncadd [#allocation17], %s538
          %s540 = sshll.u32 [#allocation18], 4
          %s541 = int_to_ptr.vmem [resolvable:$true] %s540
          %546 = dma.hbm_to_vmem [thread:$0]  %s11, 1024, %s541, [#allocation17], 64, 64, 4
        $region56: #{pointnetfeat_desc.2} parent=11 // pred_fallthru
          _
        // Predicated region
        $region57: #{pointnetfeat_desc.2} parent=11 // pred_check
          %p547 = pneg %p321
        $region58: #{pointnetfeat_desc.2} parent=11 // pred_check_branch
          %549 = sbr.rel (%p547) target = $region60
        $region59: #{pointnetfeat_desc.2} parent=11 // pred_region
          %s551 = ssub.s32 2048, 2048
          %552 = vsyncadd [#allocation20], %s551
          %s553 = sshll.u32 [#allocation19], 4
          %s554 = int_to_ptr.vmem [resolvable:$true] %s553
          %559 = dma.hbm_to_vmem [thread:$0]  %s12, 2048, %s554, [#allocation20], 128, 128, 8
        $region60: #{pointnetfeat_desc.2} parent=11 // pred_fallthru
          _
        // Predicated region
        $region61: #{pointnetfeat_desc.2} parent=11 // pred_check
          %p560 = pneg %p342
        $region62: #{pointnetfeat_desc.2} parent=11 // pred_check_branch
          %562 = sbr.rel (%p560) target = $region64
        $region63: #{pointnetfeat_desc.2} parent=11 // pred_region
          %s564 = ssub.s32 8192, 8192
          %565 = vsyncadd [#allocation20], %s564
          %s566 = sshll.u32 [#allocation21], 4
          %s567 = int_to_ptr.vmem [resolvable:$true] %s566
          %572 = dma.hbm_to_vmem [thread:$0]  %s13, 8192, %s567, [#allocation20], 64, 64, 4
        $region64: #{pointnetfeat_desc.2} parent=11 // pred_fallthru
          _
        // Predicated region
        $region65: #{pointnetfeat_desc.2} parent=11 // pred_check
          %p573 = pneg %p363
        $region66: #{pointnetfeat_desc.2} parent=11 // pred_check_branch
          %575 = sbr.rel (%p573) target = $region68
        $region67: #{pointnetfeat_desc.2} parent=11 // pred_region
          %s577 = ssub.s32 16384, 16384
          %578 = vsyncadd [#allocation23], %s577
          %s579 = sshll.u32 [#allocation22], 4
          %s580 = int_to_ptr.vmem [resolvable:$true] %s579
          %585 = dma.hbm_to_vmem [thread:$0]  %s14, 16384, %s580, [#allocation23], 128, 128, 8
        $region68: #{pointnetfeat_desc.2} parent=11 // pred_fallthru
          _
      $region12: #{pointnetfeat_desc.2} parent=5 // pred_fallthru
        _
      %p586 = scmp.lt.s32.totalorder %s29, 4
      // Predicated region
      $region69: #{pointnetfeat_desc.2} parent=5 // pred_check
        %p587 = pneg %p586
      $region70: #{pointnetfeat_desc.2} parent=5 // pred_check_branch
        %589 = sbr.rel (%p587) target = $region72
      $region71: #{pointnetfeat_desc.2} parent=5 // pred_region
        // Predicated region
        $region73: #{pointnetfeat_desc.2} parent=71 // pred_check
          %p590 = pneg %p63
        $region74: #{pointnetfeat_desc.2} parent=71 // pred_check_branch
          %592 = sbr.rel (%p590) target = $region76
        $region75: #{pointnetfeat_desc.2} parent=71 // pred_region
          %s593 = smul.u32 2, %s37
          %p594 = scmp.lt.s32.totalorder %s36, 1
          %s595 = scalar_select %p594, %s36, 1
          %p596 = scmp.lt.s32.totalorder %s593, 3
          %s597 = scalar_select %p596, %s593, 3
          %s598 = smul.addr %s595, 4
          %s599 = sadd.s32 %s597, %s598
          %s600 = smul.addr %s599, 4
          %s601 = scalar_lea.vmem %s0, %s600
          %s602 = smul.u32 2, %s37
        $region76: #{pointnetfeat_desc.2} parent=71 // pred_fallthru
          _
      $region72: #{pointnetfeat_desc.2} parent=5 // pred_fallthru
        _
      %p603 = scmp.le.s32.totalorder 1, %s29
      %p604 = scmp.lt.s32.totalorder %s29, 5
      %p605 = pnand %p603, %p604
      %p606 = pneg %p605
      // Predicated region
      $region77: #{pointnetfeat_desc.2} parent=5 // pred_check
        _
      $region78: #{pointnetfeat_desc.2} parent=5 // pred_check_branch
        %608 = sbr.rel (%p605) target = $region80
      $region79: #{pointnetfeat_desc.2} parent=5 // pred_region
        %s609 = ssub.s32 %s29, 1
        // Predicated region
        $region81: #{pointnetfeat_desc.2} parent=79 // pred_check
          %p610 = pneg %p90
        $region82: #{pointnetfeat_desc.2} parent=79 // pred_check_branch
          %612 = sbr.rel (%p610) target = $region84
        $region83: #{pointnetfeat_desc.2} parent=79 // pred_region
          %613 = dma.done [#allocation3], 512
        $region84: #{pointnetfeat_desc.2} parent=79 // pred_fallthru
          _
        // Predicated region
        $region85: #{pointnetfeat_desc.2} parent=79 // pred_check
          %p614 = pneg %p111
        $region86: #{pointnetfeat_desc.2} parent=79 // pred_check_branch
          %616 = sbr.rel (%p614) target = $region88
        $region87: #{pointnetfeat_desc.2} parent=79 // pred_region
          %617 = dma.done [#allocation5], 1024
        $region88: #{pointnetfeat_desc.2} parent=79 // pred_fallthru
          _
        // Predicated region
        $region89: #{pointnetfeat_desc.2} parent=79 // pred_check
          %p618 = pneg %p132
        $region90: #{pointnetfeat_desc.2} parent=79 // pred_check_branch
          %620 = sbr.rel (%p618) target = $region92
        $region91: #{pointnetfeat_desc.2} parent=79 // pred_region
          %621 = dma.done [#allocation5], 512
        $region92: #{pointnetfeat_desc.2} parent=79 // pred_fallthru
          _
        // Predicated region
        $region93: #{pointnetfeat_desc.2} parent=79 // pred_check
          %p622 = pneg %p153
        $region94: #{pointnetfeat_desc.2} parent=79 // pred_check_branch
          %624 = sbr.rel (%p622) target = $region96
        $region95: #{pointnetfeat_desc.2} parent=79 // pred_region
          %625 = dma.done [#allocation8], 1024
        $region96: #{pointnetfeat_desc.2} parent=79 // pred_fallthru
          _
        // Predicated region
        $region97: #{pointnetfeat_desc.2} parent=79 // pred_check
          %p626 = pneg %p174
        $region98: #{pointnetfeat_desc.2} parent=79 // pred_check_branch
          %628 = sbr.rel (%p626) target = $region100
        $region99: #{pointnetfeat_desc.2} parent=79 // pred_region
          %629 = dma.done [#allocation8], 512
        $region100: #{pointnetfeat_desc.2} parent=79 // pred_fallthru
          _
        // Predicated region
        $region101: #{pointnetfeat_desc.2} parent=79 // pred_check
          %p630 = pneg %p195
        $region102: #{pointnetfeat_desc.2} parent=79 // pred_check_branch
          %632 = sbr.rel (%p630) target = $region104
        $region103: #{pointnetfeat_desc.2} parent=79 // pred_region
          %633 = dma.done [#allocation11], 1024
        $region104: #{pointnetfeat_desc.2} parent=79 // pred_fallthru
          _
        // Predicated region
        $region105: #{pointnetfeat_desc.2} parent=79 // pred_check
          %p634 = pneg %p216
        $region106: #{pointnetfeat_desc.2} parent=79 // pred_check_branch
          %636 = sbr.rel (%p634) target = $region108
        $region107: #{pointnetfeat_desc.2} parent=79 // pred_region
          %637 = dma.done [#allocation11], 1024
        $region108: #{pointnetfeat_desc.2} parent=79 // pred_fallthru
          _
        // Predicated region
        $region109: #{pointnetfeat_desc.2} parent=79 // pred_check
          %p638 = pneg %p237
        $region110: #{pointnetfeat_desc.2} parent=79 // pred_check_branch
          %640 = sbr.rel (%p638) target = $region112
        $region111: #{pointnetfeat_desc.2} parent=79 // pred_region
          %641 = dma.done [#allocation14], 2048
        $region112: #{pointnetfeat_desc.2} parent=79 // pred_fallthru
          _
        // Predicated region
        $region113: #{pointnetfeat_desc.2} parent=79 // pred_check
          %p642 = pneg %p258
        $region114: #{pointnetfeat_desc.2} parent=79 // pred_check_branch
          %644 = sbr.rel (%p642) target = $region116
        $region115: #{pointnetfeat_desc.2} parent=79 // pred_region
          %645 = dma.done [#allocation14], 1024
        $region116: #{pointnetfeat_desc.2} parent=79 // pred_fallthru
          _
        // Predicated region
        $region117: #{pointnetfeat_desc.2} parent=79 // pred_check
          %p646 = pneg %p279
        $region118: #{pointnetfeat_desc.2} parent=79 // pred_check_branch
          %648 = sbr.rel (%p646) target = $region120
        $region119: #{pointnetfeat_desc.2} parent=79 // pred_region
          %649 = dma.done [#allocation17], 2048
        $region120: #{pointnetfeat_desc.2} parent=79 // pred_fallthru
          _
        // Predicated region
        $region121: #{pointnetfeat_desc.2} parent=79 // pred_check
          %p650 = pneg %p300
        $region122: #{pointnetfeat_desc.2} parent=79 // pred_check_branch
          %652 = sbr.rel (%p650) target = $region124
        $region123: #{pointnetfeat_desc.2} parent=79 // pred_region
          %653 = dma.done [#allocation17], 1024
        $region124: #{pointnetfeat_desc.2} parent=79 // pred_fallthru
          _
        // Predicated region
        $region125: #{pointnetfeat_desc.2} parent=79 // pred_check
          %p654 = pneg %p321
        $region126: #{pointnetfeat_desc.2} parent=79 // pred_check_branch
          %656 = sbr.rel (%p654) target = $region128
        $region127: #{pointnetfeat_desc.2} parent=79 // pred_region
          %657 = dma.done [#allocation20], 2048
        $region128: #{pointnetfeat_desc.2} parent=79 // pred_fallthru
          _
        // Predicated region
        $region129: #{pointnetfeat_desc.2} parent=79 // pred_check
          %p658 = pneg %p342
        $region130: #{pointnetfeat_desc.2} parent=79 // pred_check_branch
          %660 = sbr.rel (%p658) target = $region132
        $region131: #{pointnetfeat_desc.2} parent=79 // pred_region
          %661 = dma.done [#allocation20], 8192
        $region132: #{pointnetfeat_desc.2} parent=79 // pred_fallthru
          _
        // Predicated region
        $region133: #{pointnetfeat_desc.2} parent=79 // pred_check
          %p662 = pneg %p363
        $region134: #{pointnetfeat_desc.2} parent=79 // pred_check_branch
          %664 = sbr.rel (%p662) target = $region136
        $region135: #{pointnetfeat_desc.2} parent=79 // pred_region
          %665 = dma.done [#allocation23], 16384
        $region136: #{pointnetfeat_desc.2} parent=79 // pred_fallthru
          _
        %s666 = smul.u32 2, %s39
        %p667 = scmp.lt.s32.totalorder %s38, 1
        %s668 = scalar_select %p667, %s38, 1
        %p669 = scmp.lt.s32.totalorder %s666, 3
        %s670 = scalar_select %p669, %s666, 3
        %s671 = smul.addr %s668, 4
        %s672 = sadd.s32 %s670, %s671
        %s673 = smul.addr %s672, 4
        %s674 = scalar_lea.vmem %s0, %s673
        %p675 = pneg %p69
        %p676 = pneg %p66
        %p677 = pneg %p90
        %p678 = pneg %p87
        %p679 = pneg %p111
        %p680 = pneg %p108
        %p681 = pneg %p132
        %p682 = pneg %p129
        %p683 = pneg %p153
        %p684 = pneg %p150
        %p685 = pneg %p174
        %p686 = pneg %p171
        %p687 = pneg %p195
        %p688 = pneg %p192
        %p689 = pneg %p216
        %p690 = pneg %p213
        %p691 = pneg %p237
        %p692 = pneg %p234
        %p693 = pneg %p258
        %p694 = pneg %p255
        %p695 = pneg %p279
        %p696 = pneg %p276
        %p697 = pneg %p300
        %p698 = pneg %p297
        %p699 = pneg %p321
        %p700 = pneg %p318
        %p701 = pneg %p342
        %p702 = pneg %p339
        %p703 = pneg %p363
        %p704 = pneg %p360
        %p705 = pneg %p389
        %p706 = pneg %p386
        %p707 = scmp.lt.s32.totalorder %s38, 1
        %s708 = scalar_select %p707, %s38, 1
        %s709 = smul.addr %s708, 128
        %s710 = smul.addr %s709, 8
        %s711 = scalar_lea.vmem %s15, %s710
        %s712 = smul.u32 2, %s39
        %p713 = scmp.lt.s32.totalorder %s38, 1
        %s714 = scalar_select %p713, %s38, 1
        %p715 = scmp.lt.s32.totalorder %s712, 3
        %s716 = scalar_select %p715, %s712, 3
        %s717 = smul.addr %s714, 4
        %s718 = sadd.s32 %s716, %s717
        %s719 = smul.addr %s718, 4
        %s720 = scalar_lea.vmem %s0, %s719
        %s721 = smul.u32 2, %s39
        %p722 = scmp.lt.s32.totalorder %s38, 1
        %s723 = scalar_select %p722, %s38, 1
        %s724 = smul.addr %s723, 128
        %s725 = smul.addr %s724, 8
        %s726 = scalar_lea.vmem %s15, %s725
        %v728 = vld [vmem:[%s720] sm:$0x77]
        %v730 = vcombine.high %v728, %v728
        %v732 = vpack.c.bf16 %v728, %v728
        %v733 = vpack.c.bf16 %v730, %v730
        %v734 = vld [vmem:[#allocation2] sm:$0xf]
        %v735 = vld [vmem:[#allocation2 + $0x4] sm:$0xf]
        %v736 = vld [vmem:[#allocation2 + $0x8] sm:$0xf]
        %v737 = vld [vmem:[#allocation2 + $0xc] sm:$0xf]
        %v738 = vld [vmem:[#allocation2 + $0x10] sm:$0xf]
        %v739 = vld [vmem:[#allocation2 + $0x14] sm:$0xf]
        %v740 = vld [vmem:[#allocation2 + $0x18] sm:$0xf]
        %v741 = vld [vmem:[#allocation2 + $0x1c] sm:$0xf]
        %v742 = vld [vmem:[#allocation4] sm:$0xff]
        %v743 = vld [vmem:[#allocation4 + $0x8] sm:$0xff]
        %v744 = vld [vmem:[#allocation4 + $0x10] sm:$0xff]
        %v745 = vld [vmem:[#allocation4 + $0x18] sm:$0xff]
        %v746 = vld [vmem:[#allocation4 + $0x20] sm:$0xff]
        %v747 = vld [vmem:[#allocation4 + $0x28] sm:$0xff]
        %v748 = vld [vmem:[#allocation4 + $0x30] sm:$0xff]
        %v749 = vld [vmem:[#allocation4 + $0x38] sm:$0xff]
        %751 = vset.pattern.permute.xlu0 0
        %752 = vperm.xlu0 %751, %v742
        %v753 = vpop.permute.xlu0 %752
        %756 = vset.pattern.permute.xlu0 0
        %757 = vperm.xlu0 %756, %v743
        %v758 = vpop.permute.xlu0 %757
        %761 = vset.pattern.permute.xlu0 0
        %762 = vperm.xlu0 %761, %v744
        %v763 = vpop.permute.xlu0 %762
        %766 = vset.pattern.permute.xlu0 0
        %767 = vperm.xlu0 %766, %v745
        %v768 = vpop.permute.xlu0 %767
        %771 = vset.pattern.permute.xlu0 0
        %772 = vperm.xlu0 %771, %v746
        %v773 = vpop.permute.xlu0 %772
        %776 = vset.pattern.permute.xlu0 0
        %777 = vperm.xlu0 %776, %v747
        %v778 = vpop.permute.xlu0 %777
        %781 = vset.pattern.permute.xlu0 0
        %782 = vperm.xlu0 %781, %v748
        %v783 = vpop.permute.xlu0 %782
        %786 = vset.pattern.permute.xlu0 0
        %787 = vperm.xlu0 %786, %v749
        %v788 = vpop.permute.xlu0 %787
        %v798 = vunpack.c.l.b16 %v734
        %v799 = vunpack.c.l.b16 %v735
        %v800 = vunpack.c.l.b16 %v736
        %v801 = vunpack.c.l.b16 %v737
        %v802 = vunpack.c.l.b16 %v738
        %v803 = vunpack.c.l.b16 %v739
        %v804 = vunpack.c.l.b16 %v740
        %v805 = vunpack.c.l.b16 %v741
        %v806 = vpack.c.b16 %v799, %v798
        %v807 = vpack.c.b16 %v801, %v800
        %v808 = vpack.c.b16 %v803, %v802
        %v809 = vpack.c.b16 %v805, %v804
        %vm810 = vcmask 23552
        %v812 = vsel %vm810, %v806, 0
        %v815 = vsel %vm810, %v807, 0
        %v818 = vsel %vm810, %v808, 0
        %v821 = vsel %vm810, %v809, 0
        %vm823 = vcmask 1040384
        %vm824 = vcmask 1041408
        %v825 = vsel %vm823, 4294967295, 65535
        %v826 = vsel %vm824, %v825, 0
        %v828 = vand.u32 %v732, %v826
        %v831 = vand.u32 %v733, %v826
        %833 = vmatprep.subr.bf16.mxu0 0
        %834 = vmatpush1.bf16.msra.mxu0 0
        %835 = vmatprep.subr.bf16.mxu0 0
        %836 = vmatpush1.bf16.msra.mxu0 0
        %837 = vmatprep.subr.bf16.mxu0 0
        %838 = vmatpush1.bf16.msra.mxu0 0
        %839 = vmatprep.subr.bf16.mxu0 0
        %840 = vmatpush1.bf16.msra.mxu0 0
        %841 = vmatprep.subr.bf16.mxu0 0
        %842 = vmatpush1.bf16.msra.mxu0 0
        %843 = vmatprep.subr.bf16.mxu0 0
        %844 = vmatpush1.bf16.msra.mxu0 0
        %845 = vmatprep.subr.bf16.mxu0 0
        %846 = vmatpush1.bf16.msra.mxu0 0
        %847 = vmatprep.subr.bf16.mxu0 %v831
        %848 = vmatpush1.bf16.msra.mxu0 %v828
        %849 = vmatprep.subr.bf16.mxu0 0
        %850 = vmatpush2.bf16.msra.mxu0 0
        %851 = vmatprep.subr.bf16.mxu0 0
        %852 = vmatpush2.bf16.msra.mxu0 0
        %853 = vmatprep.subr.bf16.mxu0 0
        %854 = vmatpush2.bf16.msra.mxu0 0
        %855 = vmatprep.subr.bf16.mxu0 0
        %856 = vmatpush2.bf16.msra.mxu0 0
        %857 = vmatprep.subr.bf16.mxu0 0
        %858 = vmatpush2.bf16.msra.mxu0 0
        %859 = vmatprep.subr.bf16.mxu0 0
        %860 = vmatpush2.bf16.msra.mxu0 0
        %861 = vmatprep.subr.bf16.mxu0 0
        %862 = vmatpush2.bf16.msra.mxu0 0
        %863 = vmatprep.subr.bf16.mxu0 0
        %864 = vmatpush2.bf16.msra.mxu0 0
        %865 = vmatprep.mubr.bf16.mxu0 0
        %866 = vmatmul.mubr.bf16.gmra.mxu0 %v812
        %v867 = vpop.f32.mrf.mxu0
        %v868 = vadd.f32 %v753, %v867
        %v869 = vpop.f32.mrf.mxu0
        %v870 = vadd.f32 %v753, %v869
        %v871 = vpop.f32.mrf.mxu0
        %v872 = vadd.f32 %v758, %v871
        %v873 = vpop.f32.mrf.mxu0
        %v874 = vadd.f32 %v758, %v873
        %875 = vmatprep.mubr.bf16.mxu0 0
        %876 = vmatmul.mubr.bf16.gmra.mxu0 %v815
        %v877 = vpop.f32.mrf.mxu0
        %v878 = vadd.f32 %v763, %v877
        %v879 = vpop.f32.mrf.mxu0
        %v880 = vadd.f32 %v763, %v879
        %v881 = vpop.f32.mrf.mxu0
        %v882 = vadd.f32 %v768, %v881
        %v883 = vpop.f32.mrf.mxu0
        %v884 = vadd.f32 %v768, %v883
        %885 = vmatprep.mubr.bf16.mxu0 0
        %886 = vmatmul.mubr.bf16.gmra.mxu0 %v818
        %v887 = vpop.f32.mrf.mxu0
        %v888 = vadd.f32 %v773, %v887
        %v889 = vpop.f32.mrf.mxu0
        %v890 = vadd.f32 %v773, %v889
        %v891 = vpop.f32.mrf.mxu0
        %v892 = vadd.f32 %v778, %v891
        %v893 = vpop.f32.mrf.mxu0
        %v894 = vadd.f32 %v778, %v893
        %895 = vmatprep.mubr.bf16.mxu0 0
        %896 = vmatmul.mubr.bf16.gmra.mxu0 %v821
        %v897 = vpop.f32.mrf.mxu0
        %v898 = vadd.f32 %v783, %v897
        %v899 = vpop.f32.mrf.mxu0
        %v900 = vadd.f32 %v783, %v899
        %v901 = vpop.f32.mrf.mxu0
        %v902 = vadd.f32 %v788, %v901
        %v903 = vpop.f32.mrf.mxu0
        %v904 = vadd.f32 %v788, %v903
        %905 = vdwg.mxu0
        %v906 = vmax.f32 %v868, 0.0
        %v907 = vmax.f32 %v870, 0.0
        %v908 = vmax.f32 %v872, 0.0
        %v909 = vmax.f32 %v874, 0.0
        %v910 = vmax.f32 %v878, 0.0
        %v911 = vmax.f32 %v880, 0.0
        %v912 = vmax.f32 %v882, 0.0
        %v913 = vmax.f32 %v884, 0.0
        %v914 = vmax.f32 %v888, 0.0
        %v915 = vmax.f32 %v890, 0.0
        %v916 = vmax.f32 %v892, 0.0
        %v917 = vmax.f32 %v894, 0.0
        %v918 = vmax.f32 %v898, 0.0
        %v919 = vmax.f32 %v900, 0.0
        %v920 = vmax.f32 %v902, 0.0
        %v921 = vmax.f32 %v904, 0.0
        %v922 = vpack.c.bf16 %v908, %v906
        %v923 = vpack.c.bf16 %v909, %v907
        %v924 = vpack.c.bf16 %v912, %v910
        %v925 = vpack.c.bf16 %v913, %v911
        %v926 = vpack.c.bf16 %v916, %v914
        %v927 = vpack.c.bf16 %v917, %v915
        %v928 = vpack.c.bf16 %v920, %v918
        %v929 = vpack.c.bf16 %v921, %v919
        %v930 = vld [vmem:[#allocation6] sm:$0xf]
        %v931 = vld [vmem:[#allocation6 + $0x4] sm:$0xf]
        %v932 = vld [vmem:[#allocation6 + $0x8] sm:$0xf]
        %v933 = vld [vmem:[#allocation6 + $0xc] sm:$0xf]
        %v934 = vld [vmem:[#allocation6 + $0x10] sm:$0xf]
        %v935 = vld [vmem:[#allocation6 + $0x14] sm:$0xf]
        %v936 = vld [vmem:[#allocation6 + $0x18] sm:$0xf]
        %v937 = vld [vmem:[#allocation6 + $0x1c] sm:$0xf]
        %v938 = vld [vmem:[#allocation7] sm:$0xff]
        %v939 = vld [vmem:[#allocation7 + $0x8] sm:$0xff]
        %v940 = vld [vmem:[#allocation7 + $0x10] sm:$0xff]
        %v941 = vld [vmem:[#allocation7 + $0x18] sm:$0xff]
        %v942 = vld [vmem:[#allocation7 + $0x20] sm:$0xff]
        %v943 = vld [vmem:[#allocation7 + $0x28] sm:$0xff]
        %v944 = vld [vmem:[#allocation7 + $0x30] sm:$0xff]
        %v945 = vld [vmem:[#allocation7 + $0x38] sm:$0xff]
        %947 = vset.pattern.permute.xlu0 0
        %948 = vperm.xlu0 %947, %v938
        %v949 = vpop.permute.xlu0 %948
        %952 = vset.pattern.permute.xlu0 0
        %953 = vperm.xlu0 %952, %v939
        %v954 = vpop.permute.xlu0 %953
        %957 = vset.pattern.permute.xlu0 0
        %958 = vperm.xlu0 %957, %v940
        %v959 = vpop.permute.xlu0 %958
        %962 = vset.pattern.permute.xlu0 0
        %963 = vperm.xlu0 %962, %v941
        %v964 = vpop.permute.xlu0 %963
        %967 = vset.pattern.permute.xlu0 0
        %968 = vperm.xlu0 %967, %v942
        %v969 = vpop.permute.xlu0 %968
        %972 = vset.pattern.permute.xlu0 0
        %973 = vperm.xlu0 %972, %v943
        %v974 = vpop.permute.xlu0 %973
        %977 = vset.pattern.permute.xlu0 0
        %978 = vperm.xlu0 %977, %v944
        %v979 = vpop.permute.xlu0 %978
        %982 = vset.pattern.permute.xlu0 0
        %983 = vperm.xlu0 %982, %v945
        %v984 = vpop.permute.xlu0 %983
        %v994 = vunpack.c.l.b16 %v930
        %v995 = vunpack.c.l.b16 %v931
        %v996 = vunpack.c.l.b16 %v932
        %v997 = vunpack.c.l.b16 %v933
        %v998 = vunpack.c.l.b16 %v934
        %v999 = vunpack.c.l.b16 %v935
        %v1000 = vunpack.c.l.b16 %v936
        %v1001 = vunpack.c.l.b16 %v937
        %v1002 = vpack.c.b16 %v995, %v994
        %v1003 = vpack.c.b16 %v997, %v996
        %v1004 = vpack.c.b16 %v999, %v998
        %v1005 = vpack.c.b16 %v1001, %v1000
        %vm1006 = vcmask 523264
        %v1008 = vsel %vm1006, %v1002, 0
        %v1011 = vsel %vm1006, %v1003, 0
        %v1014 = vsel %vm1006, %v1004, 0
        %v1017 = vsel %vm1006, %v1005, 0
        %1019 = vmatprep.subr.bf16.mxu0 0
        %1020 = vmatpush1.bf16.msra.mxu0 0
        %1021 = vmatprep.subr.bf16.mxu0 0
        %1022 = vmatpush1.bf16.msra.mxu0 0
        %1023 = vmatprep.subr.bf16.mxu0 0
        %1024 = vmatpush1.bf16.msra.mxu0 0
        %1025 = vmatprep.subr.bf16.mxu0 0
        %1026 = vmatpush1.bf16.msra.mxu0 0
        %1027 = vmatprep.subr.bf16.mxu0 %v929
        %1028 = vmatpush1.bf16.msra.mxu0 %v928
        %1029 = vmatprep.subr.bf16.mxu0 %v927
        %1030 = vmatpush1.bf16.msra.mxu0 %v926
        %1031 = vmatprep.subr.bf16.mxu0 %v925
        %1032 = vmatpush1.bf16.msra.mxu0 %v924
        %1033 = vmatprep.subr.bf16.mxu0 %v923
        %1034 = vmatpush1.bf16.msra.mxu0 %v922
        %1035 = vmatprep.subr.bf16.mxu0 0
        %1036 = vmatpush2.bf16.msra.mxu0 0
        %1037 = vmatprep.subr.bf16.mxu0 0
        %1038 = vmatpush2.bf16.msra.mxu0 0
        %1039 = vmatprep.subr.bf16.mxu0 0
        %1040 = vmatpush2.bf16.msra.mxu0 0
        %1041 = vmatprep.subr.bf16.mxu0 0
        %1042 = vmatpush2.bf16.msra.mxu0 0
        %1043 = vmatprep.subr.bf16.mxu0 0
        %1044 = vmatpush2.bf16.msra.mxu0 0
        %1045 = vmatprep.subr.bf16.mxu0 0
        %1046 = vmatpush2.bf16.msra.mxu0 0
        %1047 = vmatprep.subr.bf16.mxu0 0
        %1048 = vmatpush2.bf16.msra.mxu0 0
        %1049 = vmatprep.subr.bf16.mxu0 0
        %1050 = vmatpush2.bf16.msra.mxu0 0
        %1051 = vmatprep.mubr.bf16.mxu0 0
        %1052 = vmatmul.mubr.bf16.gmra.mxu0 %v1008
        %v1053 = vpop.f32.mrf.mxu0
        %v1054 = vadd.f32 %v949, %v1053
        %v1055 = vpop.f32.mrf.mxu0
        %v1056 = vadd.f32 %v949, %v1055
        %v1057 = vpop.f32.mrf.mxu0
        %v1058 = vadd.f32 %v954, %v1057
        %v1059 = vpop.f32.mrf.mxu0
        %v1060 = vadd.f32 %v954, %v1059
        %1061 = vmatprep.mubr.bf16.mxu0 0
        %1062 = vmatmul.mubr.bf16.gmra.mxu0 %v1011
        %v1063 = vpop.f32.mrf.mxu0
        %v1064 = vadd.f32 %v959, %v1063
        %v1065 = vpop.f32.mrf.mxu0
        %v1066 = vadd.f32 %v959, %v1065
        %v1067 = vpop.f32.mrf.mxu0
        %v1068 = vadd.f32 %v964, %v1067
        %v1069 = vpop.f32.mrf.mxu0
        %v1070 = vadd.f32 %v964, %v1069
        %1071 = vmatprep.mubr.bf16.mxu0 0
        %1072 = vmatmul.mubr.bf16.gmra.mxu0 %v1014
        %v1073 = vpop.f32.mrf.mxu0
        %v1074 = vadd.f32 %v969, %v1073
        %v1075 = vpop.f32.mrf.mxu0
        %v1076 = vadd.f32 %v969, %v1075
        %v1077 = vpop.f32.mrf.mxu0
        %v1078 = vadd.f32 %v974, %v1077
        %v1079 = vpop.f32.mrf.mxu0
        %v1080 = vadd.f32 %v974, %v1079
        %1081 = vmatprep.mubr.bf16.mxu0 0
        %1082 = vmatmul.mubr.bf16.gmra.mxu0 %v1017
        %v1083 = vpop.f32.mrf.mxu0
        %v1084 = vadd.f32 %v979, %v1083
        %v1085 = vpop.f32.mrf.mxu0
        %v1086 = vadd.f32 %v979, %v1085
        %v1087 = vpop.f32.mrf.mxu0
        %v1088 = vadd.f32 %v984, %v1087
        %v1089 = vpop.f32.mrf.mxu0
        %v1090 = vadd.f32 %v984, %v1089
        %1091 = vdwg.mxu0
        %v1092 = vmax.f32 %v1054, 0.0
        %v1093 = vmax.f32 %v1056, 0.0
        %v1094 = vmax.f32 %v1058, 0.0
        %v1095 = vmax.f32 %v1060, 0.0
        %v1096 = vmax.f32 %v1064, 0.0
        %v1097 = vmax.f32 %v1066, 0.0
        %v1098 = vmax.f32 %v1068, 0.0
        %v1099 = vmax.f32 %v1070, 0.0
        %v1100 = vmax.f32 %v1074, 0.0
        %v1101 = vmax.f32 %v1076, 0.0
        %v1102 = vmax.f32 %v1078, 0.0
        %v1103 = vmax.f32 %v1080, 0.0
        %v1104 = vmax.f32 %v1084, 0.0
        %v1105 = vmax.f32 %v1086, 0.0
        %v1106 = vmax.f32 %v1088, 0.0
        %v1107 = vmax.f32 %v1090, 0.0
        %v1108 = vpack.c.bf16 %v1094, %v1092
        %v1109 = vpack.c.bf16 %v1095, %v1093
        %v1110 = vpack.c.bf16 %v1098, %v1096
        %v1111 = vpack.c.bf16 %v1099, %v1097
        %v1112 = vpack.c.bf16 %v1102, %v1100
        %v1113 = vpack.c.bf16 %v1103, %v1101
        %v1114 = vpack.c.bf16 %v1106, %v1104
        %v1115 = vpack.c.bf16 %v1107, %v1105
        %v1116 = vld [vmem:[#allocation9] sm:$0xf]
        %v1117 = vld [vmem:[#allocation9 + $0x4] sm:$0xf]
        %v1118 = vld [vmem:[#allocation9 + $0x8] sm:$0xf]
        %v1119 = vld [vmem:[#allocation9 + $0xc] sm:$0xf]
        %v1120 = vld [vmem:[#allocation9 + $0x10] sm:$0xf]
        %v1121 = vld [vmem:[#allocation9 + $0x14] sm:$0xf]
        %v1122 = vld [vmem:[#allocation9 + $0x18] sm:$0xf]
        %v1123 = vld [vmem:[#allocation9 + $0x1c] sm:$0xf]
        %v1124 = vld [vmem:[#allocation10] sm:$0xff]
        %v1125 = vld [vmem:[#allocation10 + $0x8] sm:$0xff]
        %v1126 = vld [vmem:[#allocation10 + $0x10] sm:$0xff]
        %v1127 = vld [vmem:[#allocation10 + $0x18] sm:$0xff]
        %v1128 = vld [vmem:[#allocation10 + $0x20] sm:$0xff]
        %v1129 = vld [vmem:[#allocation10 + $0x28] sm:$0xff]
        %v1130 = vld [vmem:[#allocation10 + $0x30] sm:$0xff]
        %v1131 = vld [vmem:[#allocation10 + $0x38] sm:$0xff]
        %1133 = vset.pattern.permute.xlu0 0
        %1134 = vperm.xlu0 %1133, %v1124
        %v1135 = vpop.permute.xlu0 %1134
        %1138 = vset.pattern.permute.xlu0 0
        %1139 = vperm.xlu0 %1138, %v1125
        %v1140 = vpop.permute.xlu0 %1139
        %1143 = vset.pattern.permute.xlu0 0
        %1144 = vperm.xlu0 %1143, %v1126
        %v1145 = vpop.permute.xlu0 %1144
        %1148 = vset.pattern.permute.xlu0 0
        %1149 = vperm.xlu0 %1148, %v1127
        %v1150 = vpop.permute.xlu0 %1149
        %1153 = vset.pattern.permute.xlu0 0
        %1154 = vperm.xlu0 %1153, %v1128
        %v1155 = vpop.permute.xlu0 %1154
        %1158 = vset.pattern.permute.xlu0 0
        %1159 = vperm.xlu0 %1158, %v1129
        %v1160 = vpop.permute.xlu0 %1159
        %1163 = vset.pattern.permute.xlu0 0
        %1164 = vperm.xlu0 %1163, %v1130
        %v1165 = vpop.permute.xlu0 %1164
        %1168 = vset.pattern.permute.xlu0 0
        %1169 = vperm.xlu0 %1168, %v1131
        %v1170 = vpop.permute.xlu0 %1169
        %v1180 = vunpack.c.l.b16 %v1116
        %v1181 = vunpack.c.l.b16 %v1117
        %v1182 = vunpack.c.l.b16 %v1118
        %v1183 = vunpack.c.l.b16 %v1119
        %v1184 = vunpack.c.l.b16 %v1120
        %v1185 = vunpack.c.l.b16 %v1121
        %v1186 = vunpack.c.l.b16 %v1122
        %v1187 = vunpack.c.l.b16 %v1123
        %v1188 = vpack.c.b16 %v1181, %v1180
        %v1189 = vpack.c.b16 %v1183, %v1182
        %v1190 = vpack.c.b16 %v1185, %v1184
        %v1191 = vpack.c.b16 %v1187, %v1186
        %v1193 = vsel %vm1006, %v1188, 0
        %v1196 = vsel %vm1006, %v1189, 0
        %v1199 = vsel %vm1006, %v1190, 0
        %v1202 = vsel %vm1006, %v1191, 0
        %1204 = vmatprep.subr.bf16.mxu0 0
        %1205 = vmatpush1.bf16.msra.mxu0 0
        %1206 = vmatprep.subr.bf16.mxu0 0
        %1207 = vmatpush1.bf16.msra.mxu0 0
        %1208 = vmatprep.subr.bf16.mxu0 0
        %1209 = vmatpush1.bf16.msra.mxu0 0
        %1210 = vmatprep.subr.bf16.mxu0 0
        %1211 = vmatpush1.bf16.msra.mxu0 0
        %1212 = vmatprep.subr.bf16.mxu0 %v1115
        %1213 = vmatpush1.bf16.msra.mxu0 %v1114
        %1214 = vmatprep.subr.bf16.mxu0 %v1113
        %1215 = vmatpush1.bf16.msra.mxu0 %v1112
        %1216 = vmatprep.subr.bf16.mxu0 %v1111
        %1217 = vmatpush1.bf16.msra.mxu0 %v1110
        %1218 = vmatprep.subr.bf16.mxu0 %v1109
        %1219 = vmatpush1.bf16.msra.mxu0 %v1108
        %1220 = vmatprep.subr.bf16.mxu0 0
        %1221 = vmatpush2.bf16.msra.mxu0 0
        %1222 = vmatprep.subr.bf16.mxu0 0
        %1223 = vmatpush2.bf16.msra.mxu0 0
        %1224 = vmatprep.subr.bf16.mxu0 0
        %1225 = vmatpush2.bf16.msra.mxu0 0
        %1226 = vmatprep.subr.bf16.mxu0 0
        %1227 = vmatpush2.bf16.msra.mxu0 0
        %1228 = vmatprep.subr.bf16.mxu0 0
        %1229 = vmatpush2.bf16.msra.mxu0 0
        %1230 = vmatprep.subr.bf16.mxu0 0
        %1231 = vmatpush2.bf16.msra.mxu0 0
        %1232 = vmatprep.subr.bf16.mxu0 0
        %1233 = vmatpush2.bf16.msra.mxu0 0
        %1234 = vmatprep.subr.bf16.mxu0 0
        %1235 = vmatpush2.bf16.msra.mxu0 0
        %1236 = vmatprep.mubr.bf16.mxu0 0
        %1237 = vmatmul.mubr.bf16.gmra.mxu0 %v1193
        %v1238 = vpop.f32.mrf.mxu0
        %v1239 = vadd.f32 %v1135, %v1238
        %v1240 = vpop.f32.mrf.mxu0
        %v1241 = vadd.f32 %v1135, %v1240
        %v1242 = vpop.f32.mrf.mxu0
        %v1243 = vadd.f32 %v1140, %v1242
        %v1244 = vpop.f32.mrf.mxu0
        %v1245 = vadd.f32 %v1140, %v1244
        %1246 = vmatprep.mubr.bf16.mxu0 0
        %1247 = vmatmul.mubr.bf16.gmra.mxu0 %v1196
        %v1248 = vpop.f32.mrf.mxu0
        %v1249 = vadd.f32 %v1145, %v1248
        %v1250 = vpop.f32.mrf.mxu0
        %v1251 = vadd.f32 %v1145, %v1250
        %v1252 = vpop.f32.mrf.mxu0
        %v1253 = vadd.f32 %v1150, %v1252
        %v1254 = vpop.f32.mrf.mxu0
        %v1255 = vadd.f32 %v1150, %v1254
        %1256 = vmatprep.mubr.bf16.mxu0 0
        %1257 = vmatmul.mubr.bf16.gmra.mxu0 %v1199
        %v1258 = vpop.f32.mrf.mxu0
        %v1259 = vadd.f32 %v1155, %v1258
        %v1260 = vpop.f32.mrf.mxu0
        %v1261 = vadd.f32 %v1155, %v1260
        %v1262 = vpop.f32.mrf.mxu0
        %v1263 = vadd.f32 %v1160, %v1262
        %v1264 = vpop.f32.mrf.mxu0
        %v1265 = vadd.f32 %v1160, %v1264
        %1266 = vmatprep.mubr.bf16.mxu0 0
        %1267 = vmatmul.mubr.bf16.gmra.mxu0 %v1202
        %v1268 = vpop.f32.mrf.mxu0
        %v1269 = vadd.f32 %v1165, %v1268
        %v1270 = vpop.f32.mrf.mxu0
        %v1271 = vadd.f32 %v1165, %v1270
        %v1272 = vpop.f32.mrf.mxu0
        %v1273 = vadd.f32 %v1170, %v1272
        %v1274 = vpop.f32.mrf.mxu0
        %v1275 = vadd.f32 %v1170, %v1274
        %1276 = vdwg.mxu0
        %v1277 = vmax.f32 %v1239, 0.0
        %v1278 = vmax.f32 %v1241, 0.0
        %v1279 = vmax.f32 %v1243, 0.0
        %v1280 = vmax.f32 %v1245, 0.0
        %v1281 = vmax.f32 %v1249, 0.0
        %v1282 = vmax.f32 %v1251, 0.0
        %v1283 = vmax.f32 %v1253, 0.0
        %v1284 = vmax.f32 %v1255, 0.0
        %v1285 = vmax.f32 %v1259, 0.0
        %v1286 = vmax.f32 %v1261, 0.0
        %v1287 = vmax.f32 %v1263, 0.0
        %v1288 = vmax.f32 %v1265, 0.0
        %v1289 = vmax.f32 %v1269, 0.0
        %v1290 = vmax.f32 %v1271, 0.0
        %v1291 = vmax.f32 %v1273, 0.0
        %v1292 = vmax.f32 %v1275, 0.0
        %v1293 = vpack.c.bf16 %v1279, %v1277
        %v1294 = vpack.c.bf16 %v1280, %v1278
        %v1295 = vpack.c.bf16 %v1283, %v1281
        %v1296 = vpack.c.bf16 %v1284, %v1282
        %v1297 = vpack.c.bf16 %v1287, %v1285
        %v1298 = vpack.c.bf16 %v1288, %v1286
        %v1299 = vpack.c.bf16 %v1291, %v1289
        %v1300 = vpack.c.bf16 %v1292, %v1290
        %v1301 = vld [vmem:[#allocation12] sm:$0xf]
        %v1302 = vld [vmem:[#allocation12 + $0x4] sm:$0xf]
        %v1303 = vld [vmem:[#allocation12 + $0x8] sm:$0xf]
        %v1304 = vld [vmem:[#allocation12 + $0xc] sm:$0xf]
        %v1305 = vld [vmem:[#allocation12 + $0x10] sm:$0xf]
        %v1306 = vld [vmem:[#allocation12 + $0x14] sm:$0xf]
        %v1307 = vld [vmem:[#allocation12 + $0x18] sm:$0xf]
        %v1308 = vld [vmem:[#allocation12 + $0x1c] sm:$0xf]
        %v1309 = vld [vmem:[#allocation12 + $0x20] sm:$0xf]
        %v1310 = vld [vmem:[#allocation12 + $0x24] sm:$0xf]
        %v1311 = vld [vmem:[#allocation12 + $0x28] sm:$0xf]
        %v1312 = vld [vmem:[#allocation12 + $0x2c] sm:$0xf]
        %v1313 = vld [vmem:[#allocation12 + $0x30] sm:$0xf]
        %v1314 = vld [vmem:[#allocation12 + $0x34] sm:$0xf]
        %v1315 = vld [vmem:[#allocation12 + $0x38] sm:$0xf]
        %v1316 = vld [vmem:[#allocation12 + $0x3c] sm:$0xf]
        %v1317 = vld [vmem:[#allocation13] sm:$0xff]
        %v1318 = vld [vmem:[#allocation13 + $0x8] sm:$0xff]
        %v1319 = vld [vmem:[#allocation13 + $0x10] sm:$0xff]
        %v1320 = vld [vmem:[#allocation13 + $0x18] sm:$0xff]
        %v1321 = vld [vmem:[#allocation13 + $0x20] sm:$0xff]
        %v1322 = vld [vmem:[#allocation13 + $0x28] sm:$0xff]
        %v1323 = vld [vmem:[#allocation13 + $0x30] sm:$0xff]
        %v1324 = vld [vmem:[#allocation13 + $0x38] sm:$0xff]
        %v1325 = vld [vmem:[#allocation13 + $0x40] sm:$0xff]
        %v1326 = vld [vmem:[#allocation13 + $0x48] sm:$0xff]
        %v1327 = vld [vmem:[#allocation13 + $0x50] sm:$0xff]
        %v1328 = vld [vmem:[#allocation13 + $0x58] sm:$0xff]
        %v1329 = vld [vmem:[#allocation13 + $0x60] sm:$0xff]
        %v1330 = vld [vmem:[#allocation13 + $0x68] sm:$0xff]
        %v1331 = vld [vmem:[#allocation13 + $0x70] sm:$0xff]
        %v1332 = vld [vmem:[#allocation13 + $0x78] sm:$0xff]
        %1334 = vset.pattern.permute.xlu0 0
        %1335 = vperm.xlu0 %1334, %v1317
        %v1336 = vpop.permute.xlu0 %1335
        %1339 = vset.pattern.permute.xlu0 0
        %1340 = vperm.xlu0 %1339, %v1318
        %v1341 = vpop.permute.xlu0 %1340
        %1344 = vset.pattern.permute.xlu0 0
        %1345 = vperm.xlu0 %1344, %v1319
        %v1346 = vpop.permute.xlu0 %1345
        %1349 = vset.pattern.permute.xlu0 0
        %1350 = vperm.xlu0 %1349, %v1320
        %v1351 = vpop.permute.xlu0 %1350
        %1354 = vset.pattern.permute.xlu0 0
        %1355 = vperm.xlu0 %1354, %v1321
        %v1356 = vpop.permute.xlu0 %1355
        %1359 = vset.pattern.permute.xlu0 0
        %1360 = vperm.xlu0 %1359, %v1322
        %v1361 = vpop.permute.xlu0 %1360
        %1364 = vset.pattern.permute.xlu0 0
        %1365 = vperm.xlu0 %1364, %v1323
        %v1366 = vpop.permute.xlu0 %1365
        %1369 = vset.pattern.permute.xlu0 0
        %1370 = vperm.xlu0 %1369, %v1324
        %v1371 = vpop.permute.xlu0 %1370
        %1374 = vset.pattern.permute.xlu0 0
        %1375 = vperm.xlu0 %1374, %v1325
        %v1376 = vpop.permute.xlu0 %1375
        %1379 = vset.pattern.permute.xlu0 0
        %1380 = vperm.xlu0 %1379, %v1326
        %v1381 = vpop.permute.xlu0 %1380
        %1384 = vset.pattern.permute.xlu0 0
        %1385 = vperm.xlu0 %1384, %v1327
        %v1386 = vpop.permute.xlu0 %1385
        %1389 = vset.pattern.permute.xlu0 0
        %1390 = vperm.xlu0 %1389, %v1328
        %v1391 = vpop.permute.xlu0 %1390
        %1394 = vset.pattern.permute.xlu0 0
        %1395 = vperm.xlu0 %1394, %v1329
        %v1396 = vpop.permute.xlu0 %1395
        %1399 = vset.pattern.permute.xlu0 0
        %1400 = vperm.xlu0 %1399, %v1330
        %v1401 = vpop.permute.xlu0 %1400
        %1404 = vset.pattern.permute.xlu0 0
        %1405 = vperm.xlu0 %1404, %v1331
        %v1406 = vpop.permute.xlu0 %1405
        %1409 = vset.pattern.permute.xlu0 0
        %1410 = vperm.xlu0 %1409, %v1332
        %v1411 = vpop.permute.xlu0 %1410
        %v1429 = vunpack.c.l.b16 %v1301
        %v1430 = vunpack.c.l.b16 %v1302
        %v1431 = vunpack.c.l.b16 %v1303
        %v1432 = vunpack.c.l.b16 %v1304
        %v1433 = vunpack.c.l.b16 %v1305
        %v1434 = vunpack.c.l.b16 %v1306
        %v1435 = vunpack.c.l.b16 %v1307
        %v1436 = vunpack.c.l.b16 %v1308
        %v1437 = vunpack.c.l.b16 %v1309
        %v1438 = vunpack.c.l.b16 %v1310
        %v1439 = vunpack.c.l.b16 %v1311
        %v1440 = vunpack.c.l.b16 %v1312
        %v1441 = vunpack.c.l.b16 %v1313
        %v1442 = vunpack.c.l.b16 %v1314
        %v1443 = vunpack.c.l.b16 %v1315
        %v1444 = vunpack.c.l.b16 %v1316
        %v1445 = vpack.c.b16 %v1430, %v1429
        %v1446 = vpack.c.b16 %v1432, %v1431
        %v1447 = vpack.c.b16 %v1434, %v1433
        %v1448 = vpack.c.b16 %v1436, %v1435
        %v1449 = vpack.c.b16 %v1438, %v1437
        %v1450 = vpack.c.b16 %v1440, %v1439
        %v1451 = vpack.c.b16 %v1442, %v1441
        %v1452 = vpack.c.b16 %v1444, %v1443
        %v1454 = vsel %vm1006, %v1445, 0
        %v1457 = vsel %vm1006, %v1446, 0
        %v1460 = vsel %vm1006, %v1447, 0
        %v1463 = vsel %vm1006, %v1448, 0
        %v1466 = vsel %vm1006, %v1449, 0
        %v1469 = vsel %vm1006, %v1450, 0
        %v1472 = vsel %vm1006, %v1451, 0
        %v1475 = vsel %vm1006, %v1452, 0
        %1477 = vmatprep.subr.bf16.mxu0 0
        %1478 = vmatpush1.bf16.msra.mxu0 0
        %1479 = vmatprep.subr.bf16.mxu0 0
        %1480 = vmatpush1.bf16.msra.mxu0 0
        %1481 = vmatprep.subr.bf16.mxu0 0
        %1482 = vmatpush1.bf16.msra.mxu0 0
        %1483 = vmatprep.subr.bf16.mxu0 0
        %1484 = vmatpush1.bf16.msra.mxu0 0
        %1485 = vmatprep.subr.bf16.mxu0 %v1300
        %1486 = vmatpush1.bf16.msra.mxu0 %v1299
        %1487 = vmatprep.subr.bf16.mxu0 %v1298
        %1488 = vmatpush1.bf16.msra.mxu0 %v1297
        %1489 = vmatprep.subr.bf16.mxu0 %v1296
        %1490 = vmatpush1.bf16.msra.mxu0 %v1295
        %1491 = vmatprep.subr.bf16.mxu0 %v1294
        %1492 = vmatpush1.bf16.msra.mxu0 %v1293
        %1493 = vmatprep.subr.bf16.mxu0 0
        %1494 = vmatpush2.bf16.msra.mxu0 0
        %1495 = vmatprep.subr.bf16.mxu0 0
        %1496 = vmatpush2.bf16.msra.mxu0 0
        %1497 = vmatprep.subr.bf16.mxu0 0
        %1498 = vmatpush2.bf16.msra.mxu0 0
        %1499 = vmatprep.subr.bf16.mxu0 0
        %1500 = vmatpush2.bf16.msra.mxu0 0
        %1501 = vmatprep.subr.bf16.mxu0 0
        %1502 = vmatpush2.bf16.msra.mxu0 0
        %1503 = vmatprep.subr.bf16.mxu0 0
        %1504 = vmatpush2.bf16.msra.mxu0 0
        %1505 = vmatprep.subr.bf16.mxu0 0
        %1506 = vmatpush2.bf16.msra.mxu0 0
        %1507 = vmatprep.subr.bf16.mxu0 0
        %1508 = vmatpush2.bf16.msra.mxu0 0
        %1509 = vmatprep.mubr.bf16.mxu0 0
        %1510 = vmatmul.mubr.bf16.gmra.mxu0 %v1454
        %v1511 = vpop.f32.mrf.mxu0
        %v1512 = vadd.f32 %v1336, %v1511
        %v1513 = vpop.f32.mrf.mxu0
        %v1514 = vadd.f32 %v1336, %v1513
        %v1515 = vpop.f32.mrf.mxu0
        %v1516 = vadd.f32 %v1341, %v1515
        %v1517 = vpop.f32.mrf.mxu0
        %v1518 = vadd.f32 %v1341, %v1517
        %1519 = vmatprep.mubr.bf16.mxu0 0
        %1520 = vmatmul.mubr.bf16.gmra.mxu0 %v1457
        %v1521 = vpop.f32.mrf.mxu0
        %v1522 = vadd.f32 %v1346, %v1521
        %v1523 = vpop.f32.mrf.mxu0
        %v1524 = vadd.f32 %v1346, %v1523
        %v1525 = vpop.f32.mrf.mxu0
        %v1526 = vadd.f32 %v1351, %v1525
        %v1527 = vpop.f32.mrf.mxu0
        %v1528 = vadd.f32 %v1351, %v1527
        %1529 = vmatprep.mubr.bf16.mxu0 0
        %1530 = vmatmul.mubr.bf16.gmra.mxu0 %v1460
        %v1531 = vpop.f32.mrf.mxu0
        %v1532 = vadd.f32 %v1356, %v1531
        %v1533 = vpop.f32.mrf.mxu0
        %v1534 = vadd.f32 %v1356, %v1533
        %v1535 = vpop.f32.mrf.mxu0
        %v1536 = vadd.f32 %v1361, %v1535
        %v1537 = vpop.f32.mrf.mxu0
        %v1538 = vadd.f32 %v1361, %v1537
        %1539 = vmatprep.mubr.bf16.mxu0 0
        %1540 = vmatmul.mubr.bf16.gmra.mxu0 %v1463
        %v1541 = vpop.f32.mrf.mxu0
        %v1542 = vadd.f32 %v1366, %v1541
        %v1543 = vpop.f32.mrf.mxu0
        %v1544 = vadd.f32 %v1366, %v1543
        %v1545 = vpop.f32.mrf.mxu0
        %v1546 = vadd.f32 %v1371, %v1545
        %v1547 = vpop.f32.mrf.mxu0
        %v1548 = vadd.f32 %v1371, %v1547
        %1549 = vmatprep.mubr.bf16.mxu0 0
        %1550 = vmatmul.mubr.bf16.gmra.mxu0 %v1466
        %v1551 = vpop.f32.mrf.mxu0
        %v1552 = vadd.f32 %v1376, %v1551
        %v1553 = vpop.f32.mrf.mxu0
        %v1554 = vadd.f32 %v1376, %v1553
        %v1555 = vpop.f32.mrf.mxu0
        %v1556 = vadd.f32 %v1381, %v1555
        %v1557 = vpop.f32.mrf.mxu0
        %v1558 = vadd.f32 %v1381, %v1557
        %1559 = vmatprep.mubr.bf16.mxu0 0
        %1560 = vmatmul.mubr.bf16.gmra.mxu0 %v1469
        %v1561 = vpop.f32.mrf.mxu0
        %v1562 = vadd.f32 %v1386, %v1561
        %v1563 = vpop.f32.mrf.mxu0
        %v1564 = vadd.f32 %v1386, %v1563
        %v1565 = vpop.f32.mrf.mxu0
        %v1566 = vadd.f32 %v1391, %v1565
        %v1567 = vpop.f32.mrf.mxu0
        %v1568 = vadd.f32 %v1391, %v1567
        %1569 = vmatprep.mubr.bf16.mxu0 0
        %1570 = vmatmul.mubr.bf16.gmra.mxu0 %v1472
        %v1571 = vpop.f32.mrf.mxu0
        %v1572 = vadd.f32 %v1396, %v1571
        %v1573 = vpop.f32.mrf.mxu0
        %v1574 = vadd.f32 %v1396, %v1573
        %v1575 = vpop.f32.mrf.mxu0
        %v1576 = vadd.f32 %v1401, %v1575
        %v1577 = vpop.f32.mrf.mxu0
        %v1578 = vadd.f32 %v1401, %v1577
        %1579 = vmatprep.mubr.bf16.mxu0 0
        %1580 = vmatmul.mubr.bf16.gmra.mxu0 %v1475
        %v1581 = vpop.f32.mrf.mxu0
        %v1582 = vadd.f32 %v1406, %v1581
        %v1583 = vpop.f32.mrf.mxu0
        %v1584 = vadd.f32 %v1406, %v1583
        %v1585 = vpop.f32.mrf.mxu0
        %v1586 = vadd.f32 %v1411, %v1585
        %v1587 = vpop.f32.mrf.mxu0
        %v1588 = vadd.f32 %v1411, %v1587
        %1589 = vdwg.mxu0
        %v1590 = vmax.f32 %v1512, 0.0
        %v1591 = vmax.f32 %v1514, 0.0
        %v1592 = vmax.f32 %v1516, 0.0
        %v1593 = vmax.f32 %v1518, 0.0
        %v1594 = vmax.f32 %v1522, 0.0
        %v1595 = vmax.f32 %v1524, 0.0
        %v1596 = vmax.f32 %v1526, 0.0
        %v1597 = vmax.f32 %v1528, 0.0
        %v1598 = vmax.f32 %v1532, 0.0
        %v1599 = vmax.f32 %v1534, 0.0
        %v1600 = vmax.f32 %v1536, 0.0
        %v1601 = vmax.f32 %v1538, 0.0
        %v1602 = vmax.f32 %v1542, 0.0
        %v1603 = vmax.f32 %v1544, 0.0
        %v1604 = vmax.f32 %v1546, 0.0
        %v1605 = vmax.f32 %v1548, 0.0
        %v1606 = vmax.f32 %v1552, 0.0
        %v1607 = vmax.f32 %v1554, 0.0
        %v1608 = vmax.f32 %v1556, 0.0
        %v1609 = vmax.f32 %v1558, 0.0
        %v1610 = vmax.f32 %v1562, 0.0
        %v1611 = vmax.f32 %v1564, 0.0
        %v1612 = vmax.f32 %v1566, 0.0
        %v1613 = vmax.f32 %v1568, 0.0
        %v1614 = vmax.f32 %v1572, 0.0
        %v1615 = vmax.f32 %v1574, 0.0
        %v1616 = vmax.f32 %v1576, 0.0
        %v1617 = vmax.f32 %v1578, 0.0
        %v1618 = vmax.f32 %v1582, 0.0
        %v1619 = vmax.f32 %v1584, 0.0
        %v1620 = vmax.f32 %v1586, 0.0
        %v1621 = vmax.f32 %v1588, 0.0
        %v1622 = vpack.c.bf16 %v1592, %v1590
        %v1623 = vpack.c.bf16 %v1593, %v1591
        %v1624 = vpack.c.bf16 %v1596, %v1594
        %v1625 = vpack.c.bf16 %v1597, %v1595
        %v1626 = vpack.c.bf16 %v1600, %v1598
        %v1627 = vpack.c.bf16 %v1601, %v1599
        %v1628 = vpack.c.bf16 %v1604, %v1602
        %v1629 = vpack.c.bf16 %v1605, %v1603
        %v1630 = vpack.c.bf16 %v1608, %v1606
        %v1631 = vpack.c.bf16 %v1609, %v1607
        %v1632 = vpack.c.bf16 %v1612, %v1610
        %v1633 = vpack.c.bf16 %v1613, %v1611
        %v1634 = vpack.c.bf16 %v1616, %v1614
        %v1635 = vpack.c.bf16 %v1617, %v1615
        %v1636 = vpack.c.bf16 %v1620, %v1618
        %v1637 = vpack.c.bf16 %v1621, %v1619
        %v1638 = vld [vmem:[#allocation15] sm:$0xf]
        %v1639 = vld [vmem:[#allocation15 + $0x4] sm:$0xf]
        %v1640 = vld [vmem:[#allocation15 + $0x8] sm:$0xf]
        %v1641 = vld [vmem:[#allocation15 + $0xc] sm:$0xf]
        %v1642 = vld [vmem:[#allocation15 + $0x10] sm:$0xf]
        %v1643 = vld [vmem:[#allocation15 + $0x14] sm:$0xf]
        %v1644 = vld [vmem:[#allocation15 + $0x18] sm:$0xf]
        %v1645 = vld [vmem:[#allocation15 + $0x1c] sm:$0xf]
        %v1646 = vld [vmem:[#allocation15 + $0x20] sm:$0xf]
        %v1647 = vld [vmem:[#allocation15 + $0x24] sm:$0xf]
        %v1648 = vld [vmem:[#allocation15 + $0x28] sm:$0xf]
        %v1649 = vld [vmem:[#allocation15 + $0x2c] sm:$0xf]
        %v1650 = vld [vmem:[#allocation15 + $0x30] sm:$0xf]
        %v1651 = vld [vmem:[#allocation15 + $0x34] sm:$0xf]
        %v1652 = vld [vmem:[#allocation15 + $0x38] sm:$0xf]
        %v1653 = vld [vmem:[#allocation15 + $0x3c] sm:$0xf]
        %v1654 = vld [vmem:[#allocation16] sm:$0xff]
        %v1655 = vld [vmem:[#allocation16 + $0x8] sm:$0xff]
        %v1656 = vld [vmem:[#allocation16 + $0x10] sm:$0xff]
        %v1657 = vld [vmem:[#allocation16 + $0x18] sm:$0xff]
        %v1658 = vld [vmem:[#allocation16 + $0x20] sm:$0xff]
        %v1659 = vld [vmem:[#allocation16 + $0x28] sm:$0xff]
        %v1660 = vld [vmem:[#allocation16 + $0x30] sm:$0xff]
        %v1661 = vld [vmem:[#allocation16 + $0x38] sm:$0xff]
        %v1662 = vld [vmem:[#allocation16 + $0x40] sm:$0xff]
        %v1663 = vld [vmem:[#allocation16 + $0x48] sm:$0xff]
        %v1664 = vld [vmem:[#allocation16 + $0x50] sm:$0xff]
        %v1665 = vld [vmem:[#allocation16 + $0x58] sm:$0xff]
        %v1666 = vld [vmem:[#allocation16 + $0x60] sm:$0xff]
        %v1667 = vld [vmem:[#allocation16 + $0x68] sm:$0xff]
        %v1668 = vld [vmem:[#allocation16 + $0x70] sm:$0xff]
        %v1669 = vld [vmem:[#allocation16 + $0x78] sm:$0xff]
        %1671 = vset.pattern.permute.xlu0 0
        %1672 = vperm.xlu0 %1671, %v1654
        %v1673 = vpop.permute.xlu0 %1672
        %1676 = vset.pattern.permute.xlu0 0
        %1677 = vperm.xlu0 %1676, %v1655
        %v1678 = vpop.permute.xlu0 %1677
        %1681 = vset.pattern.permute.xlu0 0
        %1682 = vperm.xlu0 %1681, %v1656
        %v1683 = vpop.permute.xlu0 %1682
        %1686 = vset.pattern.permute.xlu0 0
        %1687 = vperm.xlu0 %1686, %v1657
        %v1688 = vpop.permute.xlu0 %1687
        %1691 = vset.pattern.permute.xlu0 0
        %1692 = vperm.xlu0 %1691, %v1658
        %v1693 = vpop.permute.xlu0 %1692
        %1696 = vset.pattern.permute.xlu0 0
        %1697 = vperm.xlu0 %1696, %v1659
        %v1698 = vpop.permute.xlu0 %1697
        %1701 = vset.pattern.permute.xlu0 0
        %1702 = vperm.xlu0 %1701, %v1660
        %v1703 = vpop.permute.xlu0 %1702
        %1706 = vset.pattern.permute.xlu0 0
        %1707 = vperm.xlu0 %1706, %v1661
        %v1708 = vpop.permute.xlu0 %1707
        %1711 = vset.pattern.permute.xlu0 0
        %1712 = vperm.xlu0 %1711, %v1662
        %v1713 = vpop.permute.xlu0 %1712
        %1716 = vset.pattern.permute.xlu0 0
        %1717 = vperm.xlu0 %1716, %v1663
        %v1718 = vpop.permute.xlu0 %1717
        %1721 = vset.pattern.permute.xlu0 0
        %1722 = vperm.xlu0 %1721, %v1664
        %v1723 = vpop.permute.xlu0 %1722
        %1726 = vset.pattern.permute.xlu0 0
        %1727 = vperm.xlu0 %1726, %v1665
        %v1728 = vpop.permute.xlu0 %1727
        %1731 = vset.pattern.permute.xlu0 0
        %1732 = vperm.xlu0 %1731, %v1666
        %v1733 = vpop.permute.xlu0 %1732
        %1736 = vset.pattern.permute.xlu0 0
        %1737 = vperm.xlu0 %1736, %v1667
        %v1738 = vpop.permute.xlu0 %1737
        %1741 = vset.pattern.permute.xlu0 0
        %1742 = vperm.xlu0 %1741, %v1668
        %v1743 = vpop.permute.xlu0 %1742
        %1746 = vset.pattern.permute.xlu0 0
        %1747 = vperm.xlu0 %1746, %v1669
        %v1748 = vpop.permute.xlu0 %1747
        %v1766 = vunpack.c.l.b16 %v1638
        %v1767 = vunpack.c.l.b16 %v1639
        %v1768 = vunpack.c.l.b16 %v1640
        %v1769 = vunpack.c.l.b16 %v1641
        %v1770 = vunpack.c.l.b16 %v1642
        %v1771 = vunpack.c.l.b16 %v1643
        %v1772 = vunpack.c.l.b16 %v1644
        %v1773 = vunpack.c.l.b16 %v1645
        %v1774 = vunpack.c.l.b16 %v1646
        %v1775 = vunpack.c.l.b16 %v1647
        %v1776 = vunpack.c.l.b16 %v1648
        %v1777 = vunpack.c.l.b16 %v1649
        %v1778 = vunpack.c.l.b16 %v1650
        %v1779 = vunpack.c.l.b16 %v1651
        %v1780 = vunpack.c.l.b16 %v1652
        %v1781 = vunpack.c.l.b16 %v1653
        %v1782 = vpack.c.b16 %v1767, %v1766
        %v1783 = vpack.c.b16 %v1769, %v1768
        %v1784 = vpack.c.b16 %v1771, %v1770
        %v1785 = vpack.c.b16 %v1773, %v1772
        %v1786 = vpack.c.b16 %v1775, %v1774
        %v1787 = vpack.c.b16 %v1777, %v1776
        %v1788 = vpack.c.b16 %v1779, %v1778
        %v1789 = vpack.c.b16 %v1781, %v1780
        %1798 = vmatprep.subr.bf16.mxu0 %v1637
        %1799 = vmatpush1.bf16.msra.mxu0 %v1636
        %1800 = vmatprep.subr.bf16.mxu0 %v1635
        %1801 = vmatpush1.bf16.msra.mxu0 %v1634
        %1802 = vmatprep.subr.bf16.mxu0 %v1633
        %1803 = vmatpush1.bf16.msra.mxu0 %v1632
        %1804 = vmatprep.subr.bf16.mxu0 %v1631
        %1805 = vmatpush1.bf16.msra.mxu0 %v1630
        %1806 = vmatprep.subr.bf16.mxu0 %v1629
        %1807 = vmatpush1.bf16.msra.mxu0 %v1628
        %1808 = vmatprep.subr.bf16.mxu0 %v1627
        %1809 = vmatpush1.bf16.msra.mxu0 %v1626
        %1810 = vmatprep.subr.bf16.mxu0 %v1625
        %1811 = vmatpush1.bf16.msra.mxu0 %v1624
        %1812 = vmatprep.subr.bf16.mxu0 %v1623
        %1813 = vmatpush1.bf16.msra.mxu0 %v1622
        %1814 = vmatprep.subr.bf16.mxu0 0
        %1815 = vmatpush2.bf16.msra.mxu0 0
        %1816 = vmatprep.subr.bf16.mxu0 0
        %1817 = vmatpush2.bf16.msra.mxu0 0
        %1818 = vmatprep.subr.bf16.mxu0 0
        %1819 = vmatpush2.bf16.msra.mxu0 0
        %1820 = vmatprep.subr.bf16.mxu0 0
        %1821 = vmatpush2.bf16.msra.mxu0 0
        %1822 = vmatprep.subr.bf16.mxu0 0
        %1823 = vmatpush2.bf16.msra.mxu0 0
        %1824 = vmatprep.subr.bf16.mxu0 0
        %1825 = vmatpush2.bf16.msra.mxu0 0
        %1826 = vmatprep.subr.bf16.mxu0 0
        %1827 = vmatpush2.bf16.msra.mxu0 0
        %1828 = vmatprep.subr.bf16.mxu0 0
        %1829 = vmatpush2.bf16.msra.mxu0 0
        %1830 = vmatprep.mubr.bf16.mxu0 0
        %1831 = vmatmul.mubr.bf16.gmra.mxu0 %v1782
        %v1832 = vpop.f32.mrf.mxu0
        %v1833 = vadd.f32 %v1673, %v1832
        %v1834 = vpop.f32.mrf.mxu0
        %v1835 = vadd.f32 %v1673, %v1834
        %v1836 = vpop.f32.mrf.mxu0
        %v1837 = vadd.f32 %v1678, %v1836
        %v1838 = vpop.f32.mrf.mxu0
        %v1839 = vadd.f32 %v1678, %v1838
        %1840 = vmatprep.mubr.bf16.mxu0 0
        %1841 = vmatmul.mubr.bf16.gmra.mxu0 %v1783
        %v1842 = vpop.f32.mrf.mxu0
        %v1843 = vadd.f32 %v1683, %v1842
        %v1844 = vpop.f32.mrf.mxu0
        %v1845 = vadd.f32 %v1683, %v1844
        %v1846 = vpop.f32.mrf.mxu0
        %v1847 = vadd.f32 %v1688, %v1846
        %v1848 = vpop.f32.mrf.mxu0
        %v1849 = vadd.f32 %v1688, %v1848
        %1850 = vmatprep.mubr.bf16.mxu0 0
        %1851 = vmatmul.mubr.bf16.gmra.mxu0 %v1784
        %v1852 = vpop.f32.mrf.mxu0
        %v1853 = vadd.f32 %v1693, %v1852
        %v1854 = vpop.f32.mrf.mxu0
        %v1855 = vadd.f32 %v1693, %v1854
        %v1856 = vpop.f32.mrf.mxu0
        %v1857 = vadd.f32 %v1698, %v1856
        %v1858 = vpop.f32.mrf.mxu0
        %v1859 = vadd.f32 %v1698, %v1858
        %1860 = vmatprep.mubr.bf16.mxu0 0
        %1861 = vmatmul.mubr.bf16.gmra.mxu0 %v1785
        %v1862 = vpop.f32.mrf.mxu0
        %v1863 = vadd.f32 %v1703, %v1862
        %v1864 = vpop.f32.mrf.mxu0
        %v1865 = vadd.f32 %v1703, %v1864
        %v1866 = vpop.f32.mrf.mxu0
        %v1867 = vadd.f32 %v1708, %v1866
        %v1868 = vpop.f32.mrf.mxu0
        %v1869 = vadd.f32 %v1708, %v1868
        %1870 = vmatprep.mubr.bf16.mxu0 0
        %1871 = vmatmul.mubr.bf16.gmra.mxu0 %v1786
        %v1872 = vpop.f32.mrf.mxu0
        %v1873 = vadd.f32 %v1713, %v1872
        %v1874 = vpop.f32.mrf.mxu0
        %v1875 = vadd.f32 %v1713, %v1874
        %v1876 = vpop.f32.mrf.mxu0
        %v1877 = vadd.f32 %v1718, %v1876
        %v1878 = vpop.f32.mrf.mxu0
        %v1879 = vadd.f32 %v1718, %v1878
        %1880 = vmatprep.mubr.bf16.mxu0 0
        %1881 = vmatmul.mubr.bf16.gmra.mxu0 %v1787
        %v1882 = vpop.f32.mrf.mxu0
        %v1883 = vadd.f32 %v1723, %v1882
        %v1884 = vpop.f32.mrf.mxu0
        %v1885 = vadd.f32 %v1723, %v1884
        %v1886 = vpop.f32.mrf.mxu0
        %v1887 = vadd.f32 %v1728, %v1886
        %v1888 = vpop.f32.mrf.mxu0
        %v1889 = vadd.f32 %v1728, %v1888
        %1890 = vmatprep.mubr.bf16.mxu0 0
        %1891 = vmatmul.mubr.bf16.gmra.mxu0 %v1788
        %v1892 = vpop.f32.mrf.mxu0
        %v1893 = vadd.f32 %v1733, %v1892
        %v1894 = vpop.f32.mrf.mxu0
        %v1895 = vadd.f32 %v1733, %v1894
        %v1896 = vpop.f32.mrf.mxu0
        %v1897 = vadd.f32 %v1738, %v1896
        %v1898 = vpop.f32.mrf.mxu0
        %v1899 = vadd.f32 %v1738, %v1898
        %1900 = vmatprep.mubr.bf16.mxu0 0
        %1901 = vmatmul.mubr.bf16.gmra.mxu0 %v1789
        %v1902 = vpop.f32.mrf.mxu0
        %v1903 = vadd.f32 %v1743, %v1902
        %v1904 = vpop.f32.mrf.mxu0
        %v1905 = vadd.f32 %v1743, %v1904
        %v1906 = vpop.f32.mrf.mxu0
        %v1907 = vadd.f32 %v1748, %v1906
        %v1908 = vpop.f32.mrf.mxu0
        %v1909 = vadd.f32 %v1748, %v1908
        %1910 = vdwg.mxu0
        %v1911 = vmax.f32 %v1833, 0.0
        %v1912 = vmax.f32 %v1835, 0.0
        %v1913 = vmax.f32 %v1837, 0.0
        %v1914 = vmax.f32 %v1839, 0.0
        %v1915 = vmax.f32 %v1843, 0.0
        %v1916 = vmax.f32 %v1845, 0.0
        %v1917 = vmax.f32 %v1847, 0.0
        %v1918 = vmax.f32 %v1849, 0.0
        %v1919 = vmax.f32 %v1853, 0.0
        %v1920 = vmax.f32 %v1855, 0.0
        %v1921 = vmax.f32 %v1857, 0.0
        %v1922 = vmax.f32 %v1859, 0.0
        %v1923 = vmax.f32 %v1863, 0.0
        %v1924 = vmax.f32 %v1865, 0.0
        %v1925 = vmax.f32 %v1867, 0.0
        %v1926 = vmax.f32 %v1869, 0.0
        %v1927 = vmax.f32 %v1873, 0.0
        %v1928 = vmax.f32 %v1875, 0.0
        %v1929 = vmax.f32 %v1877, 0.0
        %v1930 = vmax.f32 %v1879, 0.0
        %v1931 = vmax.f32 %v1883, 0.0
        %v1932 = vmax.f32 %v1885, 0.0
        %v1933 = vmax.f32 %v1887, 0.0
        %v1934 = vmax.f32 %v1889, 0.0
        %v1935 = vmax.f32 %v1893, 0.0
        %v1936 = vmax.f32 %v1895, 0.0
        %v1937 = vmax.f32 %v1897, 0.0
        %v1938 = vmax.f32 %v1899, 0.0
        %v1939 = vmax.f32 %v1903, 0.0
        %v1940 = vmax.f32 %v1905, 0.0
        %v1941 = vmax.f32 %v1907, 0.0
        %v1942 = vmax.f32 %v1909, 0.0
        %v1943 = vpack.c.bf16 %v1913, %v1911
        %v1944 = vpack.c.bf16 %v1914, %v1912
        %v1945 = vpack.c.bf16 %v1917, %v1915
        %v1946 = vpack.c.bf16 %v1918, %v1916
        %v1947 = vpack.c.bf16 %v1921, %v1919
        %v1948 = vpack.c.bf16 %v1922, %v1920
        %v1949 = vpack.c.bf16 %v1925, %v1923
        %v1950 = vpack.c.bf16 %v1926, %v1924
        %v1951 = vpack.c.bf16 %v1929, %v1927
        %v1952 = vpack.c.bf16 %v1930, %v1928
        %v1953 = vpack.c.bf16 %v1933, %v1931
        %v1954 = vpack.c.bf16 %v1934, %v1932
        %v1955 = vpack.c.bf16 %v1937, %v1935
        %v1956 = vpack.c.bf16 %v1938, %v1936
        %v1957 = vpack.c.bf16 %v1941, %v1939
        %v1958 = vpack.c.bf16 %v1942, %v1940
        %v1959 = vld [vmem:[#allocation18] sm:$0xf]
        %v1960 = vld [vmem:[#allocation18 + $0x4] sm:$0xf]
        %v1961 = vld [vmem:[#allocation18 + $0x8] sm:$0xf]
        %v1962 = vld [vmem:[#allocation18 + $0xc] sm:$0xf]
        %v1963 = vld [vmem:[#allocation18 + $0x10] sm:$0xf]
        %v1964 = vld [vmem:[#allocation18 + $0x14] sm:$0xf]
        %v1965 = vld [vmem:[#allocation18 + $0x18] sm:$0xf]
        %v1966 = vld [vmem:[#allocation18 + $0x1c] sm:$0xf]
        %v1967 = vld [vmem:[#allocation18 + $0x20] sm:$0xf]
        %v1968 = vld [vmem:[#allocation18 + $0x24] sm:$0xf]
        %v1969 = vld [vmem:[#allocation18 + $0x28] sm:$0xf]
        %v1970 = vld [vmem:[#allocation18 + $0x2c] sm:$0xf]
        %v1971 = vld [vmem:[#allocation18 + $0x30] sm:$0xf]
        %v1972 = vld [vmem:[#allocation18 + $0x34] sm:$0xf]
        %v1973 = vld [vmem:[#allocation18 + $0x38] sm:$0xf]
        %v1974 = vld [vmem:[#allocation18 + $0x3c] sm:$0xf]
        %v1975 = vld [vmem:[#allocation19] sm:$0xff]
        %v1976 = vld [vmem:[#allocation19 + $0x8] sm:$0xff]
        %v1977 = vld [vmem:[#allocation19 + $0x10] sm:$0xff]
        %v1978 = vld [vmem:[#allocation19 + $0x18] sm:$0xff]
        %v1979 = vld [vmem:[#allocation19 + $0x20] sm:$0xff]
        %v1980 = vld [vmem:[#allocation19 + $0x28] sm:$0xff]
        %v1981 = vld [vmem:[#allocation19 + $0x30] sm:$0xff]
        %v1982 = vld [vmem:[#allocation19 + $0x38] sm:$0xff]
        %v1983 = vld [vmem:[#allocation19 + $0x40] sm:$0xff]
        %v1984 = vld [vmem:[#allocation19 + $0x48] sm:$0xff]
        %v1985 = vld [vmem:[#allocation19 + $0x50] sm:$0xff]
        %v1986 = vld [vmem:[#allocation19 + $0x58] sm:$0xff]
        %v1987 = vld [vmem:[#allocation19 + $0x60] sm:$0xff]
        %v1988 = vld [vmem:[#allocation19 + $0x68] sm:$0xff]
        %v1989 = vld [vmem:[#allocation19 + $0x70] sm:$0xff]
        %v1990 = vld [vmem:[#allocation19 + $0x78] sm:$0xff]
        %1992 = vset.pattern.permute.xlu0 0
        %1993 = vperm.xlu0 %1992, %v1975
        %v1994 = vpop.permute.xlu0 %1993
        %1997 = vset.pattern.permute.xlu0 0
        %1998 = vperm.xlu0 %1997, %v1976
        %v1999 = vpop.permute.xlu0 %1998
        %2002 = vset.pattern.permute.xlu0 0
        %2003 = vperm.xlu0 %2002, %v1977
        %v2004 = vpop.permute.xlu0 %2003
        %2007 = vset.pattern.permute.xlu0 0
        %2008 = vperm.xlu0 %2007, %v1978
        %v2009 = vpop.permute.xlu0 %2008
        %2012 = vset.pattern.permute.xlu0 0
        %2013 = vperm.xlu0 %2012, %v1979
        %v2014 = vpop.permute.xlu0 %2013
        %2017 = vset.pattern.permute.xlu0 0
        %2018 = vperm.xlu0 %2017, %v1980
        %v2019 = vpop.permute.xlu0 %2018
        %2022 = vset.pattern.permute.xlu0 0
        %2023 = vperm.xlu0 %2022, %v1981
        %v2024 = vpop.permute.xlu0 %2023
        %2027 = vset.pattern.permute.xlu0 0
        %2028 = vperm.xlu0 %2027, %v1982
        %v2029 = vpop.permute.xlu0 %2028
        %2032 = vset.pattern.permute.xlu0 0
        %2033 = vperm.xlu0 %2032, %v1983
        %v2034 = vpop.permute.xlu0 %2033
        %2037 = vset.pattern.permute.xlu0 0
        %2038 = vperm.xlu0 %2037, %v1984
        %v2039 = vpop.permute.xlu0 %2038
        %2042 = vset.pattern.permute.xlu0 0
        %2043 = vperm.xlu0 %2042, %v1985
        %v2044 = vpop.permute.xlu0 %2043
        %2047 = vset.pattern.permute.xlu0 0
        %2048 = vperm.xlu0 %2047, %v1986
        %v2049 = vpop.permute.xlu0 %2048
        %2052 = vset.pattern.permute.xlu0 0
        %2053 = vperm.xlu0 %2052, %v1987
        %v2054 = vpop.permute.xlu0 %2053
        %2057 = vset.pattern.permute.xlu0 0
        %2058 = vperm.xlu0 %2057, %v1988
        %v2059 = vpop.permute.xlu0 %2058
        %2062 = vset.pattern.permute.xlu0 0
        %2063 = vperm.xlu0 %2062, %v1989
        %v2064 = vpop.permute.xlu0 %2063
        %2067 = vset.pattern.permute.xlu0 0
        %2068 = vperm.xlu0 %2067, %v1990
        %v2069 = vpop.permute.xlu0 %2068
        %v2087 = vunpack.c.l.b16 %v1959
        %v2088 = vunpack.c.l.b16 %v1960
        %v2089 = vunpack.c.l.b16 %v1961
        %v2090 = vunpack.c.l.b16 %v1962
        %v2091 = vunpack.c.l.b16 %v1963
        %v2092 = vunpack.c.l.b16 %v1964
        %v2093 = vunpack.c.l.b16 %v1965
        %v2094 = vunpack.c.l.b16 %v1966
        %v2095 = vunpack.c.l.b16 %v1967
        %v2096 = vunpack.c.l.b16 %v1968
        %v2097 = vunpack.c.l.b16 %v1969
        %v2098 = vunpack.c.l.b16 %v1970
        %v2099 = vunpack.c.l.b16 %v1971
        %v2100 = vunpack.c.l.b16 %v1972
        %v2101 = vunpack.c.l.b16 %v1973
        %v2102 = vunpack.c.l.b16 %v1974
        %v2103 = vpack.c.b16 %v2088, %v2087
        %v2104 = vpack.c.b16 %v2090, %v2089
        %v2105 = vpack.c.b16 %v2092, %v2091
        %v2106 = vpack.c.b16 %v2094, %v2093
        %v2107 = vpack.c.b16 %v2096, %v2095
        %v2108 = vpack.c.b16 %v2098, %v2097
        %v2109 = vpack.c.b16 %v2100, %v2099
        %v2110 = vpack.c.b16 %v2102, %v2101
        %2119 = vmatprep.subr.bf16.mxu0 %v1958
        %2120 = vmatpush1.bf16.msra.mxu0 %v1957
        %2121 = vmatprep.subr.bf16.mxu0 %v1956
        %2122 = vmatpush1.bf16.msra.mxu0 %v1955
        %2123 = vmatprep.subr.bf16.mxu0 %v1954
        %2124 = vmatpush1.bf16.msra.mxu0 %v1953
        %2125 = vmatprep.subr.bf16.mxu0 %v1952
        %2126 = vmatpush1.bf16.msra.mxu0 %v1951
        %2127 = vmatprep.subr.bf16.mxu0 %v1950
        %2128 = vmatpush1.bf16.msra.mxu0 %v1949
        %2129 = vmatprep.subr.bf16.mxu0 %v1948
        %2130 = vmatpush1.bf16.msra.mxu0 %v1947
        %2131 = vmatprep.subr.bf16.mxu0 %v1946
        %2132 = vmatpush1.bf16.msra.mxu0 %v1945
        %2133 = vmatprep.subr.bf16.mxu0 %v1944
        %2134 = vmatpush1.bf16.msra.mxu0 %v1943
        %2135 = vmatprep.subr.bf16.mxu0 0
        %2136 = vmatpush2.bf16.msra.mxu0 0
        %2137 = vmatprep.subr.bf16.mxu0 0
        %2138 = vmatpush2.bf16.msra.mxu0 0
        %2139 = vmatprep.subr.bf16.mxu0 0
        %2140 = vmatpush2.bf16.msra.mxu0 0
        %2141 = vmatprep.subr.bf16.mxu0 0
        %2142 = vmatpush2.bf16.msra.mxu0 0
        %2143 = vmatprep.subr.bf16.mxu0 0
        %2144 = vmatpush2.bf16.msra.mxu0 0
        %2145 = vmatprep.subr.bf16.mxu0 0
        %2146 = vmatpush2.bf16.msra.mxu0 0
        %2147 = vmatprep.subr.bf16.mxu0 0
        %2148 = vmatpush2.bf16.msra.mxu0 0
        %2149 = vmatprep.subr.bf16.mxu0 0
        %2150 = vmatpush2.bf16.msra.mxu0 0
        %2151 = vmatprep.mubr.bf16.mxu0 0
        %2152 = vmatmul.mubr.bf16.gmra.mxu0 %v2103
        %v2153 = vpop.f32.mrf.mxu0
        %v2154 = vadd.f32 %v1994, %v2153
        %v2155 = vpop.f32.mrf.mxu0
        %v2156 = vadd.f32 %v1994, %v2155
        %v2157 = vpop.f32.mrf.mxu0
        %v2158 = vadd.f32 %v1999, %v2157
        %v2159 = vpop.f32.mrf.mxu0
        %v2160 = vadd.f32 %v1999, %v2159
        %2161 = vmatprep.mubr.bf16.mxu0 0
        %2162 = vmatmul.mubr.bf16.gmra.mxu0 %v2104
        %v2163 = vpop.f32.mrf.mxu0
        %v2164 = vadd.f32 %v2004, %v2163
        %v2165 = vpop.f32.mrf.mxu0
        %v2166 = vadd.f32 %v2004, %v2165
        %v2167 = vpop.f32.mrf.mxu0
        %v2168 = vadd.f32 %v2009, %v2167
        %v2169 = vpop.f32.mrf.mxu0
        %v2170 = vadd.f32 %v2009, %v2169
        %2171 = vmatprep.mubr.bf16.mxu0 0
        %2172 = vmatmul.mubr.bf16.gmra.mxu0 %v2105
        %v2173 = vpop.f32.mrf.mxu0
        %v2174 = vadd.f32 %v2014, %v2173
        %v2175 = vpop.f32.mrf.mxu0
        %v2176 = vadd.f32 %v2014, %v2175
        %v2177 = vpop.f32.mrf.mxu0
        %v2178 = vadd.f32 %v2019, %v2177
        %v2179 = vpop.f32.mrf.mxu0
        %v2180 = vadd.f32 %v2019, %v2179
        %2181 = vmatprep.mubr.bf16.mxu0 0
        %2182 = vmatmul.mubr.bf16.gmra.mxu0 %v2106
        %v2183 = vpop.f32.mrf.mxu0
        %v2184 = vadd.f32 %v2024, %v2183
        %v2185 = vpop.f32.mrf.mxu0
        %v2186 = vadd.f32 %v2024, %v2185
        %v2187 = vpop.f32.mrf.mxu0
        %v2188 = vadd.f32 %v2029, %v2187
        %v2189 = vpop.f32.mrf.mxu0
        %v2190 = vadd.f32 %v2029, %v2189
        %2191 = vmatprep.mubr.bf16.mxu0 0
        %2192 = vmatmul.mubr.bf16.gmra.mxu0 %v2107
        %v2193 = vpop.f32.mrf.mxu0
        %v2194 = vadd.f32 %v2034, %v2193
        %v2195 = vpop.f32.mrf.mxu0
        %v2196 = vadd.f32 %v2034, %v2195
        %v2197 = vpop.f32.mrf.mxu0
        %v2198 = vadd.f32 %v2039, %v2197
        %v2199 = vpop.f32.mrf.mxu0
        %v2200 = vadd.f32 %v2039, %v2199
        %2201 = vmatprep.mubr.bf16.mxu0 0
        %2202 = vmatmul.mubr.bf16.gmra.mxu0 %v2108
        %v2203 = vpop.f32.mrf.mxu0
        %v2204 = vadd.f32 %v2044, %v2203
        %v2205 = vpop.f32.mrf.mxu0
        %v2206 = vadd.f32 %v2044, %v2205
        %v2207 = vpop.f32.mrf.mxu0
        %v2208 = vadd.f32 %v2049, %v2207
        %v2209 = vpop.f32.mrf.mxu0
        %v2210 = vadd.f32 %v2049, %v2209
        %2211 = vmatprep.mubr.bf16.mxu0 0
        %2212 = vmatmul.mubr.bf16.gmra.mxu0 %v2109
        %v2213 = vpop.f32.mrf.mxu0
        %v2214 = vadd.f32 %v2054, %v2213
        %v2215 = vpop.f32.mrf.mxu0
        %v2216 = vadd.f32 %v2054, %v2215
        %v2217 = vpop.f32.mrf.mxu0
        %v2218 = vadd.f32 %v2059, %v2217
        %v2219 = vpop.f32.mrf.mxu0
        %v2220 = vadd.f32 %v2059, %v2219
        %2221 = vmatprep.mubr.bf16.mxu0 0
        %2222 = vmatmul.mubr.bf16.gmra.mxu0 %v2110
        %v2223 = vpop.f32.mrf.mxu0
        %v2224 = vadd.f32 %v2064, %v2223
        %v2225 = vpop.f32.mrf.mxu0
        %v2226 = vadd.f32 %v2064, %v2225
        %v2227 = vpop.f32.mrf.mxu0
        %v2228 = vadd.f32 %v2069, %v2227
        %v2229 = vpop.f32.mrf.mxu0
        %v2230 = vadd.f32 %v2069, %v2229
        %2231 = vdwg.mxu0
        %v2232 = vmax.f32 %v2154, 0.0
        %v2233 = vmax.f32 %v2156, 0.0
        %v2234 = vmax.f32 %v2158, 0.0
        %v2235 = vmax.f32 %v2160, 0.0
        %v2236 = vmax.f32 %v2164, 0.0
        %v2237 = vmax.f32 %v2166, 0.0
        %v2238 = vmax.f32 %v2168, 0.0
        %v2239 = vmax.f32 %v2170, 0.0
        %v2240 = vmax.f32 %v2174, 0.0
        %v2241 = vmax.f32 %v2176, 0.0
        %v2242 = vmax.f32 %v2178, 0.0
        %v2243 = vmax.f32 %v2180, 0.0
        %v2244 = vmax.f32 %v2184, 0.0
        %v2245 = vmax.f32 %v2186, 0.0
        %v2246 = vmax.f32 %v2188, 0.0
        %v2247 = vmax.f32 %v2190, 0.0
        %v2248 = vmax.f32 %v2194, 0.0
        %v2249 = vmax.f32 %v2196, 0.0
        %v2250 = vmax.f32 %v2198, 0.0
        %v2251 = vmax.f32 %v2200, 0.0
        %v2252 = vmax.f32 %v2204, 0.0
        %v2253 = vmax.f32 %v2206, 0.0
        %v2254 = vmax.f32 %v2208, 0.0
        %v2255 = vmax.f32 %v2210, 0.0
        %v2256 = vmax.f32 %v2214, 0.0
        %v2257 = vmax.f32 %v2216, 0.0
        %v2258 = vmax.f32 %v2218, 0.0
        %v2259 = vmax.f32 %v2220, 0.0
        %v2260 = vmax.f32 %v2224, 0.0
        %v2261 = vmax.f32 %v2226, 0.0
        %v2262 = vmax.f32 %v2228, 0.0
        %v2263 = vmax.f32 %v2230, 0.0
        %v2264 = vpack.c.bf16 %v2234, %v2232
        %v2265 = vpack.c.bf16 %v2235, %v2233
        %v2266 = vpack.c.bf16 %v2238, %v2236
        %v2267 = vpack.c.bf16 %v2239, %v2237
        %v2268 = vpack.c.bf16 %v2242, %v2240
        %v2269 = vpack.c.bf16 %v2243, %v2241
        %v2270 = vpack.c.bf16 %v2246, %v2244
        %v2271 = vpack.c.bf16 %v2247, %v2245
        %v2272 = vpack.c.bf16 %v2250, %v2248
        %v2273 = vpack.c.bf16 %v2251, %v2249
        %v2274 = vpack.c.bf16 %v2254, %v2252
        %v2275 = vpack.c.bf16 %v2255, %v2253
        %v2276 = vpack.c.bf16 %v2258, %v2256
        %v2277 = vpack.c.bf16 %v2259, %v2257
        %v2278 = vpack.c.bf16 %v2262, %v2260
        %v2279 = vpack.c.bf16 %v2263, %v2261
        %v2280 = vld [vmem:[#allocation21] sm:$0xf]
        %v2281 = vld [vmem:[#allocation21 + $0x4] sm:$0xf]
        %v2282 = vld [vmem:[#allocation21 + $0x8] sm:$0xf]
        %v2283 = vld [vmem:[#allocation21 + $0xc] sm:$0xf]
        %v2284 = vld [vmem:[#allocation21 + $0x10] sm:$0xf]
        %v2285 = vld [vmem:[#allocation21 + $0x14] sm:$0xf]
        %v2286 = vld [vmem:[#allocation21 + $0x18] sm:$0xf]
        %v2287 = vld [vmem:[#allocation21 + $0x1c] sm:$0xf]
        %v2288 = vld [vmem:[#allocation21 + $0x20] sm:$0xf]
        %v2289 = vld [vmem:[#allocation21 + $0x24] sm:$0xf]
        %v2290 = vld [vmem:[#allocation21 + $0x28] sm:$0xf]
        %v2291 = vld [vmem:[#allocation21 + $0x2c] sm:$0xf]
        %v2292 = vld [vmem:[#allocation21 + $0x30] sm:$0xf]
        %v2293 = vld [vmem:[#allocation21 + $0x34] sm:$0xf]
        %v2294 = vld [vmem:[#allocation21 + $0x38] sm:$0xf]
        %v2295 = vld [vmem:[#allocation21 + $0x3c] sm:$0xf]
        %v2296 = vld [vmem:[#allocation21 + $0x40] sm:$0xf]
        %v2297 = vld [vmem:[#allocation21 + $0x44] sm:$0xf]
        %v2298 = vld [vmem:[#allocation21 + $0x48] sm:$0xf]
        %v2299 = vld [vmem:[#allocation21 + $0x4c] sm:$0xf]
        %v2300 = vld [vmem:[#allocation21 + $0x50] sm:$0xf]
        %v2301 = vld [vmem:[#allocation21 + $0x54] sm:$0xf]
        %v2302 = vld [vmem:[#allocation21 + $0x58] sm:$0xf]
        %v2303 = vld [vmem:[#allocation21 + $0x5c] sm:$0xf]
        %v2304 = vld [vmem:[#allocation21 + $0x60] sm:$0xf]
        %v2305 = vld [vmem:[#allocation21 + $0x64] sm:$0xf]
        %v2306 = vld [vmem:[#allocation21 + $0x68] sm:$0xf]
        %v2307 = vld [vmem:[#allocation21 + $0x6c] sm:$0xf]
        %v2308 = vld [vmem:[#allocation21 + $0x70] sm:$0xf]
        %v2309 = vld [vmem:[#allocation21 + $0x74] sm:$0xf]
        %v2310 = vld [vmem:[#allocation21 + $0x78] sm:$0xf]
        %v2311 = vld [vmem:[#allocation21 + $0x7c] sm:$0xf]
        %v2312 = vld [vmem:[#allocation21 + $0x80] sm:$0xf]
        %v2313 = vld [vmem:[#allocation21 + $0x84] sm:$0xf]
        %v2314 = vld [vmem:[#allocation21 + $0x88] sm:$0xf]
        %v2315 = vld [vmem:[#allocation21 + $0x8c] sm:$0xf]
        %v2316 = vld [vmem:[#allocation21 + $0x90] sm:$0xf]
        %v2317 = vld [vmem:[#allocation21 + $0x94] sm:$0xf]
        %v2318 = vld [vmem:[#allocation21 + $0x98] sm:$0xf]
        %v2319 = vld [vmem:[#allocation21 + $0x9c] sm:$0xf]
        %v2320 = vld [vmem:[#allocation21 + $0xa0] sm:$0xf]
        %v2321 = vld [vmem:[#allocation21 + $0xa4] sm:$0xf]
        %v2322 = vld [vmem:[#allocation21 + $0xa8] sm:$0xf]
        %v2323 = vld [vmem:[#allocation21 + $0xac] sm:$0xf]
        %v2324 = vld [vmem:[#allocation21 + $0xb0] sm:$0xf]
        %v2325 = vld [vmem:[#allocation21 + $0xb4] sm:$0xf]
        %v2326 = vld [vmem:[#allocation21 + $0xb8] sm:$0xf]
        %v2327 = vld [vmem:[#allocation21 + $0xbc] sm:$0xf]
        %v2328 = vld [vmem:[#allocation21 + $0xc0] sm:$0xf]
        %v2329 = vld [vmem:[#allocation21 + $0xc4] sm:$0xf]
        %v2330 = vld [vmem:[#allocation21 + $0xc8] sm:$0xf]
        %v2331 = vld [vmem:[#allocation21 + $0xcc] sm:$0xf]
        %v2332 = vld [vmem:[#allocation21 + $0xd0] sm:$0xf]
        %v2333 = vld [vmem:[#allocation21 + $0xd4] sm:$0xf]
        %v2334 = vld [vmem:[#allocation21 + $0xd8] sm:$0xf]
        %v2335 = vld [vmem:[#allocation21 + $0xdc] sm:$0xf]
        %v2336 = vld [vmem:[#allocation21 + $0xe0] sm:$0xf]
        %v2337 = vld [vmem:[#allocation21 + $0xe4] sm:$0xf]
        %v2338 = vld [vmem:[#allocation21 + $0xe8] sm:$0xf]
        %v2339 = vld [vmem:[#allocation21 + $0xec] sm:$0xf]
        %v2340 = vld [vmem:[#allocation21 + $0xf0] sm:$0xf]
        %v2341 = vld [vmem:[#allocation21 + $0xf4] sm:$0xf]
        %v2342 = vld [vmem:[#allocation21 + $0xf8] sm:$0xf]
        %v2343 = vld [vmem:[#allocation21 + $0xfc] sm:$0xf]
        %v2344 = vld [vmem:[#allocation21 + $0x100] sm:$0xf]
        %v2345 = vld [vmem:[#allocation21 + $0x104] sm:$0xf]
        %v2346 = vld [vmem:[#allocation21 + $0x108] sm:$0xf]
        %v2347 = vld [vmem:[#allocation21 + $0x10c] sm:$0xf]
        %v2348 = vld [vmem:[#allocation21 + $0x110] sm:$0xf]
        %v2349 = vld [vmem:[#allocation21 + $0x114] sm:$0xf]
        %v2350 = vld [vmem:[#allocation21 + $0x118] sm:$0xf]
        %v2351 = vld [vmem:[#allocation21 + $0x11c] sm:$0xf]
        %v2352 = vld [vmem:[#allocation21 + $0x120] sm:$0xf]
        %v2353 = vld [vmem:[#allocation21 + $0x124] sm:$0xf]
        %v2354 = vld [vmem:[#allocation21 + $0x128] sm:$0xf]
        %v2355 = vld [vmem:[#allocation21 + $0x12c] sm:$0xf]
        %v2356 = vld [vmem:[#allocation21 + $0x130] sm:$0xf]
        %v2357 = vld [vmem:[#allocation21 + $0x134] sm:$0xf]
        %v2358 = vld [vmem:[#allocation21 + $0x138] sm:$0xf]
        %v2359 = vld [vmem:[#allocation21 + $0x13c] sm:$0xf]
        %v2360 = vld [vmem:[#allocation21 + $0x140] sm:$0xf]
        %v2361 = vld [vmem:[#allocation21 + $0x144] sm:$0xf]
        %v2362 = vld [vmem:[#allocation21 + $0x148] sm:$0xf]
        %v2363 = vld [vmem:[#allocation21 + $0x14c] sm:$0xf]
        %v2364 = vld [vmem:[#allocation21 + $0x150] sm:$0xf]
        %v2365 = vld [vmem:[#allocation21 + $0x154] sm:$0xf]
        %v2366 = vld [vmem:[#allocation21 + $0x158] sm:$0xf]
        %v2367 = vld [vmem:[#allocation21 + $0x15c] sm:$0xf]
        %v2368 = vld [vmem:[#allocation21 + $0x160] sm:$0xf]
        %v2369 = vld [vmem:[#allocation21 + $0x164] sm:$0xf]
        %v2370 = vld [vmem:[#allocation21 + $0x168] sm:$0xf]
        %v2371 = vld [vmem:[#allocation21 + $0x16c] sm:$0xf]
        %v2372 = vld [vmem:[#allocation21 + $0x170] sm:$0xf]
        %v2373 = vld [vmem:[#allocation21 + $0x174] sm:$0xf]
        %v2374 = vld [vmem:[#allocation21 + $0x178] sm:$0xf]
        %v2375 = vld [vmem:[#allocation21 + $0x17c] sm:$0xf]
        %v2376 = vld [vmem:[#allocation21 + $0x180] sm:$0xf]
        %v2377 = vld [vmem:[#allocation21 + $0x184] sm:$0xf]
        %v2378 = vld [vmem:[#allocation21 + $0x188] sm:$0xf]
        %v2379 = vld [vmem:[#allocation21 + $0x18c] sm:$0xf]
        %v2380 = vld [vmem:[#allocation21 + $0x190] sm:$0xf]
        %v2381 = vld [vmem:[#allocation21 + $0x194] sm:$0xf]
        %v2382 = vld [vmem:[#allocation21 + $0x198] sm:$0xf]
        %v2383 = vld [vmem:[#allocation21 + $0x19c] sm:$0xf]
        %v2384 = vld [vmem:[#allocation21 + $0x1a0] sm:$0xf]
        %v2385 = vld [vmem:[#allocation21 + $0x1a4] sm:$0xf]
        %v2386 = vld [vmem:[#allocation21 + $0x1a8] sm:$0xf]
        %v2387 = vld [vmem:[#allocation21 + $0x1ac] sm:$0xf]
        %v2388 = vld [vmem:[#allocation21 + $0x1b0] sm:$0xf]
        %v2389 = vld [vmem:[#allocation21 + $0x1b4] sm:$0xf]
        %v2390 = vld [vmem:[#allocation21 + $0x1b8] sm:$0xf]
        %v2391 = vld [vmem:[#allocation21 + $0x1bc] sm:$0xf]
        %v2392 = vld [vmem:[#allocation21 + $0x1c0] sm:$0xf]
        %v2393 = vld [vmem:[#allocation21 + $0x1c4] sm:$0xf]
        %v2394 = vld [vmem:[#allocation21 + $0x1c8] sm:$0xf]
        %v2395 = vld [vmem:[#allocation21 + $0x1cc] sm:$0xf]
        %v2396 = vld [vmem:[#allocation21 + $0x1d0] sm:$0xf]
        %v2397 = vld [vmem:[#allocation21 + $0x1d4] sm:$0xf]
        %v2398 = vld [vmem:[#allocation21 + $0x1d8] sm:$0xf]
        %v2399 = vld [vmem:[#allocation21 + $0x1dc] sm:$0xf]
        %v2400 = vld [vmem:[#allocation21 + $0x1e0] sm:$0xf]
        %v2401 = vld [vmem:[#allocation21 + $0x1e4] sm:$0xf]
        %v2402 = vld [vmem:[#allocation21 + $0x1e8] sm:$0xf]
        %v2403 = vld [vmem:[#allocation21 + $0x1ec] sm:$0xf]
        %v2404 = vld [vmem:[#allocation21 + $0x1f0] sm:$0xf]
        %v2405 = vld [vmem:[#allocation21 + $0x1f4] sm:$0xf]
        %v2406 = vld [vmem:[#allocation21 + $0x1f8] sm:$0xf]
        %v2407 = vld [vmem:[#allocation21 + $0x1fc] sm:$0xf]
        %v2408 = vld [vmem:[#allocation22] sm:$0xff]
        %v2409 = vld [vmem:[#allocation22 + $0x8] sm:$0xff]
        %v2410 = vld [vmem:[#allocation22 + $0x10] sm:$0xff]
        %v2411 = vld [vmem:[#allocation22 + $0x18] sm:$0xff]
        %v2412 = vld [vmem:[#allocation22 + $0x20] sm:$0xff]
        %v2413 = vld [vmem:[#allocation22 + $0x28] sm:$0xff]
        %v2414 = vld [vmem:[#allocation22 + $0x30] sm:$0xff]
        %v2415 = vld [vmem:[#allocation22 + $0x38] sm:$0xff]
        %v2416 = vld [vmem:[#allocation22 + $0x40] sm:$0xff]
        %v2417 = vld [vmem:[#allocation22 + $0x48] sm:$0xff]
        %v2418 = vld [vmem:[#allocation22 + $0x50] sm:$0xff]
        %v2419 = vld [vmem:[#allocation22 + $0x58] sm:$0xff]
        %v2420 = vld [vmem:[#allocation22 + $0x60] sm:$0xff]
        %v2421 = vld [vmem:[#allocation22 + $0x68] sm:$0xff]
        %v2422 = vld [vmem:[#allocation22 + $0x70] sm:$0xff]
        %v2423 = vld [vmem:[#allocation22 + $0x78] sm:$0xff]
        %v2424 = vld [vmem:[#allocation22 + $0x80] sm:$0xff]
        %v2425 = vld [vmem:[#allocation22 + $0x88] sm:$0xff]
        %v2426 = vld [vmem:[#allocation22 + $0x90] sm:$0xff]
        %v2427 = vld [vmem:[#allocation22 + $0x98] sm:$0xff]
        %v2428 = vld [vmem:[#allocation22 + $0xa0] sm:$0xff]
        %v2429 = vld [vmem:[#allocation22 + $0xa8] sm:$0xff]
        %v2430 = vld [vmem:[#allocation22 + $0xb0] sm:$0xff]
        %v2431 = vld [vmem:[#allocation22 + $0xb8] sm:$0xff]
        %v2432 = vld [vmem:[#allocation22 + $0xc0] sm:$0xff]
        %v2433 = vld [vmem:[#allocation22 + $0xc8] sm:$0xff]
        %v2434 = vld [vmem:[#allocation22 + $0xd0] sm:$0xff]
        %v2435 = vld [vmem:[#allocation22 + $0xd8] sm:$0xff]
        %v2436 = vld [vmem:[#allocation22 + $0xe0] sm:$0xff]
        %v2437 = vld [vmem:[#allocation22 + $0xe8] sm:$0xff]
        %v2438 = vld [vmem:[#allocation22 + $0xf0] sm:$0xff]
        %v2439 = vld [vmem:[#allocation22 + $0xf8] sm:$0xff]
        %v2440 = vld [vmem:[#allocation22 + $0x100] sm:$0xff]
        %v2441 = vld [vmem:[#allocation22 + $0x108] sm:$0xff]
        %v2442 = vld [vmem:[#allocation22 + $0x110] sm:$0xff]
        %v2443 = vld [vmem:[#allocation22 + $0x118] sm:$0xff]
        %v2444 = vld [vmem:[#allocation22 + $0x120] sm:$0xff]
        %v2445 = vld [vmem:[#allocation22 + $0x128] sm:$0xff]
        %v2446 = vld [vmem:[#allocation22 + $0x130] sm:$0xff]
        %v2447 = vld [vmem:[#allocation22 + $0x138] sm:$0xff]
        %v2448 = vld [vmem:[#allocation22 + $0x140] sm:$0xff]
        %v2449 = vld [vmem:[#allocation22 + $0x148] sm:$0xff]
        %v2450 = vld [vmem:[#allocation22 + $0x150] sm:$0xff]
        %v2451 = vld [vmem:[#allocation22 + $0x158] sm:$0xff]
        %v2452 = vld [vmem:[#allocation22 + $0x160] sm:$0xff]
        %v2453 = vld [vmem:[#allocation22 + $0x168] sm:$0xff]
        %v2454 = vld [vmem:[#allocation22 + $0x170] sm:$0xff]
        %v2455 = vld [vmem:[#allocation22 + $0x178] sm:$0xff]
        %v2456 = vld [vmem:[#allocation22 + $0x180] sm:$0xff]
        %v2457 = vld [vmem:[#allocation22 + $0x188] sm:$0xff]
        %v2458 = vld [vmem:[#allocation22 + $0x190] sm:$0xff]
        %v2459 = vld [vmem:[#allocation22 + $0x198] sm:$0xff]
        %v2460 = vld [vmem:[#allocation22 + $0x1a0] sm:$0xff]
        %v2461 = vld [vmem:[#allocation22 + $0x1a8] sm:$0xff]
        %v2462 = vld [vmem:[#allocation22 + $0x1b0] sm:$0xff]
        %v2463 = vld [vmem:[#allocation22 + $0x1b8] sm:$0xff]
        %v2464 = vld [vmem:[#allocation22 + $0x1c0] sm:$0xff]
        %v2465 = vld [vmem:[#allocation22 + $0x1c8] sm:$0xff]
        %v2466 = vld [vmem:[#allocation22 + $0x1d0] sm:$0xff]
        %v2467 = vld [vmem:[#allocation22 + $0x1d8] sm:$0xff]
        %v2468 = vld [vmem:[#allocation22 + $0x1e0] sm:$0xff]
        %v2469 = vld [vmem:[#allocation22 + $0x1e8] sm:$0xff]
        %v2470 = vld [vmem:[#allocation22 + $0x1f0] sm:$0xff]
        %v2471 = vld [vmem:[#allocation22 + $0x1f8] sm:$0xff]
        %v2472 = vld [vmem:[#allocation22 + $0x200] sm:$0xff]
        %v2473 = vld [vmem:[#allocation22 + $0x208] sm:$0xff]
        %v2474 = vld [vmem:[#allocation22 + $0x210] sm:$0xff]
        %v2475 = vld [vmem:[#allocation22 + $0x218] sm:$0xff]
        %v2476 = vld [vmem:[#allocation22 + $0x220] sm:$0xff]
        %v2477 = vld [vmem:[#allocation22 + $0x228] sm:$0xff]
        %v2478 = vld [vmem:[#allocation22 + $0x230] sm:$0xff]
        %v2479 = vld [vmem:[#allocation22 + $0x238] sm:$0xff]
        %v2480 = vld [vmem:[#allocation22 + $0x240] sm:$0xff]
        %v2481 = vld [vmem:[#allocation22 + $0x248] sm:$0xff]
        %v2482 = vld [vmem:[#allocation22 + $0x250] sm:$0xff]
        %v2483 = vld [vmem:[#allocation22 + $0x258] sm:$0xff]
        %v2484 = vld [vmem:[#allocation22 + $0x260] sm:$0xff]
        %v2485 = vld [vmem:[#allocation22 + $0x268] sm:$0xff]
        %v2486 = vld [vmem:[#allocation22 + $0x270] sm:$0xff]
        %v2487 = vld [vmem:[#allocation22 + $0x278] sm:$0xff]
        %v2488 = vld [vmem:[#allocation22 + $0x280] sm:$0xff]
        %v2489 = vld [vmem:[#allocation22 + $0x288] sm:$0xff]
        %v2490 = vld [vmem:[#allocation22 + $0x290] sm:$0xff]
        %v2491 = vld [vmem:[#allocation22 + $0x298] sm:$0xff]
        %v2492 = vld [vmem:[#allocation22 + $0x2a0] sm:$0xff]
        %v2493 = vld [vmem:[#allocation22 + $0x2a8] sm:$0xff]
        %v2494 = vld [vmem:[#allocation22 + $0x2b0] sm:$0xff]
        %v2495 = vld [vmem:[#allocation22 + $0x2b8] sm:$0xff]
        %v2496 = vld [vmem:[#allocation22 + $0x2c0] sm:$0xff]
        %v2497 = vld [vmem:[#allocation22 + $0x2c8] sm:$0xff]
        %v2498 = vld [vmem:[#allocation22 + $0x2d0] sm:$0xff]
        %v2499 = vld [vmem:[#allocation22 + $0x2d8] sm:$0xff]
        %v2500 = vld [vmem:[#allocation22 + $0x2e0] sm:$0xff]
        %v2501 = vld [vmem:[#allocation22 + $0x2e8] sm:$0xff]
        %v2502 = vld [vmem:[#allocation22 + $0x2f0] sm:$0xff]
        %v2503 = vld [vmem:[#allocation22 + $0x2f8] sm:$0xff]
        %v2504 = vld [vmem:[#allocation22 + $0x300] sm:$0xff]
        %v2505 = vld [vmem:[#allocation22 + $0x308] sm:$0xff]
        %v2506 = vld [vmem:[#allocation22 + $0x310] sm:$0xff]
        %v2507 = vld [vmem:[#allocation22 + $0x318] sm:$0xff]
        %v2508 = vld [vmem:[#allocation22 + $0x320] sm:$0xff]
        %v2509 = vld [vmem:[#allocation22 + $0x328] sm:$0xff]
        %v2510 = vld [vmem:[#allocation22 + $0x330] sm:$0xff]
        %v2511 = vld [vmem:[#allocation22 + $0x338] sm:$0xff]
        %v2512 = vld [vmem:[#allocation22 + $0x340] sm:$0xff]
        %v2513 = vld [vmem:[#allocation22 + $0x348] sm:$0xff]
        %v2514 = vld [vmem:[#allocation22 + $0x350] sm:$0xff]
        %v2515 = vld [vmem:[#allocation22 + $0x358] sm:$0xff]
        %v2516 = vld [vmem:[#allocation22 + $0x360] sm:$0xff]
        %v2517 = vld [vmem:[#allocation22 + $0x368] sm:$0xff]
        %v2518 = vld [vmem:[#allocation22 + $0x370] sm:$0xff]
        %v2519 = vld [vmem:[#allocation22 + $0x378] sm:$0xff]
        %v2520 = vld [vmem:[#allocation22 + $0x380] sm:$0xff]
        %v2521 = vld [vmem:[#allocation22 + $0x388] sm:$0xff]
        %v2522 = vld [vmem:[#allocation22 + $0x390] sm:$0xff]
        %v2523 = vld [vmem:[#allocation22 + $0x398] sm:$0xff]
        %v2524 = vld [vmem:[#allocation22 + $0x3a0] sm:$0xff]
        %v2525 = vld [vmem:[#allocation22 + $0x3a8] sm:$0xff]
        %v2526 = vld [vmem:[#allocation22 + $0x3b0] sm:$0xff]
        %v2527 = vld [vmem:[#allocation22 + $0x3b8] sm:$0xff]
        %v2528 = vld [vmem:[#allocation22 + $0x3c0] sm:$0xff]
        %v2529 = vld [vmem:[#allocation22 + $0x3c8] sm:$0xff]
        %v2530 = vld [vmem:[#allocation22 + $0x3d0] sm:$0xff]
        %v2531 = vld [vmem:[#allocation22 + $0x3d8] sm:$0xff]
        %v2532 = vld [vmem:[#allocation22 + $0x3e0] sm:$0xff]
        %v2533 = vld [vmem:[#allocation22 + $0x3e8] sm:$0xff]
        %v2534 = vld [vmem:[#allocation22 + $0x3f0] sm:$0xff]
        %v2535 = vld [vmem:[#allocation22 + $0x3f8] sm:$0xff]
        %2537 = vset.pattern.permute.xlu0 0
        %2538 = vperm.xlu0 %2537, %v2408
        %v2539 = vpop.permute.xlu0 %2538
        %2542 = vset.pattern.permute.xlu0 0
        %2543 = vperm.xlu0 %2542, %v2409
        %v2544 = vpop.permute.xlu0 %2543
        %2547 = vset.pattern.permute.xlu0 0
        %2548 = vperm.xlu0 %2547, %v2410
        %v2549 = vpop.permute.xlu0 %2548
        %2552 = vset.pattern.permute.xlu0 0
        %2553 = vperm.xlu0 %2552, %v2411
        %v2554 = vpop.permute.xlu0 %2553
        %2557 = vset.pattern.permute.xlu0 0
        %2558 = vperm.xlu0 %2557, %v2412
        %v2559 = vpop.permute.xlu0 %2558
        %2562 = vset.pattern.permute.xlu0 0
        %2563 = vperm.xlu0 %2562, %v2413
        %v2564 = vpop.permute.xlu0 %2563
        %2567 = vset.pattern.permute.xlu0 0
        %2568 = vperm.xlu0 %2567, %v2414
        %v2569 = vpop.permute.xlu0 %2568
        %2572 = vset.pattern.permute.xlu0 0
        %2573 = vperm.xlu0 %2572, %v2415
        %v2574 = vpop.permute.xlu0 %2573
        %2577 = vset.pattern.permute.xlu0 0
        %2578 = vperm.xlu0 %2577, %v2416
        %v2579 = vpop.permute.xlu0 %2578
        %2582 = vset.pattern.permute.xlu0 0
        %2583 = vperm.xlu0 %2582, %v2417
        %v2584 = vpop.permute.xlu0 %2583
        %2587 = vset.pattern.permute.xlu0 0
        %2588 = vperm.xlu0 %2587, %v2418
        %v2589 = vpop.permute.xlu0 %2588
        %2592 = vset.pattern.permute.xlu0 0
        %2593 = vperm.xlu0 %2592, %v2419
        %v2594 = vpop.permute.xlu0 %2593
        %2597 = vset.pattern.permute.xlu0 0
        %2598 = vperm.xlu0 %2597, %v2420
        %v2599 = vpop.permute.xlu0 %2598
        %2602 = vset.pattern.permute.xlu0 0
        %2603 = vperm.xlu0 %2602, %v2421
        %v2604 = vpop.permute.xlu0 %2603
        %2607 = vset.pattern.permute.xlu0 0
        %2608 = vperm.xlu0 %2607, %v2422
        %v2609 = vpop.permute.xlu0 %2608
        %2612 = vset.pattern.permute.xlu0 0
        %2613 = vperm.xlu0 %2612, %v2423
        %v2614 = vpop.permute.xlu0 %2613
        %2617 = vset.pattern.permute.xlu0 0
        %2618 = vperm.xlu0 %2617, %v2424
        %v2619 = vpop.permute.xlu0 %2618
        %2622 = vset.pattern.permute.xlu0 0
        %2623 = vperm.xlu0 %2622, %v2425
        %v2624 = vpop.permute.xlu0 %2623
        %2627 = vset.pattern.permute.xlu0 0
        %2628 = vperm.xlu0 %2627, %v2426
        %v2629 = vpop.permute.xlu0 %2628
        %2632 = vset.pattern.permute.xlu0 0
        %2633 = vperm.xlu0 %2632, %v2427
        %v2634 = vpop.permute.xlu0 %2633
        %2637 = vset.pattern.permute.xlu0 0
        %2638 = vperm.xlu0 %2637, %v2428
        %v2639 = vpop.permute.xlu0 %2638
        %2642 = vset.pattern.permute.xlu0 0
        %2643 = vperm.xlu0 %2642, %v2429
        %v2644 = vpop.permute.xlu0 %2643
        %2647 = vset.pattern.permute.xlu0 0
        %2648 = vperm.xlu0 %2647, %v2430
        %v2649 = vpop.permute.xlu0 %2648
        %2652 = vset.pattern.permute.xlu0 0
        %2653 = vperm.xlu0 %2652, %v2431
        %v2654 = vpop.permute.xlu0 %2653
        %2657 = vset.pattern.permute.xlu0 0
        %2658 = vperm.xlu0 %2657, %v2432
        %v2659 = vpop.permute.xlu0 %2658
        %2662 = vset.pattern.permute.xlu0 0
        %2663 = vperm.xlu0 %2662, %v2433
        %v2664 = vpop.permute.xlu0 %2663
        %2667 = vset.pattern.permute.xlu0 0
        %2668 = vperm.xlu0 %2667, %v2434
        %v2669 = vpop.permute.xlu0 %2668
        %2672 = vset.pattern.permute.xlu0 0
        %2673 = vperm.xlu0 %2672, %v2435
        %v2674 = vpop.permute.xlu0 %2673
        %2677 = vset.pattern.permute.xlu0 0
        %2678 = vperm.xlu0 %2677, %v2436
        %v2679 = vpop.permute.xlu0 %2678
        %2682 = vset.pattern.permute.xlu0 0
        %2683 = vperm.xlu0 %2682, %v2437
        %v2684 = vpop.permute.xlu0 %2683
        %2687 = vset.pattern.permute.xlu0 0
        %2688 = vperm.xlu0 %2687, %v2438
        %v2689 = vpop.permute.xlu0 %2688
        %2692 = vset.pattern.permute.xlu0 0
        %2693 = vperm.xlu0 %2692, %v2439
        %v2694 = vpop.permute.xlu0 %2693
        %2697 = vset.pattern.permute.xlu0 0
        %2698 = vperm.xlu0 %2697, %v2440
        %v2699 = vpop.permute.xlu0 %2698
        %2702 = vset.pattern.permute.xlu0 0
        %2703 = vperm.xlu0 %2702, %v2441
        %v2704 = vpop.permute.xlu0 %2703
        %2707 = vset.pattern.permute.xlu0 0
        %2708 = vperm.xlu0 %2707, %v2442
        %v2709 = vpop.permute.xlu0 %2708
        %2712 = vset.pattern.permute.xlu0 0
        %2713 = vperm.xlu0 %2712, %v2443
        %v2714 = vpop.permute.xlu0 %2713
        %2717 = vset.pattern.permute.xlu0 0
        %2718 = vperm.xlu0 %2717, %v2444
        %v2719 = vpop.permute.xlu0 %2718
        %2722 = vset.pattern.permute.xlu0 0
        %2723 = vperm.xlu0 %2722, %v2445
        %v2724 = vpop.permute.xlu0 %2723
        %2727 = vset.pattern.permute.xlu0 0
        %2728 = vperm.xlu0 %2727, %v2446
        %v2729 = vpop.permute.xlu0 %2728
        %2732 = vset.pattern.permute.xlu0 0
        %2733 = vperm.xlu0 %2732, %v2447
        %v2734 = vpop.permute.xlu0 %2733
        %2737 = vset.pattern.permute.xlu0 0
        %2738 = vperm.xlu0 %2737, %v2448
        %v2739 = vpop.permute.xlu0 %2738
        %2742 = vset.pattern.permute.xlu0 0
        %2743 = vperm.xlu0 %2742, %v2449
        %v2744 = vpop.permute.xlu0 %2743
        %2747 = vset.pattern.permute.xlu0 0
        %2748 = vperm.xlu0 %2747, %v2450
        %v2749 = vpop.permute.xlu0 %2748
        %2752 = vset.pattern.permute.xlu0 0
        %2753 = vperm.xlu0 %2752, %v2451
        %v2754 = vpop.permute.xlu0 %2753
        %2757 = vset.pattern.permute.xlu0 0
        %2758 = vperm.xlu0 %2757, %v2452
        %v2759 = vpop.permute.xlu0 %2758
        %2762 = vset.pattern.permute.xlu0 0
        %2763 = vperm.xlu0 %2762, %v2453
        %v2764 = vpop.permute.xlu0 %2763
        %2767 = vset.pattern.permute.xlu0 0
        %2768 = vperm.xlu0 %2767, %v2454
        %v2769 = vpop.permute.xlu0 %2768
        %2772 = vset.pattern.permute.xlu0 0
        %2773 = vperm.xlu0 %2772, %v2455
        %v2774 = vpop.permute.xlu0 %2773
        %2777 = vset.pattern.permute.xlu0 0
        %2778 = vperm.xlu0 %2777, %v2456
        %v2779 = vpop.permute.xlu0 %2778
        %2782 = vset.pattern.permute.xlu0 0
        %2783 = vperm.xlu0 %2782, %v2457
        %v2784 = vpop.permute.xlu0 %2783
        %2787 = vset.pattern.permute.xlu0 0
        %2788 = vperm.xlu0 %2787, %v2458
        %v2789 = vpop.permute.xlu0 %2788
        %2792 = vset.pattern.permute.xlu0 0
        %2793 = vperm.xlu0 %2792, %v2459
        %v2794 = vpop.permute.xlu0 %2793
        %2797 = vset.pattern.permute.xlu0 0
        %2798 = vperm.xlu0 %2797, %v2460
        %v2799 = vpop.permute.xlu0 %2798
        %2802 = vset.pattern.permute.xlu0 0
        %2803 = vperm.xlu0 %2802, %v2461
        %v2804 = vpop.permute.xlu0 %2803
        %2807 = vset.pattern.permute.xlu0 0
        %2808 = vperm.xlu0 %2807, %v2462
        %v2809 = vpop.permute.xlu0 %2808
        %2812 = vset.pattern.permute.xlu0 0
        %2813 = vperm.xlu0 %2812, %v2463
        %v2814 = vpop.permute.xlu0 %2813
        %2817 = vset.pattern.permute.xlu0 0
        %2818 = vperm.xlu0 %2817, %v2464
        %v2819 = vpop.permute.xlu0 %2818
        %2822 = vset.pattern.permute.xlu0 0
        %2823 = vperm.xlu0 %2822, %v2465
        %v2824 = vpop.permute.xlu0 %2823
        %2827 = vset.pattern.permute.xlu0 0
        %2828 = vperm.xlu0 %2827, %v2466
        %v2829 = vpop.permute.xlu0 %2828
        %2832 = vset.pattern.permute.xlu0 0
        %2833 = vperm.xlu0 %2832, %v2467
        %v2834 = vpop.permute.xlu0 %2833
        %2837 = vset.pattern.permute.xlu0 0
        %2838 = vperm.xlu0 %2837, %v2468
        %v2839 = vpop.permute.xlu0 %2838
        %2842 = vset.pattern.permute.xlu0 0
        %2843 = vperm.xlu0 %2842, %v2469
        %v2844 = vpop.permute.xlu0 %2843
        %2847 = vset.pattern.permute.xlu0 0
        %2848 = vperm.xlu0 %2847, %v2470
        %v2849 = vpop.permute.xlu0 %2848
        %2852 = vset.pattern.permute.xlu0 0
        %2853 = vperm.xlu0 %2852, %v2471
        %v2854 = vpop.permute.xlu0 %2853
        %2857 = vset.pattern.permute.xlu0 0
        %2858 = vperm.xlu0 %2857, %v2472
        %v2859 = vpop.permute.xlu0 %2858
        %2862 = vset.pattern.permute.xlu0 0
        %2863 = vperm.xlu0 %2862, %v2473
        %v2864 = vpop.permute.xlu0 %2863
        %2867 = vset.pattern.permute.xlu0 0
        %2868 = vperm.xlu0 %2867, %v2474
        %v2869 = vpop.permute.xlu0 %2868
        %2872 = vset.pattern.permute.xlu0 0
        %2873 = vperm.xlu0 %2872, %v2475
        %v2874 = vpop.permute.xlu0 %2873
        %2877 = vset.pattern.permute.xlu0 0
        %2878 = vperm.xlu0 %2877, %v2476
        %v2879 = vpop.permute.xlu0 %2878
        %2882 = vset.pattern.permute.xlu0 0
        %2883 = vperm.xlu0 %2882, %v2477
        %v2884 = vpop.permute.xlu0 %2883
        %2887 = vset.pattern.permute.xlu0 0
        %2888 = vperm.xlu0 %2887, %v2478
        %v2889 = vpop.permute.xlu0 %2888
        %2892 = vset.pattern.permute.xlu0 0
        %2893 = vperm.xlu0 %2892, %v2479
        %v2894 = vpop.permute.xlu0 %2893
        %2897 = vset.pattern.permute.xlu0 0
        %2898 = vperm.xlu0 %2897, %v2480
        %v2899 = vpop.permute.xlu0 %2898
        %2902 = vset.pattern.permute.xlu0 0
        %2903 = vperm.xlu0 %2902, %v2481
        %v2904 = vpop.permute.xlu0 %2903
        %2907 = vset.pattern.permute.xlu0 0
        %2908 = vperm.xlu0 %2907, %v2482
        %v2909 = vpop.permute.xlu0 %2908
        %2912 = vset.pattern.permute.xlu0 0
        %2913 = vperm.xlu0 %2912, %v2483
        %v2914 = vpop.permute.xlu0 %2913
        %2917 = vset.pattern.permute.xlu0 0
        %2918 = vperm.xlu0 %2917, %v2484
        %v2919 = vpop.permute.xlu0 %2918
        %2922 = vset.pattern.permute.xlu0 0
        %2923 = vperm.xlu0 %2922, %v2485
        %v2924 = vpop.permute.xlu0 %2923
        %2927 = vset.pattern.permute.xlu0 0
        %2928 = vperm.xlu0 %2927, %v2486
        %v2929 = vpop.permute.xlu0 %2928
        %2932 = vset.pattern.permute.xlu0 0
        %2933 = vperm.xlu0 %2932, %v2487
        %v2934 = vpop.permute.xlu0 %2933
        %2937 = vset.pattern.permute.xlu0 0
        %2938 = vperm.xlu0 %2937, %v2488
        %v2939 = vpop.permute.xlu0 %2938
        %2942 = vset.pattern.permute.xlu0 0
        %2943 = vperm.xlu0 %2942, %v2489
        %v2944 = vpop.permute.xlu0 %2943
        %2947 = vset.pattern.permute.xlu0 0
        %2948 = vperm.xlu0 %2947, %v2490
        %v2949 = vpop.permute.xlu0 %2948
        %2952 = vset.pattern.permute.xlu0 0
        %2953 = vperm.xlu0 %2952, %v2491
        %v2954 = vpop.permute.xlu0 %2953
        %2957 = vset.pattern.permute.xlu0 0
        %2958 = vperm.xlu0 %2957, %v2492
        %v2959 = vpop.permute.xlu0 %2958
        %2962 = vset.pattern.permute.xlu0 0
        %2963 = vperm.xlu0 %2962, %v2493
        %v2964 = vpop.permute.xlu0 %2963
        %2967 = vset.pattern.permute.xlu0 0
        %2968 = vperm.xlu0 %2967, %v2494
        %v2969 = vpop.permute.xlu0 %2968
        %2972 = vset.pattern.permute.xlu0 0
        %2973 = vperm.xlu0 %2972, %v2495
        %v2974 = vpop.permute.xlu0 %2973
        %2977 = vset.pattern.permute.xlu0 0
        %2978 = vperm.xlu0 %2977, %v2496
        %v2979 = vpop.permute.xlu0 %2978
        %2982 = vset.pattern.permute.xlu0 0
        %2983 = vperm.xlu0 %2982, %v2497
        %v2984 = vpop.permute.xlu0 %2983
        %2987 = vset.pattern.permute.xlu0 0
        %2988 = vperm.xlu0 %2987, %v2498
        %v2989 = vpop.permute.xlu0 %2988
        %2992 = vset.pattern.permute.xlu0 0
        %2993 = vperm.xlu0 %2992, %v2499
        %v2994 = vpop.permute.xlu0 %2993
        %2997 = vset.pattern.permute.xlu0 0
        %2998 = vperm.xlu0 %2997, %v2500
        %v2999 = vpop.permute.xlu0 %2998
        %3002 = vset.pattern.permute.xlu0 0
        %3003 = vperm.xlu0 %3002, %v2501
        %v3004 = vpop.permute.xlu0 %3003
        %3007 = vset.pattern.permute.xlu0 0
        %3008 = vperm.xlu0 %3007, %v2502
        %v3009 = vpop.permute.xlu0 %3008
        %3012 = vset.pattern.permute.xlu0 0
        %3013 = vperm.xlu0 %3012, %v2503
        %v3014 = vpop.permute.xlu0 %3013
        %3017 = vset.pattern.permute.xlu0 0
        %3018 = vperm.xlu0 %3017, %v2504
        %v3019 = vpop.permute.xlu0 %3018
        %3022 = vset.pattern.permute.xlu0 0
        %3023 = vperm.xlu0 %3022, %v2505
        %v3024 = vpop.permute.xlu0 %3023
        %3027 = vset.pattern.permute.xlu0 0
        %3028 = vperm.xlu0 %3027, %v2506
        %v3029 = vpop.permute.xlu0 %3028
        %3032 = vset.pattern.permute.xlu0 0
        %3033 = vperm.xlu0 %3032, %v2507
        %v3034 = vpop.permute.xlu0 %3033
        %3037 = vset.pattern.permute.xlu0 0
        %3038 = vperm.xlu0 %3037, %v2508
        %v3039 = vpop.permute.xlu0 %3038
        %3042 = vset.pattern.permute.xlu0 0
        %3043 = vperm.xlu0 %3042, %v2509
        %v3044 = vpop.permute.xlu0 %3043
        %3047 = vset.pattern.permute.xlu0 0
        %3048 = vperm.xlu0 %3047, %v2510
        %v3049 = vpop.permute.xlu0 %3048
        %3052 = vset.pattern.permute.xlu0 0
        %3053 = vperm.xlu0 %3052, %v2511
        %v3054 = vpop.permute.xlu0 %3053
        %3057 = vset.pattern.permute.xlu0 0
        %3058 = vperm.xlu0 %3057, %v2512
        %v3059 = vpop.permute.xlu0 %3058
        %3062 = vset.pattern.permute.xlu0 0
        %3063 = vperm.xlu0 %3062, %v2513
        %v3064 = vpop.permute.xlu0 %3063
        %3067 = vset.pattern.permute.xlu0 0
        %3068 = vperm.xlu0 %3067, %v2514
        %v3069 = vpop.permute.xlu0 %3068
        %3072 = vset.pattern.permute.xlu0 0
        %3073 = vperm.xlu0 %3072, %v2515
        %v3074 = vpop.permute.xlu0 %3073
        %3077 = vset.pattern.permute.xlu0 0
        %3078 = vperm.xlu0 %3077, %v2516
        %v3079 = vpop.permute.xlu0 %3078
        %3082 = vset.pattern.permute.xlu0 0
        %3083 = vperm.xlu0 %3082, %v2517
        %v3084 = vpop.permute.xlu0 %3083
        %3087 = vset.pattern.permute.xlu0 0
        %3088 = vperm.xlu0 %3087, %v2518
        %v3089 = vpop.permute.xlu0 %3088
        %3092 = vset.pattern.permute.xlu0 0
        %3093 = vperm.xlu0 %3092, %v2519
        %v3094 = vpop.permute.xlu0 %3093
        %3097 = vset.pattern.permute.xlu0 0
        %3098 = vperm.xlu0 %3097, %v2520
        %v3099 = vpop.permute.xlu0 %3098
        %3102 = vset.pattern.permute.xlu0 0
        %3103 = vperm.xlu0 %3102, %v2521
        %v3104 = vpop.permute.xlu0 %3103
        %3107 = vset.pattern.permute.xlu0 0
        %3108 = vperm.xlu0 %3107, %v2522
        %v3109 = vpop.permute.xlu0 %3108
        %3112 = vset.pattern.permute.xlu0 0
        %3113 = vperm.xlu0 %3112, %v2523
        %v3114 = vpop.permute.xlu0 %3113
        %3117 = vset.pattern.permute.xlu0 0
        %3118 = vperm.xlu0 %3117, %v2524
        %v3119 = vpop.permute.xlu0 %3118
        %3122 = vset.pattern.permute.xlu0 0
        %3123 = vperm.xlu0 %3122, %v2525
        %v3124 = vpop.permute.xlu0 %3123
        %3127 = vset.pattern.permute.xlu0 0
        %3128 = vperm.xlu0 %3127, %v2526
        %v3129 = vpop.permute.xlu0 %3128
        %3132 = vset.pattern.permute.xlu0 0
        %3133 = vperm.xlu0 %3132, %v2527
        %v3134 = vpop.permute.xlu0 %3133
        %3137 = vset.pattern.permute.xlu0 0
        %3138 = vperm.xlu0 %3137, %v2528
        %v3139 = vpop.permute.xlu0 %3138
        %3142 = vset.pattern.permute.xlu0 0
        %3143 = vperm.xlu0 %3142, %v2529
        %v3144 = vpop.permute.xlu0 %3143
        %3147 = vset.pattern.permute.xlu0 0
        %3148 = vperm.xlu0 %3147, %v2530
        %v3149 = vpop.permute.xlu0 %3148
        %3152 = vset.pattern.permute.xlu0 0
        %3153 = vperm.xlu0 %3152, %v2531
        %v3154 = vpop.permute.xlu0 %3153
        %3157 = vset.pattern.permute.xlu0 0
        %3158 = vperm.xlu0 %3157, %v2532
        %v3159 = vpop.permute.xlu0 %3158
        %3162 = vset.pattern.permute.xlu0 0
        %3163 = vperm.xlu0 %3162, %v2533
        %v3164 = vpop.permute.xlu0 %3163
        %3167 = vset.pattern.permute.xlu0 0
        %3168 = vperm.xlu0 %3167, %v2534
        %v3169 = vpop.permute.xlu0 %3168
        %3172 = vset.pattern.permute.xlu0 0
        %3173 = vperm.xlu0 %3172, %v2535
        %v3174 = vpop.permute.xlu0 %3173
        %v3304 = vunpack.c.l.b16 %v2280
        %v3305 = vunpack.c.l.b16 %v2281
        %v3306 = vunpack.c.l.b16 %v2282
        %v3307 = vunpack.c.l.b16 %v2283
        %v3308 = vunpack.c.l.b16 %v2284
        %v3309 = vunpack.c.l.b16 %v2285
        %v3310 = vunpack.c.l.b16 %v2286
        %v3311 = vunpack.c.l.b16 %v2287
        %v3312 = vunpack.c.l.b16 %v2288
        %v3313 = vunpack.c.l.b16 %v2289
        %v3314 = vunpack.c.l.b16 %v2290
        %v3315 = vunpack.c.l.b16 %v2291
        %v3316 = vunpack.c.l.b16 %v2292
        %v3317 = vunpack.c.l.b16 %v2293
        %v3318 = vunpack.c.l.b16 %v2294
        %v3319 = vunpack.c.l.b16 %v2295
        %v3320 = vunpack.c.l.b16 %v2296
        %v3321 = vunpack.c.l.b16 %v2297
        %v3322 = vunpack.c.l.b16 %v2298
        %v3323 = vunpack.c.l.b16 %v2299
        %v3324 = vunpack.c.l.b16 %v2300
        %v3325 = vunpack.c.l.b16 %v2301
        %v3326 = vunpack.c.l.b16 %v2302
        %v3327 = vunpack.c.l.b16 %v2303
        %v3328 = vunpack.c.l.b16 %v2304
        %v3329 = vunpack.c.l.b16 %v2305
        %v3330 = vunpack.c.l.b16 %v2306
        %v3331 = vunpack.c.l.b16 %v2307
        %v3332 = vunpack.c.l.b16 %v2308
        %v3333 = vunpack.c.l.b16 %v2309
        %v3334 = vunpack.c.l.b16 %v2310
        %v3335 = vunpack.c.l.b16 %v2311
        %v3336 = vunpack.c.l.b16 %v2312
        %v3337 = vunpack.c.l.b16 %v2313
        %v3338 = vunpack.c.l.b16 %v2314
        %v3339 = vunpack.c.l.b16 %v2315
        %v3340 = vunpack.c.l.b16 %v2316
        %v3341 = vunpack.c.l.b16 %v2317
        %v3342 = vunpack.c.l.b16 %v2318
        %v3343 = vunpack.c.l.b16 %v2319
        %v3344 = vunpack.c.l.b16 %v2320
        %v3345 = vunpack.c.l.b16 %v2321
        %v3346 = vunpack.c.l.b16 %v2322
        %v3347 = vunpack.c.l.b16 %v2323
        %v3348 = vunpack.c.l.b16 %v2324
        %v3349 = vunpack.c.l.b16 %v2325
        %v3350 = vunpack.c.l.b16 %v2326
        %v3351 = vunpack.c.l.b16 %v2327
        %v3352 = vunpack.c.l.b16 %v2328
        %v3353 = vunpack.c.l.b16 %v2329
        %v3354 = vunpack.c.l.b16 %v2330
        %v3355 = vunpack.c.l.b16 %v2331
        %v3356 = vunpack.c.l.b16 %v2332
        %v3357 = vunpack.c.l.b16 %v2333
        %v3358 = vunpack.c.l.b16 %v2334
        %v3359 = vunpack.c.l.b16 %v2335
        %v3360 = vunpack.c.l.b16 %v2336
        %v3361 = vunpack.c.l.b16 %v2337
        %v3362 = vunpack.c.l.b16 %v2338
        %v3363 = vunpack.c.l.b16 %v2339
        %v3364 = vunpack.c.l.b16 %v2340
        %v3365 = vunpack.c.l.b16 %v2341
        %v3366 = vunpack.c.l.b16 %v2342
        %v3367 = vunpack.c.l.b16 %v2343
        %v3368 = vunpack.c.l.b16 %v2344
        %v3369 = vunpack.c.l.b16 %v2345
        %v3370 = vunpack.c.l.b16 %v2346
        %v3371 = vunpack.c.l.b16 %v2347
        %v3372 = vunpack.c.l.b16 %v2348
        %v3373 = vunpack.c.l.b16 %v2349
        %v3374 = vunpack.c.l.b16 %v2350
        %v3375 = vunpack.c.l.b16 %v2351
        %v3376 = vunpack.c.l.b16 %v2352
        %v3377 = vunpack.c.l.b16 %v2353
        %v3378 = vunpack.c.l.b16 %v2354
        %v3379 = vunpack.c.l.b16 %v2355
        %v3380 = vunpack.c.l.b16 %v2356
        %v3381 = vunpack.c.l.b16 %v2357
        %v3382 = vunpack.c.l.b16 %v2358
        %v3383 = vunpack.c.l.b16 %v2359
        %v3384 = vunpack.c.l.b16 %v2360
        %v3385 = vunpack.c.l.b16 %v2361
        %v3386 = vunpack.c.l.b16 %v2362
        %v3387 = vunpack.c.l.b16 %v2363
        %v3388 = vunpack.c.l.b16 %v2364
        %v3389 = vunpack.c.l.b16 %v2365
        %v3390 = vunpack.c.l.b16 %v2366
        %v3391 = vunpack.c.l.b16 %v2367
        %v3392 = vunpack.c.l.b16 %v2368
        %v3393 = vunpack.c.l.b16 %v2369
        %v3394 = vunpack.c.l.b16 %v2370
        %v3395 = vunpack.c.l.b16 %v2371
        %v3396 = vunpack.c.l.b16 %v2372
        %v3397 = vunpack.c.l.b16 %v2373
        %v3398 = vunpack.c.l.b16 %v2374
        %v3399 = vunpack.c.l.b16 %v2375
        %v3400 = vunpack.c.l.b16 %v2376
        %v3401 = vunpack.c.l.b16 %v2377
        %v3402 = vunpack.c.l.b16 %v2378
        %v3403 = vunpack.c.l.b16 %v2379
        %v3404 = vunpack.c.l.b16 %v2380
        %v3405 = vunpack.c.l.b16 %v2381
        %v3406 = vunpack.c.l.b16 %v2382
        %v3407 = vunpack.c.l.b16 %v2383
        %v3408 = vunpack.c.l.b16 %v2384
        %v3409 = vunpack.c.l.b16 %v2385
        %v3410 = vunpack.c.l.b16 %v2386
        %v3411 = vunpack.c.l.b16 %v2387
        %v3412 = vunpack.c.l.b16 %v2388
        %v3413 = vunpack.c.l.b16 %v2389
        %v3414 = vunpack.c.l.b16 %v2390
        %v3415 = vunpack.c.l.b16 %v2391
        %v3416 = vunpack.c.l.b16 %v2392
        %v3417 = vunpack.c.l.b16 %v2393
        %v3418 = vunpack.c.l.b16 %v2394
        %v3419 = vunpack.c.l.b16 %v2395
        %v3420 = vunpack.c.l.b16 %v2396
        %v3421 = vunpack.c.l.b16 %v2397
        %v3422 = vunpack.c.l.b16 %v2398
        %v3423 = vunpack.c.l.b16 %v2399
        %v3424 = vunpack.c.l.b16 %v2400
        %v3425 = vunpack.c.l.b16 %v2401
        %v3426 = vunpack.c.l.b16 %v2402
        %v3427 = vunpack.c.l.b16 %v2403
        %v3428 = vunpack.c.l.b16 %v2404
        %v3429 = vunpack.c.l.b16 %v2405
        %v3430 = vunpack.c.l.b16 %v2406
        %v3431 = vunpack.c.l.b16 %v2407
        %v3432 = vpack.c.b16 %v3305, %v3304
        %v3433 = vpack.c.b16 %v3307, %v3306
        %v3434 = vpack.c.b16 %v3309, %v3308
        %v3435 = vpack.c.b16 %v3311, %v3310
        %v3436 = vpack.c.b16 %v3313, %v3312
        %v3437 = vpack.c.b16 %v3315, %v3314
        %v3438 = vpack.c.b16 %v3317, %v3316
        %v3439 = vpack.c.b16 %v3319, %v3318
        %v3440 = vpack.c.b16 %v3321, %v3320
        %v3441 = vpack.c.b16 %v3323, %v3322
        %v3442 = vpack.c.b16 %v3325, %v3324
        %v3443 = vpack.c.b16 %v3327, %v3326
        %v3444 = vpack.c.b16 %v3329, %v3328
        %v3445 = vpack.c.b16 %v3331, %v3330
        %v3446 = vpack.c.b16 %v3333, %v3332
        %v3447 = vpack.c.b16 %v3335, %v3334
        %v3448 = vpack.c.b16 %v3337, %v3336
        %v3449 = vpack.c.b16 %v3339, %v3338
        %v3450 = vpack.c.b16 %v3341, %v3340
        %v3451 = vpack.c.b16 %v3343, %v3342
        %v3452 = vpack.c.b16 %v3345, %v3344
        %v3453 = vpack.c.b16 %v3347, %v3346
        %v3454 = vpack.c.b16 %v3349, %v3348
        %v3455 = vpack.c.b16 %v3351, %v3350
        %v3456 = vpack.c.b16 %v3353, %v3352
        %v3457 = vpack.c.b16 %v3355, %v3354
        %v3458 = vpack.c.b16 %v3357, %v3356
        %v3459 = vpack.c.b16 %v3359, %v3358
        %v3460 = vpack.c.b16 %v3361, %v3360
        %v3461 = vpack.c.b16 %v3363, %v3362
        %v3462 = vpack.c.b16 %v3365, %v3364
        %v3463 = vpack.c.b16 %v3367, %v3366
        %v3464 = vpack.c.b16 %v3369, %v3368
        %v3465 = vpack.c.b16 %v3371, %v3370
        %v3466 = vpack.c.b16 %v3373, %v3372
        %v3467 = vpack.c.b16 %v3375, %v3374
        %v3468 = vpack.c.b16 %v3377, %v3376
        %v3469 = vpack.c.b16 %v3379, %v3378
        %v3470 = vpack.c.b16 %v3381, %v3380
        %v3471 = vpack.c.b16 %v3383, %v3382
        %v3472 = vpack.c.b16 %v3385, %v3384
        %v3473 = vpack.c.b16 %v3387, %v3386
        %v3474 = vpack.c.b16 %v3389, %v3388
        %v3475 = vpack.c.b16 %v3391, %v3390
        %v3476 = vpack.c.b16 %v3393, %v3392
        %v3477 = vpack.c.b16 %v3395, %v3394
        %v3478 = vpack.c.b16 %v3397, %v3396
        %v3479 = vpack.c.b16 %v3399, %v3398
        %v3480 = vpack.c.b16 %v3401, %v3400
        %v3481 = vpack.c.b16 %v3403, %v3402
        %v3482 = vpack.c.b16 %v3405, %v3404
        %v3483 = vpack.c.b16 %v3407, %v3406
        %v3484 = vpack.c.b16 %v3409, %v3408
        %v3485 = vpack.c.b16 %v3411, %v3410
        %v3486 = vpack.c.b16 %v3413, %v3412
        %v3487 = vpack.c.b16 %v3415, %v3414
        %v3488 = vpack.c.b16 %v3417, %v3416
        %v3489 = vpack.c.b16 %v3419, %v3418
        %v3490 = vpack.c.b16 %v3421, %v3420
        %v3491 = vpack.c.b16 %v3423, %v3422
        %v3492 = vpack.c.b16 %v3425, %v3424
        %v3493 = vpack.c.b16 %v3427, %v3426
        %v3494 = vpack.c.b16 %v3429, %v3428
        %v3495 = vpack.c.b16 %v3431, %v3430
        %3560 = vmatprep.subr.bf16.mxu0 %v2279
        %3561 = vmatpush1.bf16.msra.mxu0 %v2278
        %3562 = vmatprep.subr.bf16.mxu0 %v2277
        %3563 = vmatpush1.bf16.msra.mxu0 %v2276
        %3564 = vmatprep.subr.bf16.mxu0 %v2275
        %3565 = vmatpush1.bf16.msra.mxu0 %v2274
        %3566 = vmatprep.subr.bf16.mxu0 %v2273
        %3567 = vmatpush1.bf16.msra.mxu0 %v2272
        %3568 = vmatprep.subr.bf16.mxu0 %v2271
        %3569 = vmatpush1.bf16.msra.mxu0 %v2270
        %3570 = vmatprep.subr.bf16.mxu0 %v2269
        %3571 = vmatpush1.bf16.msra.mxu0 %v2268
        %3572 = vmatprep.subr.bf16.mxu0 %v2267
        %3573 = vmatpush1.bf16.msra.mxu0 %v2266
        %3574 = vmatprep.subr.bf16.mxu0 %v2265
        %3575 = vmatpush1.bf16.msra.mxu0 %v2264
        %3576 = vmatprep.subr.bf16.mxu0 0
        %3577 = vmatpush2.bf16.msra.mxu0 0
        %3578 = vmatprep.subr.bf16.mxu0 0
        %3579 = vmatpush2.bf16.msra.mxu0 0
        %3580 = vmatprep.subr.bf16.mxu0 0
        %3581 = vmatpush2.bf16.msra.mxu0 0
        %3582 = vmatprep.subr.bf16.mxu0 0
        %3583 = vmatpush2.bf16.msra.mxu0 0
        %3584 = vmatprep.subr.bf16.mxu0 0
        %3585 = vmatpush2.bf16.msra.mxu0 0
        %3586 = vmatprep.subr.bf16.mxu0 0
        %3587 = vmatpush2.bf16.msra.mxu0 0
        %3588 = vmatprep.subr.bf16.mxu0 0
        %3589 = vmatpush2.bf16.msra.mxu0 0
        %3590 = vmatprep.subr.bf16.mxu0 0
        %3591 = vmatpush2.bf16.msra.mxu0 0
        %3592 = vmatprep.mubr.bf16.mxu0 0
        %3593 = vmatmul.mubr.bf16.gmra.mxu0 %v3432
        %v3594 = vpop.f32.mrf.mxu0
        %v3595 = vadd.f32 %v2539, %v3594
        %v3596 = vpop.f32.mrf.mxu0
        %v3597 = vadd.f32 %v2539, %v3596
        %v3598 = vpop.f32.mrf.mxu0
        %v3599 = vadd.f32 %v2544, %v3598
        %v3600 = vpop.f32.mrf.mxu0
        %v3601 = vadd.f32 %v2544, %v3600
        %3602 = vmatprep.mubr.bf16.mxu0 0
        %3603 = vmatmul.mubr.bf16.gmra.mxu0 %v3433
        %v3604 = vpop.f32.mrf.mxu0
        %v3605 = vadd.f32 %v2549, %v3604
        %v3606 = vpop.f32.mrf.mxu0
        %v3607 = vadd.f32 %v2549, %v3606
        %v3608 = vpop.f32.mrf.mxu0
        %v3609 = vadd.f32 %v2554, %v3608
        %v3610 = vpop.f32.mrf.mxu0
        %v3611 = vadd.f32 %v2554, %v3610
        %3612 = vmatprep.mubr.bf16.mxu0 0
        %3613 = vmatmul.mubr.bf16.gmra.mxu0 %v3434
        %v3614 = vpop.f32.mrf.mxu0
        %v3615 = vadd.f32 %v2559, %v3614
        %v3616 = vpop.f32.mrf.mxu0
        %v3617 = vadd.f32 %v2559, %v3616
        %v3618 = vpop.f32.mrf.mxu0
        %v3619 = vadd.f32 %v2564, %v3618
        %v3620 = vpop.f32.mrf.mxu0
        %v3621 = vadd.f32 %v2564, %v3620
        %3622 = vmatprep.mubr.bf16.mxu0 0
        %3623 = vmatmul.mubr.bf16.gmra.mxu0 %v3435
        %v3624 = vpop.f32.mrf.mxu0
        %v3625 = vadd.f32 %v2569, %v3624
        %v3626 = vpop.f32.mrf.mxu0
        %v3627 = vadd.f32 %v2569, %v3626
        %v3628 = vpop.f32.mrf.mxu0
        %v3629 = vadd.f32 %v2574, %v3628
        %v3630 = vpop.f32.mrf.mxu0
        %v3631 = vadd.f32 %v2574, %v3630
        %3632 = vmatprep.mubr.bf16.mxu0 0
        %3633 = vmatmul.mubr.bf16.gmra.mxu0 %v3436
        %v3634 = vpop.f32.mrf.mxu0
        %v3635 = vadd.f32 %v2579, %v3634
        %v3636 = vpop.f32.mrf.mxu0
        %v3637 = vadd.f32 %v2579, %v3636
        %v3638 = vpop.f32.mrf.mxu0
        %v3639 = vadd.f32 %v2584, %v3638
        %v3640 = vpop.f32.mrf.mxu0
        %v3641 = vadd.f32 %v2584, %v3640
        %3642 = vmatprep.mubr.bf16.mxu0 0
        %3643 = vmatmul.mubr.bf16.gmra.mxu0 %v3437
        %v3644 = vpop.f32.mrf.mxu0
        %v3645 = vadd.f32 %v2589, %v3644
        %v3646 = vpop.f32.mrf.mxu0
        %v3647 = vadd.f32 %v2589, %v3646
        %v3648 = vpop.f32.mrf.mxu0
        %v3649 = vadd.f32 %v2594, %v3648
        %v3650 = vpop.f32.mrf.mxu0
        %v3651 = vadd.f32 %v2594, %v3650
        %3652 = vmatprep.mubr.bf16.mxu0 0
        %3653 = vmatmul.mubr.bf16.gmra.mxu0 %v3438
        %v3654 = vpop.f32.mrf.mxu0
        %v3655 = vadd.f32 %v2599, %v3654
        %v3656 = vpop.f32.mrf.mxu0
        %v3657 = vadd.f32 %v2599, %v3656
        %v3658 = vpop.f32.mrf.mxu0
        %v3659 = vadd.f32 %v2604, %v3658
        %v3660 = vpop.f32.mrf.mxu0
        %v3661 = vadd.f32 %v2604, %v3660
        %3662 = vmatprep.mubr.bf16.mxu0 0
        %3663 = vmatmul.mubr.bf16.gmra.mxu0 %v3439
        %v3664 = vpop.f32.mrf.mxu0
        %v3665 = vadd.f32 %v2609, %v3664
        %v3666 = vpop.f32.mrf.mxu0
        %v3667 = vadd.f32 %v2609, %v3666
        %v3668 = vpop.f32.mrf.mxu0
        %v3669 = vadd.f32 %v2614, %v3668
        %v3670 = vpop.f32.mrf.mxu0
        %v3671 = vadd.f32 %v2614, %v3670
        %3672 = vmatprep.mubr.bf16.mxu0 0
        %3673 = vmatmul.mubr.bf16.gmra.mxu0 %v3440
        %v3674 = vpop.f32.mrf.mxu0
        %v3675 = vadd.f32 %v2619, %v3674
        %v3676 = vpop.f32.mrf.mxu0
        %v3677 = vadd.f32 %v2619, %v3676
        %v3678 = vpop.f32.mrf.mxu0
        %v3679 = vadd.f32 %v2624, %v3678
        %v3680 = vpop.f32.mrf.mxu0
        %v3681 = vadd.f32 %v2624, %v3680
        %3682 = vmatprep.mubr.bf16.mxu0 0
        %3683 = vmatmul.mubr.bf16.gmra.mxu0 %v3441
        %v3684 = vpop.f32.mrf.mxu0
        %v3685 = vadd.f32 %v2629, %v3684
        %v3686 = vpop.f32.mrf.mxu0
        %v3687 = vadd.f32 %v2629, %v3686
        %v3688 = vpop.f32.mrf.mxu0
        %v3689 = vadd.f32 %v2634, %v3688
        %v3690 = vpop.f32.mrf.mxu0
        %v3691 = vadd.f32 %v2634, %v3690
        %3692 = vmatprep.mubr.bf16.mxu0 0
        %3693 = vmatmul.mubr.bf16.gmra.mxu0 %v3442
        %v3694 = vpop.f32.mrf.mxu0
        %v3695 = vadd.f32 %v2639, %v3694
        %v3696 = vpop.f32.mrf.mxu0
        %v3697 = vadd.f32 %v2639, %v3696
        %v3698 = vpop.f32.mrf.mxu0
        %v3699 = vadd.f32 %v2644, %v3698
        %v3700 = vpop.f32.mrf.mxu0
        %v3701 = vadd.f32 %v2644, %v3700
        %3702 = vmatprep.mubr.bf16.mxu0 0
        %3703 = vmatmul.mubr.bf16.gmra.mxu0 %v3443
        %v3704 = vpop.f32.mrf.mxu0
        %v3705 = vadd.f32 %v2649, %v3704
        %v3706 = vpop.f32.mrf.mxu0
        %v3707 = vadd.f32 %v2649, %v3706
        %v3708 = vpop.f32.mrf.mxu0
        %v3709 = vadd.f32 %v2654, %v3708
        %v3710 = vpop.f32.mrf.mxu0
        %v3711 = vadd.f32 %v2654, %v3710
        %3712 = vmatprep.mubr.bf16.mxu0 0
        %3713 = vmatmul.mubr.bf16.gmra.mxu0 %v3444
        %v3714 = vpop.f32.mrf.mxu0
        %v3715 = vadd.f32 %v2659, %v3714
        %v3716 = vpop.f32.mrf.mxu0
        %v3717 = vadd.f32 %v2659, %v3716
        %v3718 = vpop.f32.mrf.mxu0
        %v3719 = vadd.f32 %v2664, %v3718
        %v3720 = vpop.f32.mrf.mxu0
        %v3721 = vadd.f32 %v2664, %v3720
        %3722 = vmatprep.mubr.bf16.mxu0 0
        %3723 = vmatmul.mubr.bf16.gmra.mxu0 %v3445
        %v3724 = vpop.f32.mrf.mxu0
        %v3725 = vadd.f32 %v2669, %v3724
        %v3726 = vpop.f32.mrf.mxu0
        %v3727 = vadd.f32 %v2669, %v3726
        %v3728 = vpop.f32.mrf.mxu0
        %v3729 = vadd.f32 %v2674, %v3728
        %v3730 = vpop.f32.mrf.mxu0
        %v3731 = vadd.f32 %v2674, %v3730
        %3732 = vmatprep.mubr.bf16.mxu0 0
        %3733 = vmatmul.mubr.bf16.gmra.mxu0 %v3446
        %v3734 = vpop.f32.mrf.mxu0
        %v3735 = vadd.f32 %v2679, %v3734
        %v3736 = vpop.f32.mrf.mxu0
        %v3737 = vadd.f32 %v2679, %v3736
        %v3738 = vpop.f32.mrf.mxu0
        %v3739 = vadd.f32 %v2684, %v3738
        %v3740 = vpop.f32.mrf.mxu0
        %v3741 = vadd.f32 %v2684, %v3740
        %3742 = vmatprep.mubr.bf16.mxu0 0
        %3743 = vmatmul.mubr.bf16.gmra.mxu0 %v3447
        %v3744 = vpop.f32.mrf.mxu0
        %v3745 = vadd.f32 %v2689, %v3744
        %v3746 = vpop.f32.mrf.mxu0
        %v3747 = vadd.f32 %v2689, %v3746
        %v3748 = vpop.f32.mrf.mxu0
        %v3749 = vadd.f32 %v2694, %v3748
        %v3750 = vpop.f32.mrf.mxu0
        %v3751 = vadd.f32 %v2694, %v3750
        %3752 = vmatprep.mubr.bf16.mxu0 0
        %3753 = vmatmul.mubr.bf16.gmra.mxu0 %v3448
        %v3754 = vpop.f32.mrf.mxu0
        %v3755 = vadd.f32 %v2699, %v3754
        %v3756 = vpop.f32.mrf.mxu0
        %v3757 = vadd.f32 %v2699, %v3756
        %v3758 = vpop.f32.mrf.mxu0
        %v3759 = vadd.f32 %v2704, %v3758
        %v3760 = vpop.f32.mrf.mxu0
        %v3761 = vadd.f32 %v2704, %v3760
        %3762 = vmatprep.mubr.bf16.mxu0 0
        %3763 = vmatmul.mubr.bf16.gmra.mxu0 %v3449
        %v3764 = vpop.f32.mrf.mxu0
        %v3765 = vadd.f32 %v2709, %v3764
        %v3766 = vpop.f32.mrf.mxu0
        %v3767 = vadd.f32 %v2709, %v3766
        %v3768 = vpop.f32.mrf.mxu0
        %v3769 = vadd.f32 %v2714, %v3768
        %v3770 = vpop.f32.mrf.mxu0
        %v3771 = vadd.f32 %v2714, %v3770
        %3772 = vmatprep.mubr.bf16.mxu0 0
        %3773 = vmatmul.mubr.bf16.gmra.mxu0 %v3450
        %v3774 = vpop.f32.mrf.mxu0
        %v3775 = vadd.f32 %v2719, %v3774
        %v3776 = vpop.f32.mrf.mxu0
        %v3777 = vadd.f32 %v2719, %v3776
        %v3778 = vpop.f32.mrf.mxu0
        %v3779 = vadd.f32 %v2724, %v3778
        %v3780 = vpop.f32.mrf.mxu0
        %v3781 = vadd.f32 %v2724, %v3780
        %3782 = vmatprep.mubr.bf16.mxu0 0
        %3783 = vmatmul.mubr.bf16.gmra.mxu0 %v3451
        %v3784 = vpop.f32.mrf.mxu0
        %v3785 = vadd.f32 %v2729, %v3784
        %v3786 = vpop.f32.mrf.mxu0
        %v3787 = vadd.f32 %v2729, %v3786
        %v3788 = vpop.f32.mrf.mxu0
        %v3789 = vadd.f32 %v2734, %v3788
        %v3790 = vpop.f32.mrf.mxu0
        %v3791 = vadd.f32 %v2734, %v3790
        %3792 = vmatprep.mubr.bf16.mxu0 0
        %3793 = vmatmul.mubr.bf16.gmra.mxu0 %v3452
        %v3794 = vpop.f32.mrf.mxu0
        %v3795 = vadd.f32 %v2739, %v3794
        %v3796 = vpop.f32.mrf.mxu0
        %v3797 = vadd.f32 %v2739, %v3796
        %v3798 = vpop.f32.mrf.mxu0
        %v3799 = vadd.f32 %v2744, %v3798
        %v3800 = vpop.f32.mrf.mxu0
        %v3801 = vadd.f32 %v2744, %v3800
        %3802 = vmatprep.mubr.bf16.mxu0 0
        %3803 = vmatmul.mubr.bf16.gmra.mxu0 %v3453
        %v3804 = vpop.f32.mrf.mxu0
        %v3805 = vadd.f32 %v2749, %v3804
        %v3806 = vpop.f32.mrf.mxu0
        %v3807 = vadd.f32 %v2749, %v3806
        %v3808 = vpop.f32.mrf.mxu0
        %v3809 = vadd.f32 %v2754, %v3808
        %v3810 = vpop.f32.mrf.mxu0
        %v3811 = vadd.f32 %v2754, %v3810
        %3812 = vmatprep.mubr.bf16.mxu0 0
        %3813 = vmatmul.mubr.bf16.gmra.mxu0 %v3454
        %v3814 = vpop.f32.mrf.mxu0
        %v3815 = vadd.f32 %v2759, %v3814
        %v3816 = vpop.f32.mrf.mxu0
        %v3817 = vadd.f32 %v2759, %v3816
        %v3818 = vpop.f32.mrf.mxu0
        %v3819 = vadd.f32 %v2764, %v3818
        %v3820 = vpop.f32.mrf.mxu0
        %v3821 = vadd.f32 %v2764, %v3820
        %3822 = vmatprep.mubr.bf16.mxu0 0
        %3823 = vmatmul.mubr.bf16.gmra.mxu0 %v3455
        %v3824 = vpop.f32.mrf.mxu0
        %v3825 = vadd.f32 %v2769, %v3824
        %v3826 = vpop.f32.mrf.mxu0
        %v3827 = vadd.f32 %v2769, %v3826
        %v3828 = vpop.f32.mrf.mxu0
        %v3829 = vadd.f32 %v2774, %v3828
        %v3830 = vpop.f32.mrf.mxu0
        %v3831 = vadd.f32 %v2774, %v3830
        %3832 = vmatprep.mubr.bf16.mxu0 0
        %3833 = vmatmul.mubr.bf16.gmra.mxu0 %v3456
        %v3834 = vpop.f32.mrf.mxu0
        %v3835 = vadd.f32 %v2779, %v3834
        %v3836 = vpop.f32.mrf.mxu0
        %v3837 = vadd.f32 %v2779, %v3836
        %v3838 = vpop.f32.mrf.mxu0
        %v3839 = vadd.f32 %v2784, %v3838
        %v3840 = vpop.f32.mrf.mxu0
        %v3841 = vadd.f32 %v2784, %v3840
        %3842 = vmatprep.mubr.bf16.mxu0 0
        %3843 = vmatmul.mubr.bf16.gmra.mxu0 %v3457
        %v3844 = vpop.f32.mrf.mxu0
        %v3845 = vadd.f32 %v2789, %v3844
        %v3846 = vpop.f32.mrf.mxu0
        %v3847 = vadd.f32 %v2789, %v3846
        %v3848 = vpop.f32.mrf.mxu0
        %v3849 = vadd.f32 %v2794, %v3848
        %v3850 = vpop.f32.mrf.mxu0
        %v3851 = vadd.f32 %v2794, %v3850
        %3852 = vmatprep.mubr.bf16.mxu0 0
        %3853 = vmatmul.mubr.bf16.gmra.mxu0 %v3458
        %v3854 = vpop.f32.mrf.mxu0
        %v3855 = vadd.f32 %v2799, %v3854
        %v3856 = vpop.f32.mrf.mxu0
        %v3857 = vadd.f32 %v2799, %v3856
        %v3858 = vpop.f32.mrf.mxu0
        %v3859 = vadd.f32 %v2804, %v3858
        %v3860 = vpop.f32.mrf.mxu0
        %v3861 = vadd.f32 %v2804, %v3860
        %3862 = vmatprep.mubr.bf16.mxu0 0
        %3863 = vmatmul.mubr.bf16.gmra.mxu0 %v3459
        %v3864 = vpop.f32.mrf.mxu0
        %v3865 = vadd.f32 %v2809, %v3864
        %v3866 = vpop.f32.mrf.mxu0
        %v3867 = vadd.f32 %v2809, %v3866
        %v3868 = vpop.f32.mrf.mxu0
        %v3869 = vadd.f32 %v2814, %v3868
        %v3870 = vpop.f32.mrf.mxu0
        %v3871 = vadd.f32 %v2814, %v3870
        %3872 = vmatprep.mubr.bf16.mxu0 0
        %3873 = vmatmul.mubr.bf16.gmra.mxu0 %v3460
        %v3874 = vpop.f32.mrf.mxu0
        %v3875 = vadd.f32 %v2819, %v3874
        %v3876 = vpop.f32.mrf.mxu0
        %v3877 = vadd.f32 %v2819, %v3876
        %v3878 = vpop.f32.mrf.mxu0
        %v3879 = vadd.f32 %v2824, %v3878
        %v3880 = vpop.f32.mrf.mxu0
        %v3881 = vadd.f32 %v2824, %v3880
        %3882 = vmatprep.mubr.bf16.mxu0 0
        %3883 = vmatmul.mubr.bf16.gmra.mxu0 %v3461
        %v3884 = vpop.f32.mrf.mxu0
        %v3885 = vadd.f32 %v2829, %v3884
        %v3886 = vpop.f32.mrf.mxu0
        %v3887 = vadd.f32 %v2829, %v3886
        %v3888 = vpop.f32.mrf.mxu0
        %v3889 = vadd.f32 %v2834, %v3888
        %v3890 = vpop.f32.mrf.mxu0
        %v3891 = vadd.f32 %v2834, %v3890
        %3892 = vmatprep.mubr.bf16.mxu0 0
        %3893 = vmatmul.mubr.bf16.gmra.mxu0 %v3462
        %v3894 = vpop.f32.mrf.mxu0
        %v3895 = vadd.f32 %v2839, %v3894
        %v3896 = vpop.f32.mrf.mxu0
        %v3897 = vadd.f32 %v2839, %v3896
        %v3898 = vpop.f32.mrf.mxu0
        %v3899 = vadd.f32 %v2844, %v3898
        %v3900 = vpop.f32.mrf.mxu0
        %v3901 = vadd.f32 %v2844, %v3900
        %3902 = vmatprep.mubr.bf16.mxu0 0
        %3903 = vmatmul.mubr.bf16.gmra.mxu0 %v3463
        %v3904 = vpop.f32.mrf.mxu0
        %v3905 = vadd.f32 %v2849, %v3904
        %v3906 = vpop.f32.mrf.mxu0
        %v3907 = vadd.f32 %v2849, %v3906
        %v3908 = vpop.f32.mrf.mxu0
        %v3909 = vadd.f32 %v2854, %v3908
        %v3910 = vpop.f32.mrf.mxu0
        %v3911 = vadd.f32 %v2854, %v3910
        %3912 = vmatprep.mubr.bf16.mxu0 0
        %3913 = vmatmul.mubr.bf16.gmra.mxu0 %v3464
        %v3914 = vpop.f32.mrf.mxu0
        %v3915 = vadd.f32 %v2859, %v3914
        %v3916 = vpop.f32.mrf.mxu0
        %v3917 = vadd.f32 %v2859, %v3916
        %v3918 = vpop.f32.mrf.mxu0
        %v3919 = vadd.f32 %v2864, %v3918
        %v3920 = vpop.f32.mrf.mxu0
        %v3921 = vadd.f32 %v2864, %v3920
        %3922 = vmatprep.mubr.bf16.mxu0 0
        %3923 = vmatmul.mubr.bf16.gmra.mxu0 %v3465
        %v3924 = vpop.f32.mrf.mxu0
        %v3925 = vadd.f32 %v2869, %v3924
        %v3926 = vpop.f32.mrf.mxu0
        %v3927 = vadd.f32 %v2869, %v3926
        %v3928 = vpop.f32.mrf.mxu0
        %v3929 = vadd.f32 %v2874, %v3928
        %v3930 = vpop.f32.mrf.mxu0
        %v3931 = vadd.f32 %v2874, %v3930
        %3932 = vmatprep.mubr.bf16.mxu0 0
        %3933 = vmatmul.mubr.bf16.gmra.mxu0 %v3466
        %v3934 = vpop.f32.mrf.mxu0
        %v3935 = vadd.f32 %v2879, %v3934
        %v3936 = vpop.f32.mrf.mxu0
        %v3937 = vadd.f32 %v2879, %v3936
        %v3938 = vpop.f32.mrf.mxu0
        %v3939 = vadd.f32 %v2884, %v3938
        %v3940 = vpop.f32.mrf.mxu0
        %v3941 = vadd.f32 %v2884, %v3940
        %3942 = vmatprep.mubr.bf16.mxu0 0
        %3943 = vmatmul.mubr.bf16.gmra.mxu0 %v3467
        %v3944 = vpop.f32.mrf.mxu0
        %v3945 = vadd.f32 %v2889, %v3944
        %v3946 = vpop.f32.mrf.mxu0
        %v3947 = vadd.f32 %v2889, %v3946
        %v3948 = vpop.f32.mrf.mxu0
        %v3949 = vadd.f32 %v2894, %v3948
        %v3950 = vpop.f32.mrf.mxu0
        %v3951 = vadd.f32 %v2894, %v3950
        %3952 = vmatprep.mubr.bf16.mxu0 0
        %3953 = vmatmul.mubr.bf16.gmra.mxu0 %v3468
        %v3954 = vpop.f32.mrf.mxu0
        %v3955 = vadd.f32 %v2899, %v3954
        %v3956 = vpop.f32.mrf.mxu0
        %v3957 = vadd.f32 %v2899, %v3956
        %v3958 = vpop.f32.mrf.mxu0
        %v3959 = vadd.f32 %v2904, %v3958
        %v3960 = vpop.f32.mrf.mxu0
        %v3961 = vadd.f32 %v2904, %v3960
        %3962 = vmatprep.mubr.bf16.mxu0 0
        %3963 = vmatmul.mubr.bf16.gmra.mxu0 %v3469
        %v3964 = vpop.f32.mrf.mxu0
        %v3965 = vadd.f32 %v2909, %v3964
        %v3966 = vpop.f32.mrf.mxu0
        %v3967 = vadd.f32 %v2909, %v3966
        %v3968 = vpop.f32.mrf.mxu0
        %v3969 = vadd.f32 %v2914, %v3968
        %v3970 = vpop.f32.mrf.mxu0
        %v3971 = vadd.f32 %v2914, %v3970
        %3972 = vmatprep.mubr.bf16.mxu0 0
        %3973 = vmatmul.mubr.bf16.gmra.mxu0 %v3470
        %v3974 = vpop.f32.mrf.mxu0
        %v3975 = vadd.f32 %v2919, %v3974
        %v3976 = vpop.f32.mrf.mxu0
        %v3977 = vadd.f32 %v2919, %v3976
        %v3978 = vpop.f32.mrf.mxu0
        %v3979 = vadd.f32 %v2924, %v3978
        %v3980 = vpop.f32.mrf.mxu0
        %v3981 = vadd.f32 %v2924, %v3980
        %3982 = vmatprep.mubr.bf16.mxu0 0
        %3983 = vmatmul.mubr.bf16.gmra.mxu0 %v3471
        %v3984 = vpop.f32.mrf.mxu0
        %v3985 = vadd.f32 %v2929, %v3984
        %v3986 = vpop.f32.mrf.mxu0
        %v3987 = vadd.f32 %v2929, %v3986
        %v3988 = vpop.f32.mrf.mxu0
        %v3989 = vadd.f32 %v2934, %v3988
        %v3990 = vpop.f32.mrf.mxu0
        %v3991 = vadd.f32 %v2934, %v3990
        %3992 = vmatprep.mubr.bf16.mxu0 0
        %3993 = vmatmul.mubr.bf16.gmra.mxu0 %v3472
        %v3994 = vpop.f32.mrf.mxu0
        %v3995 = vadd.f32 %v2939, %v3994
        %v3996 = vpop.f32.mrf.mxu0
        %v3997 = vadd.f32 %v2939, %v3996
        %v3998 = vpop.f32.mrf.mxu0
        %v3999 = vadd.f32 %v2944, %v3998
        %v4000 = vpop.f32.mrf.mxu0
        %v4001 = vadd.f32 %v2944, %v4000
        %4002 = vmatprep.mubr.bf16.mxu0 0
        %4003 = vmatmul.mubr.bf16.gmra.mxu0 %v3473
        %v4004 = vpop.f32.mrf.mxu0
        %v4005 = vadd.f32 %v2949, %v4004
        %v4006 = vpop.f32.mrf.mxu0
        %v4007 = vadd.f32 %v2949, %v4006
        %v4008 = vpop.f32.mrf.mxu0
        %v4009 = vadd.f32 %v2954, %v4008
        %v4010 = vpop.f32.mrf.mxu0
        %v4011 = vadd.f32 %v2954, %v4010
        %4012 = vmatprep.mubr.bf16.mxu0 0
        %4013 = vmatmul.mubr.bf16.gmra.mxu0 %v3474
        %v4014 = vpop.f32.mrf.mxu0
        %v4015 = vadd.f32 %v2959, %v4014
        %v4016 = vpop.f32.mrf.mxu0
        %v4017 = vadd.f32 %v2959, %v4016
        %v4018 = vpop.f32.mrf.mxu0
        %v4019 = vadd.f32 %v2964, %v4018
        %v4020 = vpop.f32.mrf.mxu0
        %v4021 = vadd.f32 %v2964, %v4020
        %4022 = vmatprep.mubr.bf16.mxu0 0
        %4023 = vmatmul.mubr.bf16.gmra.mxu0 %v3475
        %v4024 = vpop.f32.mrf.mxu0
        %v4025 = vadd.f32 %v2969, %v4024
        %v4026 = vpop.f32.mrf.mxu0
        %v4027 = vadd.f32 %v2969, %v4026
        %v4028 = vpop.f32.mrf.mxu0
        %v4029 = vadd.f32 %v2974, %v4028
        %v4030 = vpop.f32.mrf.mxu0
        %v4031 = vadd.f32 %v2974, %v4030
        %4032 = vmatprep.mubr.bf16.mxu0 0
        %4033 = vmatmul.mubr.bf16.gmra.mxu0 %v3476
        %v4034 = vpop.f32.mrf.mxu0
        %v4035 = vadd.f32 %v2979, %v4034
        %v4036 = vpop.f32.mrf.mxu0
        %v4037 = vadd.f32 %v2979, %v4036
        %v4038 = vpop.f32.mrf.mxu0
        %v4039 = vadd.f32 %v2984, %v4038
        %v4040 = vpop.f32.mrf.mxu0
        %v4041 = vadd.f32 %v2984, %v4040
        %4042 = vmatprep.mubr.bf16.mxu0 0
        %4043 = vmatmul.mubr.bf16.gmra.mxu0 %v3477
        %v4044 = vpop.f32.mrf.mxu0
        %v4045 = vadd.f32 %v2989, %v4044
        %v4046 = vpop.f32.mrf.mxu0
        %v4047 = vadd.f32 %v2989, %v4046
        %v4048 = vpop.f32.mrf.mxu0
        %v4049 = vadd.f32 %v2994, %v4048
        %v4050 = vpop.f32.mrf.mxu0
        %v4051 = vadd.f32 %v2994, %v4050
        %4052 = vmatprep.mubr.bf16.mxu0 0
        %4053 = vmatmul.mubr.bf16.gmra.mxu0 %v3478
        %v4054 = vpop.f32.mrf.mxu0
        %v4055 = vadd.f32 %v2999, %v4054
        %v4056 = vpop.f32.mrf.mxu0
        %v4057 = vadd.f32 %v2999, %v4056
        %v4058 = vpop.f32.mrf.mxu0
        %v4059 = vadd.f32 %v3004, %v4058
        %v4060 = vpop.f32.mrf.mxu0
        %v4061 = vadd.f32 %v3004, %v4060
        %4062 = vmatprep.mubr.bf16.mxu0 0
        %4063 = vmatmul.mubr.bf16.gmra.mxu0 %v3479
        %v4064 = vpop.f32.mrf.mxu0
        %v4065 = vadd.f32 %v3009, %v4064
        %v4066 = vpop.f32.mrf.mxu0
        %v4067 = vadd.f32 %v3009, %v4066
        %v4068 = vpop.f32.mrf.mxu0
        %v4069 = vadd.f32 %v3014, %v4068
        %v4070 = vpop.f32.mrf.mxu0
        %v4071 = vadd.f32 %v3014, %v4070
        %4072 = vmatprep.mubr.bf16.mxu0 0
        %4073 = vmatmul.mubr.bf16.gmra.mxu0 %v3480
        %v4074 = vpop.f32.mrf.mxu0
        %v4075 = vadd.f32 %v3019, %v4074
        %v4076 = vpop.f32.mrf.mxu0
        %v4077 = vadd.f32 %v3019, %v4076
        %v4078 = vpop.f32.mrf.mxu0
        %v4079 = vadd.f32 %v3024, %v4078
        %v4080 = vpop.f32.mrf.mxu0
        %v4081 = vadd.f32 %v3024, %v4080
        %4082 = vmatprep.mubr.bf16.mxu0 0
        %4083 = vmatmul.mubr.bf16.gmra.mxu0 %v3481
        %v4084 = vpop.f32.mrf.mxu0
        %v4085 = vadd.f32 %v3029, %v4084
        %v4086 = vpop.f32.mrf.mxu0
        %v4087 = vadd.f32 %v3029, %v4086
        %v4088 = vpop.f32.mrf.mxu0
        %v4089 = vadd.f32 %v3034, %v4088
        %v4090 = vpop.f32.mrf.mxu0
        %v4091 = vadd.f32 %v3034, %v4090
        %4092 = vmatprep.mubr.bf16.mxu0 0
        %4093 = vmatmul.mubr.bf16.gmra.mxu0 %v3482
        %v4094 = vpop.f32.mrf.mxu0
        %v4095 = vadd.f32 %v3039, %v4094
        %v4096 = vpop.f32.mrf.mxu0
        %v4097 = vadd.f32 %v3039, %v4096
        %v4098 = vpop.f32.mrf.mxu0
        %v4099 = vadd.f32 %v3044, %v4098
        %v4100 = vpop.f32.mrf.mxu0
        %v4101 = vadd.f32 %v3044, %v4100
        %4102 = vmatprep.mubr.bf16.mxu0 0
        %4103 = vmatmul.mubr.bf16.gmra.mxu0 %v3483
        %v4104 = vpop.f32.mrf.mxu0
        %v4105 = vadd.f32 %v3049, %v4104
        %v4106 = vpop.f32.mrf.mxu0
        %v4107 = vadd.f32 %v3049, %v4106
        %v4108 = vpop.f32.mrf.mxu0
        %v4109 = vadd.f32 %v3054, %v4108
        %v4110 = vpop.f32.mrf.mxu0
        %v4111 = vadd.f32 %v3054, %v4110
        %4112 = vmatprep.mubr.bf16.mxu0 0
        %4113 = vmatmul.mubr.bf16.gmra.mxu0 %v3484
        %v4114 = vpop.f32.mrf.mxu0
        %v4115 = vadd.f32 %v3059, %v4114
        %v4116 = vpop.f32.mrf.mxu0
        %v4117 = vadd.f32 %v3059, %v4116
        %v4118 = vpop.f32.mrf.mxu0
        %v4119 = vadd.f32 %v3064, %v4118
        %v4120 = vpop.f32.mrf.mxu0
        %v4121 = vadd.f32 %v3064, %v4120
        %4122 = vmatprep.mubr.bf16.mxu0 0
        %4123 = vmatmul.mubr.bf16.gmra.mxu0 %v3485
        %v4124 = vpop.f32.mrf.mxu0
        %v4125 = vadd.f32 %v3069, %v4124
        %v4126 = vpop.f32.mrf.mxu0
        %v4127 = vadd.f32 %v3069, %v4126
        %v4128 = vpop.f32.mrf.mxu0
        %v4129 = vadd.f32 %v3074, %v4128
        %v4130 = vpop.f32.mrf.mxu0
        %v4131 = vadd.f32 %v3074, %v4130
        %4132 = vmatprep.mubr.bf16.mxu0 0
        %4133 = vmatmul.mubr.bf16.gmra.mxu0 %v3486
        %v4134 = vpop.f32.mrf.mxu0
        %v4135 = vadd.f32 %v3079, %v4134
        %v4136 = vpop.f32.mrf.mxu0
        %v4137 = vadd.f32 %v3079, %v4136
        %v4138 = vpop.f32.mrf.mxu0
        %v4139 = vadd.f32 %v3084, %v4138
        %v4140 = vpop.f32.mrf.mxu0
        %v4141 = vadd.f32 %v3084, %v4140
        %4142 = vmatprep.mubr.bf16.mxu0 0
        %4143 = vmatmul.mubr.bf16.gmra.mxu0 %v3487
        %v4144 = vpop.f32.mrf.mxu0
        %v4145 = vadd.f32 %v3089, %v4144
        %v4146 = vpop.f32.mrf.mxu0
        %v4147 = vadd.f32 %v3089, %v4146
        %v4148 = vpop.f32.mrf.mxu0
        %v4149 = vadd.f32 %v3094, %v4148
        %v4150 = vpop.f32.mrf.mxu0
        %v4151 = vadd.f32 %v3094, %v4150
        %4152 = vmatprep.mubr.bf16.mxu0 0
        %4153 = vmatmul.mubr.bf16.gmra.mxu0 %v3488
        %v4154 = vpop.f32.mrf.mxu0
        %v4155 = vadd.f32 %v3099, %v4154
        %v4156 = vpop.f32.mrf.mxu0
        %v4157 = vadd.f32 %v3099, %v4156
        %v4158 = vpop.f32.mrf.mxu0
        %v4159 = vadd.f32 %v3104, %v4158
        %v4160 = vpop.f32.mrf.mxu0
        %v4161 = vadd.f32 %v3104, %v4160
        %4162 = vmatprep.mubr.bf16.mxu0 0
        %4163 = vmatmul.mubr.bf16.gmra.mxu0 %v3489
        %v4164 = vpop.f32.mrf.mxu0
        %v4165 = vadd.f32 %v3109, %v4164
        %v4166 = vpop.f32.mrf.mxu0
        %v4167 = vadd.f32 %v3109, %v4166
        %v4168 = vpop.f32.mrf.mxu0
        %v4169 = vadd.f32 %v3114, %v4168
        %v4170 = vpop.f32.mrf.mxu0
        %v4171 = vadd.f32 %v3114, %v4170
        %4172 = vmatprep.mubr.bf16.mxu0 0
        %4173 = vmatmul.mubr.bf16.gmra.mxu0 %v3490
        %v4174 = vpop.f32.mrf.mxu0
        %v4175 = vadd.f32 %v3119, %v4174
        %v4176 = vpop.f32.mrf.mxu0
        %v4177 = vadd.f32 %v3119, %v4176
        %v4178 = vpop.f32.mrf.mxu0
        %v4179 = vadd.f32 %v3124, %v4178
        %v4180 = vpop.f32.mrf.mxu0
        %v4181 = vadd.f32 %v3124, %v4180
        %4182 = vmatprep.mubr.bf16.mxu0 0
        %4183 = vmatmul.mubr.bf16.gmra.mxu0 %v3491
        %v4184 = vpop.f32.mrf.mxu0
        %v4185 = vadd.f32 %v3129, %v4184
        %v4186 = vpop.f32.mrf.mxu0
        %v4187 = vadd.f32 %v3129, %v4186
        %v4188 = vpop.f32.mrf.mxu0
        %v4189 = vadd.f32 %v3134, %v4188
        %v4190 = vpop.f32.mrf.mxu0
        %v4191 = vadd.f32 %v3134, %v4190
        %4192 = vmatprep.mubr.bf16.mxu0 0
        %4193 = vmatmul.mubr.bf16.gmra.mxu0 %v3492
        %v4194 = vpop.f32.mrf.mxu0
        %v4195 = vadd.f32 %v3139, %v4194
        %v4196 = vpop.f32.mrf.mxu0
        %v4197 = vadd.f32 %v3139, %v4196
        %v4198 = vpop.f32.mrf.mxu0
        %v4199 = vadd.f32 %v3144, %v4198
        %v4200 = vpop.f32.mrf.mxu0
        %v4201 = vadd.f32 %v3144, %v4200
        %4202 = vmatprep.mubr.bf16.mxu0 0
        %4203 = vmatmul.mubr.bf16.gmra.mxu0 %v3493
        %v4204 = vpop.f32.mrf.mxu0
        %v4205 = vadd.f32 %v3149, %v4204
        %v4206 = vpop.f32.mrf.mxu0
        %v4207 = vadd.f32 %v3149, %v4206
        %v4208 = vpop.f32.mrf.mxu0
        %v4209 = vadd.f32 %v3154, %v4208
        %v4210 = vpop.f32.mrf.mxu0
        %v4211 = vadd.f32 %v3154, %v4210
        %4212 = vmatprep.mubr.bf16.mxu0 0
        %4213 = vmatmul.mubr.bf16.gmra.mxu0 %v3494
        %v4214 = vpop.f32.mrf.mxu0
        %v4215 = vadd.f32 %v3159, %v4214
        %v4216 = vpop.f32.mrf.mxu0
        %v4217 = vadd.f32 %v3159, %v4216
        %v4218 = vpop.f32.mrf.mxu0
        %v4219 = vadd.f32 %v3164, %v4218
        %v4220 = vpop.f32.mrf.mxu0
        %v4221 = vadd.f32 %v3164, %v4220
        %4222 = vmatprep.mubr.bf16.mxu0 0
        %4223 = vmatmul.mubr.bf16.gmra.mxu0 %v3495
        %v4224 = vpop.f32.mrf.mxu0
        %v4225 = vadd.f32 %v3169, %v4224
        %v4226 = vpop.f32.mrf.mxu0
        %v4227 = vadd.f32 %v3169, %v4226
        %v4228 = vpop.f32.mrf.mxu0
        %v4229 = vadd.f32 %v3174, %v4228
        %v4230 = vpop.f32.mrf.mxu0
        %v4231 = vadd.f32 %v3174, %v4230
        %4232 = vdwg.mxu0
        %v4233 = vmax.f32 %v3595, 0.0
        %v4234 = vmax.f32 %v3597, 0.0
        %v4235 = vmax.f32 %v3599, 0.0
        %v4236 = vmax.f32 %v3601, 0.0
        %v4237 = vmax.f32 %v3605, 0.0
        %v4238 = vmax.f32 %v3607, 0.0
        %v4239 = vmax.f32 %v3609, 0.0
        %v4240 = vmax.f32 %v3611, 0.0
        %v4241 = vmax.f32 %v3615, 0.0
        %v4242 = vmax.f32 %v3617, 0.0
        %v4243 = vmax.f32 %v3619, 0.0
        %v4244 = vmax.f32 %v3621, 0.0
        %v4245 = vmax.f32 %v3625, 0.0
        %v4246 = vmax.f32 %v3627, 0.0
        %v4247 = vmax.f32 %v3629, 0.0
        %v4248 = vmax.f32 %v3631, 0.0
        %v4249 = vmax.f32 %v3635, 0.0
        %v4250 = vmax.f32 %v3637, 0.0
        %v4251 = vmax.f32 %v3639, 0.0
        %v4252 = vmax.f32 %v3641, 0.0
        %v4253 = vmax.f32 %v3645, 0.0
        %v4254 = vmax.f32 %v3647, 0.0
        %v4255 = vmax.f32 %v3649, 0.0
        %v4256 = vmax.f32 %v3651, 0.0
        %v4257 = vmax.f32 %v3655, 0.0
        %v4258 = vmax.f32 %v3657, 0.0
        %v4259 = vmax.f32 %v3659, 0.0
        %v4260 = vmax.f32 %v3661, 0.0
        %v4261 = vmax.f32 %v3665, 0.0
        %v4262 = vmax.f32 %v3667, 0.0
        %v4263 = vmax.f32 %v3669, 0.0
        %v4264 = vmax.f32 %v3671, 0.0
        %v4265 = vmax.f32 %v3675, 0.0
        %v4266 = vmax.f32 %v3677, 0.0
        %v4267 = vmax.f32 %v3679, 0.0
        %v4268 = vmax.f32 %v3681, 0.0
        %v4269 = vmax.f32 %v3685, 0.0
        %v4270 = vmax.f32 %v3687, 0.0
        %v4271 = vmax.f32 %v3689, 0.0
        %v4272 = vmax.f32 %v3691, 0.0
        %v4273 = vmax.f32 %v3695, 0.0
        %v4274 = vmax.f32 %v3697, 0.0
        %v4275 = vmax.f32 %v3699, 0.0
        %v4276 = vmax.f32 %v3701, 0.0
        %v4277 = vmax.f32 %v3705, 0.0
        %v4278 = vmax.f32 %v3707, 0.0
        %v4279 = vmax.f32 %v3709, 0.0
        %v4280 = vmax.f32 %v3711, 0.0
        %v4281 = vmax.f32 %v3715, 0.0
        %v4282 = vmax.f32 %v3717, 0.0
        %v4283 = vmax.f32 %v3719, 0.0
        %v4284 = vmax.f32 %v3721, 0.0
        %v4285 = vmax.f32 %v3725, 0.0
        %v4286 = vmax.f32 %v3727, 0.0
        %v4287 = vmax.f32 %v3729, 0.0
        %v4288 = vmax.f32 %v3731, 0.0
        %v4289 = vmax.f32 %v3735, 0.0
        %v4290 = vmax.f32 %v3737, 0.0
        %v4291 = vmax.f32 %v3739, 0.0
        %v4292 = vmax.f32 %v3741, 0.0
        %v4293 = vmax.f32 %v3745, 0.0
        %v4294 = vmax.f32 %v3747, 0.0
        %v4295 = vmax.f32 %v3749, 0.0
        %v4296 = vmax.f32 %v3751, 0.0
        %v4297 = vmax.f32 %v3755, 0.0
        %v4298 = vmax.f32 %v3757, 0.0
        %v4299 = vmax.f32 %v3759, 0.0
        %v4300 = vmax.f32 %v3761, 0.0
        %v4301 = vmax.f32 %v3765, 0.0
        %v4302 = vmax.f32 %v3767, 0.0
        %v4303 = vmax.f32 %v3769, 0.0
        %v4304 = vmax.f32 %v3771, 0.0
        %v4305 = vmax.f32 %v3775, 0.0
        %v4306 = vmax.f32 %v3777, 0.0
        %v4307 = vmax.f32 %v3779, 0.0
        %v4308 = vmax.f32 %v3781, 0.0
        %v4309 = vmax.f32 %v3785, 0.0
        %v4310 = vmax.f32 %v3787, 0.0
        %v4311 = vmax.f32 %v3789, 0.0
        %v4312 = vmax.f32 %v3791, 0.0
        %v4313 = vmax.f32 %v3795, 0.0
        %v4314 = vmax.f32 %v3797, 0.0
        %v4315 = vmax.f32 %v3799, 0.0
        %v4316 = vmax.f32 %v3801, 0.0
        %v4317 = vmax.f32 %v3805, 0.0
        %v4318 = vmax.f32 %v3807, 0.0
        %v4319 = vmax.f32 %v3809, 0.0
        %v4320 = vmax.f32 %v3811, 0.0
        %v4321 = vmax.f32 %v3815, 0.0
        %v4322 = vmax.f32 %v3817, 0.0
        %v4323 = vmax.f32 %v3819, 0.0
        %v4324 = vmax.f32 %v3821, 0.0
        %v4325 = vmax.f32 %v3825, 0.0
        %v4326 = vmax.f32 %v3827, 0.0
        %v4327 = vmax.f32 %v3829, 0.0
        %v4328 = vmax.f32 %v3831, 0.0
        %v4329 = vmax.f32 %v3835, 0.0
        %v4330 = vmax.f32 %v3837, 0.0
        %v4331 = vmax.f32 %v3839, 0.0
        %v4332 = vmax.f32 %v3841, 0.0
        %v4333 = vmax.f32 %v3845, 0.0
        %v4334 = vmax.f32 %v3847, 0.0
        %v4335 = vmax.f32 %v3849, 0.0
        %v4336 = vmax.f32 %v3851, 0.0
        %v4337 = vmax.f32 %v3855, 0.0
        %v4338 = vmax.f32 %v3857, 0.0
        %v4339 = vmax.f32 %v3859, 0.0
        %v4340 = vmax.f32 %v3861, 0.0
        %v4341 = vmax.f32 %v3865, 0.0
        %v4342 = vmax.f32 %v3867, 0.0
        %v4343 = vmax.f32 %v3869, 0.0
        %v4344 = vmax.f32 %v3871, 0.0
        %v4345 = vmax.f32 %v3875, 0.0
        %v4346 = vmax.f32 %v3877, 0.0
        %v4347 = vmax.f32 %v3879, 0.0
        %v4348 = vmax.f32 %v3881, 0.0
        %v4349 = vmax.f32 %v3885, 0.0
        %v4350 = vmax.f32 %v3887, 0.0
        %v4351 = vmax.f32 %v3889, 0.0
        %v4352 = vmax.f32 %v3891, 0.0
        %v4353 = vmax.f32 %v3895, 0.0
        %v4354 = vmax.f32 %v3897, 0.0
        %v4355 = vmax.f32 %v3899, 0.0
        %v4356 = vmax.f32 %v3901, 0.0
        %v4357 = vmax.f32 %v3905, 0.0
        %v4358 = vmax.f32 %v3907, 0.0
        %v4359 = vmax.f32 %v3909, 0.0
        %v4360 = vmax.f32 %v3911, 0.0
        %v4361 = vmax.f32 %v3915, 0.0
        %v4362 = vmax.f32 %v3917, 0.0
        %v4363 = vmax.f32 %v3919, 0.0
        %v4364 = vmax.f32 %v3921, 0.0
        %v4365 = vmax.f32 %v3925, 0.0
        %v4366 = vmax.f32 %v3927, 0.0
        %v4367 = vmax.f32 %v3929, 0.0
        %v4368 = vmax.f32 %v3931, 0.0
        %v4369 = vmax.f32 %v3935, 0.0
        %v4370 = vmax.f32 %v3937, 0.0
        %v4371 = vmax.f32 %v3939, 0.0
        %v4372 = vmax.f32 %v3941, 0.0
        %v4373 = vmax.f32 %v3945, 0.0
        %v4374 = vmax.f32 %v3947, 0.0
        %v4375 = vmax.f32 %v3949, 0.0
        %v4376 = vmax.f32 %v3951, 0.0
        %v4377 = vmax.f32 %v3955, 0.0
        %v4378 = vmax.f32 %v3957, 0.0
        %v4379 = vmax.f32 %v3959, 0.0
        %v4380 = vmax.f32 %v3961, 0.0
        %v4381 = vmax.f32 %v3965, 0.0
        %v4382 = vmax.f32 %v3967, 0.0
        %v4383 = vmax.f32 %v3969, 0.0
        %v4384 = vmax.f32 %v3971, 0.0
        %v4385 = vmax.f32 %v3975, 0.0
        %v4386 = vmax.f32 %v3977, 0.0
        %v4387 = vmax.f32 %v3979, 0.0
        %v4388 = vmax.f32 %v3981, 0.0
        %v4389 = vmax.f32 %v3985, 0.0
        %v4390 = vmax.f32 %v3987, 0.0
        %v4391 = vmax.f32 %v3989, 0.0
        %v4392 = vmax.f32 %v3991, 0.0
        %v4393 = vmax.f32 %v3995, 0.0
        %v4394 = vmax.f32 %v3997, 0.0
        %v4395 = vmax.f32 %v3999, 0.0
        %v4396 = vmax.f32 %v4001, 0.0
        %v4397 = vmax.f32 %v4005, 0.0
        %v4398 = vmax.f32 %v4007, 0.0
        %v4399 = vmax.f32 %v4009, 0.0
        %v4400 = vmax.f32 %v4011, 0.0
        %v4401 = vmax.f32 %v4015, 0.0
        %v4402 = vmax.f32 %v4017, 0.0
        %v4403 = vmax.f32 %v4019, 0.0
        %v4404 = vmax.f32 %v4021, 0.0
        %v4405 = vmax.f32 %v4025, 0.0
        %v4406 = vmax.f32 %v4027, 0.0
        %v4407 = vmax.f32 %v4029, 0.0
        %v4408 = vmax.f32 %v4031, 0.0
        %v4409 = vmax.f32 %v4035, 0.0
        %v4410 = vmax.f32 %v4037, 0.0
        %v4411 = vmax.f32 %v4039, 0.0
        %v4412 = vmax.f32 %v4041, 0.0
        %v4413 = vmax.f32 %v4045, 0.0
        %v4414 = vmax.f32 %v4047, 0.0
        %v4415 = vmax.f32 %v4049, 0.0
        %v4416 = vmax.f32 %v4051, 0.0
        %v4417 = vmax.f32 %v4055, 0.0
        %v4418 = vmax.f32 %v4057, 0.0
        %v4419 = vmax.f32 %v4059, 0.0
        %v4420 = vmax.f32 %v4061, 0.0
        %v4421 = vmax.f32 %v4065, 0.0
        %v4422 = vmax.f32 %v4067, 0.0
        %v4423 = vmax.f32 %v4069, 0.0
        %v4424 = vmax.f32 %v4071, 0.0
        %v4425 = vmax.f32 %v4075, 0.0
        %v4426 = vmax.f32 %v4077, 0.0
        %v4427 = vmax.f32 %v4079, 0.0
        %v4428 = vmax.f32 %v4081, 0.0
        %v4429 = vmax.f32 %v4085, 0.0
        %v4430 = vmax.f32 %v4087, 0.0
        %v4431 = vmax.f32 %v4089, 0.0
        %v4432 = vmax.f32 %v4091, 0.0
        %v4433 = vmax.f32 %v4095, 0.0
        %v4434 = vmax.f32 %v4097, 0.0
        %v4435 = vmax.f32 %v4099, 0.0
        %v4436 = vmax.f32 %v4101, 0.0
        %v4437 = vmax.f32 %v4105, 0.0
        %v4438 = vmax.f32 %v4107, 0.0
        %v4439 = vmax.f32 %v4109, 0.0
        %v4440 = vmax.f32 %v4111, 0.0
        %v4441 = vmax.f32 %v4115, 0.0
        %v4442 = vmax.f32 %v4117, 0.0
        %v4443 = vmax.f32 %v4119, 0.0
        %v4444 = vmax.f32 %v4121, 0.0
        %v4445 = vmax.f32 %v4125, 0.0
        %v4446 = vmax.f32 %v4127, 0.0
        %v4447 = vmax.f32 %v4129, 0.0
        %v4448 = vmax.f32 %v4131, 0.0
        %v4449 = vmax.f32 %v4135, 0.0
        %v4450 = vmax.f32 %v4137, 0.0
        %v4451 = vmax.f32 %v4139, 0.0
        %v4452 = vmax.f32 %v4141, 0.0
        %v4453 = vmax.f32 %v4145, 0.0
        %v4454 = vmax.f32 %v4147, 0.0
        %v4455 = vmax.f32 %v4149, 0.0
        %v4456 = vmax.f32 %v4151, 0.0
        %v4457 = vmax.f32 %v4155, 0.0
        %v4458 = vmax.f32 %v4157, 0.0
        %v4459 = vmax.f32 %v4159, 0.0
        %v4460 = vmax.f32 %v4161, 0.0
        %v4461 = vmax.f32 %v4165, 0.0
        %v4462 = vmax.f32 %v4167, 0.0
        %v4463 = vmax.f32 %v4169, 0.0
        %v4464 = vmax.f32 %v4171, 0.0
        %v4465 = vmax.f32 %v4175, 0.0
        %v4466 = vmax.f32 %v4177, 0.0
        %v4467 = vmax.f32 %v4179, 0.0
        %v4468 = vmax.f32 %v4181, 0.0
        %v4469 = vmax.f32 %v4185, 0.0
        %v4470 = vmax.f32 %v4187, 0.0
        %v4471 = vmax.f32 %v4189, 0.0
        %v4472 = vmax.f32 %v4191, 0.0
        %v4473 = vmax.f32 %v4195, 0.0
        %v4474 = vmax.f32 %v4197, 0.0
        %v4475 = vmax.f32 %v4199, 0.0
        %v4476 = vmax.f32 %v4201, 0.0
        %v4477 = vmax.f32 %v4205, 0.0
        %v4478 = vmax.f32 %v4207, 0.0
        %v4479 = vmax.f32 %v4209, 0.0
        %v4480 = vmax.f32 %v4211, 0.0
        %v4481 = vmax.f32 %v4215, 0.0
        %v4482 = vmax.f32 %v4217, 0.0
        %v4483 = vmax.f32 %v4219, 0.0
        %v4484 = vmax.f32 %v4221, 0.0
        %v4485 = vmax.f32 %v4225, 0.0
        %v4486 = vmax.f32 %v4227, 0.0
        %v4487 = vmax.f32 %v4229, 0.0
        %v4488 = vmax.f32 %v4231, 0.0
        %p4489 = scmp.eq.s32.totalorder %s39, 0
        // Predicated region
        $region137: #{pointnetfeat_desc.2} parent=79 // pred_check
          %p4490 = pneg %p4489
        $region138: #{pointnetfeat_desc.2} parent=79 // pred_check_branch
          %4492 = sbr.rel (%p4490) target = $region140
        $region139: #{pointnetfeat_desc.2} parent=79 // pred_region
          %vm4493 = vcmask 7168
          %4494 = vst.msk [vmem:[%s726] sm:$0xff] %vm4493, -inf
          %4495 = vst.msk [vmem:[%s726 + $0x8] sm:$0xff] %vm4493, -inf
          %4496 = vst.msk [vmem:[%s726 + $0x10] sm:$0xff] %vm4493, -inf
          %4497 = vst.msk [vmem:[%s726 + $0x18] sm:$0xff] %vm4493, -inf
          %4498 = vst.msk [vmem:[%s726 + $0x20] sm:$0xff] %vm4493, -inf
          %4499 = vst.msk [vmem:[%s726 + $0x28] sm:$0xff] %vm4493, -inf
          %4500 = vst.msk [vmem:[%s726 + $0x30] sm:$0xff] %vm4493, -inf
          %4501 = vst.msk [vmem:[%s726 + $0x38] sm:$0xff] %vm4493, -inf
          %4502 = vst.msk [vmem:[%s726 + $0x40] sm:$0xff] %vm4493, -inf
          %4503 = vst.msk [vmem:[%s726 + $0x48] sm:$0xff] %vm4493, -inf
          %4504 = vst.msk [vmem:[%s726 + $0x50] sm:$0xff] %vm4493, -inf
          %4505 = vst.msk [vmem:[%s726 + $0x58] sm:$0xff] %vm4493, -inf
          %4506 = vst.msk [vmem:[%s726 + $0x60] sm:$0xff] %vm4493, -inf
          %4507 = vst.msk [vmem:[%s726 + $0x68] sm:$0xff] %vm4493, -inf
          %4508 = vst.msk [vmem:[%s726 + $0x70] sm:$0xff] %vm4493, -inf
          %4509 = vst.msk [vmem:[%s726 + $0x78] sm:$0xff] %vm4493, -inf
          %4510 = vst.msk [vmem:[%s726 + $0x80] sm:$0xff] %vm4493, -inf
          %4511 = vst.msk [vmem:[%s726 + $0x88] sm:$0xff] %vm4493, -inf
          %4512 = vst.msk [vmem:[%s726 + $0x90] sm:$0xff] %vm4493, -inf
          %4513 = vst.msk [vmem:[%s726 + $0x98] sm:$0xff] %vm4493, -inf
          %4514 = vst.msk [vmem:[%s726 + $0xa0] sm:$0xff] %vm4493, -inf
          %4515 = vst.msk [vmem:[%s726 + $0xa8] sm:$0xff] %vm4493, -inf
          %4516 = vst.msk [vmem:[%s726 + $0xb0] sm:$0xff] %vm4493, -inf
          %4517 = vst.msk [vmem:[%s726 + $0xb8] sm:$0xff] %vm4493, -inf
          %4518 = vst.msk [vmem:[%s726 + $0xc0] sm:$0xff] %vm4493, -inf
          %4519 = vst.msk [vmem:[%s726 + $0xc8] sm:$0xff] %vm4493, -inf
          %4520 = vst.msk [vmem:[%s726 + $0xd0] sm:$0xff] %vm4493, -inf
          %4521 = vst.msk [vmem:[%s726 + $0xd8] sm:$0xff] %vm4493, -inf
          %4522 = vst.msk [vmem:[%s726 + $0xe0] sm:$0xff] %vm4493, -inf
          %4523 = vst.msk [vmem:[%s726 + $0xe8] sm:$0xff] %vm4493, -inf
          %4524 = vst.msk [vmem:[%s726 + $0xf0] sm:$0xff] %vm4493, -inf
          %4525 = vst.msk [vmem:[%s726 + $0xf8] sm:$0xff] %vm4493, -inf
          %4526 = vst.msk [vmem:[%s726 + $0x100] sm:$0xff] %vm4493, -inf
          %4527 = vst.msk [vmem:[%s726 + $0x108] sm:$0xff] %vm4493, -inf
          %4528 = vst.msk [vmem:[%s726 + $0x110] sm:$0xff] %vm4493, -inf
          %4529 = vst.msk [vmem:[%s726 + $0x118] sm:$0xff] %vm4493, -inf
          %4530 = vst.msk [vmem:[%s726 + $0x120] sm:$0xff] %vm4493, -inf
          %4531 = vst.msk [vmem:[%s726 + $0x128] sm:$0xff] %vm4493, -inf
          %4532 = vst.msk [vmem:[%s726 + $0x130] sm:$0xff] %vm4493, -inf
          %4533 = vst.msk [vmem:[%s726 + $0x138] sm:$0xff] %vm4493, -inf
          %4534 = vst.msk [vmem:[%s726 + $0x140] sm:$0xff] %vm4493, -inf
          %4535 = vst.msk [vmem:[%s726 + $0x148] sm:$0xff] %vm4493, -inf
          %4536 = vst.msk [vmem:[%s726 + $0x150] sm:$0xff] %vm4493, -inf
          %4537 = vst.msk [vmem:[%s726 + $0x158] sm:$0xff] %vm4493, -inf
          %4538 = vst.msk [vmem:[%s726 + $0x160] sm:$0xff] %vm4493, -inf
          %4539 = vst.msk [vmem:[%s726 + $0x168] sm:$0xff] %vm4493, -inf
          %4540 = vst.msk [vmem:[%s726 + $0x170] sm:$0xff] %vm4493, -inf
          %4541 = vst.msk [vmem:[%s726 + $0x178] sm:$0xff] %vm4493, -inf
          %4542 = vst.msk [vmem:[%s726 + $0x180] sm:$0xff] %vm4493, -inf
          %4543 = vst.msk [vmem:[%s726 + $0x188] sm:$0xff] %vm4493, -inf
          %4544 = vst.msk [vmem:[%s726 + $0x190] sm:$0xff] %vm4493, -inf
          %4545 = vst.msk [vmem:[%s726 + $0x198] sm:$0xff] %vm4493, -inf
          %4546 = vst.msk [vmem:[%s726 + $0x1a0] sm:$0xff] %vm4493, -inf
          %4547 = vst.msk [vmem:[%s726 + $0x1a8] sm:$0xff] %vm4493, -inf
          %4548 = vst.msk [vmem:[%s726 + $0x1b0] sm:$0xff] %vm4493, -inf
          %4549 = vst.msk [vmem:[%s726 + $0x1b8] sm:$0xff] %vm4493, -inf
          %4550 = vst.msk [vmem:[%s726 + $0x1c0] sm:$0xff] %vm4493, -inf
          %4551 = vst.msk [vmem:[%s726 + $0x1c8] sm:$0xff] %vm4493, -inf
          %4552 = vst.msk [vmem:[%s726 + $0x1d0] sm:$0xff] %vm4493, -inf
          %4553 = vst.msk [vmem:[%s726 + $0x1d8] sm:$0xff] %vm4493, -inf
          %4554 = vst.msk [vmem:[%s726 + $0x1e0] sm:$0xff] %vm4493, -inf
          %4555 = vst.msk [vmem:[%s726 + $0x1e8] sm:$0xff] %vm4493, -inf
          %4556 = vst.msk [vmem:[%s726 + $0x1f0] sm:$0xff] %vm4493, -inf
          %4557 = vst.msk [vmem:[%s726 + $0x1f8] sm:$0xff] %vm4493, -inf
          %4558 = vst.msk [vmem:[%s726 + $0x200] sm:$0xff] %vm4493, -inf
          %4559 = vst.msk [vmem:[%s726 + $0x208] sm:$0xff] %vm4493, -inf
          %4560 = vst.msk [vmem:[%s726 + $0x210] sm:$0xff] %vm4493, -inf
          %4561 = vst.msk [vmem:[%s726 + $0x218] sm:$0xff] %vm4493, -inf
          %4562 = vst.msk [vmem:[%s726 + $0x220] sm:$0xff] %vm4493, -inf
          %4563 = vst.msk [vmem:[%s726 + $0x228] sm:$0xff] %vm4493, -inf
          %4564 = vst.msk [vmem:[%s726 + $0x230] sm:$0xff] %vm4493, -inf
          %4565 = vst.msk [vmem:[%s726 + $0x238] sm:$0xff] %vm4493, -inf
          %4566 = vst.msk [vmem:[%s726 + $0x240] sm:$0xff] %vm4493, -inf
          %4567 = vst.msk [vmem:[%s726 + $0x248] sm:$0xff] %vm4493, -inf
          %4568 = vst.msk [vmem:[%s726 + $0x250] sm:$0xff] %vm4493, -inf
          %4569 = vst.msk [vmem:[%s726 + $0x258] sm:$0xff] %vm4493, -inf
          %4570 = vst.msk [vmem:[%s726 + $0x260] sm:$0xff] %vm4493, -inf
          %4571 = vst.msk [vmem:[%s726 + $0x268] sm:$0xff] %vm4493, -inf
          %4572 = vst.msk [vmem:[%s726 + $0x270] sm:$0xff] %vm4493, -inf
          %4573 = vst.msk [vmem:[%s726 + $0x278] sm:$0xff] %vm4493, -inf
          %4574 = vst.msk [vmem:[%s726 + $0x280] sm:$0xff] %vm4493, -inf
          %4575 = vst.msk [vmem:[%s726 + $0x288] sm:$0xff] %vm4493, -inf
          %4576 = vst.msk [vmem:[%s726 + $0x290] sm:$0xff] %vm4493, -inf
          %4577 = vst.msk [vmem:[%s726 + $0x298] sm:$0xff] %vm4493, -inf
          %4578 = vst.msk [vmem:[%s726 + $0x2a0] sm:$0xff] %vm4493, -inf
          %4579 = vst.msk [vmem:[%s726 + $0x2a8] sm:$0xff] %vm4493, -inf
          %4580 = vst.msk [vmem:[%s726 + $0x2b0] sm:$0xff] %vm4493, -inf
          %4581 = vst.msk [vmem:[%s726 + $0x2b8] sm:$0xff] %vm4493, -inf
          %4582 = vst.msk [vmem:[%s726 + $0x2c0] sm:$0xff] %vm4493, -inf
          %4583 = vst.msk [vmem:[%s726 + $0x2c8] sm:$0xff] %vm4493, -inf
          %4584 = vst.msk [vmem:[%s726 + $0x2d0] sm:$0xff] %vm4493, -inf
          %4585 = vst.msk [vmem:[%s726 + $0x2d8] sm:$0xff] %vm4493, -inf
          %4586 = vst.msk [vmem:[%s726 + $0x2e0] sm:$0xff] %vm4493, -inf
          %4587 = vst.msk [vmem:[%s726 + $0x2e8] sm:$0xff] %vm4493, -inf
          %4588 = vst.msk [vmem:[%s726 + $0x2f0] sm:$0xff] %vm4493, -inf
          %4589 = vst.msk [vmem:[%s726 + $0x2f8] sm:$0xff] %vm4493, -inf
          %4590 = vst.msk [vmem:[%s726 + $0x300] sm:$0xff] %vm4493, -inf
          %4591 = vst.msk [vmem:[%s726 + $0x308] sm:$0xff] %vm4493, -inf
          %4592 = vst.msk [vmem:[%s726 + $0x310] sm:$0xff] %vm4493, -inf
          %4593 = vst.msk [vmem:[%s726 + $0x318] sm:$0xff] %vm4493, -inf
          %4594 = vst.msk [vmem:[%s726 + $0x320] sm:$0xff] %vm4493, -inf
          %4595 = vst.msk [vmem:[%s726 + $0x328] sm:$0xff] %vm4493, -inf
          %4596 = vst.msk [vmem:[%s726 + $0x330] sm:$0xff] %vm4493, -inf
          %4597 = vst.msk [vmem:[%s726 + $0x338] sm:$0xff] %vm4493, -inf
          %4598 = vst.msk [vmem:[%s726 + $0x340] sm:$0xff] %vm4493, -inf
          %4599 = vst.msk [vmem:[%s726 + $0x348] sm:$0xff] %vm4493, -inf
          %4600 = vst.msk [vmem:[%s726 + $0x350] sm:$0xff] %vm4493, -inf
          %4601 = vst.msk [vmem:[%s726 + $0x358] sm:$0xff] %vm4493, -inf
          %4602 = vst.msk [vmem:[%s726 + $0x360] sm:$0xff] %vm4493, -inf
          %4603 = vst.msk [vmem:[%s726 + $0x368] sm:$0xff] %vm4493, -inf
          %4604 = vst.msk [vmem:[%s726 + $0x370] sm:$0xff] %vm4493, -inf
          %4605 = vst.msk [vmem:[%s726 + $0x378] sm:$0xff] %vm4493, -inf
          %4606 = vst.msk [vmem:[%s726 + $0x380] sm:$0xff] %vm4493, -inf
          %4607 = vst.msk [vmem:[%s726 + $0x388] sm:$0xff] %vm4493, -inf
          %4608 = vst.msk [vmem:[%s726 + $0x390] sm:$0xff] %vm4493, -inf
          %4609 = vst.msk [vmem:[%s726 + $0x398] sm:$0xff] %vm4493, -inf
          %4610 = vst.msk [vmem:[%s726 + $0x3a0] sm:$0xff] %vm4493, -inf
          %4611 = vst.msk [vmem:[%s726 + $0x3a8] sm:$0xff] %vm4493, -inf
          %4612 = vst.msk [vmem:[%s726 + $0x3b0] sm:$0xff] %vm4493, -inf
          %4613 = vst.msk [vmem:[%s726 + $0x3b8] sm:$0xff] %vm4493, -inf
          %4614 = vst.msk [vmem:[%s726 + $0x3c0] sm:$0xff] %vm4493, -inf
          %4615 = vst.msk [vmem:[%s726 + $0x3c8] sm:$0xff] %vm4493, -inf
          %4616 = vst.msk [vmem:[%s726 + $0x3d0] sm:$0xff] %vm4493, -inf
          %4617 = vst.msk [vmem:[%s726 + $0x3d8] sm:$0xff] %vm4493, -inf
          %4618 = vst.msk [vmem:[%s726 + $0x3e0] sm:$0xff] %vm4493, -inf
          %4619 = vst.msk [vmem:[%s726 + $0x3e8] sm:$0xff] %vm4493, -inf
          %4620 = vst.msk [vmem:[%s726 + $0x3f0] sm:$0xff] %vm4493, -inf
          %4621 = vst.msk [vmem:[%s726 + $0x3f8] sm:$0xff] %vm4493, -inf
        $region140: #{pointnetfeat_desc.2} parent=79 // pred_fallthru
          _
        %v4622 = vmax.f32 %v4233, %v4234
        %4623 = vmax.xlane.f32.xlu0 %v4622
        %v4624 = vpop.xlane.xlu0 %4623
        %v4625 = vmax.f32 %v4235, %v4236
        %4626 = vmax.xlane.f32.xlu0 %v4625
        %v4627 = vpop.xlane.xlu0 %4626
        %v4628 = vmax.f32 %v4237, %v4238
        %4629 = vmax.xlane.f32.xlu0 %v4628
        %v4630 = vpop.xlane.xlu0 %4629
        %v4631 = vmax.f32 %v4239, %v4240
        %4632 = vmax.xlane.f32.xlu0 %v4631
        %v4633 = vpop.xlane.xlu0 %4632
        %v4634 = vmax.f32 %v4241, %v4242
        %4635 = vmax.xlane.f32.xlu0 %v4634
        %v4636 = vpop.xlane.xlu0 %4635
        %v4637 = vmax.f32 %v4243, %v4244
        %4638 = vmax.xlane.f32.xlu0 %v4637
        %v4639 = vpop.xlane.xlu0 %4638
        %v4640 = vmax.f32 %v4245, %v4246
        %4641 = vmax.xlane.f32.xlu0 %v4640
        %v4642 = vpop.xlane.xlu0 %4641
        %v4643 = vmax.f32 %v4247, %v4248
        %4644 = vmax.xlane.f32.xlu0 %v4643
        %v4645 = vpop.xlane.xlu0 %4644
        %v4646 = vmax.f32 %v4249, %v4250
        %4647 = vmax.xlane.f32.xlu0 %v4646
        %v4648 = vpop.xlane.xlu0 %4647
        %v4649 = vmax.f32 %v4251, %v4252
        %4650 = vmax.xlane.f32.xlu0 %v4649
        %v4651 = vpop.xlane.xlu0 %4650
        %v4652 = vmax.f32 %v4253, %v4254
        %4653 = vmax.xlane.f32.xlu0 %v4652
        %v4654 = vpop.xlane.xlu0 %4653
        %v4655 = vmax.f32 %v4255, %v4256
        %4656 = vmax.xlane.f32.xlu0 %v4655
        %v4657 = vpop.xlane.xlu0 %4656
        %v4658 = vmax.f32 %v4257, %v4258
        %4659 = vmax.xlane.f32.xlu0 %v4658
        %v4660 = vpop.xlane.xlu0 %4659
        %v4661 = vmax.f32 %v4259, %v4260
        %4662 = vmax.xlane.f32.xlu0 %v4661
        %v4663 = vpop.xlane.xlu0 %4662
        %v4664 = vmax.f32 %v4261, %v4262
        %4665 = vmax.xlane.f32.xlu0 %v4664
        %v4666 = vpop.xlane.xlu0 %4665
        %v4667 = vmax.f32 %v4263, %v4264
        %4668 = vmax.xlane.f32.xlu0 %v4667
        %v4669 = vpop.xlane.xlu0 %4668
        %v4670 = vmax.f32 %v4265, %v4266
        %4671 = vmax.xlane.f32.xlu0 %v4670
        %v4672 = vpop.xlane.xlu0 %4671
        %v4673 = vmax.f32 %v4267, %v4268
        %4674 = vmax.xlane.f32.xlu0 %v4673
        %v4675 = vpop.xlane.xlu0 %4674
        %v4676 = vmax.f32 %v4269, %v4270
        %4677 = vmax.xlane.f32.xlu0 %v4676
        %v4678 = vpop.xlane.xlu0 %4677
        %v4679 = vmax.f32 %v4271, %v4272
        %4680 = vmax.xlane.f32.xlu0 %v4679
        %v4681 = vpop.xlane.xlu0 %4680
        %v4682 = vmax.f32 %v4273, %v4274
        %4683 = vmax.xlane.f32.xlu0 %v4682
        %v4684 = vpop.xlane.xlu0 %4683
        %v4685 = vmax.f32 %v4275, %v4276
        %4686 = vmax.xlane.f32.xlu0 %v4685
        %v4687 = vpop.xlane.xlu0 %4686
        %v4688 = vmax.f32 %v4277, %v4278
        %4689 = vmax.xlane.f32.xlu0 %v4688
        %v4690 = vpop.xlane.xlu0 %4689
        %v4691 = vmax.f32 %v4279, %v4280
        %4692 = vmax.xlane.f32.xlu0 %v4691
        %v4693 = vpop.xlane.xlu0 %4692
        %v4694 = vmax.f32 %v4281, %v4282
        %4695 = vmax.xlane.f32.xlu0 %v4694
        %v4696 = vpop.xlane.xlu0 %4695
        %v4697 = vmax.f32 %v4283, %v4284
        %4698 = vmax.xlane.f32.xlu0 %v4697
        %v4699 = vpop.xlane.xlu0 %4698
        %v4700 = vmax.f32 %v4285, %v4286
        %4701 = vmax.xlane.f32.xlu0 %v4700
        %v4702 = vpop.xlane.xlu0 %4701
        %v4703 = vmax.f32 %v4287, %v4288
        %4704 = vmax.xlane.f32.xlu0 %v4703
        %v4705 = vpop.xlane.xlu0 %4704
        %v4706 = vmax.f32 %v4289, %v4290
        %4707 = vmax.xlane.f32.xlu0 %v4706
        %v4708 = vpop.xlane.xlu0 %4707
        %v4709 = vmax.f32 %v4291, %v4292
        %4710 = vmax.xlane.f32.xlu0 %v4709
        %v4711 = vpop.xlane.xlu0 %4710
        %v4712 = vmax.f32 %v4293, %v4294
        %4713 = vmax.xlane.f32.xlu0 %v4712
        %v4714 = vpop.xlane.xlu0 %4713
        %v4715 = vmax.f32 %v4295, %v4296
        %4716 = vmax.xlane.f32.xlu0 %v4715
        %v4717 = vpop.xlane.xlu0 %4716
        %v4718 = vmax.f32 %v4297, %v4298
        %4719 = vmax.xlane.f32.xlu0 %v4718
        %v4720 = vpop.xlane.xlu0 %4719
        %v4721 = vmax.f32 %v4299, %v4300
        %4722 = vmax.xlane.f32.xlu0 %v4721
        %v4723 = vpop.xlane.xlu0 %4722
        %v4724 = vmax.f32 %v4301, %v4302
        %4725 = vmax.xlane.f32.xlu0 %v4724
        %v4726 = vpop.xlane.xlu0 %4725
        %v4727 = vmax.f32 %v4303, %v4304
        %4728 = vmax.xlane.f32.xlu0 %v4727
        %v4729 = vpop.xlane.xlu0 %4728
        %v4730 = vmax.f32 %v4305, %v4306
        %4731 = vmax.xlane.f32.xlu0 %v4730
        %v4732 = vpop.xlane.xlu0 %4731
        %v4733 = vmax.f32 %v4307, %v4308
        %4734 = vmax.xlane.f32.xlu0 %v4733
        %v4735 = vpop.xlane.xlu0 %4734
        %v4736 = vmax.f32 %v4309, %v4310
        %4737 = vmax.xlane.f32.xlu0 %v4736
        %v4738 = vpop.xlane.xlu0 %4737
        %v4739 = vmax.f32 %v4311, %v4312
        %4740 = vmax.xlane.f32.xlu0 %v4739
        %v4741 = vpop.xlane.xlu0 %4740
        %v4742 = vmax.f32 %v4313, %v4314
        %4743 = vmax.xlane.f32.xlu0 %v4742
        %v4744 = vpop.xlane.xlu0 %4743
        %v4745 = vmax.f32 %v4315, %v4316
        %4746 = vmax.xlane.f32.xlu0 %v4745
        %v4747 = vpop.xlane.xlu0 %4746
        %v4748 = vmax.f32 %v4317, %v4318
        %4749 = vmax.xlane.f32.xlu0 %v4748
        %v4750 = vpop.xlane.xlu0 %4749
        %v4751 = vmax.f32 %v4319, %v4320
        %4752 = vmax.xlane.f32.xlu0 %v4751
        %v4753 = vpop.xlane.xlu0 %4752
        %v4754 = vmax.f32 %v4321, %v4322
        %4755 = vmax.xlane.f32.xlu0 %v4754
        %v4756 = vpop.xlane.xlu0 %4755
        %v4757 = vmax.f32 %v4323, %v4324
        %4758 = vmax.xlane.f32.xlu0 %v4757
        %v4759 = vpop.xlane.xlu0 %4758
        %v4760 = vmax.f32 %v4325, %v4326
        %4761 = vmax.xlane.f32.xlu0 %v4760
        %v4762 = vpop.xlane.xlu0 %4761
        %v4763 = vmax.f32 %v4327, %v4328
        %4764 = vmax.xlane.f32.xlu0 %v4763
        %v4765 = vpop.xlane.xlu0 %4764
        %v4766 = vmax.f32 %v4329, %v4330
        %4767 = vmax.xlane.f32.xlu0 %v4766
        %v4768 = vpop.xlane.xlu0 %4767
        %v4769 = vmax.f32 %v4331, %v4332
        %4770 = vmax.xlane.f32.xlu0 %v4769
        %v4771 = vpop.xlane.xlu0 %4770
        %v4772 = vmax.f32 %v4333, %v4334
        %4773 = vmax.xlane.f32.xlu0 %v4772
        %v4774 = vpop.xlane.xlu0 %4773
        %v4775 = vmax.f32 %v4335, %v4336
        %4776 = vmax.xlane.f32.xlu0 %v4775
        %v4777 = vpop.xlane.xlu0 %4776
        %v4778 = vmax.f32 %v4337, %v4338
        %4779 = vmax.xlane.f32.xlu0 %v4778
        %v4780 = vpop.xlane.xlu0 %4779
        %v4781 = vmax.f32 %v4339, %v4340
        %4782 = vmax.xlane.f32.xlu0 %v4781
        %v4783 = vpop.xlane.xlu0 %4782
        %v4784 = vmax.f32 %v4341, %v4342
        %4785 = vmax.xlane.f32.xlu0 %v4784
        %v4786 = vpop.xlane.xlu0 %4785
        %v4787 = vmax.f32 %v4343, %v4344
        %4788 = vmax.xlane.f32.xlu0 %v4787
        %v4789 = vpop.xlane.xlu0 %4788
        %v4790 = vmax.f32 %v4345, %v4346
        %4791 = vmax.xlane.f32.xlu0 %v4790
        %v4792 = vpop.xlane.xlu0 %4791
        %v4793 = vmax.f32 %v4347, %v4348
        %4794 = vmax.xlane.f32.xlu0 %v4793
        %v4795 = vpop.xlane.xlu0 %4794
        %v4796 = vmax.f32 %v4349, %v4350
        %4797 = vmax.xlane.f32.xlu0 %v4796
        %v4798 = vpop.xlane.xlu0 %4797
        %v4799 = vmax.f32 %v4351, %v4352
        %4800 = vmax.xlane.f32.xlu0 %v4799
        %v4801 = vpop.xlane.xlu0 %4800
        %v4802 = vmax.f32 %v4353, %v4354
        %4803 = vmax.xlane.f32.xlu0 %v4802
        %v4804 = vpop.xlane.xlu0 %4803
        %v4805 = vmax.f32 %v4355, %v4356
        %4806 = vmax.xlane.f32.xlu0 %v4805
        %v4807 = vpop.xlane.xlu0 %4806
        %v4808 = vmax.f32 %v4357, %v4358
        %4809 = vmax.xlane.f32.xlu0 %v4808
        %v4810 = vpop.xlane.xlu0 %4809
        %v4811 = vmax.f32 %v4359, %v4360
        %4812 = vmax.xlane.f32.xlu0 %v4811
        %v4813 = vpop.xlane.xlu0 %4812
        %v4814 = vmax.f32 %v4361, %v4362
        %4815 = vmax.xlane.f32.xlu0 %v4814
        %v4816 = vpop.xlane.xlu0 %4815
        %v4817 = vmax.f32 %v4363, %v4364
        %4818 = vmax.xlane.f32.xlu0 %v4817
        %v4819 = vpop.xlane.xlu0 %4818
        %v4820 = vmax.f32 %v4365, %v4366
        %4821 = vmax.xlane.f32.xlu0 %v4820
        %v4822 = vpop.xlane.xlu0 %4821
        %v4823 = vmax.f32 %v4367, %v4368
        %4824 = vmax.xlane.f32.xlu0 %v4823
        %v4825 = vpop.xlane.xlu0 %4824
        %v4826 = vmax.f32 %v4369, %v4370
        %4827 = vmax.xlane.f32.xlu0 %v4826
        %v4828 = vpop.xlane.xlu0 %4827
        %v4829 = vmax.f32 %v4371, %v4372
        %4830 = vmax.xlane.f32.xlu0 %v4829
        %v4831 = vpop.xlane.xlu0 %4830
        %v4832 = vmax.f32 %v4373, %v4374
        %4833 = vmax.xlane.f32.xlu0 %v4832
        %v4834 = vpop.xlane.xlu0 %4833
        %v4835 = vmax.f32 %v4375, %v4376
        %4836 = vmax.xlane.f32.xlu0 %v4835
        %v4837 = vpop.xlane.xlu0 %4836
        %v4838 = vmax.f32 %v4377, %v4378
        %4839 = vmax.xlane.f32.xlu0 %v4838
        %v4840 = vpop.xlane.xlu0 %4839
        %v4841 = vmax.f32 %v4379, %v4380
        %4842 = vmax.xlane.f32.xlu0 %v4841
        %v4843 = vpop.xlane.xlu0 %4842
        %v4844 = vmax.f32 %v4381, %v4382
        %4845 = vmax.xlane.f32.xlu0 %v4844
        %v4846 = vpop.xlane.xlu0 %4845
        %v4847 = vmax.f32 %v4383, %v4384
        %4848 = vmax.xlane.f32.xlu0 %v4847
        %v4849 = vpop.xlane.xlu0 %4848
        %v4850 = vmax.f32 %v4385, %v4386
        %4851 = vmax.xlane.f32.xlu0 %v4850
        %v4852 = vpop.xlane.xlu0 %4851
        %v4853 = vmax.f32 %v4387, %v4388
        %4854 = vmax.xlane.f32.xlu0 %v4853
        %v4855 = vpop.xlane.xlu0 %4854
        %v4856 = vmax.f32 %v4389, %v4390
        %4857 = vmax.xlane.f32.xlu0 %v4856
        %v4858 = vpop.xlane.xlu0 %4857
        %v4859 = vmax.f32 %v4391, %v4392
        %4860 = vmax.xlane.f32.xlu0 %v4859
        %v4861 = vpop.xlane.xlu0 %4860
        %v4862 = vmax.f32 %v4393, %v4394
        %4863 = vmax.xlane.f32.xlu0 %v4862
        %v4864 = vpop.xlane.xlu0 %4863
        %v4865 = vmax.f32 %v4395, %v4396
        %4866 = vmax.xlane.f32.xlu0 %v4865
        %v4867 = vpop.xlane.xlu0 %4866
        %v4868 = vmax.f32 %v4397, %v4398
        %4869 = vmax.xlane.f32.xlu0 %v4868
        %v4870 = vpop.xlane.xlu0 %4869
        %v4871 = vmax.f32 %v4399, %v4400
        %4872 = vmax.xlane.f32.xlu0 %v4871
        %v4873 = vpop.xlane.xlu0 %4872
        %v4874 = vmax.f32 %v4401, %v4402
        %4875 = vmax.xlane.f32.xlu0 %v4874
        %v4876 = vpop.xlane.xlu0 %4875
        %v4877 = vmax.f32 %v4403, %v4404
        %4878 = vmax.xlane.f32.xlu0 %v4877
        %v4879 = vpop.xlane.xlu0 %4878
        %v4880 = vmax.f32 %v4405, %v4406
        %4881 = vmax.xlane.f32.xlu0 %v4880
        %v4882 = vpop.xlane.xlu0 %4881
        %v4883 = vmax.f32 %v4407, %v4408
        %4884 = vmax.xlane.f32.xlu0 %v4883
        %v4885 = vpop.xlane.xlu0 %4884
        %v4886 = vmax.f32 %v4409, %v4410
        %4887 = vmax.xlane.f32.xlu0 %v4886
        %v4888 = vpop.xlane.xlu0 %4887
        %v4889 = vmax.f32 %v4411, %v4412
        %4890 = vmax.xlane.f32.xlu0 %v4889
        %v4891 = vpop.xlane.xlu0 %4890
        %v4892 = vmax.f32 %v4413, %v4414
        %4893 = vmax.xlane.f32.xlu0 %v4892
        %v4894 = vpop.xlane.xlu0 %4893
        %v4895 = vmax.f32 %v4415, %v4416
        %4896 = vmax.xlane.f32.xlu0 %v4895
        %v4897 = vpop.xlane.xlu0 %4896
        %v4898 = vmax.f32 %v4417, %v4418
        %4899 = vmax.xlane.f32.xlu0 %v4898
        %v4900 = vpop.xlane.xlu0 %4899
        %v4901 = vmax.f32 %v4419, %v4420
        %4902 = vmax.xlane.f32.xlu0 %v4901
        %v4903 = vpop.xlane.xlu0 %4902
        %v4904 = vmax.f32 %v4421, %v4422
        %4905 = vmax.xlane.f32.xlu0 %v4904
        %v4906 = vpop.xlane.xlu0 %4905
        %v4907 = vmax.f32 %v4423, %v4424
        %4908 = vmax.xlane.f32.xlu0 %v4907
        %v4909 = vpop.xlane.xlu0 %4908
        %v4910 = vmax.f32 %v4425, %v4426
        %4911 = vmax.xlane.f32.xlu0 %v4910
        %v4912 = vpop.xlane.xlu0 %4911
        %v4913 = vmax.f32 %v4427, %v4428
        %4914 = vmax.xlane.f32.xlu0 %v4913
        %v4915 = vpop.xlane.xlu0 %4914
        %v4916 = vmax.f32 %v4429, %v4430
        %4917 = vmax.xlane.f32.xlu0 %v4916
        %v4918 = vpop.xlane.xlu0 %4917
        %v4919 = vmax.f32 %v4431, %v4432
        %4920 = vmax.xlane.f32.xlu0 %v4919
        %v4921 = vpop.xlane.xlu0 %4920
        %v4922 = vmax.f32 %v4433, %v4434
        %4923 = vmax.xlane.f32.xlu0 %v4922
        %v4924 = vpop.xlane.xlu0 %4923
        %v4925 = vmax.f32 %v4435, %v4436
        %4926 = vmax.xlane.f32.xlu0 %v4925
        %v4927 = vpop.xlane.xlu0 %4926
        %v4928 = vmax.f32 %v4437, %v4438
        %4929 = vmax.xlane.f32.xlu0 %v4928
        %v4930 = vpop.xlane.xlu0 %4929
        %v4931 = vmax.f32 %v4439, %v4440
        %4932 = vmax.xlane.f32.xlu0 %v4931
        %v4933 = vpop.xlane.xlu0 %4932
        %v4934 = vmax.f32 %v4441, %v4442
        %4935 = vmax.xlane.f32.xlu0 %v4934
        %v4936 = vpop.xlane.xlu0 %4935
        %v4937 = vmax.f32 %v4443, %v4444
        %4938 = vmax.xlane.f32.xlu0 %v4937
        %v4939 = vpop.xlane.xlu0 %4938
        %v4940 = vmax.f32 %v4445, %v4446
        %4941 = vmax.xlane.f32.xlu0 %v4940
        %v4942 = vpop.xlane.xlu0 %4941
        %v4943 = vmax.f32 %v4447, %v4448
        %4944 = vmax.xlane.f32.xlu0 %v4943
        %v4945 = vpop.xlane.xlu0 %4944
        %v4946 = vmax.f32 %v4449, %v4450
        %4947 = vmax.xlane.f32.xlu0 %v4946
        %v4948 = vpop.xlane.xlu0 %4947
        %v4949 = vmax.f32 %v4451, %v4452
        %4950 = vmax.xlane.f32.xlu0 %v4949
        %v4951 = vpop.xlane.xlu0 %4950
        %v4952 = vmax.f32 %v4453, %v4454
        %4953 = vmax.xlane.f32.xlu0 %v4952
        %v4954 = vpop.xlane.xlu0 %4953
        %v4955 = vmax.f32 %v4455, %v4456
        %4956 = vmax.xlane.f32.xlu0 %v4955
        %v4957 = vpop.xlane.xlu0 %4956
        %v4958 = vmax.f32 %v4457, %v4458
        %4959 = vmax.xlane.f32.xlu0 %v4958
        %v4960 = vpop.xlane.xlu0 %4959
        %v4961 = vmax.f32 %v4459, %v4460
        %4962 = vmax.xlane.f32.xlu0 %v4961
        %v4963 = vpop.xlane.xlu0 %4962
        %v4964 = vmax.f32 %v4461, %v4462
        %4965 = vmax.xlane.f32.xlu0 %v4964
        %v4966 = vpop.xlane.xlu0 %4965
        %v4967 = vmax.f32 %v4463, %v4464
        %4968 = vmax.xlane.f32.xlu0 %v4967
        %v4969 = vpop.xlane.xlu0 %4968
        %v4970 = vmax.f32 %v4465, %v4466
        %4971 = vmax.xlane.f32.xlu0 %v4970
        %v4972 = vpop.xlane.xlu0 %4971
        %v4973 = vmax.f32 %v4467, %v4468
        %4974 = vmax.xlane.f32.xlu0 %v4973
        %v4975 = vpop.xlane.xlu0 %4974
        %v4976 = vmax.f32 %v4469, %v4470
        %4977 = vmax.xlane.f32.xlu0 %v4976
        %v4978 = vpop.xlane.xlu0 %4977
        %v4979 = vmax.f32 %v4471, %v4472
        %4980 = vmax.xlane.f32.xlu0 %v4979
        %v4981 = vpop.xlane.xlu0 %4980
        %v4982 = vmax.f32 %v4473, %v4474
        %4983 = vmax.xlane.f32.xlu0 %v4982
        %v4984 = vpop.xlane.xlu0 %4983
        %v4985 = vmax.f32 %v4475, %v4476
        %4986 = vmax.xlane.f32.xlu0 %v4985
        %v4987 = vpop.xlane.xlu0 %4986
        %v4988 = vmax.f32 %v4477, %v4478
        %4989 = vmax.xlane.f32.xlu0 %v4988
        %v4990 = vpop.xlane.xlu0 %4989
        %v4991 = vmax.f32 %v4479, %v4480
        %4992 = vmax.xlane.f32.xlu0 %v4991
        %v4993 = vpop.xlane.xlu0 %4992
        %v4994 = vmax.f32 %v4481, %v4482
        %4995 = vmax.xlane.f32.xlu0 %v4994
        %v4996 = vpop.xlane.xlu0 %4995
        %v4997 = vmax.f32 %v4483, %v4484
        %4998 = vmax.xlane.f32.xlu0 %v4997
        %v4999 = vpop.xlane.xlu0 %4998
        %v5000 = vmax.f32 %v4485, %v4486
        %5001 = vmax.xlane.f32.xlu0 %v5000
        %v5002 = vpop.xlane.xlu0 %5001
        %v5003 = vmax.f32 %v4487, %v4488
        %5004 = vmax.xlane.f32.xlu0 %v5003
        %v5005 = vpop.xlane.xlu0 %5004
        %v5006 = vld [vmem:[%s726] sm:$0xff]
        %v5007 = vld [vmem:[%s726 + $0x8] sm:$0xff]
        %v5008 = vld [vmem:[%s726 + $0x10] sm:$0xff]
        %v5009 = vld [vmem:[%s726 + $0x18] sm:$0xff]
        %v5010 = vld [vmem:[%s726 + $0x20] sm:$0xff]
        %v5011 = vld [vmem:[%s726 + $0x28] sm:$0xff]
        %v5012 = vld [vmem:[%s726 + $0x30] sm:$0xff]
        %v5013 = vld [vmem:[%s726 + $0x38] sm:$0xff]
        %v5014 = vld [vmem:[%s726 + $0x40] sm:$0xff]
        %v5015 = vld [vmem:[%s726 + $0x48] sm:$0xff]
        %v5016 = vld [vmem:[%s726 + $0x50] sm:$0xff]
        %v5017 = vld [vmem:[%s726 + $0x58] sm:$0xff]
        %v5018 = vld [vmem:[%s726 + $0x60] sm:$0xff]
        %v5019 = vld [vmem:[%s726 + $0x68] sm:$0xff]
        %v5020 = vld [vmem:[%s726 + $0x70] sm:$0xff]
        %v5021 = vld [vmem:[%s726 + $0x78] sm:$0xff]
        %v5022 = vld [vmem:[%s726 + $0x80] sm:$0xff]
        %v5023 = vld [vmem:[%s726 + $0x88] sm:$0xff]
        %v5024 = vld [vmem:[%s726 + $0x90] sm:$0xff]
        %v5025 = vld [vmem:[%s726 + $0x98] sm:$0xff]
        %v5026 = vld [vmem:[%s726 + $0xa0] sm:$0xff]
        %v5027 = vld [vmem:[%s726 + $0xa8] sm:$0xff]
        %v5028 = vld [vmem:[%s726 + $0xb0] sm:$0xff]
        %v5029 = vld [vmem:[%s726 + $0xb8] sm:$0xff]
        %v5030 = vld [vmem:[%s726 + $0xc0] sm:$0xff]
        %v5031 = vld [vmem:[%s726 + $0xc8] sm:$0xff]
        %v5032 = vld [vmem:[%s726 + $0xd0] sm:$0xff]
        %v5033 = vld [vmem:[%s726 + $0xd8] sm:$0xff]
        %v5034 = vld [vmem:[%s726 + $0xe0] sm:$0xff]
        %v5035 = vld [vmem:[%s726 + $0xe8] sm:$0xff]
        %v5036 = vld [vmem:[%s726 + $0xf0] sm:$0xff]
        %v5037 = vld [vmem:[%s726 + $0xf8] sm:$0xff]
        %v5038 = vld [vmem:[%s726 + $0x100] sm:$0xff]
        %v5039 = vld [vmem:[%s726 + $0x108] sm:$0xff]
        %v5040 = vld [vmem:[%s726 + $0x110] sm:$0xff]
        %v5041 = vld [vmem:[%s726 + $0x118] sm:$0xff]
        %v5042 = vld [vmem:[%s726 + $0x120] sm:$0xff]
        %v5043 = vld [vmem:[%s726 + $0x128] sm:$0xff]
        %v5044 = vld [vmem:[%s726 + $0x130] sm:$0xff]
        %v5045 = vld [vmem:[%s726 + $0x138] sm:$0xff]
        %v5046 = vld [vmem:[%s726 + $0x140] sm:$0xff]
        %v5047 = vld [vmem:[%s726 + $0x148] sm:$0xff]
        %v5048 = vld [vmem:[%s726 + $0x150] sm:$0xff]
        %v5049 = vld [vmem:[%s726 + $0x158] sm:$0xff]
        %v5050 = vld [vmem:[%s726 + $0x160] sm:$0xff]
        %v5051 = vld [vmem:[%s726 + $0x168] sm:$0xff]
        %v5052 = vld [vmem:[%s726 + $0x170] sm:$0xff]
        %v5053 = vld [vmem:[%s726 + $0x178] sm:$0xff]
        %v5054 = vld [vmem:[%s726 + $0x180] sm:$0xff]
        %v5055 = vld [vmem:[%s726 + $0x188] sm:$0xff]
        %v5056 = vld [vmem:[%s726 + $0x190] sm:$0xff]
        %v5057 = vld [vmem:[%s726 + $0x198] sm:$0xff]
        %v5058 = vld [vmem:[%s726 + $0x1a0] sm:$0xff]
        %v5059 = vld [vmem:[%s726 + $0x1a8] sm:$0xff]
        %v5060 = vld [vmem:[%s726 + $0x1b0] sm:$0xff]
        %v5061 = vld [vmem:[%s726 + $0x1b8] sm:$0xff]
        %v5062 = vld [vmem:[%s726 + $0x1c0] sm:$0xff]
        %v5063 = vld [vmem:[%s726 + $0x1c8] sm:$0xff]
        %v5064 = vld [vmem:[%s726 + $0x1d0] sm:$0xff]
        %v5065 = vld [vmem:[%s726 + $0x1d8] sm:$0xff]
        %v5066 = vld [vmem:[%s726 + $0x1e0] sm:$0xff]
        %v5067 = vld [vmem:[%s726 + $0x1e8] sm:$0xff]
        %v5068 = vld [vmem:[%s726 + $0x1f0] sm:$0xff]
        %v5069 = vld [vmem:[%s726 + $0x1f8] sm:$0xff]
        %v5070 = vld [vmem:[%s726 + $0x200] sm:$0xff]
        %v5071 = vld [vmem:[%s726 + $0x208] sm:$0xff]
        %v5072 = vld [vmem:[%s726 + $0x210] sm:$0xff]
        %v5073 = vld [vmem:[%s726 + $0x218] sm:$0xff]
        %v5074 = vld [vmem:[%s726 + $0x220] sm:$0xff]
        %v5075 = vld [vmem:[%s726 + $0x228] sm:$0xff]
        %v5076 = vld [vmem:[%s726 + $0x230] sm:$0xff]
        %v5077 = vld [vmem:[%s726 + $0x238] sm:$0xff]
        %v5078 = vld [vmem:[%s726 + $0x240] sm:$0xff]
        %v5079 = vld [vmem:[%s726 + $0x248] sm:$0xff]
        %v5080 = vld [vmem:[%s726 + $0x250] sm:$0xff]
        %v5081 = vld [vmem:[%s726 + $0x258] sm:$0xff]
        %v5082 = vld [vmem:[%s726 + $0x260] sm:$0xff]
        %v5083 = vld [vmem:[%s726 + $0x268] sm:$0xff]
        %v5084 = vld [vmem:[%s726 + $0x270] sm:$0xff]
        %v5085 = vld [vmem:[%s726 + $0x278] sm:$0xff]
        %v5086 = vld [vmem:[%s726 + $0x280] sm:$0xff]
        %v5087 = vld [vmem:[%s726 + $0x288] sm:$0xff]
        %v5088 = vld [vmem:[%s726 + $0x290] sm:$0xff]
        %v5089 = vld [vmem:[%s726 + $0x298] sm:$0xff]
        %v5090 = vld [vmem:[%s726 + $0x2a0] sm:$0xff]
        %v5091 = vld [vmem:[%s726 + $0x2a8] sm:$0xff]
        %v5092 = vld [vmem:[%s726 + $0x2b0] sm:$0xff]
        %v5093 = vld [vmem:[%s726 + $0x2b8] sm:$0xff]
        %v5094 = vld [vmem:[%s726 + $0x2c0] sm:$0xff]
        %v5095 = vld [vmem:[%s726 + $0x2c8] sm:$0xff]
        %v5096 = vld [vmem:[%s726 + $0x2d0] sm:$0xff]
        %v5097 = vld [vmem:[%s726 + $0x2d8] sm:$0xff]
        %v5098 = vld [vmem:[%s726 + $0x2e0] sm:$0xff]
        %v5099 = vld [vmem:[%s726 + $0x2e8] sm:$0xff]
        %v5100 = vld [vmem:[%s726 + $0x2f0] sm:$0xff]
        %v5101 = vld [vmem:[%s726 + $0x2f8] sm:$0xff]
        %v5102 = vld [vmem:[%s726 + $0x300] sm:$0xff]
        %v5103 = vld [vmem:[%s726 + $0x308] sm:$0xff]
        %v5104 = vld [vmem:[%s726 + $0x310] sm:$0xff]
        %v5105 = vld [vmem:[%s726 + $0x318] sm:$0xff]
        %v5106 = vld [vmem:[%s726 + $0x320] sm:$0xff]
        %v5107 = vld [vmem:[%s726 + $0x328] sm:$0xff]
        %v5108 = vld [vmem:[%s726 + $0x330] sm:$0xff]
        %v5109 = vld [vmem:[%s726 + $0x338] sm:$0xff]
        %v5110 = vld [vmem:[%s726 + $0x340] sm:$0xff]
        %v5111 = vld [vmem:[%s726 + $0x348] sm:$0xff]
        %v5112 = vld [vmem:[%s726 + $0x350] sm:$0xff]
        %v5113 = vld [vmem:[%s726 + $0x358] sm:$0xff]
        %v5114 = vld [vmem:[%s726 + $0x360] sm:$0xff]
        %v5115 = vld [vmem:[%s726 + $0x368] sm:$0xff]
        %v5116 = vld [vmem:[%s726 + $0x370] sm:$0xff]
        %v5117 = vld [vmem:[%s726 + $0x378] sm:$0xff]
        %v5118 = vld [vmem:[%s726 + $0x380] sm:$0xff]
        %v5119 = vld [vmem:[%s726 + $0x388] sm:$0xff]
        %v5120 = vld [vmem:[%s726 + $0x390] sm:$0xff]
        %v5121 = vld [vmem:[%s726 + $0x398] sm:$0xff]
        %v5122 = vld [vmem:[%s726 + $0x3a0] sm:$0xff]
        %v5123 = vld [vmem:[%s726 + $0x3a8] sm:$0xff]
        %v5124 = vld [vmem:[%s726 + $0x3b0] sm:$0xff]
        %v5125 = vld [vmem:[%s726 + $0x3b8] sm:$0xff]
        %v5126 = vld [vmem:[%s726 + $0x3c0] sm:$0xff]
        %v5127 = vld [vmem:[%s726 + $0x3c8] sm:$0xff]
        %v5128 = vld [vmem:[%s726 + $0x3d0] sm:$0xff]
        %v5129 = vld [vmem:[%s726 + $0x3d8] sm:$0xff]
        %v5130 = vld [vmem:[%s726 + $0x3e0] sm:$0xff]
        %v5131 = vld [vmem:[%s726 + $0x3e8] sm:$0xff]
        %v5132 = vld [vmem:[%s726 + $0x3f0] sm:$0xff]
        %v5133 = vld [vmem:[%s726 + $0x3f8] sm:$0xff]
        %v5134 = vmax.f32 %v5006, %v4624
        %v5135 = vmax.f32 %v5007, %v4627
        %v5136 = vmax.f32 %v5008, %v4630
        %v5137 = vmax.f32 %v5009, %v4633
        %v5138 = vmax.f32 %v5010, %v4636
        %v5139 = vmax.f32 %v5011, %v4639
        %v5140 = vmax.f32 %v5012, %v4642
        %v5141 = vmax.f32 %v5013, %v4645
        %v5142 = vmax.f32 %v5014, %v4648
        %v5143 = vmax.f32 %v5015, %v4651
        %v5144 = vmax.f32 %v5016, %v4654
        %v5145 = vmax.f32 %v5017, %v4657
        %v5146 = vmax.f32 %v5018, %v4660
        %v5147 = vmax.f32 %v5019, %v4663
        %v5148 = vmax.f32 %v5020, %v4666
        %v5149 = vmax.f32 %v5021, %v4669
        %v5150 = vmax.f32 %v5022, %v4672
        %v5151 = vmax.f32 %v5023, %v4675
        %v5152 = vmax.f32 %v5024, %v4678
        %v5153 = vmax.f32 %v5025, %v4681
        %v5154 = vmax.f32 %v5026, %v4684
        %v5155 = vmax.f32 %v5027, %v4687
        %v5156 = vmax.f32 %v5028, %v4690
        %v5157 = vmax.f32 %v5029, %v4693
        %v5158 = vmax.f32 %v5030, %v4696
        %v5159 = vmax.f32 %v5031, %v4699
        %v5160 = vmax.f32 %v5032, %v4702
        %v5161 = vmax.f32 %v5033, %v4705
        %v5162 = vmax.f32 %v5034, %v4708
        %v5163 = vmax.f32 %v5035, %v4711
        %v5164 = vmax.f32 %v5036, %v4714
        %v5165 = vmax.f32 %v5037, %v4717
        %v5166 = vmax.f32 %v5038, %v4720
        %v5167 = vmax.f32 %v5039, %v4723
        %v5168 = vmax.f32 %v5040, %v4726
        %v5169 = vmax.f32 %v5041, %v4729
        %v5170 = vmax.f32 %v5042, %v4732
        %v5171 = vmax.f32 %v5043, %v4735
        %v5172 = vmax.f32 %v5044, %v4738
        %v5173 = vmax.f32 %v5045, %v4741
        %v5174 = vmax.f32 %v5046, %v4744
        %v5175 = vmax.f32 %v5047, %v4747
        %v5176 = vmax.f32 %v5048, %v4750
        %v5177 = vmax.f32 %v5049, %v4753
        %v5178 = vmax.f32 %v5050, %v4756
        %v5179 = vmax.f32 %v5051, %v4759
        %v5180 = vmax.f32 %v5052, %v4762
        %v5181 = vmax.f32 %v5053, %v4765
        %v5182 = vmax.f32 %v5054, %v4768
        %v5183 = vmax.f32 %v5055, %v4771
        %v5184 = vmax.f32 %v5056, %v4774
        %v5185 = vmax.f32 %v5057, %v4777
        %v5186 = vmax.f32 %v5058, %v4780
        %v5187 = vmax.f32 %v5059, %v4783
        %v5188 = vmax.f32 %v5060, %v4786
        %v5189 = vmax.f32 %v5061, %v4789
        %v5190 = vmax.f32 %v5062, %v4792
        %v5191 = vmax.f32 %v5063, %v4795
        %v5192 = vmax.f32 %v5064, %v4798
        %v5193 = vmax.f32 %v5065, %v4801
        %v5194 = vmax.f32 %v5066, %v4804
        %v5195 = vmax.f32 %v5067, %v4807
        %v5196 = vmax.f32 %v5068, %v4810
        %v5197 = vmax.f32 %v5069, %v4813
        %v5198 = vmax.f32 %v5070, %v4816
        %v5199 = vmax.f32 %v5071, %v4819
        %v5200 = vmax.f32 %v5072, %v4822
        %v5201 = vmax.f32 %v5073, %v4825
        %v5202 = vmax.f32 %v5074, %v4828
        %v5203 = vmax.f32 %v5075, %v4831
        %v5204 = vmax.f32 %v5076, %v4834
        %v5205 = vmax.f32 %v5077, %v4837
        %v5206 = vmax.f32 %v5078, %v4840
        %v5207 = vmax.f32 %v5079, %v4843
        %v5208 = vmax.f32 %v5080, %v4846
        %v5209 = vmax.f32 %v5081, %v4849
        %v5210 = vmax.f32 %v5082, %v4852
        %v5211 = vmax.f32 %v5083, %v4855
        %v5212 = vmax.f32 %v5084, %v4858
        %v5213 = vmax.f32 %v5085, %v4861
        %v5214 = vmax.f32 %v5086, %v4864
        %v5215 = vmax.f32 %v5087, %v4867
        %v5216 = vmax.f32 %v5088, %v4870
        %v5217 = vmax.f32 %v5089, %v4873
        %v5218 = vmax.f32 %v5090, %v4876
        %v5219 = vmax.f32 %v5091, %v4879
        %v5220 = vmax.f32 %v5092, %v4882
        %v5221 = vmax.f32 %v5093, %v4885
        %v5222 = vmax.f32 %v5094, %v4888
        %v5223 = vmax.f32 %v5095, %v4891
        %v5224 = vmax.f32 %v5096, %v4894
        %v5225 = vmax.f32 %v5097, %v4897
        %v5226 = vmax.f32 %v5098, %v4900
        %v5227 = vmax.f32 %v5099, %v4903
        %v5228 = vmax.f32 %v5100, %v4906
        %v5229 = vmax.f32 %v5101, %v4909
        %v5230 = vmax.f32 %v5102, %v4912
        %v5231 = vmax.f32 %v5103, %v4915
        %v5232 = vmax.f32 %v5104, %v4918
        %v5233 = vmax.f32 %v5105, %v4921
        %v5234 = vmax.f32 %v5106, %v4924
        %v5235 = vmax.f32 %v5107, %v4927
        %v5236 = vmax.f32 %v5108, %v4930
        %v5237 = vmax.f32 %v5109, %v4933
        %v5238 = vmax.f32 %v5110, %v4936
        %v5239 = vmax.f32 %v5111, %v4939
        %v5240 = vmax.f32 %v5112, %v4942
        %v5241 = vmax.f32 %v5113, %v4945
        %v5242 = vmax.f32 %v5114, %v4948
        %v5243 = vmax.f32 %v5115, %v4951
        %v5244 = vmax.f32 %v5116, %v4954
        %v5245 = vmax.f32 %v5117, %v4957
        %v5246 = vmax.f32 %v5118, %v4960
        %v5247 = vmax.f32 %v5119, %v4963
        %v5248 = vmax.f32 %v5120, %v4966
        %v5249 = vmax.f32 %v5121, %v4969
        %v5250 = vmax.f32 %v5122, %v4972
        %v5251 = vmax.f32 %v5123, %v4975
        %v5252 = vmax.f32 %v5124, %v4978
        %v5253 = vmax.f32 %v5125, %v4981
        %v5254 = vmax.f32 %v5126, %v4984
        %v5255 = vmax.f32 %v5127, %v4987
        %v5256 = vmax.f32 %v5128, %v4990
        %v5257 = vmax.f32 %v5129, %v4993
        %v5258 = vmax.f32 %v5130, %v4996
        %v5259 = vmax.f32 %v5131, %v4999
        %v5260 = vmax.f32 %v5132, %v5002
        %v5261 = vmax.f32 %v5133, %v5005
        %vm5262 = vcmask 7168
        %5263 = vst.msk [vmem:[%s726] sm:$0xff] %vm5262, %v5134
        %5264 = vst.msk [vmem:[%s726 + $0x8] sm:$0xff] %vm5262, %v5135
        %5265 = vst.msk [vmem:[%s726 + $0x10] sm:$0xff] %vm5262, %v5136
        %5266 = vst.msk [vmem:[%s726 + $0x18] sm:$0xff] %vm5262, %v5137
        %5267 = vst.msk [vmem:[%s726 + $0x20] sm:$0xff] %vm5262, %v5138
        %5268 = vst.msk [vmem:[%s726 + $0x28] sm:$0xff] %vm5262, %v5139
        %5269 = vst.msk [vmem:[%s726 + $0x30] sm:$0xff] %vm5262, %v5140
        %5270 = vst.msk [vmem:[%s726 + $0x38] sm:$0xff] %vm5262, %v5141
        %5271 = vst.msk [vmem:[%s726 + $0x40] sm:$0xff] %vm5262, %v5142
        %5272 = vst.msk [vmem:[%s726 + $0x48] sm:$0xff] %vm5262, %v5143
        %5273 = vst.msk [vmem:[%s726 + $0x50] sm:$0xff] %vm5262, %v5144
        %5274 = vst.msk [vmem:[%s726 + $0x58] sm:$0xff] %vm5262, %v5145
        %5275 = vst.msk [vmem:[%s726 + $0x60] sm:$0xff] %vm5262, %v5146
        %5276 = vst.msk [vmem:[%s726 + $0x68] sm:$0xff] %vm5262, %v5147
        %5277 = vst.msk [vmem:[%s726 + $0x70] sm:$0xff] %vm5262, %v5148
        %5278 = vst.msk [vmem:[%s726 + $0x78] sm:$0xff] %vm5262, %v5149
        %5279 = vst.msk [vmem:[%s726 + $0x80] sm:$0xff] %vm5262, %v5150
        %5280 = vst.msk [vmem:[%s726 + $0x88] sm:$0xff] %vm5262, %v5151
        %5281 = vst.msk [vmem:[%s726 + $0x90] sm:$0xff] %vm5262, %v5152
        %5282 = vst.msk [vmem:[%s726 + $0x98] sm:$0xff] %vm5262, %v5153
        %5283 = vst.msk [vmem:[%s726 + $0xa0] sm:$0xff] %vm5262, %v5154
        %5284 = vst.msk [vmem:[%s726 + $0xa8] sm:$0xff] %vm5262, %v5155
        %5285 = vst.msk [vmem:[%s726 + $0xb0] sm:$0xff] %vm5262, %v5156
        %5286 = vst.msk [vmem:[%s726 + $0xb8] sm:$0xff] %vm5262, %v5157
        %5287 = vst.msk [vmem:[%s726 + $0xc0] sm:$0xff] %vm5262, %v5158
        %5288 = vst.msk [vmem:[%s726 + $0xc8] sm:$0xff] %vm5262, %v5159
        %5289 = vst.msk [vmem:[%s726 + $0xd0] sm:$0xff] %vm5262, %v5160
        %5290 = vst.msk [vmem:[%s726 + $0xd8] sm:$0xff] %vm5262, %v5161
        %5291 = vst.msk [vmem:[%s726 + $0xe0] sm:$0xff] %vm5262, %v5162
        %5292 = vst.msk [vmem:[%s726 + $0xe8] sm:$0xff] %vm5262, %v5163
        %5293 = vst.msk [vmem:[%s726 + $0xf0] sm:$0xff] %vm5262, %v5164
        %5294 = vst.msk [vmem:[%s726 + $0xf8] sm:$0xff] %vm5262, %v5165
        %5295 = vst.msk [vmem:[%s726 + $0x100] sm:$0xff] %vm5262, %v5166
        %5296 = vst.msk [vmem:[%s726 + $0x108] sm:$0xff] %vm5262, %v5167
        %5297 = vst.msk [vmem:[%s726 + $0x110] sm:$0xff] %vm5262, %v5168
        %5298 = vst.msk [vmem:[%s726 + $0x118] sm:$0xff] %vm5262, %v5169
        %5299 = vst.msk [vmem:[%s726 + $0x120] sm:$0xff] %vm5262, %v5170
        %5300 = vst.msk [vmem:[%s726 + $0x128] sm:$0xff] %vm5262, %v5171
        %5301 = vst.msk [vmem:[%s726 + $0x130] sm:$0xff] %vm5262, %v5172
        %5302 = vst.msk [vmem:[%s726 + $0x138] sm:$0xff] %vm5262, %v5173
        %5303 = vst.msk [vmem:[%s726 + $0x140] sm:$0xff] %vm5262, %v5174
        %5304 = vst.msk [vmem:[%s726 + $0x148] sm:$0xff] %vm5262, %v5175
        %5305 = vst.msk [vmem:[%s726 + $0x150] sm:$0xff] %vm5262, %v5176
        %5306 = vst.msk [vmem:[%s726 + $0x158] sm:$0xff] %vm5262, %v5177
        %5307 = vst.msk [vmem:[%s726 + $0x160] sm:$0xff] %vm5262, %v5178
        %5308 = vst.msk [vmem:[%s726 + $0x168] sm:$0xff] %vm5262, %v5179
        %5309 = vst.msk [vmem:[%s726 + $0x170] sm:$0xff] %vm5262, %v5180
        %5310 = vst.msk [vmem:[%s726 + $0x178] sm:$0xff] %vm5262, %v5181
        %5311 = vst.msk [vmem:[%s726 + $0x180] sm:$0xff] %vm5262, %v5182
        %5312 = vst.msk [vmem:[%s726 + $0x188] sm:$0xff] %vm5262, %v5183
        %5313 = vst.msk [vmem:[%s726 + $0x190] sm:$0xff] %vm5262, %v5184
        %5314 = vst.msk [vmem:[%s726 + $0x198] sm:$0xff] %vm5262, %v5185
        %5315 = vst.msk [vmem:[%s726 + $0x1a0] sm:$0xff] %vm5262, %v5186
        %5316 = vst.msk [vmem:[%s726 + $0x1a8] sm:$0xff] %vm5262, %v5187
        %5317 = vst.msk [vmem:[%s726 + $0x1b0] sm:$0xff] %vm5262, %v5188
        %5318 = vst.msk [vmem:[%s726 + $0x1b8] sm:$0xff] %vm5262, %v5189
        %5319 = vst.msk [vmem:[%s726 + $0x1c0] sm:$0xff] %vm5262, %v5190
        %5320 = vst.msk [vmem:[%s726 + $0x1c8] sm:$0xff] %vm5262, %v5191
        %5321 = vst.msk [vmem:[%s726 + $0x1d0] sm:$0xff] %vm5262, %v5192
        %5322 = vst.msk [vmem:[%s726 + $0x1d8] sm:$0xff] %vm5262, %v5193
        %5323 = vst.msk [vmem:[%s726 + $0x1e0] sm:$0xff] %vm5262, %v5194
        %5324 = vst.msk [vmem:[%s726 + $0x1e8] sm:$0xff] %vm5262, %v5195
        %5325 = vst.msk [vmem:[%s726 + $0x1f0] sm:$0xff] %vm5262, %v5196
        %5326 = vst.msk [vmem:[%s726 + $0x1f8] sm:$0xff] %vm5262, %v5197
        %5327 = vst.msk [vmem:[%s726 + $0x200] sm:$0xff] %vm5262, %v5198
        %5328 = vst.msk [vmem:[%s726 + $0x208] sm:$0xff] %vm5262, %v5199
        %5329 = vst.msk [vmem:[%s726 + $0x210] sm:$0xff] %vm5262, %v5200
        %5330 = vst.msk [vmem:[%s726 + $0x218] sm:$0xff] %vm5262, %v5201
        %5331 = vst.msk [vmem:[%s726 + $0x220] sm:$0xff] %vm5262, %v5202
        %5332 = vst.msk [vmem:[%s726 + $0x228] sm:$0xff] %vm5262, %v5203
        %5333 = vst.msk [vmem:[%s726 + $0x230] sm:$0xff] %vm5262, %v5204
        %5334 = vst.msk [vmem:[%s726 + $0x238] sm:$0xff] %vm5262, %v5205
        %5335 = vst.msk [vmem:[%s726 + $0x240] sm:$0xff] %vm5262, %v5206
        %5336 = vst.msk [vmem:[%s726 + $0x248] sm:$0xff] %vm5262, %v5207
        %5337 = vst.msk [vmem:[%s726 + $0x250] sm:$0xff] %vm5262, %v5208
        %5338 = vst.msk [vmem:[%s726 + $0x258] sm:$0xff] %vm5262, %v5209
        %5339 = vst.msk [vmem:[%s726 + $0x260] sm:$0xff] %vm5262, %v5210
        %5340 = vst.msk [vmem:[%s726 + $0x268] sm:$0xff] %vm5262, %v5211
        %5341 = vst.msk [vmem:[%s726 + $0x270] sm:$0xff] %vm5262, %v5212
        %5342 = vst.msk [vmem:[%s726 + $0x278] sm:$0xff] %vm5262, %v5213
        %5343 = vst.msk [vmem:[%s726 + $0x280] sm:$0xff] %vm5262, %v5214
        %5344 = vst.msk [vmem:[%s726 + $0x288] sm:$0xff] %vm5262, %v5215
        %5345 = vst.msk [vmem:[%s726 + $0x290] sm:$0xff] %vm5262, %v5216
        %5346 = vst.msk [vmem:[%s726 + $0x298] sm:$0xff] %vm5262, %v5217
        %5347 = vst.msk [vmem:[%s726 + $0x2a0] sm:$0xff] %vm5262, %v5218
        %5348 = vst.msk [vmem:[%s726 + $0x2a8] sm:$0xff] %vm5262, %v5219
        %5349 = vst.msk [vmem:[%s726 + $0x2b0] sm:$0xff] %vm5262, %v5220
        %5350 = vst.msk [vmem:[%s726 + $0x2b8] sm:$0xff] %vm5262, %v5221
        %5351 = vst.msk [vmem:[%s726 + $0x2c0] sm:$0xff] %vm5262, %v5222
        %5352 = vst.msk [vmem:[%s726 + $0x2c8] sm:$0xff] %vm5262, %v5223
        %5353 = vst.msk [vmem:[%s726 + $0x2d0] sm:$0xff] %vm5262, %v5224
        %5354 = vst.msk [vmem:[%s726 + $0x2d8] sm:$0xff] %vm5262, %v5225
        %5355 = vst.msk [vmem:[%s726 + $0x2e0] sm:$0xff] %vm5262, %v5226
        %5356 = vst.msk [vmem:[%s726 + $0x2e8] sm:$0xff] %vm5262, %v5227
        %5357 = vst.msk [vmem:[%s726 + $0x2f0] sm:$0xff] %vm5262, %v5228
        %5358 = vst.msk [vmem:[%s726 + $0x2f8] sm:$0xff] %vm5262, %v5229
        %5359 = vst.msk [vmem:[%s726 + $0x300] sm:$0xff] %vm5262, %v5230
        %5360 = vst.msk [vmem:[%s726 + $0x308] sm:$0xff] %vm5262, %v5231
        %5361 = vst.msk [vmem:[%s726 + $0x310] sm:$0xff] %vm5262, %v5232
        %5362 = vst.msk [vmem:[%s726 + $0x318] sm:$0xff] %vm5262, %v5233
        %5363 = vst.msk [vmem:[%s726 + $0x320] sm:$0xff] %vm5262, %v5234
        %5364 = vst.msk [vmem:[%s726 + $0x328] sm:$0xff] %vm5262, %v5235
        %5365 = vst.msk [vmem:[%s726 + $0x330] sm:$0xff] %vm5262, %v5236
        %5366 = vst.msk [vmem:[%s726 + $0x338] sm:$0xff] %vm5262, %v5237
        %5367 = vst.msk [vmem:[%s726 + $0x340] sm:$0xff] %vm5262, %v5238
        %5368 = vst.msk [vmem:[%s726 + $0x348] sm:$0xff] %vm5262, %v5239
        %5369 = vst.msk [vmem:[%s726 + $0x350] sm:$0xff] %vm5262, %v5240
        %5370 = vst.msk [vmem:[%s726 + $0x358] sm:$0xff] %vm5262, %v5241
        %5371 = vst.msk [vmem:[%s726 + $0x360] sm:$0xff] %vm5262, %v5242
        %5372 = vst.msk [vmem:[%s726 + $0x368] sm:$0xff] %vm5262, %v5243
        %5373 = vst.msk [vmem:[%s726 + $0x370] sm:$0xff] %vm5262, %v5244
        %5374 = vst.msk [vmem:[%s726 + $0x378] sm:$0xff] %vm5262, %v5245
        %5375 = vst.msk [vmem:[%s726 + $0x380] sm:$0xff] %vm5262, %v5246
        %5376 = vst.msk [vmem:[%s726 + $0x388] sm:$0xff] %vm5262, %v5247
        %5377 = vst.msk [vmem:[%s726 + $0x390] sm:$0xff] %vm5262, %v5248
        %5378 = vst.msk [vmem:[%s726 + $0x398] sm:$0xff] %vm5262, %v5249
        %5379 = vst.msk [vmem:[%s726 + $0x3a0] sm:$0xff] %vm5262, %v5250
        %5380 = vst.msk [vmem:[%s726 + $0x3a8] sm:$0xff] %vm5262, %v5251
        %5381 = vst.msk [vmem:[%s726 + $0x3b0] sm:$0xff] %vm5262, %v5252
        %5382 = vst.msk [vmem:[%s726 + $0x3b8] sm:$0xff] %vm5262, %v5253
        %5383 = vst.msk [vmem:[%s726 + $0x3c0] sm:$0xff] %vm5262, %v5254
        %5384 = vst.msk [vmem:[%s726 + $0x3c8] sm:$0xff] %vm5262, %v5255
        %5385 = vst.msk [vmem:[%s726 + $0x3d0] sm:$0xff] %vm5262, %v5256
        %5386 = vst.msk [vmem:[%s726 + $0x3d8] sm:$0xff] %vm5262, %v5257
        %5387 = vst.msk [vmem:[%s726 + $0x3e0] sm:$0xff] %vm5262, %v5258
        %5388 = vst.msk [vmem:[%s726 + $0x3e8] sm:$0xff] %vm5262, %v5259
        %5389 = vst.msk [vmem:[%s726 + $0x3f0] sm:$0xff] %vm5262, %v5260
        %5390 = vst.msk [vmem:[%s726 + $0x3f8] sm:$0xff] %vm5262, %v5261
        %p5391 = scmp.lt.s32.totalorder %s38, 1
        %s5392 = scalar_select %p5391, %s38, 1
        %s5393 = smul.addr %s5392, 128
        %s5394 = smul.addr %s5393, 8
        %s5395 = scalar_lea.vmem %s15, %s5394
        // Predicated region
        $region141: #{pointnetfeat_desc.2} parent=79 // pred_check
          %p5396 = pneg %p386
        $region142: #{pointnetfeat_desc.2} parent=79 // pred_check_branch
          %5398 = sbr.rel (%p5396) target = $region144
        $region143: #{pointnetfeat_desc.2} parent=79 // pred_region
          _
        $region144: #{pointnetfeat_desc.2} parent=79 // pred_fallthru
          _
      $region80: #{pointnetfeat_desc.2} parent=5 // pred_fallthru
        _
      %p5399 = scmp.le.s32.totalorder 2, %s29
      // Predicated region
      $region145: #{pointnetfeat_desc.2} parent=5 // pred_check
        %p5400 = pneg %p5399
      $region146: #{pointnetfeat_desc.2} parent=5 // pred_check_branch
        %5402 = sbr.rel (%p5400) target = $region148
      $region147: #{pointnetfeat_desc.2} parent=5 // pred_region
        %s5403 = ssub.s32 %s29, 2
        // Predicated region
        $region149: #{pointnetfeat_desc.2} parent=147 // pred_check
          %p5404 = pneg %p392
        $region150: #{pointnetfeat_desc.2} parent=147 // pred_check_branch
          %5406 = sbr.rel (%p5404) target = $region152
        $region151: #{pointnetfeat_desc.2} parent=147 // pred_region
          %p5407 = scmp.lt.s32.totalorder %s40, 1
          %s5408 = scalar_select %p5407, %s40, 1
          %s5409 = smul.addr %s5408, 128
          %s5410 = smul.addr %s5409, 8
          %s5411 = scalar_lea.vmem %s15, %s5410
        $region152: #{pointnetfeat_desc.2} parent=147 // pred_fallthru
          _
      $region148: #{pointnetfeat_desc.2} parent=5 // pred_fallthru
        _
    $region6: #{pointnetfeat_desc.2} parent=1 // loop_footer
      %s33 = sadd.s32 1, %s29
    $region7: #{pointnetfeat_desc.2} parent=1 // loop_footer_branch
      %28 = sbr.rel target = $region3
    $region8: #{pointnetfeat_desc.2} parent=1 // loop_exit
      _
    %5412 = vsyncpa [#allocation3], 1
    %s5413 = scalar_lea.sflag [#allocation3], 1
    %5414 = vsyncpa %s5413, 1
    %5415 = vsyncpa [#allocation5], 1
    %5416 = vsyncpa [#allocation8], 1
    %5417 = vsyncpa [#allocation11], 1
    %5418 = vsyncpa [#allocation14], 1
    %5419 = vsyncpa [#allocation17], 1
    %5420 = vsyncpa [#allocation20], 1
    %5421 = vsyncpa [#allocation23], 1

// kernel: pointnetfeat_desc.3
$region0: #{pointnetfeat_desc.3}
  #allocation0 [shape = 'u32[]', space=smem, size = 0x4, offset = 0x4, fixed_abs, tag = 'smem constant byte address 0x4 - core index']
  #allocation1 [shape = 'u32[144,128]{1,0:T(1,128)}', space=vmem, size = 0x12000, scoped, tag = 'internal scratch']
  %s0 = inlined_call_operand.vmem [shape: f32[2,3,512], index: 0, kind: input, shape index: {}]
  %s1 = inlined_call_operand.vmem [shape: f32[2,256,1], index: 1, kind: input, shape index: {}]
  %s2 = inlined_call_operand.hbm [shape: bf16[64,3], index: 2, kind: input, shape index: {}]
  %s3 = inlined_call_operand.hbm [shape: f32[64,1], index: 3, kind: input, shape index: {}]
  %s4 = inlined_call_operand.hbm [shape: bf16[64,64], index: 4, kind: input, shape index: {}]
  %s5 = inlined_call_operand.hbm [shape: f32[64,1], index: 5, kind: input, shape index: {}]
  %s6 = inlined_call_operand.hbm [shape: bf16[64,64], index: 6, kind: input, shape index: {}]
  %s7 = inlined_call_operand.hbm [shape: f32[64,1], index: 7, kind: input, shape index: {}]
  %s8 = inlined_call_operand.hbm [shape: bf16[128,64], index: 8, kind: input, shape index: {}]
  %s9 = inlined_call_operand.hbm [shape: f32[128,1], index: 9, kind: input, shape index: {}]
  %s10 = inlined_call_operand.hbm [shape: bf16[128,128], index: 10, kind: input, shape index: {}]
  %s11 = inlined_call_operand.hbm [shape: f32[128,1], index: 11, kind: input, shape index: {}]
  %s12 = inlined_call_operand.hbm [shape: bf16[128,128], index: 12, kind: input, shape index: {}]
  %s13 = inlined_call_operand.hbm [shape: f32[128,1], index: 13, kind: input, shape index: {}]
  %s14 = inlined_call_operand.hbm [shape: bf16[1024,128], index: 14, kind: input, shape index: {}]
  %s15 = inlined_call_operand.hbm [shape: f32[1024,1], index: 15, kind: input, shape index: {}]
  %s16 = inlined_call_operand.hbm [shape: f32[2,1280,512], index: 16, kind: output, shape index: {}]
  %s17 = sld [smem:[#allocation0]]
  $region153: #{pointnetfeat_desc.3} parent=0
    _
  %s19 = ssub.s32 1, %s17
  %s20 = scalar_select 0, %s19, %s17
  $region1: #{pointnetfeat_desc.3} parent=0
    #allocation2 [shape = 'u8[16384]{0}', space=vmem, size = 0x4000, scoped, tag = 'input window, operand 2, single buffered']
    #allocation3 [shape = 's32[2]{0}', space=sflag, size = 0x8, scoped, tag = 'scoped memory for pointnetfeat_desc.3']
    #allocation4 [shape = 's32[2]{0}', space=sflag, size = 0x8, scoped, tag = 'scoped memory for pointnetfeat_desc.3']
    #allocation5 [shape = 'u8[32768]{0}', space=vmem, size = 0x8000, scoped, tag = 'input window, operand 3, single buffered']
    #allocation6 [shape = 's32[1]{0}', space=sflag, size = 0x4, scoped, tag = 'scoped memory for pointnetfeat_desc.3']
    #allocation7 [shape = 'u8[16384]{0}', space=vmem, size = 0x4000, scoped, tag = 'input window, operand 4, single buffered']
    #allocation8 [shape = 'u8[32768]{0}', space=vmem, size = 0x8000, scoped, tag = 'input window, operand 5, single buffered']
    #allocation9 [shape = 's32[1]{0}', space=sflag, size = 0x4, scoped, tag = 'scoped memory for pointnetfeat_desc.3']
    #allocation10 [shape = 'u8[16384]{0}', space=vmem, size = 0x4000, scoped, tag = 'input window, operand 6, single buffered']
    #allocation11 [shape = 'u8[32768]{0}', space=vmem, size = 0x8000, scoped, tag = 'input window, operand 7, single buffered']
    #allocation12 [shape = 's32[1]{0}', space=sflag, size = 0x4, scoped, tag = 'scoped memory for pointnetfeat_desc.3']
    #allocation13 [shape = 'u8[32768]{0}', space=vmem, size = 0x8000, scoped, tag = 'input window, operand 8, single buffered']
    #allocation14 [shape = 'u8[65536]{0}', space=vmem, size = 0x10000, scoped, tag = 'input window, operand 9, single buffered']
    #allocation15 [shape = 's32[1]{0}', space=sflag, size = 0x4, scoped, tag = 'scoped memory for pointnetfeat_desc.3']
    #allocation16 [shape = 'u8[32768]{0}', space=vmem, size = 0x8000, scoped, tag = 'input window, operand 10, single buffered']
    #allocation17 [shape = 'u8[65536]{0}', space=vmem, size = 0x10000, scoped, tag = 'input window, operand 11, single buffered']
    #allocation18 [shape = 's32[1]{0}', space=sflag, size = 0x4, scoped, tag = 'scoped memory for pointnetfeat_desc.3']
    #allocation19 [shape = 'u8[32768]{0}', space=vmem, size = 0x8000, scoped, tag = 'input window, operand 12, single buffered']
    #allocation20 [shape = 'u8[65536]{0}', space=vmem, size = 0x10000, scoped, tag = 'input window, operand 13, single buffered']
    #allocation21 [shape = 's32[1]{0}', space=sflag, size = 0x4, scoped, tag = 'scoped memory for pointnetfeat_desc.3']
    #allocation22 [shape = 'u8[262144]{0}', space=vmem, size = 0x40000, scoped, tag = 'input window, operand 14, single buffered']
    #allocation23 [shape = 'u8[524288]{0}', space=vmem, size = 0x80000, scoped, tag = 'input window, operand 15, single buffered']
    #allocation24 [shape = 's32[1]{0}', space=sflag, size = 0x4, scoped, tag = 'scoped memory for pointnetfeat_desc.3']
    #allocation25 [shape = 'u8[2621440]{0}', space=vmem, size = 0x280000, scoped, tag = 'output window, operand 0']
    %21 = vsyncpa [#allocation3], 0
    %22 = vsyncpa [#allocation6], 0
    %23 = vsyncpa [#allocation9], 0
    %24 = vsyncpa [#allocation12], 0
    %25 = vsyncpa [#allocation15], 0
    %26 = vsyncpa [#allocation18], 0
    %27 = vsyncpa [#allocation21], 0
    %28 = vsyncpa [#allocation24], 0
    %29 = vsyncpa [#allocation4], 0
    %s30 = scalar_lea.sflag [#allocation4], 1
    %31 = vsyncpa %s30, 0
    loop: start=0, step=1, limit=6
    $region2: #{pointnetfeat_desc.3} parent=1 // loop_pre_header
      _
    $region3: #{pointnetfeat_desc.3} parent=1 // loop_header
      %s33 = sphi 0, %s37
      %p34 = scmp.ge.s32.totalorder %s33, 6
      %s40 = sphi 0, %s52
      %s41 = sphi 0, %s48
      %s42 = sphi 0, %s40
      %s43 = sphi 0, %s41
      %s44 = sphi 0, %s42
      %s45 = sphi 0, %s43
      %s57 = sphi 0, %s59
      %s60 = sphi 0, %s57
      %s61 = sphi 0, %s60
      %s77 = sphi 0, %s61
      %s83 = sphi 0, %s85
      %s86 = sphi 0, %s83
      %s87 = sphi 0, %s86
      %s103 = sphi 0, %s87
      %s107 = sphi 0, %s107
      %s109 = sphi 0, %s107
      %s110 = sphi 0, %s109
      %s124 = sphi 0, %s110
      %s128 = sphi 0, %s128
      %s130 = sphi 0, %s128
      %s131 = sphi 0, %s130
      %s145 = sphi 0, %s131
      %s149 = sphi 0, %s149
      %s151 = sphi 0, %s149
      %s152 = sphi 0, %s151
      %s166 = sphi 0, %s152
      %s170 = sphi 0, %s170
      %s172 = sphi 0, %s170
      %s173 = sphi 0, %s172
      %s187 = sphi 0, %s173
      %s191 = sphi 0, %s191
      %s193 = sphi 0, %s191
      %s194 = sphi 0, %s193
      %s208 = sphi 0, %s194
      %s212 = sphi 0, %s212
      %s214 = sphi 0, %s212
      %s215 = sphi 0, %s214
      %s229 = sphi 0, %s215
      %s233 = sphi 0, %s233
      %s235 = sphi 0, %s233
      %s236 = sphi 0, %s235
      %s250 = sphi 0, %s236
      %s254 = sphi 0, %s254
      %s256 = sphi 0, %s254
      %s257 = sphi 0, %s256
      %s271 = sphi 0, %s257
      %s275 = sphi 0, %s275
      %s277 = sphi 0, %s275
      %s278 = sphi 0, %s277
      %s292 = sphi 0, %s278
      %s296 = sphi 0, %s296
      %s298 = sphi 0, %s296
      %s299 = sphi 0, %s298
      %s313 = sphi 0, %s299
      %s317 = sphi 0, %s317
      %s319 = sphi 0, %s317
      %s320 = sphi 0, %s319
      %s334 = sphi 0, %s320
      %s338 = sphi 0, %s338
      %s340 = sphi 0, %s338
      %s341 = sphi 0, %s340
      %s355 = sphi 0, %s341
      %s359 = sphi 0, %s359
      %s361 = sphi 0, %s359
      %s362 = sphi 0, %s361
      %s376 = sphi 0, %s362
      %s380 = sphi 0, %s380
      %s382 = sphi 0, %s380
      %s383 = sphi 0, %s382
      %s397 = sphi 0, %s383
      %s405 = sphi 0, %s407
      %s408 = sphi 0, %s405
      %s409 = sphi 0, %s408
      %s425 = sphi 0, %s409
    $region4: #{pointnetfeat_desc.3} parent=1 // loop_header_branch
      %36 = sbr.rel (%p34) target = $region8
    $region5: #{pointnetfeat_desc.3} parent=1 // loop_body
      %s38 = ssub.s32 %s33, 1
      %s39 = ssub.s32 %s33, 2
      %s46 = sadd.s32 1, %s41
      %p47 = scmp.ge.s32.totalorder %s46, 2
      %s48 = scalar_select %p47, 0, %s46
      %s49 = sadd.s32 1, %s40
      %s50 = scalar_select %p47, %s49, %s40
      %p51 = scmp.ge.s32.totalorder %s50, 2
      %s52 = scalar_select %p51, 0, %s50
      %s53 = ssub.s32 %s40, %s52
      %s54 = ssub.s32 %s41, %s48
      %s55 = sor.u32 %s53, %s54
      %p56 = scmp.eq.s32.totalorder %s55, 0
      %s58 = sadd.s32 %s57, 1
      %s59 = scalar_select %p56, %s57, %s58
      %p62 = pneg %p56
      %p63 = scmp.eq.s32.totalorder %s33, 3
      %p64 = por %p62, %p63
      %p65 = scmp.ne.s32.totalorder %s57, %s60
      %p66 = scmp.eq.s32.totalorder %s33, 0
      %p67 = por %p65, %p66
      %p68 = scmp.ne.s32.totalorder %s57, %s60
      %p69 = scmp.eq.s32.totalorder %s38, 3
      %p70 = por %p68, %p69
      %p71 = scmp.ne.s32.totalorder %s60, %s61
      %p72 = scmp.eq.s32.totalorder %s38, 0
      %p73 = por %p71, %p72
      %p74 = scmp.ne.s32.totalorder %s60, %s61
      %p75 = scmp.eq.s32.totalorder %s39, 3
      %p76 = por %p74, %p75
      %p78 = scmp.ne.s32.totalorder %s61, %s77
      %p79 = scmp.eq.s32.totalorder %s39, 0
      %p80 = por %p78, %p79
      %s81 = ssub.s32 %s40, %s52
      %p82 = scmp.eq.s32.totalorder %s81, 0
      %s84 = sadd.s32 %s83, 1
      %s85 = scalar_select %p82, %s83, %s84
      %p88 = pneg %p82
      %p89 = scmp.eq.s32.totalorder %s33, 3
      %p90 = por %p88, %p89
      %p91 = scmp.ne.s32.totalorder %s83, %s86
      %p92 = scmp.eq.s32.totalorder %s33, 0
      %p93 = por %p91, %p92
      %p94 = scmp.ne.s32.totalorder %s83, %s86
      %p95 = scmp.eq.s32.totalorder %s38, 3
      %p96 = por %p94, %p95
      %p97 = scmp.ne.s32.totalorder %s86, %s87
      %p98 = scmp.eq.s32.totalorder %s38, 0
      %p99 = por %p97, %p98
      %p100 = scmp.ne.s32.totalorder %s86, %s87
      %p101 = scmp.eq.s32.totalorder %s39, 3
      %p102 = por %p100, %p101
      %p104 = scmp.ne.s32.totalorder %s87, %s103
      %p105 = scmp.eq.s32.totalorder %s39, 0
      %p106 = por %p104, %p105
      %s108 = sadd.s32 %s107, 1
      %p111 = scmp.eq.s32.totalorder %s33, 3
      %p112 = scmp.ne.s32.totalorder %s107, %s109
      %p113 = scmp.eq.s32.totalorder %s33, 0
      %p114 = por %p112, %p113
      %p115 = scmp.ne.s32.totalorder %s107, %s109
      %p116 = scmp.eq.s32.totalorder %s38, 3
      %p117 = por %p115, %p116
      %p118 = scmp.ne.s32.totalorder %s109, %s110
      %p119 = scmp.eq.s32.totalorder %s38, 0
      %p120 = por %p118, %p119
      %p121 = scmp.ne.s32.totalorder %s109, %s110
      %p122 = scmp.eq.s32.totalorder %s39, 3
      %p123 = por %p121, %p122
      %p125 = scmp.ne.s32.totalorder %s110, %s124
      %p126 = scmp.eq.s32.totalorder %s39, 0
      %p127 = por %p125, %p126
      %s129 = sadd.s32 %s128, 1
      %p132 = scmp.eq.s32.totalorder %s33, 3
      %p133 = scmp.ne.s32.totalorder %s128, %s130
      %p134 = scmp.eq.s32.totalorder %s33, 0
      %p135 = por %p133, %p134
      %p136 = scmp.ne.s32.totalorder %s128, %s130
      %p137 = scmp.eq.s32.totalorder %s38, 3
      %p138 = por %p136, %p137
      %p139 = scmp.ne.s32.totalorder %s130, %s131
      %p140 = scmp.eq.s32.totalorder %s38, 0
      %p141 = por %p139, %p140
      %p142 = scmp.ne.s32.totalorder %s130, %s131
      %p143 = scmp.eq.s32.totalorder %s39, 3
      %p144 = por %p142, %p143
      %p146 = scmp.ne.s32.totalorder %s131, %s145
      %p147 = scmp.eq.s32.totalorder %s39, 0
      %p148 = por %p146, %p147
      %s150 = sadd.s32 %s149, 1
      %p153 = scmp.eq.s32.totalorder %s33, 3
      %p154 = scmp.ne.s32.totalorder %s149, %s151
      %p155 = scmp.eq.s32.totalorder %s33, 0
      %p156 = por %p154, %p155
      %p157 = scmp.ne.s32.totalorder %s149, %s151
      %p158 = scmp.eq.s32.totalorder %s38, 3
      %p159 = por %p157, %p158
      %p160 = scmp.ne.s32.totalorder %s151, %s152
      %p161 = scmp.eq.s32.totalorder %s38, 0
      %p162 = por %p160, %p161
      %p163 = scmp.ne.s32.totalorder %s151, %s152
      %p164 = scmp.eq.s32.totalorder %s39, 3
      %p165 = por %p163, %p164
      %p167 = scmp.ne.s32.totalorder %s152, %s166
      %p168 = scmp.eq.s32.totalorder %s39, 0
      %p169 = por %p167, %p168
      %s171 = sadd.s32 %s170, 1
      %p174 = scmp.eq.s32.totalorder %s33, 3
      %p175 = scmp.ne.s32.totalorder %s170, %s172
      %p176 = scmp.eq.s32.totalorder %s33, 0
      %p177 = por %p175, %p176
      %p178 = scmp.ne.s32.totalorder %s170, %s172
      %p179 = scmp.eq.s32.totalorder %s38, 3
      %p180 = por %p178, %p179
      %p181 = scmp.ne.s32.totalorder %s172, %s173
      %p182 = scmp.eq.s32.totalorder %s38, 0
      %p183 = por %p181, %p182
      %p184 = scmp.ne.s32.totalorder %s172, %s173
      %p185 = scmp.eq.s32.totalorder %s39, 3
      %p186 = por %p184, %p185
      %p188 = scmp.ne.s32.totalorder %s173, %s187
      %p189 = scmp.eq.s32.totalorder %s39, 0
      %p190 = por %p188, %p189
      %s192 = sadd.s32 %s191, 1
      %p195 = scmp.eq.s32.totalorder %s33, 3
      %p196 = scmp.ne.s32.totalorder %s191, %s193
      %p197 = scmp.eq.s32.totalorder %s33, 0
      %p198 = por %p196, %p197
      %p199 = scmp.ne.s32.totalorder %s191, %s193
      %p200 = scmp.eq.s32.totalorder %s38, 3
      %p201 = por %p199, %p200
      %p202 = scmp.ne.s32.totalorder %s193, %s194
      %p203 = scmp.eq.s32.totalorder %s38, 0
      %p204 = por %p202, %p203
      %p205 = scmp.ne.s32.totalorder %s193, %s194
      %p206 = scmp.eq.s32.totalorder %s39, 3
      %p207 = por %p205, %p206
      %p209 = scmp.ne.s32.totalorder %s194, %s208
      %p210 = scmp.eq.s32.totalorder %s39, 0
      %p211 = por %p209, %p210
      %s213 = sadd.s32 %s212, 1
      %p216 = scmp.eq.s32.totalorder %s33, 3
      %p217 = scmp.ne.s32.totalorder %s212, %s214
      %p218 = scmp.eq.s32.totalorder %s33, 0
      %p219 = por %p217, %p218
      %p220 = scmp.ne.s32.totalorder %s212, %s214
      %p221 = scmp.eq.s32.totalorder %s38, 3
      %p222 = por %p220, %p221
      %p223 = scmp.ne.s32.totalorder %s214, %s215
      %p224 = scmp.eq.s32.totalorder %s38, 0
      %p225 = por %p223, %p224
      %p226 = scmp.ne.s32.totalorder %s214, %s215
      %p227 = scmp.eq.s32.totalorder %s39, 3
      %p228 = por %p226, %p227
      %p230 = scmp.ne.s32.totalorder %s215, %s229
      %p231 = scmp.eq.s32.totalorder %s39, 0
      %p232 = por %p230, %p231
      %s234 = sadd.s32 %s233, 1
      %p237 = scmp.eq.s32.totalorder %s33, 3
      %p238 = scmp.ne.s32.totalorder %s233, %s235
      %p239 = scmp.eq.s32.totalorder %s33, 0
      %p240 = por %p238, %p239
      %p241 = scmp.ne.s32.totalorder %s233, %s235
      %p242 = scmp.eq.s32.totalorder %s38, 3
      %p243 = por %p241, %p242
      %p244 = scmp.ne.s32.totalorder %s235, %s236
      %p245 = scmp.eq.s32.totalorder %s38, 0
      %p246 = por %p244, %p245
      %p247 = scmp.ne.s32.totalorder %s235, %s236
      %p248 = scmp.eq.s32.totalorder %s39, 3
      %p249 = por %p247, %p248
      %p251 = scmp.ne.s32.totalorder %s236, %s250
      %p252 = scmp.eq.s32.totalorder %s39, 0
      %p253 = por %p251, %p252
      %s255 = sadd.s32 %s254, 1
      %p258 = scmp.eq.s32.totalorder %s33, 3
      %p259 = scmp.ne.s32.totalorder %s254, %s256
      %p260 = scmp.eq.s32.totalorder %s33, 0
      %p261 = por %p259, %p260
      %p262 = scmp.ne.s32.totalorder %s254, %s256
      %p263 = scmp.eq.s32.totalorder %s38, 3
      %p264 = por %p262, %p263
      %p265 = scmp.ne.s32.totalorder %s256, %s257
      %p266 = scmp.eq.s32.totalorder %s38, 0
      %p267 = por %p265, %p266
      %p268 = scmp.ne.s32.totalorder %s256, %s257
      %p269 = scmp.eq.s32.totalorder %s39, 3
      %p270 = por %p268, %p269
      %p272 = scmp.ne.s32.totalorder %s257, %s271
      %p273 = scmp.eq.s32.totalorder %s39, 0
      %p274 = por %p272, %p273
      %s276 = sadd.s32 %s275, 1
      %p279 = scmp.eq.s32.totalorder %s33, 3
      %p280 = scmp.ne.s32.totalorder %s275, %s277
      %p281 = scmp.eq.s32.totalorder %s33, 0
      %p282 = por %p280, %p281
      %p283 = scmp.ne.s32.totalorder %s275, %s277
      %p284 = scmp.eq.s32.totalorder %s38, 3
      %p285 = por %p283, %p284
      %p286 = scmp.ne.s32.totalorder %s277, %s278
      %p287 = scmp.eq.s32.totalorder %s38, 0
      %p288 = por %p286, %p287
      %p289 = scmp.ne.s32.totalorder %s277, %s278
      %p290 = scmp.eq.s32.totalorder %s39, 3
      %p291 = por %p289, %p290
      %p293 = scmp.ne.s32.totalorder %s278, %s292
      %p294 = scmp.eq.s32.totalorder %s39, 0
      %p295 = por %p293, %p294
      %s297 = sadd.s32 %s296, 1
      %p300 = scmp.eq.s32.totalorder %s33, 3
      %p301 = scmp.ne.s32.totalorder %s296, %s298
      %p302 = scmp.eq.s32.totalorder %s33, 0
      %p303 = por %p301, %p302
      %p304 = scmp.ne.s32.totalorder %s296, %s298
      %p305 = scmp.eq.s32.totalorder %s38, 3
      %p306 = por %p304, %p305
      %p307 = scmp.ne.s32.totalorder %s298, %s299
      %p308 = scmp.eq.s32.totalorder %s38, 0
      %p309 = por %p307, %p308
      %p310 = scmp.ne.s32.totalorder %s298, %s299
      %p311 = scmp.eq.s32.totalorder %s39, 3
      %p312 = por %p310, %p311
      %p314 = scmp.ne.s32.totalorder %s299, %s313
      %p315 = scmp.eq.s32.totalorder %s39, 0
      %p316 = por %p314, %p315
      %s318 = sadd.s32 %s317, 1
      %p321 = scmp.eq.s32.totalorder %s33, 3
      %p322 = scmp.ne.s32.totalorder %s317, %s319
      %p323 = scmp.eq.s32.totalorder %s33, 0
      %p324 = por %p322, %p323
      %p325 = scmp.ne.s32.totalorder %s317, %s319
      %p326 = scmp.eq.s32.totalorder %s38, 3
      %p327 = por %p325, %p326
      %p328 = scmp.ne.s32.totalorder %s319, %s320
      %p329 = scmp.eq.s32.totalorder %s38, 0
      %p330 = por %p328, %p329
      %p331 = scmp.ne.s32.totalorder %s319, %s320
      %p332 = scmp.eq.s32.totalorder %s39, 3
      %p333 = por %p331, %p332
      %p335 = scmp.ne.s32.totalorder %s320, %s334
      %p336 = scmp.eq.s32.totalorder %s39, 0
      %p337 = por %p335, %p336
      %s339 = sadd.s32 %s338, 1
      %p342 = scmp.eq.s32.totalorder %s33, 3
      %p343 = scmp.ne.s32.totalorder %s338, %s340
      %p344 = scmp.eq.s32.totalorder %s33, 0
      %p345 = por %p343, %p344
      %p346 = scmp.ne.s32.totalorder %s338, %s340
      %p347 = scmp.eq.s32.totalorder %s38, 3
      %p348 = por %p346, %p347
      %p349 = scmp.ne.s32.totalorder %s340, %s341
      %p350 = scmp.eq.s32.totalorder %s38, 0
      %p351 = por %p349, %p350
      %p352 = scmp.ne.s32.totalorder %s340, %s341
      %p353 = scmp.eq.s32.totalorder %s39, 3
      %p354 = por %p352, %p353
      %p356 = scmp.ne.s32.totalorder %s341, %s355
      %p357 = scmp.eq.s32.totalorder %s39, 0
      %p358 = por %p356, %p357
      %s360 = sadd.s32 %s359, 1
      %p363 = scmp.eq.s32.totalorder %s33, 3
      %p364 = scmp.ne.s32.totalorder %s359, %s361
      %p365 = scmp.eq.s32.totalorder %s33, 0
      %p366 = por %p364, %p365
      %p367 = scmp.ne.s32.totalorder %s359, %s361
      %p368 = scmp.eq.s32.totalorder %s38, 3
      %p369 = por %p367, %p368
      %p370 = scmp.ne.s32.totalorder %s361, %s362
      %p371 = scmp.eq.s32.totalorder %s38, 0
      %p372 = por %p370, %p371
      %p373 = scmp.ne.s32.totalorder %s361, %s362
      %p374 = scmp.eq.s32.totalorder %s39, 3
      %p375 = por %p373, %p374
      %p377 = scmp.ne.s32.totalorder %s362, %s376
      %p378 = scmp.eq.s32.totalorder %s39, 0
      %p379 = por %p377, %p378
      %s381 = sadd.s32 %s380, 1
      %p384 = scmp.eq.s32.totalorder %s33, 3
      %p385 = scmp.ne.s32.totalorder %s380, %s382
      %p386 = scmp.eq.s32.totalorder %s33, 0
      %p387 = por %p385, %p386
      %p388 = scmp.ne.s32.totalorder %s380, %s382
      %p389 = scmp.eq.s32.totalorder %s38, 3
      %p390 = por %p388, %p389
      %p391 = scmp.ne.s32.totalorder %s382, %s383
      %p392 = scmp.eq.s32.totalorder %s38, 0
      %p393 = por %p391, %p392
      %p394 = scmp.ne.s32.totalorder %s382, %s383
      %p395 = scmp.eq.s32.totalorder %s39, 3
      %p396 = por %p394, %p395
      %p398 = scmp.ne.s32.totalorder %s383, %s397
      %p399 = scmp.eq.s32.totalorder %s39, 0
      %p400 = por %p398, %p399
      %s401 = ssub.s32 %s40, %s52
      %s402 = ssub.s32 %s41, %s48
      %s403 = sor.u32 %s401, %s402
      %p404 = scmp.eq.s32.totalorder %s403, 0
      %s406 = sadd.s32 %s405, 1
      %s407 = scalar_select %p404, %s405, %s406
      %p410 = pneg %p404
      %p411 = scmp.eq.s32.totalorder %s33, 3
      %p412 = por %p410, %p411
      %p413 = scmp.ne.s32.totalorder %s405, %s408
      %p414 = scmp.eq.s32.totalorder %s33, 0
      %p415 = por %p413, %p414
      %p416 = scmp.ne.s32.totalorder %s405, %s408
      %p417 = scmp.eq.s32.totalorder %s38, 3
      %p418 = por %p416, %p417
      %p419 = scmp.ne.s32.totalorder %s408, %s409
      %p420 = scmp.eq.s32.totalorder %s38, 0
      %p421 = por %p419, %p420
      %p422 = scmp.ne.s32.totalorder %s408, %s409
      %p423 = scmp.eq.s32.totalorder %s39, 3
      %p424 = por %p422, %p423
      %p426 = scmp.ne.s32.totalorder %s409, %s425
      %p427 = scmp.eq.s32.totalorder %s39, 0
      %p428 = por %p426, %p427
      %p429 = scmp.le.s32.totalorder 1, %s33
      %p430 = scmp.lt.s32.totalorder %s33, 5
      %p431 = pnand %p429, %p430
      %p432 = pneg %p431
      // Predicated region
      $region9: #{pointnetfeat_desc.3} parent=5 // pred_check
        _
      $region10: #{pointnetfeat_desc.3} parent=5 // pred_check_branch
        %434 = sbr.rel (%p431) target = $region12
      $region11: #{pointnetfeat_desc.3} parent=5 // pred_region
        %s435 = ssub.s32 %s33, 1
        // Predicated region
        $region13: #{pointnetfeat_desc.3} parent=11 // pred_check
          %p436 = pneg %p120
        $region14: #{pointnetfeat_desc.3} parent=11 // pred_check_branch
          %438 = sbr.rel (%p436) target = $region16
        $region15: #{pointnetfeat_desc.3} parent=11 // pred_region
          %s440 = ssub.s32 512, 512
          %441 = vsyncadd [#allocation3], %s440
          %s442 = sshll.u32 [#allocation2], 4
          %s443 = int_to_ptr.vmem [resolvable:$true] %s442
          %448 = dma.hbm_to_vmem [thread:$0]  %s2, 512, %s443, [#allocation3], 64, 64, 4
        $region16: #{pointnetfeat_desc.3} parent=11 // pred_fallthru
          _
        // Predicated region
        $region17: #{pointnetfeat_desc.3} parent=11 // pred_check
          %p449 = pneg %p141
        $region18: #{pointnetfeat_desc.3} parent=11 // pred_check_branch
          %451 = sbr.rel (%p449) target = $region20
        $region19: #{pointnetfeat_desc.3} parent=11 // pred_region
          %s453 = ssub.s32 1024, 1024
          %454 = vsyncadd [#allocation6], %s453
          %s455 = sshll.u32 [#allocation5], 4
          %s456 = int_to_ptr.vmem [resolvable:$true] %s455
          %461 = dma.hbm_to_vmem [thread:$0]  %s3, 1024, %s456, [#allocation6], 128, 128, 8
        $region20: #{pointnetfeat_desc.3} parent=11 // pred_fallthru
          _
        // Predicated region
        $region21: #{pointnetfeat_desc.3} parent=11 // pred_check
          %p462 = pneg %p162
        $region22: #{pointnetfeat_desc.3} parent=11 // pred_check_branch
          %464 = sbr.rel (%p462) target = $region24
        $region23: #{pointnetfeat_desc.3} parent=11 // pred_region
          %s466 = ssub.s32 512, 512
          %467 = vsyncadd [#allocation6], %s466
          %s468 = sshll.u32 [#allocation7], 4
          %s469 = int_to_ptr.vmem [resolvable:$true] %s468
          %474 = dma.hbm_to_vmem [thread:$0]  %s4, 512, %s469, [#allocation6], 64, 64, 4
        $region24: #{pointnetfeat_desc.3} parent=11 // pred_fallthru
          _
        // Predicated region
        $region25: #{pointnetfeat_desc.3} parent=11 // pred_check
          %p475 = pneg %p183
        $region26: #{pointnetfeat_desc.3} parent=11 // pred_check_branch
          %477 = sbr.rel (%p475) target = $region28
        $region27: #{pointnetfeat_desc.3} parent=11 // pred_region
          %s479 = ssub.s32 1024, 1024
          %480 = vsyncadd [#allocation9], %s479
          %s481 = sshll.u32 [#allocation8], 4
          %s482 = int_to_ptr.vmem [resolvable:$true] %s481
          %487 = dma.hbm_to_vmem [thread:$0]  %s5, 1024, %s482, [#allocation9], 128, 128, 8
        $region28: #{pointnetfeat_desc.3} parent=11 // pred_fallthru
          _
        // Predicated region
        $region29: #{pointnetfeat_desc.3} parent=11 // pred_check
          %p488 = pneg %p204
        $region30: #{pointnetfeat_desc.3} parent=11 // pred_check_branch
          %490 = sbr.rel (%p488) target = $region32
        $region31: #{pointnetfeat_desc.3} parent=11 // pred_region
          %s492 = ssub.s32 512, 512
          %493 = vsyncadd [#allocation9], %s492
          %s494 = sshll.u32 [#allocation10], 4
          %s495 = int_to_ptr.vmem [resolvable:$true] %s494
          %500 = dma.hbm_to_vmem [thread:$0]  %s6, 512, %s495, [#allocation9], 64, 64, 4
        $region32: #{pointnetfeat_desc.3} parent=11 // pred_fallthru
          _
        // Predicated region
        $region33: #{pointnetfeat_desc.3} parent=11 // pred_check
          %p501 = pneg %p225
        $region34: #{pointnetfeat_desc.3} parent=11 // pred_check_branch
          %503 = sbr.rel (%p501) target = $region36
        $region35: #{pointnetfeat_desc.3} parent=11 // pred_region
          %s505 = ssub.s32 1024, 1024
          %506 = vsyncadd [#allocation12], %s505
          %s507 = sshll.u32 [#allocation11], 4
          %s508 = int_to_ptr.vmem [resolvable:$true] %s507
          %513 = dma.hbm_to_vmem [thread:$0]  %s7, 1024, %s508, [#allocation12], 128, 128, 8
        $region36: #{pointnetfeat_desc.3} parent=11 // pred_fallthru
          _
        // Predicated region
        $region37: #{pointnetfeat_desc.3} parent=11 // pred_check
          %p514 = pneg %p246
        $region38: #{pointnetfeat_desc.3} parent=11 // pred_check_branch
          %516 = sbr.rel (%p514) target = $region40
        $region39: #{pointnetfeat_desc.3} parent=11 // pred_region
          %s518 = ssub.s32 1024, 1024
          %519 = vsyncadd [#allocation12], %s518
          %s520 = sshll.u32 [#allocation13], 4
          %s521 = int_to_ptr.vmem [resolvable:$true] %s520
          %526 = dma.hbm_to_vmem [thread:$0]  %s8, 1024, %s521, [#allocation12], 64, 64, 4
        $region40: #{pointnetfeat_desc.3} parent=11 // pred_fallthru
          _
        // Predicated region
        $region41: #{pointnetfeat_desc.3} parent=11 // pred_check
          %p527 = pneg %p267
        $region42: #{pointnetfeat_desc.3} parent=11 // pred_check_branch
          %529 = sbr.rel (%p527) target = $region44
        $region43: #{pointnetfeat_desc.3} parent=11 // pred_region
          %s531 = ssub.s32 2048, 2048
          %532 = vsyncadd [#allocation15], %s531
          %s533 = sshll.u32 [#allocation14], 4
          %s534 = int_to_ptr.vmem [resolvable:$true] %s533
          %539 = dma.hbm_to_vmem [thread:$0]  %s9, 2048, %s534, [#allocation15], 128, 128, 8
        $region44: #{pointnetfeat_desc.3} parent=11 // pred_fallthru
          _
        // Predicated region
        $region45: #{pointnetfeat_desc.3} parent=11 // pred_check
          %p540 = pneg %p288
        $region46: #{pointnetfeat_desc.3} parent=11 // pred_check_branch
          %542 = sbr.rel (%p540) target = $region48
        $region47: #{pointnetfeat_desc.3} parent=11 // pred_region
          %s544 = ssub.s32 1024, 1024
          %545 = vsyncadd [#allocation15], %s544
          %s546 = sshll.u32 [#allocation16], 4
          %s547 = int_to_ptr.vmem [resolvable:$true] %s546
          %552 = dma.hbm_to_vmem [thread:$0]  %s10, 1024, %s547, [#allocation15], 64, 64, 4
        $region48: #{pointnetfeat_desc.3} parent=11 // pred_fallthru
          _
        // Predicated region
        $region49: #{pointnetfeat_desc.3} parent=11 // pred_check
          %p553 = pneg %p309
        $region50: #{pointnetfeat_desc.3} parent=11 // pred_check_branch
          %555 = sbr.rel (%p553) target = $region52
        $region51: #{pointnetfeat_desc.3} parent=11 // pred_region
          %s557 = ssub.s32 2048, 2048
          %558 = vsyncadd [#allocation18], %s557
          %s559 = sshll.u32 [#allocation17], 4
          %s560 = int_to_ptr.vmem [resolvable:$true] %s559
          %565 = dma.hbm_to_vmem [thread:$0]  %s11, 2048, %s560, [#allocation18], 128, 128, 8
        $region52: #{pointnetfeat_desc.3} parent=11 // pred_fallthru
          _
        // Predicated region
        $region53: #{pointnetfeat_desc.3} parent=11 // pred_check
          %p566 = pneg %p330
        $region54: #{pointnetfeat_desc.3} parent=11 // pred_check_branch
          %568 = sbr.rel (%p566) target = $region56
        $region55: #{pointnetfeat_desc.3} parent=11 // pred_region
          %s570 = ssub.s32 1024, 1024
          %571 = vsyncadd [#allocation18], %s570
          %s572 = sshll.u32 [#allocation19], 4
          %s573 = int_to_ptr.vmem [resolvable:$true] %s572
          %578 = dma.hbm_to_vmem [thread:$0]  %s12, 1024, %s573, [#allocation18], 64, 64, 4
        $region56: #{pointnetfeat_desc.3} parent=11 // pred_fallthru
          _
        // Predicated region
        $region57: #{pointnetfeat_desc.3} parent=11 // pred_check
          %p579 = pneg %p351
        $region58: #{pointnetfeat_desc.3} parent=11 // pred_check_branch
          %581 = sbr.rel (%p579) target = $region60
        $region59: #{pointnetfeat_desc.3} parent=11 // pred_region
          %s583 = ssub.s32 2048, 2048
          %584 = vsyncadd [#allocation21], %s583
          %s585 = sshll.u32 [#allocation20], 4
          %s586 = int_to_ptr.vmem [resolvable:$true] %s585
          %591 = dma.hbm_to_vmem [thread:$0]  %s13, 2048, %s586, [#allocation21], 128, 128, 8
        $region60: #{pointnetfeat_desc.3} parent=11 // pred_fallthru
          _
        // Predicated region
        $region61: #{pointnetfeat_desc.3} parent=11 // pred_check
          %p592 = pneg %p372
        $region62: #{pointnetfeat_desc.3} parent=11 // pred_check_branch
          %594 = sbr.rel (%p592) target = $region64
        $region63: #{pointnetfeat_desc.3} parent=11 // pred_region
          %s596 = ssub.s32 8192, 8192
          %597 = vsyncadd [#allocation21], %s596
          %s598 = sshll.u32 [#allocation22], 4
          %s599 = int_to_ptr.vmem [resolvable:$true] %s598
          %604 = dma.hbm_to_vmem [thread:$0]  %s14, 8192, %s599, [#allocation21], 64, 64, 4
        $region64: #{pointnetfeat_desc.3} parent=11 // pred_fallthru
          _
        // Predicated region
        $region65: #{pointnetfeat_desc.3} parent=11 // pred_check
          %p605 = pneg %p393
        $region66: #{pointnetfeat_desc.3} parent=11 // pred_check_branch
          %607 = sbr.rel (%p605) target = $region68
        $region67: #{pointnetfeat_desc.3} parent=11 // pred_region
          %s609 = ssub.s32 16384, 16384
          %610 = vsyncadd [#allocation24], %s609
          %s611 = sshll.u32 [#allocation23], 4
          %s612 = int_to_ptr.vmem [resolvable:$true] %s611
          %617 = dma.hbm_to_vmem [thread:$0]  %s15, 16384, %s612, [#allocation24], 128, 128, 8
        $region68: #{pointnetfeat_desc.3} parent=11 // pred_fallthru
          _
      $region12: #{pointnetfeat_desc.3} parent=5 // pred_fallthru
        _
      %p618 = scmp.lt.s32.totalorder %s33, 4
      // Predicated region
      $region69: #{pointnetfeat_desc.3} parent=5 // pred_check
        %p619 = pneg %p618
      $region70: #{pointnetfeat_desc.3} parent=5 // pred_check_branch
        %621 = sbr.rel (%p619) target = $region72
      $region71: #{pointnetfeat_desc.3} parent=5 // pred_region
        // Predicated region
        $region73: #{pointnetfeat_desc.3} parent=71 // pred_check
          %p622 = pneg %p67
        $region74: #{pointnetfeat_desc.3} parent=71 // pred_check_branch
          %624 = sbr.rel (%p622) target = $region76
        $region75: #{pointnetfeat_desc.3} parent=71 // pred_region
          %s625 = smul.u32 2, %s41
          %p626 = scmp.lt.s32.totalorder %s40, 1
          %s627 = scalar_select %p626, %s40, 1
          %p628 = scmp.lt.s32.totalorder %s625, 3
          %s629 = scalar_select %p628, %s625, 3
          %s630 = smul.addr %s627, 4
          %s631 = sadd.s32 %s629, %s630
          %s632 = smul.addr %s631, 4
          %s633 = scalar_lea.vmem %s0, %s632
          %s634 = smul.u32 2, %s41
        $region76: #{pointnetfeat_desc.3} parent=71 // pred_fallthru
          _
        // Predicated region
        $region77: #{pointnetfeat_desc.3} parent=71 // pred_check
          %p635 = pneg %p93
        $region78: #{pointnetfeat_desc.3} parent=71 // pred_check_branch
          %637 = sbr.rel (%p635) target = $region80
        $region79: #{pointnetfeat_desc.3} parent=71 // pred_region
          %p638 = scmp.lt.s32.totalorder %s40, 1
          %s639 = scalar_select %p638, %s40, 1
          %s640 = smul.addr %s639, 32
          %s641 = smul.addr %s640, 8
          %s642 = scalar_lea.vmem %s1, %s641
        $region80: #{pointnetfeat_desc.3} parent=71 // pred_fallthru
          _
      $region72: #{pointnetfeat_desc.3} parent=5 // pred_fallthru
        _
      %p643 = scmp.le.s32.totalorder 1, %s33
      %p644 = scmp.lt.s32.totalorder %s33, 5
      %p645 = pnand %p643, %p644
      %p646 = pneg %p645
      // Predicated region
      $region81: #{pointnetfeat_desc.3} parent=5 // pred_check
        _
      $region82: #{pointnetfeat_desc.3} parent=5 // pred_check_branch
        %648 = sbr.rel (%p645) target = $region84
      $region83: #{pointnetfeat_desc.3} parent=5 // pred_region
        %s649 = ssub.s32 %s33, 1
        // Predicated region
        $region85: #{pointnetfeat_desc.3} parent=83 // pred_check
          %p650 = pneg %p120
        $region86: #{pointnetfeat_desc.3} parent=83 // pred_check_branch
          %652 = sbr.rel (%p650) target = $region88
        $region87: #{pointnetfeat_desc.3} parent=83 // pred_region
          %653 = dma.done [#allocation3], 512
        $region88: #{pointnetfeat_desc.3} parent=83 // pred_fallthru
          _
        // Predicated region
        $region89: #{pointnetfeat_desc.3} parent=83 // pred_check
          %p654 = pneg %p141
        $region90: #{pointnetfeat_desc.3} parent=83 // pred_check_branch
          %656 = sbr.rel (%p654) target = $region92
        $region91: #{pointnetfeat_desc.3} parent=83 // pred_region
          %657 = dma.done [#allocation6], 1024
        $region92: #{pointnetfeat_desc.3} parent=83 // pred_fallthru
          _
        // Predicated region
        $region93: #{pointnetfeat_desc.3} parent=83 // pred_check
          %p658 = pneg %p162
        $region94: #{pointnetfeat_desc.3} parent=83 // pred_check_branch
          %660 = sbr.rel (%p658) target = $region96
        $region95: #{pointnetfeat_desc.3} parent=83 // pred_region
          %661 = dma.done [#allocation6], 512
        $region96: #{pointnetfeat_desc.3} parent=83 // pred_fallthru
          _
        // Predicated region
        $region97: #{pointnetfeat_desc.3} parent=83 // pred_check
          %p662 = pneg %p183
        $region98: #{pointnetfeat_desc.3} parent=83 // pred_check_branch
          %664 = sbr.rel (%p662) target = $region100
        $region99: #{pointnetfeat_desc.3} parent=83 // pred_region
          %665 = dma.done [#allocation9], 1024
        $region100: #{pointnetfeat_desc.3} parent=83 // pred_fallthru
          _
        // Predicated region
        $region101: #{pointnetfeat_desc.3} parent=83 // pred_check
          %p666 = pneg %p204
        $region102: #{pointnetfeat_desc.3} parent=83 // pred_check_branch
          %668 = sbr.rel (%p666) target = $region104
        $region103: #{pointnetfeat_desc.3} parent=83 // pred_region
          %669 = dma.done [#allocation9], 512
        $region104: #{pointnetfeat_desc.3} parent=83 // pred_fallthru
          _
        // Predicated region
        $region105: #{pointnetfeat_desc.3} parent=83 // pred_check
          %p670 = pneg %p225
        $region106: #{pointnetfeat_desc.3} parent=83 // pred_check_branch
          %672 = sbr.rel (%p670) target = $region108
        $region107: #{pointnetfeat_desc.3} parent=83 // pred_region
          %673 = dma.done [#allocation12], 1024
        $region108: #{pointnetfeat_desc.3} parent=83 // pred_fallthru
          _
        // Predicated region
        $region109: #{pointnetfeat_desc.3} parent=83 // pred_check
          %p674 = pneg %p246
        $region110: #{pointnetfeat_desc.3} parent=83 // pred_check_branch
          %676 = sbr.rel (%p674) target = $region112
        $region111: #{pointnetfeat_desc.3} parent=83 // pred_region
          %677 = dma.done [#allocation12], 1024
        $region112: #{pointnetfeat_desc.3} parent=83 // pred_fallthru
          _
        // Predicated region
        $region113: #{pointnetfeat_desc.3} parent=83 // pred_check
          %p678 = pneg %p267
        $region114: #{pointnetfeat_desc.3} parent=83 // pred_check_branch
          %680 = sbr.rel (%p678) target = $region116
        $region115: #{pointnetfeat_desc.3} parent=83 // pred_region
          %681 = dma.done [#allocation15], 2048
        $region116: #{pointnetfeat_desc.3} parent=83 // pred_fallthru
          _
        // Predicated region
        $region117: #{pointnetfeat_desc.3} parent=83 // pred_check
          %p682 = pneg %p288
        $region118: #{pointnetfeat_desc.3} parent=83 // pred_check_branch
          %684 = sbr.rel (%p682) target = $region120
        $region119: #{pointnetfeat_desc.3} parent=83 // pred_region
          %685 = dma.done [#allocation15], 1024
        $region120: #{pointnetfeat_desc.3} parent=83 // pred_fallthru
          _
        // Predicated region
        $region121: #{pointnetfeat_desc.3} parent=83 // pred_check
          %p686 = pneg %p309
        $region122: #{pointnetfeat_desc.3} parent=83 // pred_check_branch
          %688 = sbr.rel (%p686) target = $region124
        $region123: #{pointnetfeat_desc.3} parent=83 // pred_region
          %689 = dma.done [#allocation18], 2048
        $region124: #{pointnetfeat_desc.3} parent=83 // pred_fallthru
          _
        // Predicated region
        $region125: #{pointnetfeat_desc.3} parent=83 // pred_check
          %p690 = pneg %p330
        $region126: #{pointnetfeat_desc.3} parent=83 // pred_check_branch
          %692 = sbr.rel (%p690) target = $region128
        $region127: #{pointnetfeat_desc.3} parent=83 // pred_region
          %693 = dma.done [#allocation18], 1024
        $region128: #{pointnetfeat_desc.3} parent=83 // pred_fallthru
          _
        // Predicated region
        $region129: #{pointnetfeat_desc.3} parent=83 // pred_check
          %p694 = pneg %p351
        $region130: #{pointnetfeat_desc.3} parent=83 // pred_check_branch
          %696 = sbr.rel (%p694) target = $region132
        $region131: #{pointnetfeat_desc.3} parent=83 // pred_region
          %697 = dma.done [#allocation21], 2048
        $region132: #{pointnetfeat_desc.3} parent=83 // pred_fallthru
          _
        // Predicated region
        $region133: #{pointnetfeat_desc.3} parent=83 // pred_check
          %p698 = pneg %p372
        $region134: #{pointnetfeat_desc.3} parent=83 // pred_check_branch
          %700 = sbr.rel (%p698) target = $region136
        $region135: #{pointnetfeat_desc.3} parent=83 // pred_region
          %701 = dma.done [#allocation21], 8192
        $region136: #{pointnetfeat_desc.3} parent=83 // pred_fallthru
          _
        // Predicated region
        $region137: #{pointnetfeat_desc.3} parent=83 // pred_check
          %p702 = pneg %p393
        $region138: #{pointnetfeat_desc.3} parent=83 // pred_check_branch
          %704 = sbr.rel (%p702) target = $region140
        $region139: #{pointnetfeat_desc.3} parent=83 // pred_region
          %705 = dma.done [#allocation24], 16384
        $region140: #{pointnetfeat_desc.3} parent=83 // pred_fallthru
          _
        %s706 = smul.u32 2, %s43
        %p707 = scmp.lt.s32.totalorder %s42, 1
        %s708 = scalar_select %p707, %s42, 1
        %p709 = scmp.lt.s32.totalorder %s706, 3
        %s710 = scalar_select %p709, %s706, 3
        %s711 = smul.addr %s708, 4
        %s712 = sadd.s32 %s710, %s711
        %s713 = smul.addr %s712, 4
        %s714 = scalar_lea.vmem %s0, %s713
        %p715 = pneg %p73
        %p716 = pneg %p70
        %p717 = scmp.lt.s32.totalorder %s42, 1
        %s718 = scalar_select %p717, %s42, 1
        %s719 = smul.addr %s718, 32
        %s720 = smul.addr %s719, 8
        %s721 = scalar_lea.vmem %s1, %s720
        %p722 = pneg %p99
        %p723 = pneg %p96
        %p724 = pneg %p120
        %p725 = pneg %p117
        %p726 = pneg %p141
        %p727 = pneg %p138
        %p728 = pneg %p162
        %p729 = pneg %p159
        %p730 = pneg %p183
        %p731 = pneg %p180
        %p732 = pneg %p204
        %p733 = pneg %p201
        %p734 = pneg %p225
        %p735 = pneg %p222
        %p736 = pneg %p246
        %p737 = pneg %p243
        %p738 = pneg %p267
        %p739 = pneg %p264
        %p740 = pneg %p288
        %p741 = pneg %p285
        %p742 = pneg %p309
        %p743 = pneg %p306
        %p744 = pneg %p330
        %p745 = pneg %p327
        %p746 = pneg %p351
        %p747 = pneg %p348
        %p748 = pneg %p372
        %p749 = pneg %p369
        %p750 = pneg %p393
        %p751 = pneg %p390
        %p752 = pneg %p421
        %p753 = pneg %p418
        %s754 = sand.u32 %s408, 1
        %s755 = scalar_lea.sflag [#allocation4], %s754
        %s756 = sand.u32 %s408, 1
        %s757 = smul.addr %s756, 2560
        %s758 = scalar_lea.vmem [#allocation25], %s757
        %s759 = smul.u32 2, %s43
        %p760 = scmp.lt.s32.totalorder %s42, 1
        %s761 = scalar_select %p760, %s42, 1
        %p762 = scmp.lt.s32.totalorder %s759, 3
        %s763 = scalar_select %p762, %s759, 3
        %s764 = smul.addr %s761, 4
        %s765 = sadd.s32 %s763, %s764
        %s766 = smul.addr %s765, 4
        %s767 = scalar_lea.vmem %s0, %s766
        %s768 = smul.u32 2, %s43
        %p769 = scmp.lt.s32.totalorder %s42, 1
        %s770 = scalar_select %p769, %s42, 1
        %s771 = smul.addr %s770, 32
        %s772 = smul.addr %s771, 8
        %s773 = scalar_lea.vmem %s1, %s772
        %s774 = smul.u32 2, %s43
        %v776 = vld [vmem:[%s767] sm:$0x77]
        %v778 = vcombine.high %v776, %v776
        %v780 = vpack.c.bf16 %v776, %v776
        %v781 = vpack.c.bf16 %v778, %v778
        %v782 = vld [vmem:[#allocation2] sm:$0xf]
        %v783 = vld [vmem:[#allocation2 + $0x4] sm:$0xf]
        %v784 = vld [vmem:[#allocation2 + $0x8] sm:$0xf]
        %v785 = vld [vmem:[#allocation2 + $0xc] sm:$0xf]
        %v786 = vld [vmem:[#allocation2 + $0x10] sm:$0xf]
        %v787 = vld [vmem:[#allocation2 + $0x14] sm:$0xf]
        %v788 = vld [vmem:[#allocation2 + $0x18] sm:$0xf]
        %v789 = vld [vmem:[#allocation2 + $0x1c] sm:$0xf]
        %v790 = vld [vmem:[#allocation5] sm:$0xff]
        %v791 = vld [vmem:[#allocation5 + $0x8] sm:$0xff]
        %v792 = vld [vmem:[#allocation5 + $0x10] sm:$0xff]
        %v793 = vld [vmem:[#allocation5 + $0x18] sm:$0xff]
        %v794 = vld [vmem:[#allocation5 + $0x20] sm:$0xff]
        %v795 = vld [vmem:[#allocation5 + $0x28] sm:$0xff]
        %v796 = vld [vmem:[#allocation5 + $0x30] sm:$0xff]
        %v797 = vld [vmem:[#allocation5 + $0x38] sm:$0xff]
        %799 = vset.pattern.permute.xlu0 0
        %800 = vperm.xlu0 %799, %v790
        %v801 = vpop.permute.xlu0 %800
        %804 = vset.pattern.permute.xlu0 0
        %805 = vperm.xlu0 %804, %v791
        %v806 = vpop.permute.xlu0 %805
        %809 = vset.pattern.permute.xlu0 0
        %810 = vperm.xlu0 %809, %v792
        %v811 = vpop.permute.xlu0 %810
        %814 = vset.pattern.permute.xlu0 0
        %815 = vperm.xlu0 %814, %v793
        %v816 = vpop.permute.xlu0 %815
        %819 = vset.pattern.permute.xlu0 0
        %820 = vperm.xlu0 %819, %v794
        %v821 = vpop.permute.xlu0 %820
        %824 = vset.pattern.permute.xlu0 0
        %825 = vperm.xlu0 %824, %v795
        %v826 = vpop.permute.xlu0 %825
        %829 = vset.pattern.permute.xlu0 0
        %830 = vperm.xlu0 %829, %v796
        %v831 = vpop.permute.xlu0 %830
        %834 = vset.pattern.permute.xlu0 0
        %835 = vperm.xlu0 %834, %v797
        %v836 = vpop.permute.xlu0 %835
        %v846 = vunpack.c.l.b16 %v782
        %v847 = vunpack.c.l.b16 %v783
        %v848 = vunpack.c.l.b16 %v784
        %v849 = vunpack.c.l.b16 %v785
        %v850 = vunpack.c.l.b16 %v786
        %v851 = vunpack.c.l.b16 %v787
        %v852 = vunpack.c.l.b16 %v788
        %v853 = vunpack.c.l.b16 %v789
        %v854 = vpack.c.b16 %v847, %v846
        %v855 = vpack.c.b16 %v849, %v848
        %v856 = vpack.c.b16 %v851, %v850
        %v857 = vpack.c.b16 %v853, %v852
        %vm858 = vcmask 23552
        %v860 = vsel %vm858, %v854, 0
        %v863 = vsel %vm858, %v855, 0
        %v866 = vsel %vm858, %v856, 0
        %v869 = vsel %vm858, %v857, 0
        %vm871 = vcmask 1040384
        %vm872 = vcmask 1041408
        %v873 = vsel %vm871, 4294967295, 65535
        %v874 = vsel %vm872, %v873, 0
        %v876 = vand.u32 %v780, %v874
        %v879 = vand.u32 %v781, %v874
        %881 = vmatprep.subr.bf16.mxu0 0
        %882 = vmatpush1.bf16.msra.mxu0 0
        %883 = vmatprep.subr.bf16.mxu0 0
        %884 = vmatpush1.bf16.msra.mxu0 0
        %885 = vmatprep.subr.bf16.mxu0 0
        %886 = vmatpush1.bf16.msra.mxu0 0
        %887 = vmatprep.subr.bf16.mxu0 0
        %888 = vmatpush1.bf16.msra.mxu0 0
        %889 = vmatprep.subr.bf16.mxu0 0
        %890 = vmatpush1.bf16.msra.mxu0 0
        %891 = vmatprep.subr.bf16.mxu0 0
        %892 = vmatpush1.bf16.msra.mxu0 0
        %893 = vmatprep.subr.bf16.mxu0 0
        %894 = vmatpush1.bf16.msra.mxu0 0
        %895 = vmatprep.subr.bf16.mxu0 %v879
        %896 = vmatpush1.bf16.msra.mxu0 %v876
        %897 = vmatprep.subr.bf16.mxu0 0
        %898 = vmatpush2.bf16.msra.mxu0 0
        %899 = vmatprep.subr.bf16.mxu0 0
        %900 = vmatpush2.bf16.msra.mxu0 0
        %901 = vmatprep.subr.bf16.mxu0 0
        %902 = vmatpush2.bf16.msra.mxu0 0
        %903 = vmatprep.subr.bf16.mxu0 0
        %904 = vmatpush2.bf16.msra.mxu0 0
        %905 = vmatprep.subr.bf16.mxu0 0
        %906 = vmatpush2.bf16.msra.mxu0 0
        %907 = vmatprep.subr.bf16.mxu0 0
        %908 = vmatpush2.bf16.msra.mxu0 0
        %909 = vmatprep.subr.bf16.mxu0 0
        %910 = vmatpush2.bf16.msra.mxu0 0
        %911 = vmatprep.subr.bf16.mxu0 0
        %912 = vmatpush2.bf16.msra.mxu0 0
        %913 = vmatprep.mubr.bf16.mxu0 0
        %914 = vmatmul.mubr.bf16.gmra.mxu0 %v860
        %v915 = vpop.f32.mrf.mxu0
        %v916 = vadd.f32 %v801, %v915
        %v917 = vpop.f32.mrf.mxu0
        %v918 = vadd.f32 %v801, %v917
        %v919 = vpop.f32.mrf.mxu0
        %v920 = vadd.f32 %v806, %v919
        %v921 = vpop.f32.mrf.mxu0
        %v922 = vadd.f32 %v806, %v921
        %923 = vmatprep.mubr.bf16.mxu0 0
        %924 = vmatmul.mubr.bf16.gmra.mxu0 %v863
        %v925 = vpop.f32.mrf.mxu0
        %v926 = vadd.f32 %v811, %v925
        %v927 = vpop.f32.mrf.mxu0
        %v928 = vadd.f32 %v811, %v927
        %v929 = vpop.f32.mrf.mxu0
        %v930 = vadd.f32 %v816, %v929
        %v931 = vpop.f32.mrf.mxu0
        %v932 = vadd.f32 %v816, %v931
        %933 = vmatprep.mubr.bf16.mxu0 0
        %934 = vmatmul.mubr.bf16.gmra.mxu0 %v866
        %v935 = vpop.f32.mrf.mxu0
        %v936 = vadd.f32 %v821, %v935
        %v937 = vpop.f32.mrf.mxu0
        %v938 = vadd.f32 %v821, %v937
        %v939 = vpop.f32.mrf.mxu0
        %v940 = vadd.f32 %v826, %v939
        %v941 = vpop.f32.mrf.mxu0
        %v942 = vadd.f32 %v826, %v941
        %943 = vmatprep.mubr.bf16.mxu0 0
        %944 = vmatmul.mubr.bf16.gmra.mxu0 %v869
        %v945 = vpop.f32.mrf.mxu0
        %v946 = vadd.f32 %v831, %v945
        %v947 = vpop.f32.mrf.mxu0
        %v948 = vadd.f32 %v831, %v947
        %v949 = vpop.f32.mrf.mxu0
        %v950 = vadd.f32 %v836, %v949
        %v951 = vpop.f32.mrf.mxu0
        %v952 = vadd.f32 %v836, %v951
        %953 = vdwg.mxu0
        %v954 = vmax.f32 %v916, 0.0
        %v955 = vmax.f32 %v918, 0.0
        %v956 = vmax.f32 %v920, 0.0
        %v957 = vmax.f32 %v922, 0.0
        %v958 = vmax.f32 %v926, 0.0
        %v959 = vmax.f32 %v928, 0.0
        %v960 = vmax.f32 %v930, 0.0
        %v961 = vmax.f32 %v932, 0.0
        %v962 = vmax.f32 %v936, 0.0
        %v963 = vmax.f32 %v938, 0.0
        %v964 = vmax.f32 %v940, 0.0
        %v965 = vmax.f32 %v942, 0.0
        %v966 = vmax.f32 %v946, 0.0
        %v967 = vmax.f32 %v948, 0.0
        %v968 = vmax.f32 %v950, 0.0
        %v969 = vmax.f32 %v952, 0.0
        %v970 = vpack.c.bf16 %v956, %v954
        %v971 = vpack.c.bf16 %v957, %v955
        %v972 = vpack.c.bf16 %v960, %v958
        %v973 = vpack.c.bf16 %v961, %v959
        %v974 = vpack.c.bf16 %v964, %v962
        %v975 = vpack.c.bf16 %v965, %v963
        %v976 = vpack.c.bf16 %v968, %v966
        %v977 = vpack.c.bf16 %v969, %v967
        %v978 = vld [vmem:[#allocation7] sm:$0xf]
        %v979 = vld [vmem:[#allocation7 + $0x4] sm:$0xf]
        %v980 = vld [vmem:[#allocation7 + $0x8] sm:$0xf]
        %v981 = vld [vmem:[#allocation7 + $0xc] sm:$0xf]
        %v982 = vld [vmem:[#allocation7 + $0x10] sm:$0xf]
        %v983 = vld [vmem:[#allocation7 + $0x14] sm:$0xf]
        %v984 = vld [vmem:[#allocation7 + $0x18] sm:$0xf]
        %v985 = vld [vmem:[#allocation7 + $0x1c] sm:$0xf]
        %v986 = vld [vmem:[#allocation8] sm:$0xff]
        %v987 = vld [vmem:[#allocation8 + $0x8] sm:$0xff]
        %v988 = vld [vmem:[#allocation8 + $0x10] sm:$0xff]
        %v989 = vld [vmem:[#allocation8 + $0x18] sm:$0xff]
        %v990 = vld [vmem:[#allocation8 + $0x20] sm:$0xff]
        %v991 = vld [vmem:[#allocation8 + $0x28] sm:$0xff]
        %v992 = vld [vmem:[#allocation8 + $0x30] sm:$0xff]
        %v993 = vld [vmem:[#allocation8 + $0x38] sm:$0xff]
        %995 = vset.pattern.permute.xlu0 0
        %996 = vperm.xlu0 %995, %v986
        %v997 = vpop.permute.xlu0 %996
        %1000 = vset.pattern.permute.xlu0 0
        %1001 = vperm.xlu0 %1000, %v987
        %v1002 = vpop.permute.xlu0 %1001
        %1005 = vset.pattern.permute.xlu0 0
        %1006 = vperm.xlu0 %1005, %v988
        %v1007 = vpop.permute.xlu0 %1006
        %1010 = vset.pattern.permute.xlu0 0
        %1011 = vperm.xlu0 %1010, %v989
        %v1012 = vpop.permute.xlu0 %1011
        %1015 = vset.pattern.permute.xlu0 0
        %1016 = vperm.xlu0 %1015, %v990
        %v1017 = vpop.permute.xlu0 %1016
        %1020 = vset.pattern.permute.xlu0 0
        %1021 = vperm.xlu0 %1020, %v991
        %v1022 = vpop.permute.xlu0 %1021
        %1025 = vset.pattern.permute.xlu0 0
        %1026 = vperm.xlu0 %1025, %v992
        %v1027 = vpop.permute.xlu0 %1026
        %1030 = vset.pattern.permute.xlu0 0
        %1031 = vperm.xlu0 %1030, %v993
        %v1032 = vpop.permute.xlu0 %1031
        %v1042 = vunpack.c.l.b16 %v978
        %v1043 = vunpack.c.l.b16 %v979
        %v1044 = vunpack.c.l.b16 %v980
        %v1045 = vunpack.c.l.b16 %v981
        %v1046 = vunpack.c.l.b16 %v982
        %v1047 = vunpack.c.l.b16 %v983
        %v1048 = vunpack.c.l.b16 %v984
        %v1049 = vunpack.c.l.b16 %v985
        %v1050 = vpack.c.b16 %v1043, %v1042
        %v1051 = vpack.c.b16 %v1045, %v1044
        %v1052 = vpack.c.b16 %v1047, %v1046
        %v1053 = vpack.c.b16 %v1049, %v1048
        %vm1054 = vcmask 523264
        %v1056 = vsel %vm1054, %v1050, 0
        %v1059 = vsel %vm1054, %v1051, 0
        %v1062 = vsel %vm1054, %v1052, 0
        %v1065 = vsel %vm1054, %v1053, 0
        %1067 = vmatprep.subr.bf16.mxu0 0
        %1068 = vmatpush1.bf16.msra.mxu0 0
        %1069 = vmatprep.subr.bf16.mxu0 0
        %1070 = vmatpush1.bf16.msra.mxu0 0
        %1071 = vmatprep.subr.bf16.mxu0 0
        %1072 = vmatpush1.bf16.msra.mxu0 0
        %1073 = vmatprep.subr.bf16.mxu0 0
        %1074 = vmatpush1.bf16.msra.mxu0 0
        %1075 = vmatprep.subr.bf16.mxu0 %v977
        %1076 = vmatpush1.bf16.msra.mxu0 %v976
        %1077 = vmatprep.subr.bf16.mxu0 %v975
        %1078 = vmatpush1.bf16.msra.mxu0 %v974
        %1079 = vmatprep.subr.bf16.mxu0 %v973
        %1080 = vmatpush1.bf16.msra.mxu0 %v972
        %1081 = vmatprep.subr.bf16.mxu0 %v971
        %1082 = vmatpush1.bf16.msra.mxu0 %v970
        %1083 = vmatprep.subr.bf16.mxu0 0
        %1084 = vmatpush2.bf16.msra.mxu0 0
        %1085 = vmatprep.subr.bf16.mxu0 0
        %1086 = vmatpush2.bf16.msra.mxu0 0
        %1087 = vmatprep.subr.bf16.mxu0 0
        %1088 = vmatpush2.bf16.msra.mxu0 0
        %1089 = vmatprep.subr.bf16.mxu0 0
        %1090 = vmatpush2.bf16.msra.mxu0 0
        %1091 = vmatprep.subr.bf16.mxu0 0
        %1092 = vmatpush2.bf16.msra.mxu0 0
        %1093 = vmatprep.subr.bf16.mxu0 0
        %1094 = vmatpush2.bf16.msra.mxu0 0
        %1095 = vmatprep.subr.bf16.mxu0 0
        %1096 = vmatpush2.bf16.msra.mxu0 0
        %1097 = vmatprep.subr.bf16.mxu0 0
        %1098 = vmatpush2.bf16.msra.mxu0 0
        %1099 = vmatprep.mubr.bf16.mxu0 0
        %1100 = vmatmul.mubr.bf16.gmra.mxu0 %v1056
        %v1101 = vpop.f32.mrf.mxu0
        %v1102 = vadd.f32 %v997, %v1101
        %v1103 = vpop.f32.mrf.mxu0
        %v1104 = vadd.f32 %v997, %v1103
        %v1105 = vpop.f32.mrf.mxu0
        %v1106 = vadd.f32 %v1002, %v1105
        %v1107 = vpop.f32.mrf.mxu0
        %v1108 = vadd.f32 %v1002, %v1107
        %1109 = vmatprep.mubr.bf16.mxu0 0
        %1110 = vmatmul.mubr.bf16.gmra.mxu0 %v1059
        %v1111 = vpop.f32.mrf.mxu0
        %v1112 = vadd.f32 %v1007, %v1111
        %v1113 = vpop.f32.mrf.mxu0
        %v1114 = vadd.f32 %v1007, %v1113
        %v1115 = vpop.f32.mrf.mxu0
        %v1116 = vadd.f32 %v1012, %v1115
        %v1117 = vpop.f32.mrf.mxu0
        %v1118 = vadd.f32 %v1012, %v1117
        %1119 = vmatprep.mubr.bf16.mxu0 0
        %1120 = vmatmul.mubr.bf16.gmra.mxu0 %v1062
        %v1121 = vpop.f32.mrf.mxu0
        %v1122 = vadd.f32 %v1017, %v1121
        %v1123 = vpop.f32.mrf.mxu0
        %v1124 = vadd.f32 %v1017, %v1123
        %v1125 = vpop.f32.mrf.mxu0
        %v1126 = vadd.f32 %v1022, %v1125
        %v1127 = vpop.f32.mrf.mxu0
        %v1128 = vadd.f32 %v1022, %v1127
        %1129 = vmatprep.mubr.bf16.mxu0 0
        %1130 = vmatmul.mubr.bf16.gmra.mxu0 %v1065
        %v1131 = vpop.f32.mrf.mxu0
        %v1132 = vadd.f32 %v1027, %v1131
        %v1133 = vpop.f32.mrf.mxu0
        %v1134 = vadd.f32 %v1027, %v1133
        %v1135 = vpop.f32.mrf.mxu0
        %v1136 = vadd.f32 %v1032, %v1135
        %v1137 = vpop.f32.mrf.mxu0
        %v1138 = vadd.f32 %v1032, %v1137
        %1139 = vdwg.mxu0
        %v1140 = vmax.f32 %v1102, 0.0
        %v1141 = vmax.f32 %v1104, 0.0
        %v1142 = vmax.f32 %v1106, 0.0
        %v1143 = vmax.f32 %v1108, 0.0
        %v1144 = vmax.f32 %v1112, 0.0
        %v1145 = vmax.f32 %v1114, 0.0
        %v1146 = vmax.f32 %v1116, 0.0
        %v1147 = vmax.f32 %v1118, 0.0
        %v1148 = vmax.f32 %v1122, 0.0
        %v1149 = vmax.f32 %v1124, 0.0
        %v1150 = vmax.f32 %v1126, 0.0
        %v1151 = vmax.f32 %v1128, 0.0
        %v1152 = vmax.f32 %v1132, 0.0
        %v1153 = vmax.f32 %v1134, 0.0
        %v1154 = vmax.f32 %v1136, 0.0
        %v1155 = vmax.f32 %v1138, 0.0
        %v1156 = vpack.c.bf16 %v1142, %v1140
        %v1157 = vpack.c.bf16 %v1143, %v1141
        %v1158 = vpack.c.bf16 %v1146, %v1144
        %v1159 = vpack.c.bf16 %v1147, %v1145
        %v1160 = vpack.c.bf16 %v1150, %v1148
        %v1161 = vpack.c.bf16 %v1151, %v1149
        %v1162 = vpack.c.bf16 %v1154, %v1152
        %v1163 = vpack.c.bf16 %v1155, %v1153
        %v1164 = vld [vmem:[#allocation10] sm:$0xf]
        %v1165 = vld [vmem:[#allocation10 + $0x4] sm:$0xf]
        %v1166 = vld [vmem:[#allocation10 + $0x8] sm:$0xf]
        %v1167 = vld [vmem:[#allocation10 + $0xc] sm:$0xf]
        %v1168 = vld [vmem:[#allocation10 + $0x10] sm:$0xf]
        %v1169 = vld [vmem:[#allocation10 + $0x14] sm:$0xf]
        %v1170 = vld [vmem:[#allocation10 + $0x18] sm:$0xf]
        %v1171 = vld [vmem:[#allocation10 + $0x1c] sm:$0xf]
        %v1172 = vld [vmem:[#allocation11] sm:$0xff]
        %v1173 = vld [vmem:[#allocation11 + $0x8] sm:$0xff]
        %v1174 = vld [vmem:[#allocation11 + $0x10] sm:$0xff]
        %v1175 = vld [vmem:[#allocation11 + $0x18] sm:$0xff]
        %v1176 = vld [vmem:[#allocation11 + $0x20] sm:$0xff]
        %v1177 = vld [vmem:[#allocation11 + $0x28] sm:$0xff]
        %v1178 = vld [vmem:[#allocation11 + $0x30] sm:$0xff]
        %v1179 = vld [vmem:[#allocation11 + $0x38] sm:$0xff]
        %1181 = vset.pattern.permute.xlu0 0
        %1182 = vperm.xlu0 %1181, %v1172
        %v1183 = vpop.permute.xlu0 %1182
        %1186 = vset.pattern.permute.xlu0 0
        %1187 = vperm.xlu0 %1186, %v1173
        %v1188 = vpop.permute.xlu0 %1187
        %1191 = vset.pattern.permute.xlu0 0
        %1192 = vperm.xlu0 %1191, %v1174
        %v1193 = vpop.permute.xlu0 %1192
        %1196 = vset.pattern.permute.xlu0 0
        %1197 = vperm.xlu0 %1196, %v1175
        %v1198 = vpop.permute.xlu0 %1197
        %1201 = vset.pattern.permute.xlu0 0
        %1202 = vperm.xlu0 %1201, %v1176
        %v1203 = vpop.permute.xlu0 %1202
        %1206 = vset.pattern.permute.xlu0 0
        %1207 = vperm.xlu0 %1206, %v1177
        %v1208 = vpop.permute.xlu0 %1207
        %1211 = vset.pattern.permute.xlu0 0
        %1212 = vperm.xlu0 %1211, %v1178
        %v1213 = vpop.permute.xlu0 %1212
        %1216 = vset.pattern.permute.xlu0 0
        %1217 = vperm.xlu0 %1216, %v1179
        %v1218 = vpop.permute.xlu0 %1217
        %v1228 = vunpack.c.l.b16 %v1164
        %v1229 = vunpack.c.l.b16 %v1165
        %v1230 = vunpack.c.l.b16 %v1166
        %v1231 = vunpack.c.l.b16 %v1167
        %v1232 = vunpack.c.l.b16 %v1168
        %v1233 = vunpack.c.l.b16 %v1169
        %v1234 = vunpack.c.l.b16 %v1170
        %v1235 = vunpack.c.l.b16 %v1171
        %v1236 = vpack.c.b16 %v1229, %v1228
        %v1237 = vpack.c.b16 %v1231, %v1230
        %v1238 = vpack.c.b16 %v1233, %v1232
        %v1239 = vpack.c.b16 %v1235, %v1234
        %v1241 = vsel %vm1054, %v1236, 0
        %v1244 = vsel %vm1054, %v1237, 0
        %v1247 = vsel %vm1054, %v1238, 0
        %v1250 = vsel %vm1054, %v1239, 0
        %1252 = vmatprep.subr.bf16.mxu0 0
        %1253 = vmatpush1.bf16.msra.mxu0 0
        %1254 = vmatprep.subr.bf16.mxu0 0
        %1255 = vmatpush1.bf16.msra.mxu0 0
        %1256 = vmatprep.subr.bf16.mxu0 0
        %1257 = vmatpush1.bf16.msra.mxu0 0
        %1258 = vmatprep.subr.bf16.mxu0 0
        %1259 = vmatpush1.bf16.msra.mxu0 0
        %1260 = vmatprep.subr.bf16.mxu0 %v1163
        %1261 = vmatpush1.bf16.msra.mxu0 %v1162
        %1262 = vmatprep.subr.bf16.mxu0 %v1161
        %1263 = vmatpush1.bf16.msra.mxu0 %v1160
        %1264 = vmatprep.subr.bf16.mxu0 %v1159
        %1265 = vmatpush1.bf16.msra.mxu0 %v1158
        %1266 = vmatprep.subr.bf16.mxu0 %v1157
        %1267 = vmatpush1.bf16.msra.mxu0 %v1156
        %1268 = vmatprep.subr.bf16.mxu0 0
        %1269 = vmatpush2.bf16.msra.mxu0 0
        %1270 = vmatprep.subr.bf16.mxu0 0
        %1271 = vmatpush2.bf16.msra.mxu0 0
        %1272 = vmatprep.subr.bf16.mxu0 0
        %1273 = vmatpush2.bf16.msra.mxu0 0
        %1274 = vmatprep.subr.bf16.mxu0 0
        %1275 = vmatpush2.bf16.msra.mxu0 0
        %1276 = vmatprep.subr.bf16.mxu0 0
        %1277 = vmatpush2.bf16.msra.mxu0 0
        %1278 = vmatprep.subr.bf16.mxu0 0
        %1279 = vmatpush2.bf16.msra.mxu0 0
        %1280 = vmatprep.subr.bf16.mxu0 0
        %1281 = vmatpush2.bf16.msra.mxu0 0
        %1282 = vmatprep.subr.bf16.mxu0 0
        %1283 = vmatpush2.bf16.msra.mxu0 0
        %1284 = vmatprep.mubr.bf16.mxu0 0
        %1285 = vmatmul.mubr.bf16.gmra.mxu0 %v1241
        %v1286 = vpop.f32.mrf.mxu0
        %v1287 = vadd.f32 %v1183, %v1286
        %v1288 = vpop.f32.mrf.mxu0
        %v1289 = vadd.f32 %v1183, %v1288
        %v1290 = vpop.f32.mrf.mxu0
        %v1291 = vadd.f32 %v1188, %v1290
        %v1292 = vpop.f32.mrf.mxu0
        %v1293 = vadd.f32 %v1188, %v1292
        %1294 = vmatprep.mubr.bf16.mxu0 0
        %1295 = vmatmul.mubr.bf16.gmra.mxu0 %v1244
        %v1296 = vpop.f32.mrf.mxu0
        %v1297 = vadd.f32 %v1193, %v1296
        %v1298 = vpop.f32.mrf.mxu0
        %v1299 = vadd.f32 %v1193, %v1298
        %v1300 = vpop.f32.mrf.mxu0
        %v1301 = vadd.f32 %v1198, %v1300
        %v1302 = vpop.f32.mrf.mxu0
        %v1303 = vadd.f32 %v1198, %v1302
        %1304 = vmatprep.mubr.bf16.mxu0 0
        %1305 = vmatmul.mubr.bf16.gmra.mxu0 %v1247
        %v1306 = vpop.f32.mrf.mxu0
        %v1307 = vadd.f32 %v1203, %v1306
        %v1308 = vpop.f32.mrf.mxu0
        %v1309 = vadd.f32 %v1203, %v1308
        %v1310 = vpop.f32.mrf.mxu0
        %v1311 = vadd.f32 %v1208, %v1310
        %v1312 = vpop.f32.mrf.mxu0
        %v1313 = vadd.f32 %v1208, %v1312
        %1314 = vmatprep.mubr.bf16.mxu0 0
        %1315 = vmatmul.mubr.bf16.gmra.mxu0 %v1250
        %v1316 = vpop.f32.mrf.mxu0
        %v1317 = vadd.f32 %v1213, %v1316
        %v1318 = vpop.f32.mrf.mxu0
        %v1319 = vadd.f32 %v1213, %v1318
        %v1320 = vpop.f32.mrf.mxu0
        %v1321 = vadd.f32 %v1218, %v1320
        %v1322 = vpop.f32.mrf.mxu0
        %v1323 = vadd.f32 %v1218, %v1322
        %1324 = vdwg.mxu0
        %v1325 = vmax.f32 %v1287, 0.0
        %v1326 = vmax.f32 %v1289, 0.0
        %v1327 = vmax.f32 %v1291, 0.0
        %v1328 = vmax.f32 %v1293, 0.0
        %v1329 = vmax.f32 %v1297, 0.0
        %v1330 = vmax.f32 %v1299, 0.0
        %v1331 = vmax.f32 %v1301, 0.0
        %v1332 = vmax.f32 %v1303, 0.0
        %v1333 = vmax.f32 %v1307, 0.0
        %v1334 = vmax.f32 %v1309, 0.0
        %v1335 = vmax.f32 %v1311, 0.0
        %v1336 = vmax.f32 %v1313, 0.0
        %v1337 = vmax.f32 %v1317, 0.0
        %v1338 = vmax.f32 %v1319, 0.0
        %v1339 = vmax.f32 %v1321, 0.0
        %v1340 = vmax.f32 %v1323, 0.0
        %v1341 = vpack.c.bf16 %v1327, %v1325
        %v1342 = vpack.c.bf16 %v1328, %v1326
        %v1343 = vpack.c.bf16 %v1331, %v1329
        %v1344 = vpack.c.bf16 %v1332, %v1330
        %v1345 = vpack.c.bf16 %v1335, %v1333
        %v1346 = vpack.c.bf16 %v1336, %v1334
        %v1347 = vpack.c.bf16 %v1339, %v1337
        %v1348 = vpack.c.bf16 %v1340, %v1338
        %v1349 = vld [vmem:[#allocation13] sm:$0xf]
        %v1350 = vld [vmem:[#allocation13 + $0x4] sm:$0xf]
        %v1351 = vld [vmem:[#allocation13 + $0x8] sm:$0xf]
        %v1352 = vld [vmem:[#allocation13 + $0xc] sm:$0xf]
        %v1353 = vld [vmem:[#allocation13 + $0x10] sm:$0xf]
        %v1354 = vld [vmem:[#allocation13 + $0x14] sm:$0xf]
        %v1355 = vld [vmem:[#allocation13 + $0x18] sm:$0xf]
        %v1356 = vld [vmem:[#allocation13 + $0x1c] sm:$0xf]
        %v1357 = vld [vmem:[#allocation13 + $0x20] sm:$0xf]
        %v1358 = vld [vmem:[#allocation13 + $0x24] sm:$0xf]
        %v1359 = vld [vmem:[#allocation13 + $0x28] sm:$0xf]
        %v1360 = vld [vmem:[#allocation13 + $0x2c] sm:$0xf]
        %v1361 = vld [vmem:[#allocation13 + $0x30] sm:$0xf]
        %v1362 = vld [vmem:[#allocation13 + $0x34] sm:$0xf]
        %v1363 = vld [vmem:[#allocation13 + $0x38] sm:$0xf]
        %v1364 = vld [vmem:[#allocation13 + $0x3c] sm:$0xf]
        %v1365 = vld [vmem:[#allocation14] sm:$0xff]
        %v1366 = vld [vmem:[#allocation14 + $0x8] sm:$0xff]
        %v1367 = vld [vmem:[#allocation14 + $0x10] sm:$0xff]
        %v1368 = vld [vmem:[#allocation14 + $0x18] sm:$0xff]
        %v1369 = vld [vmem:[#allocation14 + $0x20] sm:$0xff]
        %v1370 = vld [vmem:[#allocation14 + $0x28] sm:$0xff]
        %v1371 = vld [vmem:[#allocation14 + $0x30] sm:$0xff]
        %v1372 = vld [vmem:[#allocation14 + $0x38] sm:$0xff]
        %v1373 = vld [vmem:[#allocation14 + $0x40] sm:$0xff]
        %v1374 = vld [vmem:[#allocation14 + $0x48] sm:$0xff]
        %v1375 = vld [vmem:[#allocation14 + $0x50] sm:$0xff]
        %v1376 = vld [vmem:[#allocation14 + $0x58] sm:$0xff]
        %v1377 = vld [vmem:[#allocation14 + $0x60] sm:$0xff]
        %v1378 = vld [vmem:[#allocation14 + $0x68] sm:$0xff]
        %v1379 = vld [vmem:[#allocation14 + $0x70] sm:$0xff]
        %v1380 = vld [vmem:[#allocation14 + $0x78] sm:$0xff]
        %1382 = vset.pattern.permute.xlu0 0
        %1383 = vperm.xlu0 %1382, %v1365
        %v1384 = vpop.permute.xlu0 %1383
        %1387 = vset.pattern.permute.xlu0 0
        %1388 = vperm.xlu0 %1387, %v1366
        %v1389 = vpop.permute.xlu0 %1388
        %1392 = vset.pattern.permute.xlu0 0
        %1393 = vperm.xlu0 %1392, %v1367
        %v1394 = vpop.permute.xlu0 %1393
        %1397 = vset.pattern.permute.xlu0 0
        %1398 = vperm.xlu0 %1397, %v1368
        %v1399 = vpop.permute.xlu0 %1398
        %1402 = vset.pattern.permute.xlu0 0
        %1403 = vperm.xlu0 %1402, %v1369
        %v1404 = vpop.permute.xlu0 %1403
        %1407 = vset.pattern.permute.xlu0 0
        %1408 = vperm.xlu0 %1407, %v1370
        %v1409 = vpop.permute.xlu0 %1408
        %1412 = vset.pattern.permute.xlu0 0
        %1413 = vperm.xlu0 %1412, %v1371
        %v1414 = vpop.permute.xlu0 %1413
        %1417 = vset.pattern.permute.xlu0 0
        %1418 = vperm.xlu0 %1417, %v1372
        %v1419 = vpop.permute.xlu0 %1418
        %1422 = vset.pattern.permute.xlu0 0
        %1423 = vperm.xlu0 %1422, %v1373
        %v1424 = vpop.permute.xlu0 %1423
        %1427 = vset.pattern.permute.xlu0 0
        %1428 = vperm.xlu0 %1427, %v1374
        %v1429 = vpop.permute.xlu0 %1428
        %1432 = vset.pattern.permute.xlu0 0
        %1433 = vperm.xlu0 %1432, %v1375
        %v1434 = vpop.permute.xlu0 %1433
        %1437 = vset.pattern.permute.xlu0 0
        %1438 = vperm.xlu0 %1437, %v1376
        %v1439 = vpop.permute.xlu0 %1438
        %1442 = vset.pattern.permute.xlu0 0
        %1443 = vperm.xlu0 %1442, %v1377
        %v1444 = vpop.permute.xlu0 %1443
        %1447 = vset.pattern.permute.xlu0 0
        %1448 = vperm.xlu0 %1447, %v1378
        %v1449 = vpop.permute.xlu0 %1448
        %1452 = vset.pattern.permute.xlu0 0
        %1453 = vperm.xlu0 %1452, %v1379
        %v1454 = vpop.permute.xlu0 %1453
        %1457 = vset.pattern.permute.xlu0 0
        %1458 = vperm.xlu0 %1457, %v1380
        %v1459 = vpop.permute.xlu0 %1458
        %v1477 = vunpack.c.l.b16 %v1349
        %v1478 = vunpack.c.l.b16 %v1350
        %v1479 = vunpack.c.l.b16 %v1351
        %v1480 = vunpack.c.l.b16 %v1352
        %v1481 = vunpack.c.l.b16 %v1353
        %v1482 = vunpack.c.l.b16 %v1354
        %v1483 = vunpack.c.l.b16 %v1355
        %v1484 = vunpack.c.l.b16 %v1356
        %v1485 = vunpack.c.l.b16 %v1357
        %v1486 = vunpack.c.l.b16 %v1358
        %v1487 = vunpack.c.l.b16 %v1359
        %v1488 = vunpack.c.l.b16 %v1360
        %v1489 = vunpack.c.l.b16 %v1361
        %v1490 = vunpack.c.l.b16 %v1362
        %v1491 = vunpack.c.l.b16 %v1363
        %v1492 = vunpack.c.l.b16 %v1364
        %v1493 = vpack.c.b16 %v1478, %v1477
        %v1494 = vpack.c.b16 %v1480, %v1479
        %v1495 = vpack.c.b16 %v1482, %v1481
        %v1496 = vpack.c.b16 %v1484, %v1483
        %v1497 = vpack.c.b16 %v1486, %v1485
        %v1498 = vpack.c.b16 %v1488, %v1487
        %v1499 = vpack.c.b16 %v1490, %v1489
        %v1500 = vpack.c.b16 %v1492, %v1491
        %v1502 = vsel %vm1054, %v1493, 0
        %v1505 = vsel %vm1054, %v1494, 0
        %v1508 = vsel %vm1054, %v1495, 0
        %v1511 = vsel %vm1054, %v1496, 0
        %v1514 = vsel %vm1054, %v1497, 0
        %v1517 = vsel %vm1054, %v1498, 0
        %v1520 = vsel %vm1054, %v1499, 0
        %v1523 = vsel %vm1054, %v1500, 0
        %1525 = vmatprep.subr.bf16.mxu0 0
        %1526 = vmatpush1.bf16.msra.mxu0 0
        %1527 = vmatprep.subr.bf16.mxu0 0
        %1528 = vmatpush1.bf16.msra.mxu0 0
        %1529 = vmatprep.subr.bf16.mxu0 0
        %1530 = vmatpush1.bf16.msra.mxu0 0
        %1531 = vmatprep.subr.bf16.mxu0 0
        %1532 = vmatpush1.bf16.msra.mxu0 0
        %1533 = vmatprep.subr.bf16.mxu0 %v1348
        %1534 = vmatpush1.bf16.msra.mxu0 %v1347
        %1535 = vmatprep.subr.bf16.mxu0 %v1346
        %1536 = vmatpush1.bf16.msra.mxu0 %v1345
        %1537 = vmatprep.subr.bf16.mxu0 %v1344
        %1538 = vmatpush1.bf16.msra.mxu0 %v1343
        %1539 = vmatprep.subr.bf16.mxu0 %v1342
        %1540 = vmatpush1.bf16.msra.mxu0 %v1341
        %1541 = vmatprep.subr.bf16.mxu0 0
        %1542 = vmatpush2.bf16.msra.mxu0 0
        %1543 = vmatprep.subr.bf16.mxu0 0
        %1544 = vmatpush2.bf16.msra.mxu0 0
        %1545 = vmatprep.subr.bf16.mxu0 0
        %1546 = vmatpush2.bf16.msra.mxu0 0
        %1547 = vmatprep.subr.bf16.mxu0 0
        %1548 = vmatpush2.bf16.msra.mxu0 0
        %1549 = vmatprep.subr.bf16.mxu0 0
        %1550 = vmatpush2.bf16.msra.mxu0 0
        %1551 = vmatprep.subr.bf16.mxu0 0
        %1552 = vmatpush2.bf16.msra.mxu0 0
        %1553 = vmatprep.subr.bf16.mxu0 0
        %1554 = vmatpush2.bf16.msra.mxu0 0
        %1555 = vmatprep.subr.bf16.mxu0 0
        %1556 = vmatpush2.bf16.msra.mxu0 0
        %1557 = vmatprep.mubr.bf16.mxu0 0
        %1558 = vmatmul.mubr.bf16.gmra.mxu0 %v1502
        %v1559 = vpop.f32.mrf.mxu0
        %v1560 = vadd.f32 %v1384, %v1559
        %v1561 = vpop.f32.mrf.mxu0
        %v1562 = vadd.f32 %v1384, %v1561
        %v1563 = vpop.f32.mrf.mxu0
        %v1564 = vadd.f32 %v1389, %v1563
        %v1565 = vpop.f32.mrf.mxu0
        %v1566 = vadd.f32 %v1389, %v1565
        %1567 = vmatprep.mubr.bf16.mxu0 0
        %1568 = vmatmul.mubr.bf16.gmra.mxu0 %v1505
        %v1569 = vpop.f32.mrf.mxu0
        %v1570 = vadd.f32 %v1394, %v1569
        %v1571 = vpop.f32.mrf.mxu0
        %v1572 = vadd.f32 %v1394, %v1571
        %v1573 = vpop.f32.mrf.mxu0
        %v1574 = vadd.f32 %v1399, %v1573
        %v1575 = vpop.f32.mrf.mxu0
        %v1576 = vadd.f32 %v1399, %v1575
        %1577 = vmatprep.mubr.bf16.mxu0 0
        %1578 = vmatmul.mubr.bf16.gmra.mxu0 %v1508
        %v1579 = vpop.f32.mrf.mxu0
        %v1580 = vadd.f32 %v1404, %v1579
        %v1581 = vpop.f32.mrf.mxu0
        %v1582 = vadd.f32 %v1404, %v1581
        %v1583 = vpop.f32.mrf.mxu0
        %v1584 = vadd.f32 %v1409, %v1583
        %v1585 = vpop.f32.mrf.mxu0
        %v1586 = vadd.f32 %v1409, %v1585
        %1587 = vmatprep.mubr.bf16.mxu0 0
        %1588 = vmatmul.mubr.bf16.gmra.mxu0 %v1511
        %v1589 = vpop.f32.mrf.mxu0
        %v1590 = vadd.f32 %v1414, %v1589
        %v1591 = vpop.f32.mrf.mxu0
        %v1592 = vadd.f32 %v1414, %v1591
        %v1593 = vpop.f32.mrf.mxu0
        %v1594 = vadd.f32 %v1419, %v1593
        %v1595 = vpop.f32.mrf.mxu0
        %v1596 = vadd.f32 %v1419, %v1595
        %1597 = vmatprep.mubr.bf16.mxu0 0
        %1598 = vmatmul.mubr.bf16.gmra.mxu0 %v1514
        %v1599 = vpop.f32.mrf.mxu0
        %v1600 = vadd.f32 %v1424, %v1599
        %v1601 = vpop.f32.mrf.mxu0
        %v1602 = vadd.f32 %v1424, %v1601
        %v1603 = vpop.f32.mrf.mxu0
        %v1604 = vadd.f32 %v1429, %v1603
        %v1605 = vpop.f32.mrf.mxu0
        %v1606 = vadd.f32 %v1429, %v1605
        %1607 = vmatprep.mubr.bf16.mxu0 0
        %1608 = vmatmul.mubr.bf16.gmra.mxu0 %v1517
        %v1609 = vpop.f32.mrf.mxu0
        %v1610 = vadd.f32 %v1434, %v1609
        %v1611 = vpop.f32.mrf.mxu0
        %v1612 = vadd.f32 %v1434, %v1611
        %v1613 = vpop.f32.mrf.mxu0
        %v1614 = vadd.f32 %v1439, %v1613
        %v1615 = vpop.f32.mrf.mxu0
        %v1616 = vadd.f32 %v1439, %v1615
        %1617 = vmatprep.mubr.bf16.mxu0 0
        %1618 = vmatmul.mubr.bf16.gmra.mxu0 %v1520
        %v1619 = vpop.f32.mrf.mxu0
        %v1620 = vadd.f32 %v1444, %v1619
        %v1621 = vpop.f32.mrf.mxu0
        %v1622 = vadd.f32 %v1444, %v1621
        %v1623 = vpop.f32.mrf.mxu0
        %v1624 = vadd.f32 %v1449, %v1623
        %v1625 = vpop.f32.mrf.mxu0
        %v1626 = vadd.f32 %v1449, %v1625
        %1627 = vmatprep.mubr.bf16.mxu0 0
        %1628 = vmatmul.mubr.bf16.gmra.mxu0 %v1523
        %v1629 = vpop.f32.mrf.mxu0
        %v1630 = vadd.f32 %v1454, %v1629
        %v1631 = vpop.f32.mrf.mxu0
        %v1632 = vadd.f32 %v1454, %v1631
        %v1633 = vpop.f32.mrf.mxu0
        %v1634 = vadd.f32 %v1459, %v1633
        %v1635 = vpop.f32.mrf.mxu0
        %v1636 = vadd.f32 %v1459, %v1635
        %1637 = vdwg.mxu0
        %v1638 = vmax.f32 %v1560, 0.0
        %v1639 = vmax.f32 %v1562, 0.0
        %v1640 = vmax.f32 %v1564, 0.0
        %v1641 = vmax.f32 %v1566, 0.0
        %v1642 = vmax.f32 %v1570, 0.0
        %v1643 = vmax.f32 %v1572, 0.0
        %v1644 = vmax.f32 %v1574, 0.0
        %v1645 = vmax.f32 %v1576, 0.0
        %v1646 = vmax.f32 %v1580, 0.0
        %v1647 = vmax.f32 %v1582, 0.0
        %v1648 = vmax.f32 %v1584, 0.0
        %v1649 = vmax.f32 %v1586, 0.0
        %v1650 = vmax.f32 %v1590, 0.0
        %v1651 = vmax.f32 %v1592, 0.0
        %v1652 = vmax.f32 %v1594, 0.0
        %v1653 = vmax.f32 %v1596, 0.0
        %v1654 = vmax.f32 %v1600, 0.0
        %v1655 = vmax.f32 %v1602, 0.0
        %v1656 = vmax.f32 %v1604, 0.0
        %v1657 = vmax.f32 %v1606, 0.0
        %v1658 = vmax.f32 %v1610, 0.0
        %v1659 = vmax.f32 %v1612, 0.0
        %v1660 = vmax.f32 %v1614, 0.0
        %v1661 = vmax.f32 %v1616, 0.0
        %v1662 = vmax.f32 %v1620, 0.0
        %v1663 = vmax.f32 %v1622, 0.0
        %v1664 = vmax.f32 %v1624, 0.0
        %v1665 = vmax.f32 %v1626, 0.0
        %v1666 = vmax.f32 %v1630, 0.0
        %v1667 = vmax.f32 %v1632, 0.0
        %v1668 = vmax.f32 %v1634, 0.0
        %v1669 = vmax.f32 %v1636, 0.0
        %v1670 = vpack.c.bf16 %v1640, %v1638
        %v1671 = vpack.c.bf16 %v1641, %v1639
        %v1672 = vpack.c.bf16 %v1644, %v1642
        %v1673 = vpack.c.bf16 %v1645, %v1643
        %v1674 = vpack.c.bf16 %v1648, %v1646
        %v1675 = vpack.c.bf16 %v1649, %v1647
        %v1676 = vpack.c.bf16 %v1652, %v1650
        %v1677 = vpack.c.bf16 %v1653, %v1651
        %v1678 = vpack.c.bf16 %v1656, %v1654
        %v1679 = vpack.c.bf16 %v1657, %v1655
        %v1680 = vpack.c.bf16 %v1660, %v1658
        %v1681 = vpack.c.bf16 %v1661, %v1659
        %v1682 = vpack.c.bf16 %v1664, %v1662
        %v1683 = vpack.c.bf16 %v1665, %v1663
        %v1684 = vpack.c.bf16 %v1668, %v1666
        %v1685 = vpack.c.bf16 %v1669, %v1667
        %v1686 = vld [vmem:[#allocation16] sm:$0xf]
        %v1687 = vld [vmem:[#allocation16 + $0x4] sm:$0xf]
        %v1688 = vld [vmem:[#allocation16 + $0x8] sm:$0xf]
        %v1689 = vld [vmem:[#allocation16 + $0xc] sm:$0xf]
        %v1690 = vld [vmem:[#allocation16 + $0x10] sm:$0xf]
        %v1691 = vld [vmem:[#allocation16 + $0x14] sm:$0xf]
        %v1692 = vld [vmem:[#allocation16 + $0x18] sm:$0xf]
        %v1693 = vld [vmem:[#allocation16 + $0x1c] sm:$0xf]
        %v1694 = vld [vmem:[#allocation16 + $0x20] sm:$0xf]
        %v1695 = vld [vmem:[#allocation16 + $0x24] sm:$0xf]
        %v1696 = vld [vmem:[#allocation16 + $0x28] sm:$0xf]
        %v1697 = vld [vmem:[#allocation16 + $0x2c] sm:$0xf]
        %v1698 = vld [vmem:[#allocation16 + $0x30] sm:$0xf]
        %v1699 = vld [vmem:[#allocation16 + $0x34] sm:$0xf]
        %v1700 = vld [vmem:[#allocation16 + $0x38] sm:$0xf]
        %v1701 = vld [vmem:[#allocation16 + $0x3c] sm:$0xf]
        %v1702 = vld [vmem:[#allocation17] sm:$0xff]
        %v1703 = vld [vmem:[#allocation17 + $0x8] sm:$0xff]
        %v1704 = vld [vmem:[#allocation17 + $0x10] sm:$0xff]
        %v1705 = vld [vmem:[#allocation17 + $0x18] sm:$0xff]
        %v1706 = vld [vmem:[#allocation17 + $0x20] sm:$0xff]
        %v1707 = vld [vmem:[#allocation17 + $0x28] sm:$0xff]
        %v1708 = vld [vmem:[#allocation17 + $0x30] sm:$0xff]
        %v1709 = vld [vmem:[#allocation17 + $0x38] sm:$0xff]
        %v1710 = vld [vmem:[#allocation17 + $0x40] sm:$0xff]
        %v1711 = vld [vmem:[#allocation17 + $0x48] sm:$0xff]
        %v1712 = vld [vmem:[#allocation17 + $0x50] sm:$0xff]
        %v1713 = vld [vmem:[#allocation17 + $0x58] sm:$0xff]
        %v1714 = vld [vmem:[#allocation17 + $0x60] sm:$0xff]
        %v1715 = vld [vmem:[#allocation17 + $0x68] sm:$0xff]
        %v1716 = vld [vmem:[#allocation17 + $0x70] sm:$0xff]
        %v1717 = vld [vmem:[#allocation17 + $0x78] sm:$0xff]
        %1719 = vset.pattern.permute.xlu0 0
        %1720 = vperm.xlu0 %1719, %v1702
        %v1721 = vpop.permute.xlu0 %1720
        %1724 = vset.pattern.permute.xlu0 0
        %1725 = vperm.xlu0 %1724, %v1703
        %v1726 = vpop.permute.xlu0 %1725
        %1729 = vset.pattern.permute.xlu0 0
        %1730 = vperm.xlu0 %1729, %v1704
        %v1731 = vpop.permute.xlu0 %1730
        %1734 = vset.pattern.permute.xlu0 0
        %1735 = vperm.xlu0 %1734, %v1705
        %v1736 = vpop.permute.xlu0 %1735
        %1739 = vset.pattern.permute.xlu0 0
        %1740 = vperm.xlu0 %1739, %v1706
        %v1741 = vpop.permute.xlu0 %1740
        %1744 = vset.pattern.permute.xlu0 0
        %1745 = vperm.xlu0 %1744, %v1707
        %v1746 = vpop.permute.xlu0 %1745
        %1749 = vset.pattern.permute.xlu0 0
        %1750 = vperm.xlu0 %1749, %v1708
        %v1751 = vpop.permute.xlu0 %1750
        %1754 = vset.pattern.permute.xlu0 0
        %1755 = vperm.xlu0 %1754, %v1709
        %v1756 = vpop.permute.xlu0 %1755
        %1759 = vset.pattern.permute.xlu0 0
        %1760 = vperm.xlu0 %1759, %v1710
        %v1761 = vpop.permute.xlu0 %1760
        %1764 = vset.pattern.permute.xlu0 0
        %1765 = vperm.xlu0 %1764, %v1711
        %v1766 = vpop.permute.xlu0 %1765
        %1769 = vset.pattern.permute.xlu0 0
        %1770 = vperm.xlu0 %1769, %v1712
        %v1771 = vpop.permute.xlu0 %1770
        %1774 = vset.pattern.permute.xlu0 0
        %1775 = vperm.xlu0 %1774, %v1713
        %v1776 = vpop.permute.xlu0 %1775
        %1779 = vset.pattern.permute.xlu0 0
        %1780 = vperm.xlu0 %1779, %v1714
        %v1781 = vpop.permute.xlu0 %1780
        %1784 = vset.pattern.permute.xlu0 0
        %1785 = vperm.xlu0 %1784, %v1715
        %v1786 = vpop.permute.xlu0 %1785
        %1789 = vset.pattern.permute.xlu0 0
        %1790 = vperm.xlu0 %1789, %v1716
        %v1791 = vpop.permute.xlu0 %1790
        %1794 = vset.pattern.permute.xlu0 0
        %1795 = vperm.xlu0 %1794, %v1717
        %v1796 = vpop.permute.xlu0 %1795
        %v1814 = vunpack.c.l.b16 %v1686
        %v1815 = vunpack.c.l.b16 %v1687
        %v1816 = vunpack.c.l.b16 %v1688
        %v1817 = vunpack.c.l.b16 %v1689
        %v1818 = vunpack.c.l.b16 %v1690
        %v1819 = vunpack.c.l.b16 %v1691
        %v1820 = vunpack.c.l.b16 %v1692
        %v1821 = vunpack.c.l.b16 %v1693
        %v1822 = vunpack.c.l.b16 %v1694
        %v1823 = vunpack.c.l.b16 %v1695
        %v1824 = vunpack.c.l.b16 %v1696
        %v1825 = vunpack.c.l.b16 %v1697
        %v1826 = vunpack.c.l.b16 %v1698
        %v1827 = vunpack.c.l.b16 %v1699
        %v1828 = vunpack.c.l.b16 %v1700
        %v1829 = vunpack.c.l.b16 %v1701
        %v1830 = vpack.c.b16 %v1815, %v1814
        %v1831 = vpack.c.b16 %v1817, %v1816
        %v1832 = vpack.c.b16 %v1819, %v1818
        %v1833 = vpack.c.b16 %v1821, %v1820
        %v1834 = vpack.c.b16 %v1823, %v1822
        %v1835 = vpack.c.b16 %v1825, %v1824
        %v1836 = vpack.c.b16 %v1827, %v1826
        %v1837 = vpack.c.b16 %v1829, %v1828
        %1846 = vmatprep.subr.bf16.mxu0 %v1685
        %1847 = vmatpush1.bf16.msra.mxu0 %v1684
        %1848 = vmatprep.subr.bf16.mxu0 %v1683
        %1849 = vmatpush1.bf16.msra.mxu0 %v1682
        %1850 = vmatprep.subr.bf16.mxu0 %v1681
        %1851 = vmatpush1.bf16.msra.mxu0 %v1680
        %1852 = vmatprep.subr.bf16.mxu0 %v1679
        %1853 = vmatpush1.bf16.msra.mxu0 %v1678
        %1854 = vmatprep.subr.bf16.mxu0 %v1677
        %1855 = vmatpush1.bf16.msra.mxu0 %v1676
        %1856 = vmatprep.subr.bf16.mxu0 %v1675
        %1857 = vmatpush1.bf16.msra.mxu0 %v1674
        %1858 = vmatprep.subr.bf16.mxu0 %v1673
        %1859 = vmatpush1.bf16.msra.mxu0 %v1672
        %1860 = vmatprep.subr.bf16.mxu0 %v1671
        %1861 = vmatpush1.bf16.msra.mxu0 %v1670
        %1862 = vmatprep.subr.bf16.mxu0 0
        %1863 = vmatpush2.bf16.msra.mxu0 0
        %1864 = vmatprep.subr.bf16.mxu0 0
        %1865 = vmatpush2.bf16.msra.mxu0 0
        %1866 = vmatprep.subr.bf16.mxu0 0
        %1867 = vmatpush2.bf16.msra.mxu0 0
        %1868 = vmatprep.subr.bf16.mxu0 0
        %1869 = vmatpush2.bf16.msra.mxu0 0
        %1870 = vmatprep.subr.bf16.mxu0 0
        %1871 = vmatpush2.bf16.msra.mxu0 0
        %1872 = vmatprep.subr.bf16.mxu0 0
        %1873 = vmatpush2.bf16.msra.mxu0 0
        %1874 = vmatprep.subr.bf16.mxu0 0
        %1875 = vmatpush2.bf16.msra.mxu0 0
        %1876 = vmatprep.subr.bf16.mxu0 0
        %1877 = vmatpush2.bf16.msra.mxu0 0
        %1878 = vmatprep.mubr.bf16.mxu0 0
        %1879 = vmatmul.mubr.bf16.gmra.mxu0 %v1830
        %v1880 = vpop.f32.mrf.mxu0
        %v1881 = vadd.f32 %v1721, %v1880
        %v1882 = vpop.f32.mrf.mxu0
        %v1883 = vadd.f32 %v1721, %v1882
        %v1884 = vpop.f32.mrf.mxu0
        %v1885 = vadd.f32 %v1726, %v1884
        %v1886 = vpop.f32.mrf.mxu0
        %v1887 = vadd.f32 %v1726, %v1886
        %1888 = vmatprep.mubr.bf16.mxu0 0
        %1889 = vmatmul.mubr.bf16.gmra.mxu0 %v1831
        %v1890 = vpop.f32.mrf.mxu0
        %v1891 = vadd.f32 %v1731, %v1890
        %v1892 = vpop.f32.mrf.mxu0
        %v1893 = vadd.f32 %v1731, %v1892
        %v1894 = vpop.f32.mrf.mxu0
        %v1895 = vadd.f32 %v1736, %v1894
        %v1896 = vpop.f32.mrf.mxu0
        %v1897 = vadd.f32 %v1736, %v1896
        %1898 = vmatprep.mubr.bf16.mxu0 0
        %1899 = vmatmul.mubr.bf16.gmra.mxu0 %v1832
        %v1900 = vpop.f32.mrf.mxu0
        %v1901 = vadd.f32 %v1741, %v1900
        %v1902 = vpop.f32.mrf.mxu0
        %v1903 = vadd.f32 %v1741, %v1902
        %v1904 = vpop.f32.mrf.mxu0
        %v1905 = vadd.f32 %v1746, %v1904
        %v1906 = vpop.f32.mrf.mxu0
        %v1907 = vadd.f32 %v1746, %v1906
        %1908 = vmatprep.mubr.bf16.mxu0 0
        %1909 = vmatmul.mubr.bf16.gmra.mxu0 %v1833
        %v1910 = vpop.f32.mrf.mxu0
        %v1911 = vadd.f32 %v1751, %v1910
        %v1912 = vpop.f32.mrf.mxu0
        %v1913 = vadd.f32 %v1751, %v1912
        %v1914 = vpop.f32.mrf.mxu0
        %v1915 = vadd.f32 %v1756, %v1914
        %v1916 = vpop.f32.mrf.mxu0
        %v1917 = vadd.f32 %v1756, %v1916
        %1918 = vmatprep.mubr.bf16.mxu0 0
        %1919 = vmatmul.mubr.bf16.gmra.mxu0 %v1834
        %v1920 = vpop.f32.mrf.mxu0
        %v1921 = vadd.f32 %v1761, %v1920
        %v1922 = vpop.f32.mrf.mxu0
        %v1923 = vadd.f32 %v1761, %v1922
        %v1924 = vpop.f32.mrf.mxu0
        %v1925 = vadd.f32 %v1766, %v1924
        %v1926 = vpop.f32.mrf.mxu0
        %v1927 = vadd.f32 %v1766, %v1926
        %1928 = vmatprep.mubr.bf16.mxu0 0
        %1929 = vmatmul.mubr.bf16.gmra.mxu0 %v1835
        %v1930 = vpop.f32.mrf.mxu0
        %v1931 = vadd.f32 %v1771, %v1930
        %v1932 = vpop.f32.mrf.mxu0
        %v1933 = vadd.f32 %v1771, %v1932
        %v1934 = vpop.f32.mrf.mxu0
        %v1935 = vadd.f32 %v1776, %v1934
        %v1936 = vpop.f32.mrf.mxu0
        %v1937 = vadd.f32 %v1776, %v1936
        %1938 = vmatprep.mubr.bf16.mxu0 0
        %1939 = vmatmul.mubr.bf16.gmra.mxu0 %v1836
        %v1940 = vpop.f32.mrf.mxu0
        %v1941 = vadd.f32 %v1781, %v1940
        %v1942 = vpop.f32.mrf.mxu0
        %v1943 = vadd.f32 %v1781, %v1942
        %v1944 = vpop.f32.mrf.mxu0
        %v1945 = vadd.f32 %v1786, %v1944
        %v1946 = vpop.f32.mrf.mxu0
        %v1947 = vadd.f32 %v1786, %v1946
        %1948 = vmatprep.mubr.bf16.mxu0 0
        %1949 = vmatmul.mubr.bf16.gmra.mxu0 %v1837
        %v1950 = vpop.f32.mrf.mxu0
        %v1951 = vadd.f32 %v1791, %v1950
        %v1952 = vpop.f32.mrf.mxu0
        %v1953 = vadd.f32 %v1791, %v1952
        %v1954 = vpop.f32.mrf.mxu0
        %v1955 = vadd.f32 %v1796, %v1954
        %v1956 = vpop.f32.mrf.mxu0
        %v1957 = vadd.f32 %v1796, %v1956
        %1958 = vdwg.mxu0
        %v1959 = vmax.f32 %v1881, 0.0
        %v1960 = vmax.f32 %v1883, 0.0
        %v1961 = vmax.f32 %v1885, 0.0
        %v1962 = vmax.f32 %v1887, 0.0
        %v1963 = vmax.f32 %v1891, 0.0
        %v1964 = vmax.f32 %v1893, 0.0
        %v1965 = vmax.f32 %v1895, 0.0
        %v1966 = vmax.f32 %v1897, 0.0
        %v1967 = vmax.f32 %v1901, 0.0
        %v1968 = vmax.f32 %v1903, 0.0
        %v1969 = vmax.f32 %v1905, 0.0
        %v1970 = vmax.f32 %v1907, 0.0
        %v1971 = vmax.f32 %v1911, 0.0
        %v1972 = vmax.f32 %v1913, 0.0
        %v1973 = vmax.f32 %v1915, 0.0
        %v1974 = vmax.f32 %v1917, 0.0
        %v1975 = vmax.f32 %v1921, 0.0
        %v1976 = vmax.f32 %v1923, 0.0
        %v1977 = vmax.f32 %v1925, 0.0
        %v1978 = vmax.f32 %v1927, 0.0
        %v1979 = vmax.f32 %v1931, 0.0
        %v1980 = vmax.f32 %v1933, 0.0
        %v1981 = vmax.f32 %v1935, 0.0
        %v1982 = vmax.f32 %v1937, 0.0
        %v1983 = vmax.f32 %v1941, 0.0
        %v1984 = vmax.f32 %v1943, 0.0
        %v1985 = vmax.f32 %v1945, 0.0
        %v1986 = vmax.f32 %v1947, 0.0
        %v1987 = vmax.f32 %v1951, 0.0
        %v1988 = vmax.f32 %v1953, 0.0
        %v1989 = vmax.f32 %v1955, 0.0
        %v1990 = vmax.f32 %v1957, 0.0
        %v1991 = vpack.c.bf16 %v1961, %v1959
        %v1992 = vpack.c.bf16 %v1962, %v1960
        %v1993 = vpack.c.bf16 %v1965, %v1963
        %v1994 = vpack.c.bf16 %v1966, %v1964
        %v1995 = vpack.c.bf16 %v1969, %v1967
        %v1996 = vpack.c.bf16 %v1970, %v1968
        %v1997 = vpack.c.bf16 %v1973, %v1971
        %v1998 = vpack.c.bf16 %v1974, %v1972
        %v1999 = vpack.c.bf16 %v1977, %v1975
        %v2000 = vpack.c.bf16 %v1978, %v1976
        %v2001 = vpack.c.bf16 %v1981, %v1979
        %v2002 = vpack.c.bf16 %v1982, %v1980
        %v2003 = vpack.c.bf16 %v1985, %v1983
        %v2004 = vpack.c.bf16 %v1986, %v1984
        %v2005 = vpack.c.bf16 %v1989, %v1987
        %v2006 = vpack.c.bf16 %v1990, %v1988
        %v2007 = vld [vmem:[#allocation19] sm:$0xf]
        %v2008 = vld [vmem:[#allocation19 + $0x4] sm:$0xf]
        %v2009 = vld [vmem:[#allocation19 + $0x8] sm:$0xf]
        %v2010 = vld [vmem:[#allocation19 + $0xc] sm:$0xf]
        %v2011 = vld [vmem:[#allocation19 + $0x10] sm:$0xf]
        %v2012 = vld [vmem:[#allocation19 + $0x14] sm:$0xf]
        %v2013 = vld [vmem:[#allocation19 + $0x18] sm:$0xf]
        %v2014 = vld [vmem:[#allocation19 + $0x1c] sm:$0xf]
        %v2015 = vld [vmem:[#allocation19 + $0x20] sm:$0xf]
        %v2016 = vld [vmem:[#allocation19 + $0x24] sm:$0xf]
        %v2017 = vld [vmem:[#allocation19 + $0x28] sm:$0xf]
        %v2018 = vld [vmem:[#allocation19 + $0x2c] sm:$0xf]
        %v2019 = vld [vmem:[#allocation19 + $0x30] sm:$0xf]
        %v2020 = vld [vmem:[#allocation19 + $0x34] sm:$0xf]
        %v2021 = vld [vmem:[#allocation19 + $0x38] sm:$0xf]
        %v2022 = vld [vmem:[#allocation19 + $0x3c] sm:$0xf]
        %v2023 = vld [vmem:[#allocation20] sm:$0xff]
        %v2024 = vld [vmem:[#allocation20 + $0x8] sm:$0xff]
        %v2025 = vld [vmem:[#allocation20 + $0x10] sm:$0xff]
        %v2026 = vld [vmem:[#allocation20 + $0x18] sm:$0xff]
        %v2027 = vld [vmem:[#allocation20 + $0x20] sm:$0xff]
        %v2028 = vld [vmem:[#allocation20 + $0x28] sm:$0xff]
        %v2029 = vld [vmem:[#allocation20 + $0x30] sm:$0xff]
        %v2030 = vld [vmem:[#allocation20 + $0x38] sm:$0xff]
        %v2031 = vld [vmem:[#allocation20 + $0x40] sm:$0xff]
        %v2032 = vld [vmem:[#allocation20 + $0x48] sm:$0xff]
        %v2033 = vld [vmem:[#allocation20 + $0x50] sm:$0xff]
        %v2034 = vld [vmem:[#allocation20 + $0x58] sm:$0xff]
        %v2035 = vld [vmem:[#allocation20 + $0x60] sm:$0xff]
        %v2036 = vld [vmem:[#allocation20 + $0x68] sm:$0xff]
        %v2037 = vld [vmem:[#allocation20 + $0x70] sm:$0xff]
        %v2038 = vld [vmem:[#allocation20 + $0x78] sm:$0xff]
        %2040 = vset.pattern.permute.xlu0 0
        %2041 = vperm.xlu0 %2040, %v2023
        %v2042 = vpop.permute.xlu0 %2041
        %2045 = vset.pattern.permute.xlu0 0
        %2046 = vperm.xlu0 %2045, %v2024
        %v2047 = vpop.permute.xlu0 %2046
        %2050 = vset.pattern.permute.xlu0 0
        %2051 = vperm.xlu0 %2050, %v2025
        %v2052 = vpop.permute.xlu0 %2051
        %2055 = vset.pattern.permute.xlu0 0
        %2056 = vperm.xlu0 %2055, %v2026
        %v2057 = vpop.permute.xlu0 %2056
        %2060 = vset.pattern.permute.xlu0 0
        %2061 = vperm.xlu0 %2060, %v2027
        %v2062 = vpop.permute.xlu0 %2061
        %2065 = vset.pattern.permute.xlu0 0
        %2066 = vperm.xlu0 %2065, %v2028
        %v2067 = vpop.permute.xlu0 %2066
        %2070 = vset.pattern.permute.xlu0 0
        %2071 = vperm.xlu0 %2070, %v2029
        %v2072 = vpop.permute.xlu0 %2071
        %2075 = vset.pattern.permute.xlu0 0
        %2076 = vperm.xlu0 %2075, %v2030
        %v2077 = vpop.permute.xlu0 %2076
        %2080 = vset.pattern.permute.xlu0 0
        %2081 = vperm.xlu0 %2080, %v2031
        %v2082 = vpop.permute.xlu0 %2081
        %2085 = vset.pattern.permute.xlu0 0
        %2086 = vperm.xlu0 %2085, %v2032
        %v2087 = vpop.permute.xlu0 %2086
        %2090 = vset.pattern.permute.xlu0 0
        %2091 = vperm.xlu0 %2090, %v2033
        %v2092 = vpop.permute.xlu0 %2091
        %2095 = vset.pattern.permute.xlu0 0
        %2096 = vperm.xlu0 %2095, %v2034
        %v2097 = vpop.permute.xlu0 %2096
        %2100 = vset.pattern.permute.xlu0 0
        %2101 = vperm.xlu0 %2100, %v2035
        %v2102 = vpop.permute.xlu0 %2101
        %2105 = vset.pattern.permute.xlu0 0
        %2106 = vperm.xlu0 %2105, %v2036
        %v2107 = vpop.permute.xlu0 %2106
        %2110 = vset.pattern.permute.xlu0 0
        %2111 = vperm.xlu0 %2110, %v2037
        %v2112 = vpop.permute.xlu0 %2111
        %2115 = vset.pattern.permute.xlu0 0
        %2116 = vperm.xlu0 %2115, %v2038
        %v2117 = vpop.permute.xlu0 %2116
        %v2135 = vunpack.c.l.b16 %v2007
        %v2136 = vunpack.c.l.b16 %v2008
        %v2137 = vunpack.c.l.b16 %v2009
        %v2138 = vunpack.c.l.b16 %v2010
        %v2139 = vunpack.c.l.b16 %v2011
        %v2140 = vunpack.c.l.b16 %v2012
        %v2141 = vunpack.c.l.b16 %v2013
        %v2142 = vunpack.c.l.b16 %v2014
        %v2143 = vunpack.c.l.b16 %v2015
        %v2144 = vunpack.c.l.b16 %v2016
        %v2145 = vunpack.c.l.b16 %v2017
        %v2146 = vunpack.c.l.b16 %v2018
        %v2147 = vunpack.c.l.b16 %v2019
        %v2148 = vunpack.c.l.b16 %v2020
        %v2149 = vunpack.c.l.b16 %v2021
        %v2150 = vunpack.c.l.b16 %v2022
        %v2151 = vpack.c.b16 %v2136, %v2135
        %v2152 = vpack.c.b16 %v2138, %v2137
        %v2153 = vpack.c.b16 %v2140, %v2139
        %v2154 = vpack.c.b16 %v2142, %v2141
        %v2155 = vpack.c.b16 %v2144, %v2143
        %v2156 = vpack.c.b16 %v2146, %v2145
        %v2157 = vpack.c.b16 %v2148, %v2147
        %v2158 = vpack.c.b16 %v2150, %v2149
        %2167 = vmatprep.subr.bf16.mxu0 %v2006
        %2168 = vmatpush1.bf16.msra.mxu0 %v2005
        %2169 = vmatprep.subr.bf16.mxu0 %v2004
        %2170 = vmatpush1.bf16.msra.mxu0 %v2003
        %2171 = vmatprep.subr.bf16.mxu0 %v2002
        %2172 = vmatpush1.bf16.msra.mxu0 %v2001
        %2173 = vmatprep.subr.bf16.mxu0 %v2000
        %2174 = vmatpush1.bf16.msra.mxu0 %v1999
        %2175 = vmatprep.subr.bf16.mxu0 %v1998
        %2176 = vmatpush1.bf16.msra.mxu0 %v1997
        %2177 = vmatprep.subr.bf16.mxu0 %v1996
        %2178 = vmatpush1.bf16.msra.mxu0 %v1995
        %2179 = vmatprep.subr.bf16.mxu0 %v1994
        %2180 = vmatpush1.bf16.msra.mxu0 %v1993
        %2181 = vmatprep.subr.bf16.mxu0 %v1992
        %2182 = vmatpush1.bf16.msra.mxu0 %v1991
        %2183 = vmatprep.subr.bf16.mxu0 0
        %2184 = vmatpush2.bf16.msra.mxu0 0
        %2185 = vmatprep.subr.bf16.mxu0 0
        %2186 = vmatpush2.bf16.msra.mxu0 0
        %2187 = vmatprep.subr.bf16.mxu0 0
        %2188 = vmatpush2.bf16.msra.mxu0 0
        %2189 = vmatprep.subr.bf16.mxu0 0
        %2190 = vmatpush2.bf16.msra.mxu0 0
        %2191 = vmatprep.subr.bf16.mxu0 0
        %2192 = vmatpush2.bf16.msra.mxu0 0
        %2193 = vmatprep.subr.bf16.mxu0 0
        %2194 = vmatpush2.bf16.msra.mxu0 0
        %2195 = vmatprep.subr.bf16.mxu0 0
        %2196 = vmatpush2.bf16.msra.mxu0 0
        %2197 = vmatprep.subr.bf16.mxu0 0
        %2198 = vmatpush2.bf16.msra.mxu0 0
        %2199 = vmatprep.mubr.bf16.mxu0 0
        %2200 = vmatmul.mubr.bf16.gmra.mxu0 %v2151
        %v2201 = vpop.f32.mrf.mxu0
        %v2202 = vadd.f32 %v2042, %v2201
        %v2203 = vpop.f32.mrf.mxu0
        %v2204 = vadd.f32 %v2042, %v2203
        %v2205 = vpop.f32.mrf.mxu0
        %v2206 = vadd.f32 %v2047, %v2205
        %v2207 = vpop.f32.mrf.mxu0
        %v2208 = vadd.f32 %v2047, %v2207
        %2209 = vmatprep.mubr.bf16.mxu0 0
        %2210 = vmatmul.mubr.bf16.gmra.mxu0 %v2152
        %v2211 = vpop.f32.mrf.mxu0
        %v2212 = vadd.f32 %v2052, %v2211
        %v2213 = vpop.f32.mrf.mxu0
        %v2214 = vadd.f32 %v2052, %v2213
        %v2215 = vpop.f32.mrf.mxu0
        %v2216 = vadd.f32 %v2057, %v2215
        %v2217 = vpop.f32.mrf.mxu0
        %v2218 = vadd.f32 %v2057, %v2217
        %2219 = vmatprep.mubr.bf16.mxu0 0
        %2220 = vmatmul.mubr.bf16.gmra.mxu0 %v2153
        %v2221 = vpop.f32.mrf.mxu0
        %v2222 = vadd.f32 %v2062, %v2221
        %v2223 = vpop.f32.mrf.mxu0
        %v2224 = vadd.f32 %v2062, %v2223
        %v2225 = vpop.f32.mrf.mxu0
        %v2226 = vadd.f32 %v2067, %v2225
        %v2227 = vpop.f32.mrf.mxu0
        %v2228 = vadd.f32 %v2067, %v2227
        %2229 = vmatprep.mubr.bf16.mxu0 0
        %2230 = vmatmul.mubr.bf16.gmra.mxu0 %v2154
        %v2231 = vpop.f32.mrf.mxu0
        %v2232 = vadd.f32 %v2072, %v2231
        %v2233 = vpop.f32.mrf.mxu0
        %v2234 = vadd.f32 %v2072, %v2233
        %v2235 = vpop.f32.mrf.mxu0
        %v2236 = vadd.f32 %v2077, %v2235
        %v2237 = vpop.f32.mrf.mxu0
        %v2238 = vadd.f32 %v2077, %v2237
        %2239 = vmatprep.mubr.bf16.mxu0 0
        %2240 = vmatmul.mubr.bf16.gmra.mxu0 %v2155
        %v2241 = vpop.f32.mrf.mxu0
        %v2242 = vadd.f32 %v2082, %v2241
        %v2243 = vpop.f32.mrf.mxu0
        %v2244 = vadd.f32 %v2082, %v2243
        %v2245 = vpop.f32.mrf.mxu0
        %v2246 = vadd.f32 %v2087, %v2245
        %v2247 = vpop.f32.mrf.mxu0
        %v2248 = vadd.f32 %v2087, %v2247
        %2249 = vmatprep.mubr.bf16.mxu0 0
        %2250 = vmatmul.mubr.bf16.gmra.mxu0 %v2156
        %v2251 = vpop.f32.mrf.mxu0
        %v2252 = vadd.f32 %v2092, %v2251
        %v2253 = vpop.f32.mrf.mxu0
        %v2254 = vadd.f32 %v2092, %v2253
        %v2255 = vpop.f32.mrf.mxu0
        %v2256 = vadd.f32 %v2097, %v2255
        %v2257 = vpop.f32.mrf.mxu0
        %v2258 = vadd.f32 %v2097, %v2257
        %2259 = vmatprep.mubr.bf16.mxu0 0
        %2260 = vmatmul.mubr.bf16.gmra.mxu0 %v2157
        %v2261 = vpop.f32.mrf.mxu0
        %v2262 = vadd.f32 %v2102, %v2261
        %v2263 = vpop.f32.mrf.mxu0
        %v2264 = vadd.f32 %v2102, %v2263
        %v2265 = vpop.f32.mrf.mxu0
        %v2266 = vadd.f32 %v2107, %v2265
        %v2267 = vpop.f32.mrf.mxu0
        %v2268 = vadd.f32 %v2107, %v2267
        %2269 = vmatprep.mubr.bf16.mxu0 0
        %2270 = vmatmul.mubr.bf16.gmra.mxu0 %v2158
        %v2271 = vpop.f32.mrf.mxu0
        %v2272 = vadd.f32 %v2112, %v2271
        %v2273 = vpop.f32.mrf.mxu0
        %v2274 = vadd.f32 %v2112, %v2273
        %v2275 = vpop.f32.mrf.mxu0
        %v2276 = vadd.f32 %v2117, %v2275
        %v2277 = vpop.f32.mrf.mxu0
        %v2278 = vadd.f32 %v2117, %v2277
        %2279 = vdwg.mxu0
        %v2280 = vmax.f32 %v2202, 0.0
        %v2281 = vmax.f32 %v2204, 0.0
        %v2282 = vmax.f32 %v2206, 0.0
        %v2283 = vmax.f32 %v2208, 0.0
        %v2284 = vmax.f32 %v2212, 0.0
        %v2285 = vmax.f32 %v2214, 0.0
        %v2286 = vmax.f32 %v2216, 0.0
        %v2287 = vmax.f32 %v2218, 0.0
        %v2288 = vmax.f32 %v2222, 0.0
        %v2289 = vmax.f32 %v2224, 0.0
        %v2290 = vmax.f32 %v2226, 0.0
        %v2291 = vmax.f32 %v2228, 0.0
        %v2292 = vmax.f32 %v2232, 0.0
        %v2293 = vmax.f32 %v2234, 0.0
        %v2294 = vmax.f32 %v2236, 0.0
        %v2295 = vmax.f32 %v2238, 0.0
        %v2296 = vmax.f32 %v2242, 0.0
        %v2297 = vmax.f32 %v2244, 0.0
        %v2298 = vmax.f32 %v2246, 0.0
        %v2299 = vmax.f32 %v2248, 0.0
        %v2300 = vmax.f32 %v2252, 0.0
        %v2301 = vmax.f32 %v2254, 0.0
        %v2302 = vmax.f32 %v2256, 0.0
        %v2303 = vmax.f32 %v2258, 0.0
        %v2304 = vmax.f32 %v2262, 0.0
        %v2305 = vmax.f32 %v2264, 0.0
        %v2306 = vmax.f32 %v2266, 0.0
        %v2307 = vmax.f32 %v2268, 0.0
        %v2308 = vmax.f32 %v2272, 0.0
        %v2309 = vmax.f32 %v2274, 0.0
        %v2310 = vmax.f32 %v2276, 0.0
        %v2311 = vmax.f32 %v2278, 0.0
        %v2312 = vpack.c.bf16 %v2282, %v2280
        %v2313 = vpack.c.bf16 %v2283, %v2281
        %v2314 = vpack.c.bf16 %v2286, %v2284
        %v2315 = vpack.c.bf16 %v2287, %v2285
        %v2316 = vpack.c.bf16 %v2290, %v2288
        %v2317 = vpack.c.bf16 %v2291, %v2289
        %v2318 = vpack.c.bf16 %v2294, %v2292
        %v2319 = vpack.c.bf16 %v2295, %v2293
        %v2320 = vpack.c.bf16 %v2298, %v2296
        %v2321 = vpack.c.bf16 %v2299, %v2297
        %v2322 = vpack.c.bf16 %v2302, %v2300
        %v2323 = vpack.c.bf16 %v2303, %v2301
        %v2324 = vpack.c.bf16 %v2306, %v2304
        %v2325 = vpack.c.bf16 %v2307, %v2305
        %v2326 = vpack.c.bf16 %v2310, %v2308
        %v2327 = vpack.c.bf16 %v2311, %v2309
        %v2328 = vld [vmem:[#allocation22] sm:$0xf]
        %v2329 = vld [vmem:[#allocation22 + $0x4] sm:$0xf]
        %v2330 = vld [vmem:[#allocation22 + $0x8] sm:$0xf]
        %v2331 = vld [vmem:[#allocation22 + $0xc] sm:$0xf]
        %v2332 = vld [vmem:[#allocation22 + $0x10] sm:$0xf]
        %v2333 = vld [vmem:[#allocation22 + $0x14] sm:$0xf]
        %v2334 = vld [vmem:[#allocation22 + $0x18] sm:$0xf]
        %v2335 = vld [vmem:[#allocation22 + $0x1c] sm:$0xf]
        %v2336 = vld [vmem:[#allocation22 + $0x20] sm:$0xf]
        %v2337 = vld [vmem:[#allocation22 + $0x24] sm:$0xf]
        %v2338 = vld [vmem:[#allocation22 + $0x28] sm:$0xf]
        %v2339 = vld [vmem:[#allocation22 + $0x2c] sm:$0xf]
        %v2340 = vld [vmem:[#allocation22 + $0x30] sm:$0xf]
        %v2341 = vld [vmem:[#allocation22 + $0x34] sm:$0xf]
        %v2342 = vld [vmem:[#allocation22 + $0x38] sm:$0xf]
        %v2343 = vld [vmem:[#allocation22 + $0x3c] sm:$0xf]
        %v2344 = vld [vmem:[#allocation22 + $0x40] sm:$0xf]
        %v2345 = vld [vmem:[#allocation22 + $0x44] sm:$0xf]
        %v2346 = vld [vmem:[#allocation22 + $0x48] sm:$0xf]
        %v2347 = vld [vmem:[#allocation22 + $0x4c] sm:$0xf]
        %v2348 = vld [vmem:[#allocation22 + $0x50] sm:$0xf]
        %v2349 = vld [vmem:[#allocation22 + $0x54] sm:$0xf]
        %v2350 = vld [vmem:[#allocation22 + $0x58] sm:$0xf]
        %v2351 = vld [vmem:[#allocation22 + $0x5c] sm:$0xf]
        %v2352 = vld [vmem:[#allocation22 + $0x60] sm:$0xf]
        %v2353 = vld [vmem:[#allocation22 + $0x64] sm:$0xf]
        %v2354 = vld [vmem:[#allocation22 + $0x68] sm:$0xf]
        %v2355 = vld [vmem:[#allocation22 + $0x6c] sm:$0xf]
        %v2356 = vld [vmem:[#allocation22 + $0x70] sm:$0xf]
        %v2357 = vld [vmem:[#allocation22 + $0x74] sm:$0xf]
        %v2358 = vld [vmem:[#allocation22 + $0x78] sm:$0xf]
        %v2359 = vld [vmem:[#allocation22 + $0x7c] sm:$0xf]
        %v2360 = vld [vmem:[#allocation22 + $0x80] sm:$0xf]
        %v2361 = vld [vmem:[#allocation22 + $0x84] sm:$0xf]
        %v2362 = vld [vmem:[#allocation22 + $0x88] sm:$0xf]
        %v2363 = vld [vmem:[#allocation22 + $0x8c] sm:$0xf]
        %v2364 = vld [vmem:[#allocation22 + $0x90] sm:$0xf]
        %v2365 = vld [vmem:[#allocation22 + $0x94] sm:$0xf]
        %v2366 = vld [vmem:[#allocation22 + $0x98] sm:$0xf]
        %v2367 = vld [vmem:[#allocation22 + $0x9c] sm:$0xf]
        %v2368 = vld [vmem:[#allocation22 + $0xa0] sm:$0xf]
        %v2369 = vld [vmem:[#allocation22 + $0xa4] sm:$0xf]
        %v2370 = vld [vmem:[#allocation22 + $0xa8] sm:$0xf]
        %v2371 = vld [vmem:[#allocation22 + $0xac] sm:$0xf]
        %v2372 = vld [vmem:[#allocation22 + $0xb0] sm:$0xf]
        %v2373 = vld [vmem:[#allocation22 + $0xb4] sm:$0xf]
        %v2374 = vld [vmem:[#allocation22 + $0xb8] sm:$0xf]
        %v2375 = vld [vmem:[#allocation22 + $0xbc] sm:$0xf]
        %v2376 = vld [vmem:[#allocation22 + $0xc0] sm:$0xf]
        %v2377 = vld [vmem:[#allocation22 + $0xc4] sm:$0xf]
        %v2378 = vld [vmem:[#allocation22 + $0xc8] sm:$0xf]
        %v2379 = vld [vmem:[#allocation22 + $0xcc] sm:$0xf]
        %v2380 = vld [vmem:[#allocation22 + $0xd0] sm:$0xf]
        %v2381 = vld [vmem:[#allocation22 + $0xd4] sm:$0xf]
        %v2382 = vld [vmem:[#allocation22 + $0xd8] sm:$0xf]
        %v2383 = vld [vmem:[#allocation22 + $0xdc] sm:$0xf]
        %v2384 = vld [vmem:[#allocation22 + $0xe0] sm:$0xf]
        %v2385 = vld [vmem:[#allocation22 + $0xe4] sm:$0xf]
        %v2386 = vld [vmem:[#allocation22 + $0xe8] sm:$0xf]
        %v2387 = vld [vmem:[#allocation22 + $0xec] sm:$0xf]
        %v2388 = vld [vmem:[#allocation22 + $0xf0] sm:$0xf]
        %v2389 = vld [vmem:[#allocation22 + $0xf4] sm:$0xf]
        %v2390 = vld [vmem:[#allocation22 + $0xf8] sm:$0xf]
        %v2391 = vld [vmem:[#allocation22 + $0xfc] sm:$0xf]
        %v2392 = vld [vmem:[#allocation22 + $0x100] sm:$0xf]
        %v2393 = vld [vmem:[#allocation22 + $0x104] sm:$0xf]
        %v2394 = vld [vmem:[#allocation22 + $0x108] sm:$0xf]
        %v2395 = vld [vmem:[#allocation22 + $0x10c] sm:$0xf]
        %v2396 = vld [vmem:[#allocation22 + $0x110] sm:$0xf]
        %v2397 = vld [vmem:[#allocation22 + $0x114] sm:$0xf]
        %v2398 = vld [vmem:[#allocation22 + $0x118] sm:$0xf]
        %v2399 = vld [vmem:[#allocation22 + $0x11c] sm:$0xf]
        %v2400 = vld [vmem:[#allocation22 + $0x120] sm:$0xf]
        %v2401 = vld [vmem:[#allocation22 + $0x124] sm:$0xf]
        %v2402 = vld [vmem:[#allocation22 + $0x128] sm:$0xf]
        %v2403 = vld [vmem:[#allocation22 + $0x12c] sm:$0xf]
        %v2404 = vld [vmem:[#allocation22 + $0x130] sm:$0xf]
        %v2405 = vld [vmem:[#allocation22 + $0x134] sm:$0xf]
        %v2406 = vld [vmem:[#allocation22 + $0x138] sm:$0xf]
        %v2407 = vld [vmem:[#allocation22 + $0x13c] sm:$0xf]
        %v2408 = vld [vmem:[#allocation22 + $0x140] sm:$0xf]
        %v2409 = vld [vmem:[#allocation22 + $0x144] sm:$0xf]
        %v2410 = vld [vmem:[#allocation22 + $0x148] sm:$0xf]
        %v2411 = vld [vmem:[#allocation22 + $0x14c] sm:$0xf]
        %v2412 = vld [vmem:[#allocation22 + $0x150] sm:$0xf]
        %v2413 = vld [vmem:[#allocation22 + $0x154] sm:$0xf]
        %v2414 = vld [vmem:[#allocation22 + $0x158] sm:$0xf]
        %v2415 = vld [vmem:[#allocation22 + $0x15c] sm:$0xf]
        %v2416 = vld [vmem:[#allocation22 + $0x160] sm:$0xf]
        %v2417 = vld [vmem:[#allocation22 + $0x164] sm:$0xf]
        %v2418 = vld [vmem:[#allocation22 + $0x168] sm:$0xf]
        %v2419 = vld [vmem:[#allocation22 + $0x16c] sm:$0xf]
        %v2420 = vld [vmem:[#allocation22 + $0x170] sm:$0xf]
        %v2421 = vld [vmem:[#allocation22 + $0x174] sm:$0xf]
        %v2422 = vld [vmem:[#allocation22 + $0x178] sm:$0xf]
        %v2423 = vld [vmem:[#allocation22 + $0x17c] sm:$0xf]
        %v2424 = vld [vmem:[#allocation22 + $0x180] sm:$0xf]
        %v2425 = vld [vmem:[#allocation22 + $0x184] sm:$0xf]
        %v2426 = vld [vmem:[#allocation22 + $0x188] sm:$0xf]
        %v2427 = vld [vmem:[#allocation22 + $0x18c] sm:$0xf]
        %v2428 = vld [vmem:[#allocation22 + $0x190] sm:$0xf]
        %v2429 = vld [vmem:[#allocation22 + $0x194] sm:$0xf]
        %v2430 = vld [vmem:[#allocation22 + $0x198] sm:$0xf]
        %v2431 = vld [vmem:[#allocation22 + $0x19c] sm:$0xf]
        %v2432 = vld [vmem:[#allocation22 + $0x1a0] sm:$0xf]
        %v2433 = vld [vmem:[#allocation22 + $0x1a4] sm:$0xf]
        %v2434 = vld [vmem:[#allocation22 + $0x1a8] sm:$0xf]
        %v2435 = vld [vmem:[#allocation22 + $0x1ac] sm:$0xf]
        %v2436 = vld [vmem:[#allocation22 + $0x1b0] sm:$0xf]
        %v2437 = vld [vmem:[#allocation22 + $0x1b4] sm:$0xf]
        %v2438 = vld [vmem:[#allocation22 + $0x1b8] sm:$0xf]
        %v2439 = vld [vmem:[#allocation22 + $0x1bc] sm:$0xf]
        %v2440 = vld [vmem:[#allocation22 + $0x1c0] sm:$0xf]
        %v2441 = vld [vmem:[#allocation22 + $0x1c4] sm:$0xf]
        %v2442 = vld [vmem:[#allocation22 + $0x1c8] sm:$0xf]
        %v2443 = vld [vmem:[#allocation22 + $0x1cc] sm:$0xf]
        %v2444 = vld [vmem:[#allocation22 + $0x1d0] sm:$0xf]
        %v2445 = vld [vmem:[#allocation22 + $0x1d4] sm:$0xf]
        %v2446 = vld [vmem:[#allocation22 + $0x1d8] sm:$0xf]
        %v2447 = vld [vmem:[#allocation22 + $0x1dc] sm:$0xf]
        %v2448 = vld [vmem:[#allocation22 + $0x1e0] sm:$0xf]
        %v2449 = vld [vmem:[#allocation22 + $0x1e4] sm:$0xf]
        %v2450 = vld [vmem:[#allocation22 + $0x1e8] sm:$0xf]
        %v2451 = vld [vmem:[#allocation22 + $0x1ec] sm:$0xf]
        %v2452 = vld [vmem:[#allocation22 + $0x1f0] sm:$0xf]
        %v2453 = vld [vmem:[#allocation22 + $0x1f4] sm:$0xf]
        %v2454 = vld [vmem:[#allocation22 + $0x1f8] sm:$0xf]
        %v2455 = vld [vmem:[#allocation22 + $0x1fc] sm:$0xf]
        %v2456 = vld [vmem:[#allocation23] sm:$0xff]
        %v2457 = vld [vmem:[#allocation23 + $0x8] sm:$0xff]
        %v2458 = vld [vmem:[#allocation23 + $0x10] sm:$0xff]
        %v2459 = vld [vmem:[#allocation23 + $0x18] sm:$0xff]
        %v2460 = vld [vmem:[#allocation23 + $0x20] sm:$0xff]
        %v2461 = vld [vmem:[#allocation23 + $0x28] sm:$0xff]
        %v2462 = vld [vmem:[#allocation23 + $0x30] sm:$0xff]
        %v2463 = vld [vmem:[#allocation23 + $0x38] sm:$0xff]
        %v2464 = vld [vmem:[#allocation23 + $0x40] sm:$0xff]
        %v2465 = vld [vmem:[#allocation23 + $0x48] sm:$0xff]
        %v2466 = vld [vmem:[#allocation23 + $0x50] sm:$0xff]
        %v2467 = vld [vmem:[#allocation23 + $0x58] sm:$0xff]
        %v2468 = vld [vmem:[#allocation23 + $0x60] sm:$0xff]
        %v2469 = vld [vmem:[#allocation23 + $0x68] sm:$0xff]
        %v2470 = vld [vmem:[#allocation23 + $0x70] sm:$0xff]
        %v2471 = vld [vmem:[#allocation23 + $0x78] sm:$0xff]
        %v2472 = vld [vmem:[#allocation23 + $0x80] sm:$0xff]
        %v2473 = vld [vmem:[#allocation23 + $0x88] sm:$0xff]
        %v2474 = vld [vmem:[#allocation23 + $0x90] sm:$0xff]
        %v2475 = vld [vmem:[#allocation23 + $0x98] sm:$0xff]
        %v2476 = vld [vmem:[#allocation23 + $0xa0] sm:$0xff]
        %v2477 = vld [vmem:[#allocation23 + $0xa8] sm:$0xff]
        %v2478 = vld [vmem:[#allocation23 + $0xb0] sm:$0xff]
        %v2479 = vld [vmem:[#allocation23 + $0xb8] sm:$0xff]
        %v2480 = vld [vmem:[#allocation23 + $0xc0] sm:$0xff]
        %v2481 = vld [vmem:[#allocation23 + $0xc8] sm:$0xff]
        %v2482 = vld [vmem:[#allocation23 + $0xd0] sm:$0xff]
        %v2483 = vld [vmem:[#allocation23 + $0xd8] sm:$0xff]
        %v2484 = vld [vmem:[#allocation23 + $0xe0] sm:$0xff]
        %v2485 = vld [vmem:[#allocation23 + $0xe8] sm:$0xff]
        %v2486 = vld [vmem:[#allocation23 + $0xf0] sm:$0xff]
        %v2487 = vld [vmem:[#allocation23 + $0xf8] sm:$0xff]
        %v2488 = vld [vmem:[#allocation23 + $0x100] sm:$0xff]
        %v2489 = vld [vmem:[#allocation23 + $0x108] sm:$0xff]
        %v2490 = vld [vmem:[#allocation23 + $0x110] sm:$0xff]
        %v2491 = vld [vmem:[#allocation23 + $0x118] sm:$0xff]
        %v2492 = vld [vmem:[#allocation23 + $0x120] sm:$0xff]
        %v2493 = vld [vmem:[#allocation23 + $0x128] sm:$0xff]
        %v2494 = vld [vmem:[#allocation23 + $0x130] sm:$0xff]
        %v2495 = vld [vmem:[#allocation23 + $0x138] sm:$0xff]
        %v2496 = vld [vmem:[#allocation23 + $0x140] sm:$0xff]
        %v2497 = vld [vmem:[#allocation23 + $0x148] sm:$0xff]
        %v2498 = vld [vmem:[#allocation23 + $0x150] sm:$0xff]
        %v2499 = vld [vmem:[#allocation23 + $0x158] sm:$0xff]
        %v2500 = vld [vmem:[#allocation23 + $0x160] sm:$0xff]
        %v2501 = vld [vmem:[#allocation23 + $0x168] sm:$0xff]
        %v2502 = vld [vmem:[#allocation23 + $0x170] sm:$0xff]
        %v2503 = vld [vmem:[#allocation23 + $0x178] sm:$0xff]
        %v2504 = vld [vmem:[#allocation23 + $0x180] sm:$0xff]
        %v2505 = vld [vmem:[#allocation23 + $0x188] sm:$0xff]
        %v2506 = vld [vmem:[#allocation23 + $0x190] sm:$0xff]
        %v2507 = vld [vmem:[#allocation23 + $0x198] sm:$0xff]
        %v2508 = vld [vmem:[#allocation23 + $0x1a0] sm:$0xff]
        %v2509 = vld [vmem:[#allocation23 + $0x1a8] sm:$0xff]
        %v2510 = vld [vmem:[#allocation23 + $0x1b0] sm:$0xff]
        %v2511 = vld [vmem:[#allocation23 + $0x1b8] sm:$0xff]
        %v2512 = vld [vmem:[#allocation23 + $0x1c0] sm:$0xff]
        %v2513 = vld [vmem:[#allocation23 + $0x1c8] sm:$0xff]
        %v2514 = vld [vmem:[#allocation23 + $0x1d0] sm:$0xff]
        %v2515 = vld [vmem:[#allocation23 + $0x1d8] sm:$0xff]
        %v2516 = vld [vmem:[#allocation23 + $0x1e0] sm:$0xff]
        %v2517 = vld [vmem:[#allocation23 + $0x1e8] sm:$0xff]
        %v2518 = vld [vmem:[#allocation23 + $0x1f0] sm:$0xff]
        %v2519 = vld [vmem:[#allocation23 + $0x1f8] sm:$0xff]
        %v2520 = vld [vmem:[#allocation23 + $0x200] sm:$0xff]
        %v2521 = vld [vmem:[#allocation23 + $0x208] sm:$0xff]
        %v2522 = vld [vmem:[#allocation23 + $0x210] sm:$0xff]
        %v2523 = vld [vmem:[#allocation23 + $0x218] sm:$0xff]
        %v2524 = vld [vmem:[#allocation23 + $0x220] sm:$0xff]
        %v2525 = vld [vmem:[#allocation23 + $0x228] sm:$0xff]
        %v2526 = vld [vmem:[#allocation23 + $0x230] sm:$0xff]
        %v2527 = vld [vmem:[#allocation23 + $0x238] sm:$0xff]
        %v2528 = vld [vmem:[#allocation23 + $0x240] sm:$0xff]
        %v2529 = vld [vmem:[#allocation23 + $0x248] sm:$0xff]
        %v2530 = vld [vmem:[#allocation23 + $0x250] sm:$0xff]
        %v2531 = vld [vmem:[#allocation23 + $0x258] sm:$0xff]
        %v2532 = vld [vmem:[#allocation23 + $0x260] sm:$0xff]
        %v2533 = vld [vmem:[#allocation23 + $0x268] sm:$0xff]
        %v2534 = vld [vmem:[#allocation23 + $0x270] sm:$0xff]
        %v2535 = vld [vmem:[#allocation23 + $0x278] sm:$0xff]
        %v2536 = vld [vmem:[#allocation23 + $0x280] sm:$0xff]
        %v2537 = vld [vmem:[#allocation23 + $0x288] sm:$0xff]
        %v2538 = vld [vmem:[#allocation23 + $0x290] sm:$0xff]
        %v2539 = vld [vmem:[#allocation23 + $0x298] sm:$0xff]
        %v2540 = vld [vmem:[#allocation23 + $0x2a0] sm:$0xff]
        %v2541 = vld [vmem:[#allocation23 + $0x2a8] sm:$0xff]
        %v2542 = vld [vmem:[#allocation23 + $0x2b0] sm:$0xff]
        %v2543 = vld [vmem:[#allocation23 + $0x2b8] sm:$0xff]
        %v2544 = vld [vmem:[#allocation23 + $0x2c0] sm:$0xff]
        %v2545 = vld [vmem:[#allocation23 + $0x2c8] sm:$0xff]
        %v2546 = vld [vmem:[#allocation23 + $0x2d0] sm:$0xff]
        %v2547 = vld [vmem:[#allocation23 + $0x2d8] sm:$0xff]
        %v2548 = vld [vmem:[#allocation23 + $0x2e0] sm:$0xff]
        %v2549 = vld [vmem:[#allocation23 + $0x2e8] sm:$0xff]
        %v2550 = vld [vmem:[#allocation23 + $0x2f0] sm:$0xff]
        %v2551 = vld [vmem:[#allocation23 + $0x2f8] sm:$0xff]
        %v2552 = vld [vmem:[#allocation23 + $0x300] sm:$0xff]
        %v2553 = vld [vmem:[#allocation23 + $0x308] sm:$0xff]
        %v2554 = vld [vmem:[#allocation23 + $0x310] sm:$0xff]
        %v2555 = vld [vmem:[#allocation23 + $0x318] sm:$0xff]
        %v2556 = vld [vmem:[#allocation23 + $0x320] sm:$0xff]
        %v2557 = vld [vmem:[#allocation23 + $0x328] sm:$0xff]
        %v2558 = vld [vmem:[#allocation23 + $0x330] sm:$0xff]
        %v2559 = vld [vmem:[#allocation23 + $0x338] sm:$0xff]
        %v2560 = vld [vmem:[#allocation23 + $0x340] sm:$0xff]
        %v2561 = vld [vmem:[#allocation23 + $0x348] sm:$0xff]
        %v2562 = vld [vmem:[#allocation23 + $0x350] sm:$0xff]
        %v2563 = vld [vmem:[#allocation23 + $0x358] sm:$0xff]
        %v2564 = vld [vmem:[#allocation23 + $0x360] sm:$0xff]
        %v2565 = vld [vmem:[#allocation23 + $0x368] sm:$0xff]
        %v2566 = vld [vmem:[#allocation23 + $0x370] sm:$0xff]
        %v2567 = vld [vmem:[#allocation23 + $0x378] sm:$0xff]
        %v2568 = vld [vmem:[#allocation23 + $0x380] sm:$0xff]
        %v2569 = vld [vmem:[#allocation23 + $0x388] sm:$0xff]
        %v2570 = vld [vmem:[#allocation23 + $0x390] sm:$0xff]
        %v2571 = vld [vmem:[#allocation23 + $0x398] sm:$0xff]
        %v2572 = vld [vmem:[#allocation23 + $0x3a0] sm:$0xff]
        %v2573 = vld [vmem:[#allocation23 + $0x3a8] sm:$0xff]
        %v2574 = vld [vmem:[#allocation23 + $0x3b0] sm:$0xff]
        %v2575 = vld [vmem:[#allocation23 + $0x3b8] sm:$0xff]
        %v2576 = vld [vmem:[#allocation23 + $0x3c0] sm:$0xff]
        %v2577 = vld [vmem:[#allocation23 + $0x3c8] sm:$0xff]
        %v2578 = vld [vmem:[#allocation23 + $0x3d0] sm:$0xff]
        %v2579 = vld [vmem:[#allocation23 + $0x3d8] sm:$0xff]
        %v2580 = vld [vmem:[#allocation23 + $0x3e0] sm:$0xff]
        %v2581 = vld [vmem:[#allocation23 + $0x3e8] sm:$0xff]
        %v2582 = vld [vmem:[#allocation23 + $0x3f0] sm:$0xff]
        %v2583 = vld [vmem:[#allocation23 + $0x3f8] sm:$0xff]
        %2585 = vset.pattern.permute.xlu0 0
        %2586 = vperm.xlu0 %2585, %v2456
        %v2587 = vpop.permute.xlu0 %2586
        %2590 = vset.pattern.permute.xlu0 0
        %2591 = vperm.xlu0 %2590, %v2457
        %v2592 = vpop.permute.xlu0 %2591
        %2595 = vset.pattern.permute.xlu0 0
        %2596 = vperm.xlu0 %2595, %v2458
        %v2597 = vpop.permute.xlu0 %2596
        %2600 = vset.pattern.permute.xlu0 0
        %2601 = vperm.xlu0 %2600, %v2459
        %v2602 = vpop.permute.xlu0 %2601
        %2605 = vset.pattern.permute.xlu0 0
        %2606 = vperm.xlu0 %2605, %v2460
        %v2607 = vpop.permute.xlu0 %2606
        %2610 = vset.pattern.permute.xlu0 0
        %2611 = vperm.xlu0 %2610, %v2461
        %v2612 = vpop.permute.xlu0 %2611
        %2615 = vset.pattern.permute.xlu0 0
        %2616 = vperm.xlu0 %2615, %v2462
        %v2617 = vpop.permute.xlu0 %2616
        %2620 = vset.pattern.permute.xlu0 0
        %2621 = vperm.xlu0 %2620, %v2463
        %v2622 = vpop.permute.xlu0 %2621
        %2625 = vset.pattern.permute.xlu0 0
        %2626 = vperm.xlu0 %2625, %v2464
        %v2627 = vpop.permute.xlu0 %2626
        %2630 = vset.pattern.permute.xlu0 0
        %2631 = vperm.xlu0 %2630, %v2465
        %v2632 = vpop.permute.xlu0 %2631
        %2635 = vset.pattern.permute.xlu0 0
        %2636 = vperm.xlu0 %2635, %v2466
        %v2637 = vpop.permute.xlu0 %2636
        %2640 = vset.pattern.permute.xlu0 0
        %2641 = vperm.xlu0 %2640, %v2467
        %v2642 = vpop.permute.xlu0 %2641
        %2645 = vset.pattern.permute.xlu0 0
        %2646 = vperm.xlu0 %2645, %v2468
        %v2647 = vpop.permute.xlu0 %2646
        %2650 = vset.pattern.permute.xlu0 0
        %2651 = vperm.xlu0 %2650, %v2469
        %v2652 = vpop.permute.xlu0 %2651
        %2655 = vset.pattern.permute.xlu0 0
        %2656 = vperm.xlu0 %2655, %v2470
        %v2657 = vpop.permute.xlu0 %2656
        %2660 = vset.pattern.permute.xlu0 0
        %2661 = vperm.xlu0 %2660, %v2471
        %v2662 = vpop.permute.xlu0 %2661
        %2665 = vset.pattern.permute.xlu0 0
        %2666 = vperm.xlu0 %2665, %v2472
        %v2667 = vpop.permute.xlu0 %2666
        %2670 = vset.pattern.permute.xlu0 0
        %2671 = vperm.xlu0 %2670, %v2473
        %v2672 = vpop.permute.xlu0 %2671
        %2675 = vset.pattern.permute.xlu0 0
        %2676 = vperm.xlu0 %2675, %v2474
        %v2677 = vpop.permute.xlu0 %2676
        %2680 = vset.pattern.permute.xlu0 0
        %2681 = vperm.xlu0 %2680, %v2475
        %v2682 = vpop.permute.xlu0 %2681
        %2685 = vset.pattern.permute.xlu0 0
        %2686 = vperm.xlu0 %2685, %v2476
        %v2687 = vpop.permute.xlu0 %2686
        %2690 = vset.pattern.permute.xlu0 0
        %2691 = vperm.xlu0 %2690, %v2477
        %v2692 = vpop.permute.xlu0 %2691
        %2695 = vset.pattern.permute.xlu0 0
        %2696 = vperm.xlu0 %2695, %v2478
        %v2697 = vpop.permute.xlu0 %2696
        %2700 = vset.pattern.permute.xlu0 0
        %2701 = vperm.xlu0 %2700, %v2479
        %v2702 = vpop.permute.xlu0 %2701
        %2705 = vset.pattern.permute.xlu0 0
        %2706 = vperm.xlu0 %2705, %v2480
        %v2707 = vpop.permute.xlu0 %2706
        %2710 = vset.pattern.permute.xlu0 0
        %2711 = vperm.xlu0 %2710, %v2481
        %v2712 = vpop.permute.xlu0 %2711
        %2715 = vset.pattern.permute.xlu0 0
        %2716 = vperm.xlu0 %2715, %v2482
        %v2717 = vpop.permute.xlu0 %2716
        %2720 = vset.pattern.permute.xlu0 0
        %2721 = vperm.xlu0 %2720, %v2483
        %v2722 = vpop.permute.xlu0 %2721
        %2725 = vset.pattern.permute.xlu0 0
        %2726 = vperm.xlu0 %2725, %v2484
        %v2727 = vpop.permute.xlu0 %2726
        %2730 = vset.pattern.permute.xlu0 0
        %2731 = vperm.xlu0 %2730, %v2485
        %v2732 = vpop.permute.xlu0 %2731
        %2735 = vset.pattern.permute.xlu0 0
        %2736 = vperm.xlu0 %2735, %v2486
        %v2737 = vpop.permute.xlu0 %2736
        %2740 = vset.pattern.permute.xlu0 0
        %2741 = vperm.xlu0 %2740, %v2487
        %v2742 = vpop.permute.xlu0 %2741
        %2745 = vset.pattern.permute.xlu0 0
        %2746 = vperm.xlu0 %2745, %v2488
        %v2747 = vpop.permute.xlu0 %2746
        %2750 = vset.pattern.permute.xlu0 0
        %2751 = vperm.xlu0 %2750, %v2489
        %v2752 = vpop.permute.xlu0 %2751
        %2755 = vset.pattern.permute.xlu0 0
        %2756 = vperm.xlu0 %2755, %v2490
        %v2757 = vpop.permute.xlu0 %2756
        %2760 = vset.pattern.permute.xlu0 0
        %2761 = vperm.xlu0 %2760, %v2491
        %v2762 = vpop.permute.xlu0 %2761
        %2765 = vset.pattern.permute.xlu0 0
        %2766 = vperm.xlu0 %2765, %v2492
        %v2767 = vpop.permute.xlu0 %2766
        %2770 = vset.pattern.permute.xlu0 0
        %2771 = vperm.xlu0 %2770, %v2493
        %v2772 = vpop.permute.xlu0 %2771
        %2775 = vset.pattern.permute.xlu0 0
        %2776 = vperm.xlu0 %2775, %v2494
        %v2777 = vpop.permute.xlu0 %2776
        %2780 = vset.pattern.permute.xlu0 0
        %2781 = vperm.xlu0 %2780, %v2495
        %v2782 = vpop.permute.xlu0 %2781
        %2785 = vset.pattern.permute.xlu0 0
        %2786 = vperm.xlu0 %2785, %v2496
        %v2787 = vpop.permute.xlu0 %2786
        %2790 = vset.pattern.permute.xlu0 0
        %2791 = vperm.xlu0 %2790, %v2497
        %v2792 = vpop.permute.xlu0 %2791
        %2795 = vset.pattern.permute.xlu0 0
        %2796 = vperm.xlu0 %2795, %v2498
        %v2797 = vpop.permute.xlu0 %2796
        %2800 = vset.pattern.permute.xlu0 0
        %2801 = vperm.xlu0 %2800, %v2499
        %v2802 = vpop.permute.xlu0 %2801
        %2805 = vset.pattern.permute.xlu0 0
        %2806 = vperm.xlu0 %2805, %v2500
        %v2807 = vpop.permute.xlu0 %2806
        %2810 = vset.pattern.permute.xlu0 0
        %2811 = vperm.xlu0 %2810, %v2501
        %v2812 = vpop.permute.xlu0 %2811
        %2815 = vset.pattern.permute.xlu0 0
        %2816 = vperm.xlu0 %2815, %v2502
        %v2817 = vpop.permute.xlu0 %2816
        %2820 = vset.pattern.permute.xlu0 0
        %2821 = vperm.xlu0 %2820, %v2503
        %v2822 = vpop.permute.xlu0 %2821
        %2825 = vset.pattern.permute.xlu0 0
        %2826 = vperm.xlu0 %2825, %v2504
        %v2827 = vpop.permute.xlu0 %2826
        %2830 = vset.pattern.permute.xlu0 0
        %2831 = vperm.xlu0 %2830, %v2505
        %v2832 = vpop.permute.xlu0 %2831
        %2835 = vset.pattern.permute.xlu0 0
        %2836 = vperm.xlu0 %2835, %v2506
        %v2837 = vpop.permute.xlu0 %2836
        %2840 = vset.pattern.permute.xlu0 0
        %2841 = vperm.xlu0 %2840, %v2507
        %v2842 = vpop.permute.xlu0 %2841
        %2845 = vset.pattern.permute.xlu0 0
        %2846 = vperm.xlu0 %2845, %v2508
        %v2847 = vpop.permute.xlu0 %2846
        %2850 = vset.pattern.permute.xlu0 0
        %2851 = vperm.xlu0 %2850, %v2509
        %v2852 = vpop.permute.xlu0 %2851
        %2855 = vset.pattern.permute.xlu0 0
        %2856 = vperm.xlu0 %2855, %v2510
        %v2857 = vpop.permute.xlu0 %2856
        %2860 = vset.pattern.permute.xlu0 0
        %2861 = vperm.xlu0 %2860, %v2511
        %v2862 = vpop.permute.xlu0 %2861
        %2865 = vset.pattern.permute.xlu0 0
        %2866 = vperm.xlu0 %2865, %v2512
        %v2867 = vpop.permute.xlu0 %2866
        %2870 = vset.pattern.permute.xlu0 0
        %2871 = vperm.xlu0 %2870, %v2513
        %v2872 = vpop.permute.xlu0 %2871
        %2875 = vset.pattern.permute.xlu0 0
        %2876 = vperm.xlu0 %2875, %v2514
        %v2877 = vpop.permute.xlu0 %2876
        %2880 = vset.pattern.permute.xlu0 0
        %2881 = vperm.xlu0 %2880, %v2515
        %v2882 = vpop.permute.xlu0 %2881
        %2885 = vset.pattern.permute.xlu0 0
        %2886 = vperm.xlu0 %2885, %v2516
        %v2887 = vpop.permute.xlu0 %2886
        %2890 = vset.pattern.permute.xlu0 0
        %2891 = vperm.xlu0 %2890, %v2517
        %v2892 = vpop.permute.xlu0 %2891
        %2895 = vset.pattern.permute.xlu0 0
        %2896 = vperm.xlu0 %2895, %v2518
        %v2897 = vpop.permute.xlu0 %2896
        %2900 = vset.pattern.permute.xlu0 0
        %2901 = vperm.xlu0 %2900, %v2519
        %v2902 = vpop.permute.xlu0 %2901
        %2905 = vset.pattern.permute.xlu0 0
        %2906 = vperm.xlu0 %2905, %v2520
        %v2907 = vpop.permute.xlu0 %2906
        %2910 = vset.pattern.permute.xlu0 0
        %2911 = vperm.xlu0 %2910, %v2521
        %v2912 = vpop.permute.xlu0 %2911
        %2915 = vset.pattern.permute.xlu0 0
        %2916 = vperm.xlu0 %2915, %v2522
        %v2917 = vpop.permute.xlu0 %2916
        %2920 = vset.pattern.permute.xlu0 0
        %2921 = vperm.xlu0 %2920, %v2523
        %v2922 = vpop.permute.xlu0 %2921
        %2925 = vset.pattern.permute.xlu0 0
        %2926 = vperm.xlu0 %2925, %v2524
        %v2927 = vpop.permute.xlu0 %2926
        %2930 = vset.pattern.permute.xlu0 0
        %2931 = vperm.xlu0 %2930, %v2525
        %v2932 = vpop.permute.xlu0 %2931
        %2935 = vset.pattern.permute.xlu0 0
        %2936 = vperm.xlu0 %2935, %v2526
        %v2937 = vpop.permute.xlu0 %2936
        %2940 = vset.pattern.permute.xlu0 0
        %2941 = vperm.xlu0 %2940, %v2527
        %v2942 = vpop.permute.xlu0 %2941
        %2945 = vset.pattern.permute.xlu0 0
        %2946 = vperm.xlu0 %2945, %v2528
        %v2947 = vpop.permute.xlu0 %2946
        %2950 = vset.pattern.permute.xlu0 0
        %2951 = vperm.xlu0 %2950, %v2529
        %v2952 = vpop.permute.xlu0 %2951
        %2955 = vset.pattern.permute.xlu0 0
        %2956 = vperm.xlu0 %2955, %v2530
        %v2957 = vpop.permute.xlu0 %2956
        %2960 = vset.pattern.permute.xlu0 0
        %2961 = vperm.xlu0 %2960, %v2531
        %v2962 = vpop.permute.xlu0 %2961
        %2965 = vset.pattern.permute.xlu0 0
        %2966 = vperm.xlu0 %2965, %v2532
        %v2967 = vpop.permute.xlu0 %2966
        %2970 = vset.pattern.permute.xlu0 0
        %2971 = vperm.xlu0 %2970, %v2533
        %v2972 = vpop.permute.xlu0 %2971
        %2975 = vset.pattern.permute.xlu0 0
        %2976 = vperm.xlu0 %2975, %v2534
        %v2977 = vpop.permute.xlu0 %2976
        %2980 = vset.pattern.permute.xlu0 0
        %2981 = vperm.xlu0 %2980, %v2535
        %v2982 = vpop.permute.xlu0 %2981
        %2985 = vset.pattern.permute.xlu0 0
        %2986 = vperm.xlu0 %2985, %v2536
        %v2987 = vpop.permute.xlu0 %2986
        %2990 = vset.pattern.permute.xlu0 0
        %2991 = vperm.xlu0 %2990, %v2537
        %v2992 = vpop.permute.xlu0 %2991
        %2995 = vset.pattern.permute.xlu0 0
        %2996 = vperm.xlu0 %2995, %v2538
        %v2997 = vpop.permute.xlu0 %2996
        %3000 = vset.pattern.permute.xlu0 0
        %3001 = vperm.xlu0 %3000, %v2539
        %v3002 = vpop.permute.xlu0 %3001
        %3005 = vset.pattern.permute.xlu0 0
        %3006 = vperm.xlu0 %3005, %v2540
        %v3007 = vpop.permute.xlu0 %3006
        %3010 = vset.pattern.permute.xlu0 0
        %3011 = vperm.xlu0 %3010, %v2541
        %v3012 = vpop.permute.xlu0 %3011
        %3015 = vset.pattern.permute.xlu0 0
        %3016 = vperm.xlu0 %3015, %v2542
        %v3017 = vpop.permute.xlu0 %3016
        %3020 = vset.pattern.permute.xlu0 0
        %3021 = vperm.xlu0 %3020, %v2543
        %v3022 = vpop.permute.xlu0 %3021
        %3025 = vset.pattern.permute.xlu0 0
        %3026 = vperm.xlu0 %3025, %v2544
        %v3027 = vpop.permute.xlu0 %3026
        %3030 = vset.pattern.permute.xlu0 0
        %3031 = vperm.xlu0 %3030, %v2545
        %v3032 = vpop.permute.xlu0 %3031
        %3035 = vset.pattern.permute.xlu0 0
        %3036 = vperm.xlu0 %3035, %v2546
        %v3037 = vpop.permute.xlu0 %3036
        %3040 = vset.pattern.permute.xlu0 0
        %3041 = vperm.xlu0 %3040, %v2547
        %v3042 = vpop.permute.xlu0 %3041
        %3045 = vset.pattern.permute.xlu0 0
        %3046 = vperm.xlu0 %3045, %v2548
        %v3047 = vpop.permute.xlu0 %3046
        %3050 = vset.pattern.permute.xlu0 0
        %3051 = vperm.xlu0 %3050, %v2549
        %v3052 = vpop.permute.xlu0 %3051
        %3055 = vset.pattern.permute.xlu0 0
        %3056 = vperm.xlu0 %3055, %v2550
        %v3057 = vpop.permute.xlu0 %3056
        %3060 = vset.pattern.permute.xlu0 0
        %3061 = vperm.xlu0 %3060, %v2551
        %v3062 = vpop.permute.xlu0 %3061
        %3065 = vset.pattern.permute.xlu0 0
        %3066 = vperm.xlu0 %3065, %v2552
        %v3067 = vpop.permute.xlu0 %3066
        %3070 = vset.pattern.permute.xlu0 0
        %3071 = vperm.xlu0 %3070, %v2553
        %v3072 = vpop.permute.xlu0 %3071
        %3075 = vset.pattern.permute.xlu0 0
        %3076 = vperm.xlu0 %3075, %v2554
        %v3077 = vpop.permute.xlu0 %3076
        %3080 = vset.pattern.permute.xlu0 0
        %3081 = vperm.xlu0 %3080, %v2555
        %v3082 = vpop.permute.xlu0 %3081
        %3085 = vset.pattern.permute.xlu0 0
        %3086 = vperm.xlu0 %3085, %v2556
        %v3087 = vpop.permute.xlu0 %3086
        %3090 = vset.pattern.permute.xlu0 0
        %3091 = vperm.xlu0 %3090, %v2557
        %v3092 = vpop.permute.xlu0 %3091
        %3095 = vset.pattern.permute.xlu0 0
        %3096 = vperm.xlu0 %3095, %v2558
        %v3097 = vpop.permute.xlu0 %3096
        %3100 = vset.pattern.permute.xlu0 0
        %3101 = vperm.xlu0 %3100, %v2559
        %v3102 = vpop.permute.xlu0 %3101
        %3105 = vset.pattern.permute.xlu0 0
        %3106 = vperm.xlu0 %3105, %v2560
        %v3107 = vpop.permute.xlu0 %3106
        %3110 = vset.pattern.permute.xlu0 0
        %3111 = vperm.xlu0 %3110, %v2561
        %v3112 = vpop.permute.xlu0 %3111
        %3115 = vset.pattern.permute.xlu0 0
        %3116 = vperm.xlu0 %3115, %v2562
        %v3117 = vpop.permute.xlu0 %3116
        %3120 = vset.pattern.permute.xlu0 0
        %3121 = vperm.xlu0 %3120, %v2563
        %v3122 = vpop.permute.xlu0 %3121
        %3125 = vset.pattern.permute.xlu0 0
        %3126 = vperm.xlu0 %3125, %v2564
        %v3127 = vpop.permute.xlu0 %3126
        %3130 = vset.pattern.permute.xlu0 0
        %3131 = vperm.xlu0 %3130, %v2565
        %v3132 = vpop.permute.xlu0 %3131
        %3135 = vset.pattern.permute.xlu0 0
        %3136 = vperm.xlu0 %3135, %v2566
        %v3137 = vpop.permute.xlu0 %3136
        %3140 = vset.pattern.permute.xlu0 0
        %3141 = vperm.xlu0 %3140, %v2567
        %v3142 = vpop.permute.xlu0 %3141
        %3145 = vset.pattern.permute.xlu0 0
        %3146 = vperm.xlu0 %3145, %v2568
        %v3147 = vpop.permute.xlu0 %3146
        %3150 = vset.pattern.permute.xlu0 0
        %3151 = vperm.xlu0 %3150, %v2569
        %v3152 = vpop.permute.xlu0 %3151
        %3155 = vset.pattern.permute.xlu0 0
        %3156 = vperm.xlu0 %3155, %v2570
        %v3157 = vpop.permute.xlu0 %3156
        %3160 = vset.pattern.permute.xlu0 0
        %3161 = vperm.xlu0 %3160, %v2571
        %v3162 = vpop.permute.xlu0 %3161
        %3165 = vset.pattern.permute.xlu0 0
        %3166 = vperm.xlu0 %3165, %v2572
        %v3167 = vpop.permute.xlu0 %3166
        %3170 = vset.pattern.permute.xlu0 0
        %3171 = vperm.xlu0 %3170, %v2573
        %v3172 = vpop.permute.xlu0 %3171
        %3175 = vset.pattern.permute.xlu0 0
        %3176 = vperm.xlu0 %3175, %v2574
        %v3177 = vpop.permute.xlu0 %3176
        %3180 = vset.pattern.permute.xlu0 0
        %3181 = vperm.xlu0 %3180, %v2575
        %v3182 = vpop.permute.xlu0 %3181
        %3185 = vset.pattern.permute.xlu0 0
        %3186 = vperm.xlu0 %3185, %v2576
        %v3187 = vpop.permute.xlu0 %3186
        %3190 = vset.pattern.permute.xlu0 0
        %3191 = vperm.xlu0 %3190, %v2577
        %v3192 = vpop.permute.xlu0 %3191
        %3195 = vset.pattern.permute.xlu0 0
        %3196 = vperm.xlu0 %3195, %v2578
        %v3197 = vpop.permute.xlu0 %3196
        %3200 = vset.pattern.permute.xlu0 0
        %3201 = vperm.xlu0 %3200, %v2579
        %v3202 = vpop.permute.xlu0 %3201
        %3205 = vset.pattern.permute.xlu0 0
        %3206 = vperm.xlu0 %3205, %v2580
        %v3207 = vpop.permute.xlu0 %3206
        %3210 = vset.pattern.permute.xlu0 0
        %3211 = vperm.xlu0 %3210, %v2581
        %v3212 = vpop.permute.xlu0 %3211
        %3215 = vset.pattern.permute.xlu0 0
        %3216 = vperm.xlu0 %3215, %v2582
        %v3217 = vpop.permute.xlu0 %3216
        %3220 = vset.pattern.permute.xlu0 0
        %3221 = vperm.xlu0 %3220, %v2583
        %v3222 = vpop.permute.xlu0 %3221
        %v3352 = vunpack.c.l.b16 %v2328
        %v3353 = vunpack.c.l.b16 %v2329
        %v3354 = vunpack.c.l.b16 %v2330
        %v3355 = vunpack.c.l.b16 %v2331
        %v3356 = vunpack.c.l.b16 %v2332
        %v3357 = vunpack.c.l.b16 %v2333
        %v3358 = vunpack.c.l.b16 %v2334
        %v3359 = vunpack.c.l.b16 %v2335
        %v3360 = vunpack.c.l.b16 %v2336
        %v3361 = vunpack.c.l.b16 %v2337
        %v3362 = vunpack.c.l.b16 %v2338
        %v3363 = vunpack.c.l.b16 %v2339
        %v3364 = vunpack.c.l.b16 %v2340
        %v3365 = vunpack.c.l.b16 %v2341
        %v3366 = vunpack.c.l.b16 %v2342
        %v3367 = vunpack.c.l.b16 %v2343
        %v3368 = vunpack.c.l.b16 %v2344
        %v3369 = vunpack.c.l.b16 %v2345
        %v3370 = vunpack.c.l.b16 %v2346
        %v3371 = vunpack.c.l.b16 %v2347
        %v3372 = vunpack.c.l.b16 %v2348
        %v3373 = vunpack.c.l.b16 %v2349
        %v3374 = vunpack.c.l.b16 %v2350
        %v3375 = vunpack.c.l.b16 %v2351
        %v3376 = vunpack.c.l.b16 %v2352
        %v3377 = vunpack.c.l.b16 %v2353
        %v3378 = vunpack.c.l.b16 %v2354
        %v3379 = vunpack.c.l.b16 %v2355
        %v3380 = vunpack.c.l.b16 %v2356
        %v3381 = vunpack.c.l.b16 %v2357
        %v3382 = vunpack.c.l.b16 %v2358
        %v3383 = vunpack.c.l.b16 %v2359
        %v3384 = vunpack.c.l.b16 %v2360
        %v3385 = vunpack.c.l.b16 %v2361
        %v3386 = vunpack.c.l.b16 %v2362
        %v3387 = vunpack.c.l.b16 %v2363
        %v3388 = vunpack.c.l.b16 %v2364
        %v3389 = vunpack.c.l.b16 %v2365
        %v3390 = vunpack.c.l.b16 %v2366
        %v3391 = vunpack.c.l.b16 %v2367
        %v3392 = vunpack.c.l.b16 %v2368
        %v3393 = vunpack.c.l.b16 %v2369
        %v3394 = vunpack.c.l.b16 %v2370
        %v3395 = vunpack.c.l.b16 %v2371
        %v3396 = vunpack.c.l.b16 %v2372
        %v3397 = vunpack.c.l.b16 %v2373
        %v3398 = vunpack.c.l.b16 %v2374
        %v3399 = vunpack.c.l.b16 %v2375
        %v3400 = vunpack.c.l.b16 %v2376
        %v3401 = vunpack.c.l.b16 %v2377
        %v3402 = vunpack.c.l.b16 %v2378
        %v3403 = vunpack.c.l.b16 %v2379
        %v3404 = vunpack.c.l.b16 %v2380
        %v3405 = vunpack.c.l.b16 %v2381
        %v3406 = vunpack.c.l.b16 %v2382
        %v3407 = vunpack.c.l.b16 %v2383
        %v3408 = vunpack.c.l.b16 %v2384
        %v3409 = vunpack.c.l.b16 %v2385
        %v3410 = vunpack.c.l.b16 %v2386
        %v3411 = vunpack.c.l.b16 %v2387
        %v3412 = vunpack.c.l.b16 %v2388
        %v3413 = vunpack.c.l.b16 %v2389
        %v3414 = vunpack.c.l.b16 %v2390
        %v3415 = vunpack.c.l.b16 %v2391
        %v3416 = vunpack.c.l.b16 %v2392
        %v3417 = vunpack.c.l.b16 %v2393
        %v3418 = vunpack.c.l.b16 %v2394
        %v3419 = vunpack.c.l.b16 %v2395
        %v3420 = vunpack.c.l.b16 %v2396
        %v3421 = vunpack.c.l.b16 %v2397
        %v3422 = vunpack.c.l.b16 %v2398
        %v3423 = vunpack.c.l.b16 %v2399
        %v3424 = vunpack.c.l.b16 %v2400
        %v3425 = vunpack.c.l.b16 %v2401
        %v3426 = vunpack.c.l.b16 %v2402
        %v3427 = vunpack.c.l.b16 %v2403
        %v3428 = vunpack.c.l.b16 %v2404
        %v3429 = vunpack.c.l.b16 %v2405
        %v3430 = vunpack.c.l.b16 %v2406
        %v3431 = vunpack.c.l.b16 %v2407
        %v3432 = vunpack.c.l.b16 %v2408
        %v3433 = vunpack.c.l.b16 %v2409
        %v3434 = vunpack.c.l.b16 %v2410
        %v3435 = vunpack.c.l.b16 %v2411
        %v3436 = vunpack.c.l.b16 %v2412
        %v3437 = vunpack.c.l.b16 %v2413
        %v3438 = vunpack.c.l.b16 %v2414
        %v3439 = vunpack.c.l.b16 %v2415
        %v3440 = vunpack.c.l.b16 %v2416
        %v3441 = vunpack.c.l.b16 %v2417
        %v3442 = vunpack.c.l.b16 %v2418
        %v3443 = vunpack.c.l.b16 %v2419
        %v3444 = vunpack.c.l.b16 %v2420
        %v3445 = vunpack.c.l.b16 %v2421
        %v3446 = vunpack.c.l.b16 %v2422
        %v3447 = vunpack.c.l.b16 %v2423
        %v3448 = vunpack.c.l.b16 %v2424
        %v3449 = vunpack.c.l.b16 %v2425
        %v3450 = vunpack.c.l.b16 %v2426
        %v3451 = vunpack.c.l.b16 %v2427
        %v3452 = vunpack.c.l.b16 %v2428
        %v3453 = vunpack.c.l.b16 %v2429
        %v3454 = vunpack.c.l.b16 %v2430
        %v3455 = vunpack.c.l.b16 %v2431
        %v3456 = vunpack.c.l.b16 %v2432
        %v3457 = vunpack.c.l.b16 %v2433
        %v3458 = vunpack.c.l.b16 %v2434
        %v3459 = vunpack.c.l.b16 %v2435
        %v3460 = vunpack.c.l.b16 %v2436
        %v3461 = vunpack.c.l.b16 %v2437
        %v3462 = vunpack.c.l.b16 %v2438
        %v3463 = vunpack.c.l.b16 %v2439
        %v3464 = vunpack.c.l.b16 %v2440
        %v3465 = vunpack.c.l.b16 %v2441
        %v3466 = vunpack.c.l.b16 %v2442
        %v3467 = vunpack.c.l.b16 %v2443
        %v3468 = vunpack.c.l.b16 %v2444
        %v3469 = vunpack.c.l.b16 %v2445
        %v3470 = vunpack.c.l.b16 %v2446
        %v3471 = vunpack.c.l.b16 %v2447
        %v3472 = vunpack.c.l.b16 %v2448
        %v3473 = vunpack.c.l.b16 %v2449
        %v3474 = vunpack.c.l.b16 %v2450
        %v3475 = vunpack.c.l.b16 %v2451
        %v3476 = vunpack.c.l.b16 %v2452
        %v3477 = vunpack.c.l.b16 %v2453
        %v3478 = vunpack.c.l.b16 %v2454
        %v3479 = vunpack.c.l.b16 %v2455
        %v3480 = vpack.c.b16 %v3353, %v3352
        %v3481 = vpack.c.b16 %v3355, %v3354
        %v3482 = vpack.c.b16 %v3357, %v3356
        %v3483 = vpack.c.b16 %v3359, %v3358
        %v3484 = vpack.c.b16 %v3361, %v3360
        %v3485 = vpack.c.b16 %v3363, %v3362
        %v3486 = vpack.c.b16 %v3365, %v3364
        %v3487 = vpack.c.b16 %v3367, %v3366
        %v3488 = vpack.c.b16 %v3369, %v3368
        %v3489 = vpack.c.b16 %v3371, %v3370
        %v3490 = vpack.c.b16 %v3373, %v3372
        %v3491 = vpack.c.b16 %v3375, %v3374
        %v3492 = vpack.c.b16 %v3377, %v3376
        %v3493 = vpack.c.b16 %v3379, %v3378
        %v3494 = vpack.c.b16 %v3381, %v3380
        %v3495 = vpack.c.b16 %v3383, %v3382
        %v3496 = vpack.c.b16 %v3385, %v3384
        %v3497 = vpack.c.b16 %v3387, %v3386
        %v3498 = vpack.c.b16 %v3389, %v3388
        %v3499 = vpack.c.b16 %v3391, %v3390
        %v3500 = vpack.c.b16 %v3393, %v3392
        %v3501 = vpack.c.b16 %v3395, %v3394
        %v3502 = vpack.c.b16 %v3397, %v3396
        %v3503 = vpack.c.b16 %v3399, %v3398
        %v3504 = vpack.c.b16 %v3401, %v3400
        %v3505 = vpack.c.b16 %v3403, %v3402
        %v3506 = vpack.c.b16 %v3405, %v3404
        %v3507 = vpack.c.b16 %v3407, %v3406
        %v3508 = vpack.c.b16 %v3409, %v3408
        %v3509 = vpack.c.b16 %v3411, %v3410
        %v3510 = vpack.c.b16 %v3413, %v3412
        %v3511 = vpack.c.b16 %v3415, %v3414
        %v3512 = vpack.c.b16 %v3417, %v3416
        %v3513 = vpack.c.b16 %v3419, %v3418
        %v3514 = vpack.c.b16 %v3421, %v3420
        %v3515 = vpack.c.b16 %v3423, %v3422
        %v3516 = vpack.c.b16 %v3425, %v3424
        %v3517 = vpack.c.b16 %v3427, %v3426
        %v3518 = vpack.c.b16 %v3429, %v3428
        %v3519 = vpack.c.b16 %v3431, %v3430
        %v3520 = vpack.c.b16 %v3433, %v3432
        %v3521 = vpack.c.b16 %v3435, %v3434
        %v3522 = vpack.c.b16 %v3437, %v3436
        %v3523 = vpack.c.b16 %v3439, %v3438
        %v3524 = vpack.c.b16 %v3441, %v3440
        %v3525 = vpack.c.b16 %v3443, %v3442
        %v3526 = vpack.c.b16 %v3445, %v3444
        %v3527 = vpack.c.b16 %v3447, %v3446
        %v3528 = vpack.c.b16 %v3449, %v3448
        %v3529 = vpack.c.b16 %v3451, %v3450
        %v3530 = vpack.c.b16 %v3453, %v3452
        %v3531 = vpack.c.b16 %v3455, %v3454
        %v3532 = vpack.c.b16 %v3457, %v3456
        %v3533 = vpack.c.b16 %v3459, %v3458
        %v3534 = vpack.c.b16 %v3461, %v3460
        %v3535 = vpack.c.b16 %v3463, %v3462
        %v3536 = vpack.c.b16 %v3465, %v3464
        %v3537 = vpack.c.b16 %v3467, %v3466
        %v3538 = vpack.c.b16 %v3469, %v3468
        %v3539 = vpack.c.b16 %v3471, %v3470
        %v3540 = vpack.c.b16 %v3473, %v3472
        %v3541 = vpack.c.b16 %v3475, %v3474
        %v3542 = vpack.c.b16 %v3477, %v3476
        %v3543 = vpack.c.b16 %v3479, %v3478
        %3608 = vmatprep.subr.bf16.mxu0 %v2327
        %3609 = vmatpush1.bf16.msra.mxu0 %v2326
        %3610 = vmatprep.subr.bf16.mxu0 %v2325
        %3611 = vmatpush1.bf16.msra.mxu0 %v2324
        %3612 = vmatprep.subr.bf16.mxu0 %v2323
        %3613 = vmatpush1.bf16.msra.mxu0 %v2322
        %3614 = vmatprep.subr.bf16.mxu0 %v2321
        %3615 = vmatpush1.bf16.msra.mxu0 %v2320
        %3616 = vmatprep.subr.bf16.mxu0 %v2319
        %3617 = vmatpush1.bf16.msra.mxu0 %v2318
        %3618 = vmatprep.subr.bf16.mxu0 %v2317
        %3619 = vmatpush1.bf16.msra.mxu0 %v2316
        %3620 = vmatprep.subr.bf16.mxu0 %v2315
        %3621 = vmatpush1.bf16.msra.mxu0 %v2314
        %3622 = vmatprep.subr.bf16.mxu0 %v2313
        %3623 = vmatpush1.bf16.msra.mxu0 %v2312
        %3624 = vmatprep.subr.bf16.mxu0 0
        %3625 = vmatpush2.bf16.msra.mxu0 0
        %3626 = vmatprep.subr.bf16.mxu0 0
        %3627 = vmatpush2.bf16.msra.mxu0 0
        %3628 = vmatprep.subr.bf16.mxu0 0
        %3629 = vmatpush2.bf16.msra.mxu0 0
        %3630 = vmatprep.subr.bf16.mxu0 0
        %3631 = vmatpush2.bf16.msra.mxu0 0
        %3632 = vmatprep.subr.bf16.mxu0 0
        %3633 = vmatpush2.bf16.msra.mxu0 0
        %3634 = vmatprep.subr.bf16.mxu0 0
        %3635 = vmatpush2.bf16.msra.mxu0 0
        %3636 = vmatprep.subr.bf16.mxu0 0
        %3637 = vmatpush2.bf16.msra.mxu0 0
        %3638 = vmatprep.subr.bf16.mxu0 0
        %3639 = vmatpush2.bf16.msra.mxu0 0
        %3640 = vmatprep.mubr.bf16.mxu0 0
        %3641 = vmatmul.mubr.bf16.gmra.mxu0 %v3480
        %v3642 = vpop.f32.mrf.mxu0
        %v3643 = vadd.f32 %v2587, %v3642
        %v3644 = vpop.f32.mrf.mxu0
        %v3645 = vadd.f32 %v2587, %v3644
        %v3646 = vpop.f32.mrf.mxu0
        %v3647 = vadd.f32 %v2592, %v3646
        %v3648 = vpop.f32.mrf.mxu0
        %v3649 = vadd.f32 %v2592, %v3648
        %3650 = vmatprep.mubr.bf16.mxu0 0
        %3651 = vmatmul.mubr.bf16.gmra.mxu0 %v3481
        %v3652 = vpop.f32.mrf.mxu0
        %v3653 = vadd.f32 %v2597, %v3652
        %v3654 = vpop.f32.mrf.mxu0
        %v3655 = vadd.f32 %v2597, %v3654
        %v3656 = vpop.f32.mrf.mxu0
        %v3657 = vadd.f32 %v2602, %v3656
        %v3658 = vpop.f32.mrf.mxu0
        %v3659 = vadd.f32 %v2602, %v3658
        %3660 = vmatprep.mubr.bf16.mxu0 0
        %3661 = vmatmul.mubr.bf16.gmra.mxu0 %v3482
        %v3662 = vpop.f32.mrf.mxu0
        %v3663 = vadd.f32 %v2607, %v3662
        %v3664 = vpop.f32.mrf.mxu0
        %v3665 = vadd.f32 %v2607, %v3664
        %v3666 = vpop.f32.mrf.mxu0
        %v3667 = vadd.f32 %v2612, %v3666
        %v3668 = vpop.f32.mrf.mxu0
        %v3669 = vadd.f32 %v2612, %v3668
        %3670 = vmatprep.mubr.bf16.mxu0 0
        %3671 = vmatmul.mubr.bf16.gmra.mxu0 %v3483
        %v3672 = vpop.f32.mrf.mxu0
        %v3673 = vadd.f32 %v2617, %v3672
        %v3674 = vpop.f32.mrf.mxu0
        %v3675 = vadd.f32 %v2617, %v3674
        %v3676 = vpop.f32.mrf.mxu0
        %v3677 = vadd.f32 %v2622, %v3676
        %v3678 = vpop.f32.mrf.mxu0
        %v3679 = vadd.f32 %v2622, %v3678
        %3680 = vmatprep.mubr.bf16.mxu0 0
        %3681 = vmatmul.mubr.bf16.gmra.mxu0 %v3484
        %v3682 = vpop.f32.mrf.mxu0
        %v3683 = vadd.f32 %v2627, %v3682
        %v3684 = vpop.f32.mrf.mxu0
        %v3685 = vadd.f32 %v2627, %v3684
        %v3686 = vpop.f32.mrf.mxu0
        %v3687 = vadd.f32 %v2632, %v3686
        %v3688 = vpop.f32.mrf.mxu0
        %v3689 = vadd.f32 %v2632, %v3688
        %3690 = vmatprep.mubr.bf16.mxu0 0
        %3691 = vmatmul.mubr.bf16.gmra.mxu0 %v3485
        %v3692 = vpop.f32.mrf.mxu0
        %v3693 = vadd.f32 %v2637, %v3692
        %v3694 = vpop.f32.mrf.mxu0
        %v3695 = vadd.f32 %v2637, %v3694
        %v3696 = vpop.f32.mrf.mxu0
        %v3697 = vadd.f32 %v2642, %v3696
        %v3698 = vpop.f32.mrf.mxu0
        %v3699 = vadd.f32 %v2642, %v3698
        %3700 = vmatprep.mubr.bf16.mxu0 0
        %3701 = vmatmul.mubr.bf16.gmra.mxu0 %v3486
        %v3702 = vpop.f32.mrf.mxu0
        %v3703 = vadd.f32 %v2647, %v3702
        %v3704 = vpop.f32.mrf.mxu0
        %v3705 = vadd.f32 %v2647, %v3704
        %v3706 = vpop.f32.mrf.mxu0
        %v3707 = vadd.f32 %v2652, %v3706
        %v3708 = vpop.f32.mrf.mxu0
        %v3709 = vadd.f32 %v2652, %v3708
        %3710 = vmatprep.mubr.bf16.mxu0 0
        %3711 = vmatmul.mubr.bf16.gmra.mxu0 %v3487
        %v3712 = vpop.f32.mrf.mxu0
        %v3713 = vadd.f32 %v2657, %v3712
        %v3714 = vpop.f32.mrf.mxu0
        %v3715 = vadd.f32 %v2657, %v3714
        %v3716 = vpop.f32.mrf.mxu0
        %v3717 = vadd.f32 %v2662, %v3716
        %v3718 = vpop.f32.mrf.mxu0
        %v3719 = vadd.f32 %v2662, %v3718
        %3720 = vmatprep.mubr.bf16.mxu0 0
        %3721 = vmatmul.mubr.bf16.gmra.mxu0 %v3488
        %v3722 = vpop.f32.mrf.mxu0
        %v3723 = vadd.f32 %v2667, %v3722
        %v3724 = vpop.f32.mrf.mxu0
        %v3725 = vadd.f32 %v2667, %v3724
        %v3726 = vpop.f32.mrf.mxu0
        %v3727 = vadd.f32 %v2672, %v3726
        %v3728 = vpop.f32.mrf.mxu0
        %v3729 = vadd.f32 %v2672, %v3728
        %3730 = vmatprep.mubr.bf16.mxu0 0
        %3731 = vmatmul.mubr.bf16.gmra.mxu0 %v3489
        %v3732 = vpop.f32.mrf.mxu0
        %v3733 = vadd.f32 %v2677, %v3732
        %v3734 = vpop.f32.mrf.mxu0
        %v3735 = vadd.f32 %v2677, %v3734
        %v3736 = vpop.f32.mrf.mxu0
        %v3737 = vadd.f32 %v2682, %v3736
        %v3738 = vpop.f32.mrf.mxu0
        %v3739 = vadd.f32 %v2682, %v3738
        %3740 = vmatprep.mubr.bf16.mxu0 0
        %3741 = vmatmul.mubr.bf16.gmra.mxu0 %v3490
        %v3742 = vpop.f32.mrf.mxu0
        %v3743 = vadd.f32 %v2687, %v3742
        %v3744 = vpop.f32.mrf.mxu0
        %v3745 = vadd.f32 %v2687, %v3744
        %v3746 = vpop.f32.mrf.mxu0
        %v3747 = vadd.f32 %v2692, %v3746
        %v3748 = vpop.f32.mrf.mxu0
        %v3749 = vadd.f32 %v2692, %v3748
        %3750 = vmatprep.mubr.bf16.mxu0 0
        %3751 = vmatmul.mubr.bf16.gmra.mxu0 %v3491
        %v3752 = vpop.f32.mrf.mxu0
        %v3753 = vadd.f32 %v2697, %v3752
        %v3754 = vpop.f32.mrf.mxu0
        %v3755 = vadd.f32 %v2697, %v3754
        %v3756 = vpop.f32.mrf.mxu0
        %v3757 = vadd.f32 %v2702, %v3756
        %v3758 = vpop.f32.mrf.mxu0
        %v3759 = vadd.f32 %v2702, %v3758
        %3760 = vmatprep.mubr.bf16.mxu0 0
        %3761 = vmatmul.mubr.bf16.gmra.mxu0 %v3492
        %v3762 = vpop.f32.mrf.mxu0
        %v3763 = vadd.f32 %v2707, %v3762
        %v3764 = vpop.f32.mrf.mxu0
        %v3765 = vadd.f32 %v2707, %v3764
        %v3766 = vpop.f32.mrf.mxu0
        %v3767 = vadd.f32 %v2712, %v3766
        %v3768 = vpop.f32.mrf.mxu0
        %v3769 = vadd.f32 %v2712, %v3768
        %3770 = vmatprep.mubr.bf16.mxu0 0
        %3771 = vmatmul.mubr.bf16.gmra.mxu0 %v3493
        %v3772 = vpop.f32.mrf.mxu0
        %v3773 = vadd.f32 %v2717, %v3772
        %v3774 = vpop.f32.mrf.mxu0
        %v3775 = vadd.f32 %v2717, %v3774
        %v3776 = vpop.f32.mrf.mxu0
        %v3777 = vadd.f32 %v2722, %v3776
        %v3778 = vpop.f32.mrf.mxu0
        %v3779 = vadd.f32 %v2722, %v3778
        %3780 = vmatprep.mubr.bf16.mxu0 0
        %3781 = vmatmul.mubr.bf16.gmra.mxu0 %v3494
        %v3782 = vpop.f32.mrf.mxu0
        %v3783 = vadd.f32 %v2727, %v3782
        %v3784 = vpop.f32.mrf.mxu0
        %v3785 = vadd.f32 %v2727, %v3784
        %v3786 = vpop.f32.mrf.mxu0
        %v3787 = vadd.f32 %v2732, %v3786
        %v3788 = vpop.f32.mrf.mxu0
        %v3789 = vadd.f32 %v2732, %v3788
        %3790 = vmatprep.mubr.bf16.mxu0 0
        %3791 = vmatmul.mubr.bf16.gmra.mxu0 %v3495
        %v3792 = vpop.f32.mrf.mxu0
        %v3793 = vadd.f32 %v2737, %v3792
        %v3794 = vpop.f32.mrf.mxu0
        %v3795 = vadd.f32 %v2737, %v3794
        %v3796 = vpop.f32.mrf.mxu0
        %v3797 = vadd.f32 %v2742, %v3796
        %v3798 = vpop.f32.mrf.mxu0
        %v3799 = vadd.f32 %v2742, %v3798
        %3800 = vmatprep.mubr.bf16.mxu0 0
        %3801 = vmatmul.mubr.bf16.gmra.mxu0 %v3496
        %v3802 = vpop.f32.mrf.mxu0
        %v3803 = vadd.f32 %v2747, %v3802
        %v3804 = vpop.f32.mrf.mxu0
        %v3805 = vadd.f32 %v2747, %v3804
        %v3806 = vpop.f32.mrf.mxu0
        %v3807 = vadd.f32 %v2752, %v3806
        %v3808 = vpop.f32.mrf.mxu0
        %v3809 = vadd.f32 %v2752, %v3808
        %3810 = vmatprep.mubr.bf16.mxu0 0
        %3811 = vmatmul.mubr.bf16.gmra.mxu0 %v3497
        %v3812 = vpop.f32.mrf.mxu0
        %v3813 = vadd.f32 %v2757, %v3812
        %v3814 = vpop.f32.mrf.mxu0
        %v3815 = vadd.f32 %v2757, %v3814
        %v3816 = vpop.f32.mrf.mxu0
        %v3817 = vadd.f32 %v2762, %v3816
        %v3818 = vpop.f32.mrf.mxu0
        %v3819 = vadd.f32 %v2762, %v3818
        %3820 = vmatprep.mubr.bf16.mxu0 0
        %3821 = vmatmul.mubr.bf16.gmra.mxu0 %v3498
        %v3822 = vpop.f32.mrf.mxu0
        %v3823 = vadd.f32 %v2767, %v3822
        %v3824 = vpop.f32.mrf.mxu0
        %v3825 = vadd.f32 %v2767, %v3824
        %v3826 = vpop.f32.mrf.mxu0
        %v3827 = vadd.f32 %v2772, %v3826
        %v3828 = vpop.f32.mrf.mxu0
        %v3829 = vadd.f32 %v2772, %v3828
        %3830 = vmatprep.mubr.bf16.mxu0 0
        %3831 = vmatmul.mubr.bf16.gmra.mxu0 %v3499
        %v3832 = vpop.f32.mrf.mxu0
        %v3833 = vadd.f32 %v2777, %v3832
        %v3834 = vpop.f32.mrf.mxu0
        %v3835 = vadd.f32 %v2777, %v3834
        %v3836 = vpop.f32.mrf.mxu0
        %v3837 = vadd.f32 %v2782, %v3836
        %v3838 = vpop.f32.mrf.mxu0
        %v3839 = vadd.f32 %v2782, %v3838
        %3840 = vmatprep.mubr.bf16.mxu0 0
        %3841 = vmatmul.mubr.bf16.gmra.mxu0 %v3500
        %v3842 = vpop.f32.mrf.mxu0
        %v3843 = vadd.f32 %v2787, %v3842
        %v3844 = vpop.f32.mrf.mxu0
        %v3845 = vadd.f32 %v2787, %v3844
        %v3846 = vpop.f32.mrf.mxu0
        %v3847 = vadd.f32 %v2792, %v3846
        %v3848 = vpop.f32.mrf.mxu0
        %v3849 = vadd.f32 %v2792, %v3848
        %3850 = vmatprep.mubr.bf16.mxu0 0
        %3851 = vmatmul.mubr.bf16.gmra.mxu0 %v3501
        %v3852 = vpop.f32.mrf.mxu0
        %v3853 = vadd.f32 %v2797, %v3852
        %v3854 = vpop.f32.mrf.mxu0
        %v3855 = vadd.f32 %v2797, %v3854
        %v3856 = vpop.f32.mrf.mxu0
        %v3857 = vadd.f32 %v2802, %v3856
        %v3858 = vpop.f32.mrf.mxu0
        %v3859 = vadd.f32 %v2802, %v3858
        %3860 = vmatprep.mubr.bf16.mxu0 0
        %3861 = vmatmul.mubr.bf16.gmra.mxu0 %v3502
        %v3862 = vpop.f32.mrf.mxu0
        %v3863 = vadd.f32 %v2807, %v3862
        %v3864 = vpop.f32.mrf.mxu0
        %v3865 = vadd.f32 %v2807, %v3864
        %v3866 = vpop.f32.mrf.mxu0
        %v3867 = vadd.f32 %v2812, %v3866
        %v3868 = vpop.f32.mrf.mxu0
        %v3869 = vadd.f32 %v2812, %v3868
        %3870 = vmatprep.mubr.bf16.mxu0 0
        %3871 = vmatmul.mubr.bf16.gmra.mxu0 %v3503
        %v3872 = vpop.f32.mrf.mxu0
        %v3873 = vadd.f32 %v2817, %v3872
        %v3874 = vpop.f32.mrf.mxu0
        %v3875 = vadd.f32 %v2817, %v3874
        %v3876 = vpop.f32.mrf.mxu0
        %v3877 = vadd.f32 %v2822, %v3876
        %v3878 = vpop.f32.mrf.mxu0
        %v3879 = vadd.f32 %v2822, %v3878
        %3880 = vmatprep.mubr.bf16.mxu0 0
        %3881 = vmatmul.mubr.bf16.gmra.mxu0 %v3504
        %v3882 = vpop.f32.mrf.mxu0
        %v3883 = vadd.f32 %v2827, %v3882
        %v3884 = vpop.f32.mrf.mxu0
        %v3885 = vadd.f32 %v2827, %v3884
        %v3886 = vpop.f32.mrf.mxu0
        %v3887 = vadd.f32 %v2832, %v3886
        %v3888 = vpop.f32.mrf.mxu0
        %v3889 = vadd.f32 %v2832, %v3888
        %3890 = vmatprep.mubr.bf16.mxu0 0
        %3891 = vmatmul.mubr.bf16.gmra.mxu0 %v3505
        %v3892 = vpop.f32.mrf.mxu0
        %v3893 = vadd.f32 %v2837, %v3892
        %v3894 = vpop.f32.mrf.mxu0
        %v3895 = vadd.f32 %v2837, %v3894
        %v3896 = vpop.f32.mrf.mxu0
        %v3897 = vadd.f32 %v2842, %v3896
        %v3898 = vpop.f32.mrf.mxu0
        %v3899 = vadd.f32 %v2842, %v3898
        %3900 = vmatprep.mubr.bf16.mxu0 0
        %3901 = vmatmul.mubr.bf16.gmra.mxu0 %v3506
        %v3902 = vpop.f32.mrf.mxu0
        %v3903 = vadd.f32 %v2847, %v3902
        %v3904 = vpop.f32.mrf.mxu0
        %v3905 = vadd.f32 %v2847, %v3904
        %v3906 = vpop.f32.mrf.mxu0
        %v3907 = vadd.f32 %v2852, %v3906
        %v3908 = vpop.f32.mrf.mxu0
        %v3909 = vadd.f32 %v2852, %v3908
        %3910 = vmatprep.mubr.bf16.mxu0 0
        %3911 = vmatmul.mubr.bf16.gmra.mxu0 %v3507
        %v3912 = vpop.f32.mrf.mxu0
        %v3913 = vadd.f32 %v2857, %v3912
        %v3914 = vpop.f32.mrf.mxu0
        %v3915 = vadd.f32 %v2857, %v3914
        %v3916 = vpop.f32.mrf.mxu0
        %v3917 = vadd.f32 %v2862, %v3916
        %v3918 = vpop.f32.mrf.mxu0
        %v3919 = vadd.f32 %v2862, %v3918
        %3920 = vmatprep.mubr.bf16.mxu0 0
        %3921 = vmatmul.mubr.bf16.gmra.mxu0 %v3508
        %v3922 = vpop.f32.mrf.mxu0
        %v3923 = vadd.f32 %v2867, %v3922
        %v3924 = vpop.f32.mrf.mxu0
        %v3925 = vadd.f32 %v2867, %v3924
        %v3926 = vpop.f32.mrf.mxu0
        %v3927 = vadd.f32 %v2872, %v3926
        %v3928 = vpop.f32.mrf.mxu0
        %v3929 = vadd.f32 %v2872, %v3928
        %3930 = vmatprep.mubr.bf16.mxu0 0
        %3931 = vmatmul.mubr.bf16.gmra.mxu0 %v3509
        %v3932 = vpop.f32.mrf.mxu0
        %v3933 = vadd.f32 %v2877, %v3932
        %v3934 = vpop.f32.mrf.mxu0
        %v3935 = vadd.f32 %v2877, %v3934
        %v3936 = vpop.f32.mrf.mxu0
        %v3937 = vadd.f32 %v2882, %v3936
        %v3938 = vpop.f32.mrf.mxu0
        %v3939 = vadd.f32 %v2882, %v3938
        %3940 = vmatprep.mubr.bf16.mxu0 0
        %3941 = vmatmul.mubr.bf16.gmra.mxu0 %v3510
        %v3942 = vpop.f32.mrf.mxu0
        %v3943 = vadd.f32 %v2887, %v3942
        %v3944 = vpop.f32.mrf.mxu0
        %v3945 = vadd.f32 %v2887, %v3944
        %v3946 = vpop.f32.mrf.mxu0
        %v3947 = vadd.f32 %v2892, %v3946
        %v3948 = vpop.f32.mrf.mxu0
        %v3949 = vadd.f32 %v2892, %v3948
        %3950 = vmatprep.mubr.bf16.mxu0 0
        %3951 = vmatmul.mubr.bf16.gmra.mxu0 %v3511
        %v3952 = vpop.f32.mrf.mxu0
        %v3953 = vadd.f32 %v2897, %v3952
        %v3954 = vpop.f32.mrf.mxu0
        %v3955 = vadd.f32 %v2897, %v3954
        %v3956 = vpop.f32.mrf.mxu0
        %v3957 = vadd.f32 %v2902, %v3956
        %v3958 = vpop.f32.mrf.mxu0
        %v3959 = vadd.f32 %v2902, %v3958
        %3960 = vmatprep.mubr.bf16.mxu0 0
        %3961 = vmatmul.mubr.bf16.gmra.mxu0 %v3512
        %v3962 = vpop.f32.mrf.mxu0
        %v3963 = vadd.f32 %v2907, %v3962
        %v3964 = vpop.f32.mrf.mxu0
        %v3965 = vadd.f32 %v2907, %v3964
        %v3966 = vpop.f32.mrf.mxu0
        %v3967 = vadd.f32 %v2912, %v3966
        %v3968 = vpop.f32.mrf.mxu0
        %v3969 = vadd.f32 %v2912, %v3968
        %3970 = vmatprep.mubr.bf16.mxu0 0
        %3971 = vmatmul.mubr.bf16.gmra.mxu0 %v3513
        %v3972 = vpop.f32.mrf.mxu0
        %v3973 = vadd.f32 %v2917, %v3972
        %v3974 = vpop.f32.mrf.mxu0
        %v3975 = vadd.f32 %v2917, %v3974
        %v3976 = vpop.f32.mrf.mxu0
        %v3977 = vadd.f32 %v2922, %v3976
        %v3978 = vpop.f32.mrf.mxu0
        %v3979 = vadd.f32 %v2922, %v3978
        %3980 = vmatprep.mubr.bf16.mxu0 0
        %3981 = vmatmul.mubr.bf16.gmra.mxu0 %v3514
        %v3982 = vpop.f32.mrf.mxu0
        %v3983 = vadd.f32 %v2927, %v3982
        %v3984 = vpop.f32.mrf.mxu0
        %v3985 = vadd.f32 %v2927, %v3984
        %v3986 = vpop.f32.mrf.mxu0
        %v3987 = vadd.f32 %v2932, %v3986
        %v3988 = vpop.f32.mrf.mxu0
        %v3989 = vadd.f32 %v2932, %v3988
        %3990 = vmatprep.mubr.bf16.mxu0 0
        %3991 = vmatmul.mubr.bf16.gmra.mxu0 %v3515
        %v3992 = vpop.f32.mrf.mxu0
        %v3993 = vadd.f32 %v2937, %v3992
        %v3994 = vpop.f32.mrf.mxu0
        %v3995 = vadd.f32 %v2937, %v3994
        %v3996 = vpop.f32.mrf.mxu0
        %v3997 = vadd.f32 %v2942, %v3996
        %v3998 = vpop.f32.mrf.mxu0
        %v3999 = vadd.f32 %v2942, %v3998
        %4000 = vmatprep.mubr.bf16.mxu0 0
        %4001 = vmatmul.mubr.bf16.gmra.mxu0 %v3516
        %v4002 = vpop.f32.mrf.mxu0
        %v4003 = vadd.f32 %v2947, %v4002
        %v4004 = vpop.f32.mrf.mxu0
        %v4005 = vadd.f32 %v2947, %v4004
        %v4006 = vpop.f32.mrf.mxu0
        %v4007 = vadd.f32 %v2952, %v4006
        %v4008 = vpop.f32.mrf.mxu0
        %v4009 = vadd.f32 %v2952, %v4008
        %4010 = vmatprep.mubr.bf16.mxu0 0
        %4011 = vmatmul.mubr.bf16.gmra.mxu0 %v3517
        %v4012 = vpop.f32.mrf.mxu0
        %v4013 = vadd.f32 %v2957, %v4012
        %v4014 = vpop.f32.mrf.mxu0
        %v4015 = vadd.f32 %v2957, %v4014
        %v4016 = vpop.f32.mrf.mxu0
        %v4017 = vadd.f32 %v2962, %v4016
        %v4018 = vpop.f32.mrf.mxu0
        %v4019 = vadd.f32 %v2962, %v4018
        %4020 = vmatprep.mubr.bf16.mxu0 0
        %4021 = vmatmul.mubr.bf16.gmra.mxu0 %v3518
        %v4022 = vpop.f32.mrf.mxu0
        %v4023 = vadd.f32 %v2967, %v4022
        %v4024 = vpop.f32.mrf.mxu0
        %v4025 = vadd.f32 %v2967, %v4024
        %v4026 = vpop.f32.mrf.mxu0
        %v4027 = vadd.f32 %v2972, %v4026
        %v4028 = vpop.f32.mrf.mxu0
        %v4029 = vadd.f32 %v2972, %v4028
        %4030 = vmatprep.mubr.bf16.mxu0 0
        %4031 = vmatmul.mubr.bf16.gmra.mxu0 %v3519
        %v4032 = vpop.f32.mrf.mxu0
        %v4033 = vadd.f32 %v2977, %v4032
        %v4034 = vpop.f32.mrf.mxu0
        %v4035 = vadd.f32 %v2977, %v4034
        %v4036 = vpop.f32.mrf.mxu0
        %v4037 = vadd.f32 %v2982, %v4036
        %v4038 = vpop.f32.mrf.mxu0
        %v4039 = vadd.f32 %v2982, %v4038
        %4040 = vmatprep.mubr.bf16.mxu0 0
        %4041 = vmatmul.mubr.bf16.gmra.mxu0 %v3520
        %v4042 = vpop.f32.mrf.mxu0
        %v4043 = vadd.f32 %v2987, %v4042
        %v4044 = vpop.f32.mrf.mxu0
        %v4045 = vadd.f32 %v2987, %v4044
        %v4046 = vpop.f32.mrf.mxu0
        %v4047 = vadd.f32 %v2992, %v4046
        %v4048 = vpop.f32.mrf.mxu0
        %v4049 = vadd.f32 %v2992, %v4048
        %4050 = vmatprep.mubr.bf16.mxu0 0
        %4051 = vmatmul.mubr.bf16.gmra.mxu0 %v3521
        %v4052 = vpop.f32.mrf.mxu0
        %v4053 = vadd.f32 %v2997, %v4052
        %v4054 = vpop.f32.mrf.mxu0
        %v4055 = vadd.f32 %v2997, %v4054
        %v4056 = vpop.f32.mrf.mxu0
        %v4057 = vadd.f32 %v3002, %v4056
        %v4058 = vpop.f32.mrf.mxu0
        %v4059 = vadd.f32 %v3002, %v4058
        %4060 = vmatprep.mubr.bf16.mxu0 0
        %4061 = vmatmul.mubr.bf16.gmra.mxu0 %v3522
        %v4062 = vpop.f32.mrf.mxu0
        %v4063 = vadd.f32 %v3007, %v4062
        %v4064 = vpop.f32.mrf.mxu0
        %v4065 = vadd.f32 %v3007, %v4064
        %v4066 = vpop.f32.mrf.mxu0
        %v4067 = vadd.f32 %v3012, %v4066
        %v4068 = vpop.f32.mrf.mxu0
        %v4069 = vadd.f32 %v3012, %v4068
        %4070 = vmatprep.mubr.bf16.mxu0 0
        %4071 = vmatmul.mubr.bf16.gmra.mxu0 %v3523
        %v4072 = vpop.f32.mrf.mxu0
        %v4073 = vadd.f32 %v3017, %v4072
        %v4074 = vpop.f32.mrf.mxu0
        %v4075 = vadd.f32 %v3017, %v4074
        %v4076 = vpop.f32.mrf.mxu0
        %v4077 = vadd.f32 %v3022, %v4076
        %v4078 = vpop.f32.mrf.mxu0
        %v4079 = vadd.f32 %v3022, %v4078
        %4080 = vmatprep.mubr.bf16.mxu0 0
        %4081 = vmatmul.mubr.bf16.gmra.mxu0 %v3524
        %v4082 = vpop.f32.mrf.mxu0
        %v4083 = vadd.f32 %v3027, %v4082
        %v4084 = vpop.f32.mrf.mxu0
        %v4085 = vadd.f32 %v3027, %v4084
        %v4086 = vpop.f32.mrf.mxu0
        %v4087 = vadd.f32 %v3032, %v4086
        %v4088 = vpop.f32.mrf.mxu0
        %v4089 = vadd.f32 %v3032, %v4088
        %4090 = vmatprep.mubr.bf16.mxu0 0
        %4091 = vmatmul.mubr.bf16.gmra.mxu0 %v3525
        %v4092 = vpop.f32.mrf.mxu0
        %v4093 = vadd.f32 %v3037, %v4092
        %v4094 = vpop.f32.mrf.mxu0
        %v4095 = vadd.f32 %v3037, %v4094
        %v4096 = vpop.f32.mrf.mxu0
        %v4097 = vadd.f32 %v3042, %v4096
        %v4098 = vpop.f32.mrf.mxu0
        %v4099 = vadd.f32 %v3042, %v4098
        %4100 = vmatprep.mubr.bf16.mxu0 0
        %4101 = vmatmul.mubr.bf16.gmra.mxu0 %v3526
        %v4102 = vpop.f32.mrf.mxu0
        %v4103 = vadd.f32 %v3047, %v4102
        %v4104 = vpop.f32.mrf.mxu0
        %v4105 = vadd.f32 %v3047, %v4104
        %v4106 = vpop.f32.mrf.mxu0
        %v4107 = vadd.f32 %v3052, %v4106
        %v4108 = vpop.f32.mrf.mxu0
        %v4109 = vadd.f32 %v3052, %v4108
        %4110 = vmatprep.mubr.bf16.mxu0 0
        %4111 = vmatmul.mubr.bf16.gmra.mxu0 %v3527
        %v4112 = vpop.f32.mrf.mxu0
        %v4113 = vadd.f32 %v3057, %v4112
        %v4114 = vpop.f32.mrf.mxu0
        %v4115 = vadd.f32 %v3057, %v4114
        %v4116 = vpop.f32.mrf.mxu0
        %v4117 = vadd.f32 %v3062, %v4116
        %v4118 = vpop.f32.mrf.mxu0
        %v4119 = vadd.f32 %v3062, %v4118
        %4120 = vmatprep.mubr.bf16.mxu0 0
        %4121 = vmatmul.mubr.bf16.gmra.mxu0 %v3528
        %v4122 = vpop.f32.mrf.mxu0
        %v4123 = vadd.f32 %v3067, %v4122
        %v4124 = vpop.f32.mrf.mxu0
        %v4125 = vadd.f32 %v3067, %v4124
        %v4126 = vpop.f32.mrf.mxu0
        %v4127 = vadd.f32 %v3072, %v4126
        %v4128 = vpop.f32.mrf.mxu0
        %v4129 = vadd.f32 %v3072, %v4128
        %4130 = vmatprep.mubr.bf16.mxu0 0
        %4131 = vmatmul.mubr.bf16.gmra.mxu0 %v3529
        %v4132 = vpop.f32.mrf.mxu0
        %v4133 = vadd.f32 %v3077, %v4132
        %v4134 = vpop.f32.mrf.mxu0
        %v4135 = vadd.f32 %v3077, %v4134
        %v4136 = vpop.f32.mrf.mxu0
        %v4137 = vadd.f32 %v3082, %v4136
        %v4138 = vpop.f32.mrf.mxu0
        %v4139 = vadd.f32 %v3082, %v4138
        %4140 = vmatprep.mubr.bf16.mxu0 0
        %4141 = vmatmul.mubr.bf16.gmra.mxu0 %v3530
        %v4142 = vpop.f32.mrf.mxu0
        %v4143 = vadd.f32 %v3087, %v4142
        %v4144 = vpop.f32.mrf.mxu0
        %v4145 = vadd.f32 %v3087, %v4144
        %v4146 = vpop.f32.mrf.mxu0
        %v4147 = vadd.f32 %v3092, %v4146
        %v4148 = vpop.f32.mrf.mxu0
        %v4149 = vadd.f32 %v3092, %v4148
        %4150 = vmatprep.mubr.bf16.mxu0 0
        %4151 = vmatmul.mubr.bf16.gmra.mxu0 %v3531
        %v4152 = vpop.f32.mrf.mxu0
        %v4153 = vadd.f32 %v3097, %v4152
        %v4154 = vpop.f32.mrf.mxu0
        %v4155 = vadd.f32 %v3097, %v4154
        %v4156 = vpop.f32.mrf.mxu0
        %v4157 = vadd.f32 %v3102, %v4156
        %v4158 = vpop.f32.mrf.mxu0
        %v4159 = vadd.f32 %v3102, %v4158
        %4160 = vmatprep.mubr.bf16.mxu0 0
        %4161 = vmatmul.mubr.bf16.gmra.mxu0 %v3532
        %v4162 = vpop.f32.mrf.mxu0
        %v4163 = vadd.f32 %v3107, %v4162
        %v4164 = vpop.f32.mrf.mxu0
        %v4165 = vadd.f32 %v3107, %v4164
        %v4166 = vpop.f32.mrf.mxu0
        %v4167 = vadd.f32 %v3112, %v4166
        %v4168 = vpop.f32.mrf.mxu0
        %v4169 = vadd.f32 %v3112, %v4168
        %4170 = vmatprep.mubr.bf16.mxu0 0
        %4171 = vmatmul.mubr.bf16.gmra.mxu0 %v3533
        %v4172 = vpop.f32.mrf.mxu0
        %v4173 = vadd.f32 %v3117, %v4172
        %v4174 = vpop.f32.mrf.mxu0
        %v4175 = vadd.f32 %v3117, %v4174
        %v4176 = vpop.f32.mrf.mxu0
        %v4177 = vadd.f32 %v3122, %v4176
        %v4178 = vpop.f32.mrf.mxu0
        %v4179 = vadd.f32 %v3122, %v4178
        %4180 = vmatprep.mubr.bf16.mxu0 0
        %4181 = vmatmul.mubr.bf16.gmra.mxu0 %v3534
        %v4182 = vpop.f32.mrf.mxu0
        %v4183 = vadd.f32 %v3127, %v4182
        %v4184 = vpop.f32.mrf.mxu0
        %v4185 = vadd.f32 %v3127, %v4184
        %v4186 = vpop.f32.mrf.mxu0
        %v4187 = vadd.f32 %v3132, %v4186
        %v4188 = vpop.f32.mrf.mxu0
        %v4189 = vadd.f32 %v3132, %v4188
        %4190 = vmatprep.mubr.bf16.mxu0 0
        %4191 = vmatmul.mubr.bf16.gmra.mxu0 %v3535
        %v4192 = vpop.f32.mrf.mxu0
        %v4193 = vadd.f32 %v3137, %v4192
        %v4194 = vpop.f32.mrf.mxu0
        %v4195 = vadd.f32 %v3137, %v4194
        %v4196 = vpop.f32.mrf.mxu0
        %v4197 = vadd.f32 %v3142, %v4196
        %v4198 = vpop.f32.mrf.mxu0
        %v4199 = vadd.f32 %v3142, %v4198
        %4200 = vmatprep.mubr.bf16.mxu0 0
        %4201 = vmatmul.mubr.bf16.gmra.mxu0 %v3536
        %v4202 = vpop.f32.mrf.mxu0
        %v4203 = vadd.f32 %v3147, %v4202
        %v4204 = vpop.f32.mrf.mxu0
        %v4205 = vadd.f32 %v3147, %v4204
        %v4206 = vpop.f32.mrf.mxu0
        %v4207 = vadd.f32 %v3152, %v4206
        %v4208 = vpop.f32.mrf.mxu0
        %v4209 = vadd.f32 %v3152, %v4208
        %4210 = vmatprep.mubr.bf16.mxu0 0
        %4211 = vmatmul.mubr.bf16.gmra.mxu0 %v3537
        %v4212 = vpop.f32.mrf.mxu0
        %v4213 = vadd.f32 %v3157, %v4212
        %v4214 = vpop.f32.mrf.mxu0
        %v4215 = vadd.f32 %v3157, %v4214
        %v4216 = vpop.f32.mrf.mxu0
        %v4217 = vadd.f32 %v3162, %v4216
        %v4218 = vpop.f32.mrf.mxu0
        %v4219 = vadd.f32 %v3162, %v4218
        %4220 = vmatprep.mubr.bf16.mxu0 0
        %4221 = vmatmul.mubr.bf16.gmra.mxu0 %v3538
        %v4222 = vpop.f32.mrf.mxu0
        %v4223 = vadd.f32 %v3167, %v4222
        %v4224 = vpop.f32.mrf.mxu0
        %v4225 = vadd.f32 %v3167, %v4224
        %v4226 = vpop.f32.mrf.mxu0
        %v4227 = vadd.f32 %v3172, %v4226
        %v4228 = vpop.f32.mrf.mxu0
        %v4229 = vadd.f32 %v3172, %v4228
        %4230 = vmatprep.mubr.bf16.mxu0 0
        %4231 = vmatmul.mubr.bf16.gmra.mxu0 %v3539
        %v4232 = vpop.f32.mrf.mxu0
        %v4233 = vadd.f32 %v3177, %v4232
        %v4234 = vpop.f32.mrf.mxu0
        %v4235 = vadd.f32 %v3177, %v4234
        %v4236 = vpop.f32.mrf.mxu0
        %v4237 = vadd.f32 %v3182, %v4236
        %v4238 = vpop.f32.mrf.mxu0
        %v4239 = vadd.f32 %v3182, %v4238
        %4240 = vmatprep.mubr.bf16.mxu0 0
        %4241 = vmatmul.mubr.bf16.gmra.mxu0 %v3540
        %v4242 = vpop.f32.mrf.mxu0
        %v4243 = vadd.f32 %v3187, %v4242
        %v4244 = vpop.f32.mrf.mxu0
        %v4245 = vadd.f32 %v3187, %v4244
        %v4246 = vpop.f32.mrf.mxu0
        %v4247 = vadd.f32 %v3192, %v4246
        %v4248 = vpop.f32.mrf.mxu0
        %v4249 = vadd.f32 %v3192, %v4248
        %4250 = vmatprep.mubr.bf16.mxu0 0
        %4251 = vmatmul.mubr.bf16.gmra.mxu0 %v3541
        %v4252 = vpop.f32.mrf.mxu0
        %v4253 = vadd.f32 %v3197, %v4252
        %v4254 = vpop.f32.mrf.mxu0
        %v4255 = vadd.f32 %v3197, %v4254
        %v4256 = vpop.f32.mrf.mxu0
        %v4257 = vadd.f32 %v3202, %v4256
        %v4258 = vpop.f32.mrf.mxu0
        %v4259 = vadd.f32 %v3202, %v4258
        %4260 = vmatprep.mubr.bf16.mxu0 0
        %4261 = vmatmul.mubr.bf16.gmra.mxu0 %v3542
        %v4262 = vpop.f32.mrf.mxu0
        %v4263 = vadd.f32 %v3207, %v4262
        %v4264 = vpop.f32.mrf.mxu0
        %v4265 = vadd.f32 %v3207, %v4264
        %v4266 = vpop.f32.mrf.mxu0
        %v4267 = vadd.f32 %v3212, %v4266
        %v4268 = vpop.f32.mrf.mxu0
        %v4269 = vadd.f32 %v3212, %v4268
        %4270 = vmatprep.mubr.bf16.mxu0 0
        %4271 = vmatmul.mubr.bf16.gmra.mxu0 %v3543
        %v4272 = vpop.f32.mrf.mxu0
        %v4273 = vadd.f32 %v3217, %v4272
        %v4274 = vpop.f32.mrf.mxu0
        %v4275 = vadd.f32 %v3217, %v4274
        %v4276 = vpop.f32.mrf.mxu0
        %v4277 = vadd.f32 %v3222, %v4276
        %v4278 = vpop.f32.mrf.mxu0
        %v4279 = vadd.f32 %v3222, %v4278
        %4280 = vdwg.mxu0
        %v4281 = vmax.f32 %v3643, 0.0
        %v4282 = vmax.f32 %v3645, 0.0
        %v4283 = vmax.f32 %v3647, 0.0
        %v4284 = vmax.f32 %v3649, 0.0
        %v4285 = vmax.f32 %v3653, 0.0
        %v4286 = vmax.f32 %v3655, 0.0
        %v4287 = vmax.f32 %v3657, 0.0
        %v4288 = vmax.f32 %v3659, 0.0
        %v4289 = vmax.f32 %v3663, 0.0
        %v4290 = vmax.f32 %v3665, 0.0
        %v4291 = vmax.f32 %v3667, 0.0
        %v4292 = vmax.f32 %v3669, 0.0
        %v4293 = vmax.f32 %v3673, 0.0
        %v4294 = vmax.f32 %v3675, 0.0
        %v4295 = vmax.f32 %v3677, 0.0
        %v4296 = vmax.f32 %v3679, 0.0
        %v4297 = vmax.f32 %v3683, 0.0
        %v4298 = vmax.f32 %v3685, 0.0
        %v4299 = vmax.f32 %v3687, 0.0
        %v4300 = vmax.f32 %v3689, 0.0
        %v4301 = vmax.f32 %v3693, 0.0
        %v4302 = vmax.f32 %v3695, 0.0
        %v4303 = vmax.f32 %v3697, 0.0
        %v4304 = vmax.f32 %v3699, 0.0
        %v4305 = vmax.f32 %v3703, 0.0
        %v4306 = vmax.f32 %v3705, 0.0
        %v4307 = vmax.f32 %v3707, 0.0
        %v4308 = vmax.f32 %v3709, 0.0
        %v4309 = vmax.f32 %v3713, 0.0
        %v4310 = vmax.f32 %v3715, 0.0
        %v4311 = vmax.f32 %v3717, 0.0
        %v4312 = vmax.f32 %v3719, 0.0
        %v4313 = vmax.f32 %v3723, 0.0
        %v4314 = vmax.f32 %v3725, 0.0
        %v4315 = vmax.f32 %v3727, 0.0
        %v4316 = vmax.f32 %v3729, 0.0
        %v4317 = vmax.f32 %v3733, 0.0
        %v4318 = vmax.f32 %v3735, 0.0
        %v4319 = vmax.f32 %v3737, 0.0
        %v4320 = vmax.f32 %v3739, 0.0
        %v4321 = vmax.f32 %v3743, 0.0
        %v4322 = vmax.f32 %v3745, 0.0
        %v4323 = vmax.f32 %v3747, 0.0
        %v4324 = vmax.f32 %v3749, 0.0
        %v4325 = vmax.f32 %v3753, 0.0
        %v4326 = vmax.f32 %v3755, 0.0
        %v4327 = vmax.f32 %v3757, 0.0
        %v4328 = vmax.f32 %v3759, 0.0
        %v4329 = vmax.f32 %v3763, 0.0
        %v4330 = vmax.f32 %v3765, 0.0
        %v4331 = vmax.f32 %v3767, 0.0
        %v4332 = vmax.f32 %v3769, 0.0
        %v4333 = vmax.f32 %v3773, 0.0
        %v4334 = vmax.f32 %v3775, 0.0
        %v4335 = vmax.f32 %v3777, 0.0
        %v4336 = vmax.f32 %v3779, 0.0
        %v4337 = vmax.f32 %v3783, 0.0
        %v4338 = vmax.f32 %v3785, 0.0
        %v4339 = vmax.f32 %v3787, 0.0
        %v4340 = vmax.f32 %v3789, 0.0
        %v4341 = vmax.f32 %v3793, 0.0
        %v4342 = vmax.f32 %v3795, 0.0
        %v4343 = vmax.f32 %v3797, 0.0
        %v4344 = vmax.f32 %v3799, 0.0
        %v4345 = vmax.f32 %v3803, 0.0
        %v4346 = vmax.f32 %v3805, 0.0
        %v4347 = vmax.f32 %v3807, 0.0
        %v4348 = vmax.f32 %v3809, 0.0
        %v4349 = vmax.f32 %v3813, 0.0
        %v4350 = vmax.f32 %v3815, 0.0
        %v4351 = vmax.f32 %v3817, 0.0
        %v4352 = vmax.f32 %v3819, 0.0
        %v4353 = vmax.f32 %v3823, 0.0
        %v4354 = vmax.f32 %v3825, 0.0
        %v4355 = vmax.f32 %v3827, 0.0
        %v4356 = vmax.f32 %v3829, 0.0
        %v4357 = vmax.f32 %v3833, 0.0
        %v4358 = vmax.f32 %v3835, 0.0
        %v4359 = vmax.f32 %v3837, 0.0
        %v4360 = vmax.f32 %v3839, 0.0
        %v4361 = vmax.f32 %v3843, 0.0
        %v4362 = vmax.f32 %v3845, 0.0
        %v4363 = vmax.f32 %v3847, 0.0
        %v4364 = vmax.f32 %v3849, 0.0
        %v4365 = vmax.f32 %v3853, 0.0
        %v4366 = vmax.f32 %v3855, 0.0
        %v4367 = vmax.f32 %v3857, 0.0
        %v4368 = vmax.f32 %v3859, 0.0
        %v4369 = vmax.f32 %v3863, 0.0
        %v4370 = vmax.f32 %v3865, 0.0
        %v4371 = vmax.f32 %v3867, 0.0
        %v4372 = vmax.f32 %v3869, 0.0
        %v4373 = vmax.f32 %v3873, 0.0
        %v4374 = vmax.f32 %v3875, 0.0
        %v4375 = vmax.f32 %v3877, 0.0
        %v4376 = vmax.f32 %v3879, 0.0
        %v4377 = vmax.f32 %v3883, 0.0
        %v4378 = vmax.f32 %v3885, 0.0
        %v4379 = vmax.f32 %v3887, 0.0
        %v4380 = vmax.f32 %v3889, 0.0
        %v4381 = vmax.f32 %v3893, 0.0
        %v4382 = vmax.f32 %v3895, 0.0
        %v4383 = vmax.f32 %v3897, 0.0
        %v4384 = vmax.f32 %v3899, 0.0
        %v4385 = vmax.f32 %v3903, 0.0
        %v4386 = vmax.f32 %v3905, 0.0
        %v4387 = vmax.f32 %v3907, 0.0
        %v4388 = vmax.f32 %v3909, 0.0
        %v4389 = vmax.f32 %v3913, 0.0
        %v4390 = vmax.f32 %v3915, 0.0
        %v4391 = vmax.f32 %v3917, 0.0
        %v4392 = vmax.f32 %v3919, 0.0
        %v4393 = vmax.f32 %v3923, 0.0
        %v4394 = vmax.f32 %v3925, 0.0
        %v4395 = vmax.f32 %v3927, 0.0
        %v4396 = vmax.f32 %v3929, 0.0
        %v4397 = vmax.f32 %v3933, 0.0
        %v4398 = vmax.f32 %v3935, 0.0
        %v4399 = vmax.f32 %v3937, 0.0
        %v4400 = vmax.f32 %v3939, 0.0
        %v4401 = vmax.f32 %v3943, 0.0
        %v4402 = vmax.f32 %v3945, 0.0
        %v4403 = vmax.f32 %v3947, 0.0
        %v4404 = vmax.f32 %v3949, 0.0
        %v4405 = vmax.f32 %v3953, 0.0
        %v4406 = vmax.f32 %v3955, 0.0
        %v4407 = vmax.f32 %v3957, 0.0
        %v4408 = vmax.f32 %v3959, 0.0
        %v4409 = vmax.f32 %v3963, 0.0
        %v4410 = vmax.f32 %v3965, 0.0
        %v4411 = vmax.f32 %v3967, 0.0
        %v4412 = vmax.f32 %v3969, 0.0
        %v4413 = vmax.f32 %v3973, 0.0
        %v4414 = vmax.f32 %v3975, 0.0
        %v4415 = vmax.f32 %v3977, 0.0
        %v4416 = vmax.f32 %v3979, 0.0
        %v4417 = vmax.f32 %v3983, 0.0
        %v4418 = vmax.f32 %v3985, 0.0
        %v4419 = vmax.f32 %v3987, 0.0
        %v4420 = vmax.f32 %v3989, 0.0
        %v4421 = vmax.f32 %v3993, 0.0
        %v4422 = vmax.f32 %v3995, 0.0
        %v4423 = vmax.f32 %v3997, 0.0
        %v4424 = vmax.f32 %v3999, 0.0
        %v4425 = vmax.f32 %v4003, 0.0
        %v4426 = vmax.f32 %v4005, 0.0
        %v4427 = vmax.f32 %v4007, 0.0
        %v4428 = vmax.f32 %v4009, 0.0
        %v4429 = vmax.f32 %v4013, 0.0
        %v4430 = vmax.f32 %v4015, 0.0
        %v4431 = vmax.f32 %v4017, 0.0
        %v4432 = vmax.f32 %v4019, 0.0
        %v4433 = vmax.f32 %v4023, 0.0
        %v4434 = vmax.f32 %v4025, 0.0
        %v4435 = vmax.f32 %v4027, 0.0
        %v4436 = vmax.f32 %v4029, 0.0
        %v4437 = vmax.f32 %v4033, 0.0
        %v4438 = vmax.f32 %v4035, 0.0
        %v4439 = vmax.f32 %v4037, 0.0
        %v4440 = vmax.f32 %v4039, 0.0
        %v4441 = vmax.f32 %v4043, 0.0
        %v4442 = vmax.f32 %v4045, 0.0
        %v4443 = vmax.f32 %v4047, 0.0
        %v4444 = vmax.f32 %v4049, 0.0
        %v4445 = vmax.f32 %v4053, 0.0
        %v4446 = vmax.f32 %v4055, 0.0
        %v4447 = vmax.f32 %v4057, 0.0
        %v4448 = vmax.f32 %v4059, 0.0
        %v4449 = vmax.f32 %v4063, 0.0
        %v4450 = vmax.f32 %v4065, 0.0
        %v4451 = vmax.f32 %v4067, 0.0
        %v4452 = vmax.f32 %v4069, 0.0
        %v4453 = vmax.f32 %v4073, 0.0
        %v4454 = vmax.f32 %v4075, 0.0
        %v4455 = vmax.f32 %v4077, 0.0
        %v4456 = vmax.f32 %v4079, 0.0
        %v4457 = vmax.f32 %v4083, 0.0
        %v4458 = vmax.f32 %v4085, 0.0
        %v4459 = vmax.f32 %v4087, 0.0
        %v4460 = vmax.f32 %v4089, 0.0
        %v4461 = vmax.f32 %v4093, 0.0
        %v4462 = vmax.f32 %v4095, 0.0
        %v4463 = vmax.f32 %v4097, 0.0
        %v4464 = vmax.f32 %v4099, 0.0
        %v4465 = vmax.f32 %v4103, 0.0
        %v4466 = vmax.f32 %v4105, 0.0
        %v4467 = vmax.f32 %v4107, 0.0
        %v4468 = vmax.f32 %v4109, 0.0
        %v4469 = vmax.f32 %v4113, 0.0
        %v4470 = vmax.f32 %v4115, 0.0
        %v4471 = vmax.f32 %v4117, 0.0
        %v4472 = vmax.f32 %v4119, 0.0
        %v4473 = vmax.f32 %v4123, 0.0
        %v4474 = vmax.f32 %v4125, 0.0
        %v4475 = vmax.f32 %v4127, 0.0
        %v4476 = vmax.f32 %v4129, 0.0
        %v4477 = vmax.f32 %v4133, 0.0
        %v4478 = vmax.f32 %v4135, 0.0
        %v4479 = vmax.f32 %v4137, 0.0
        %v4480 = vmax.f32 %v4139, 0.0
        %v4481 = vmax.f32 %v4143, 0.0
        %v4482 = vmax.f32 %v4145, 0.0
        %v4483 = vmax.f32 %v4147, 0.0
        %v4484 = vmax.f32 %v4149, 0.0
        %v4485 = vmax.f32 %v4153, 0.0
        %v4486 = vmax.f32 %v4155, 0.0
        %v4487 = vmax.f32 %v4157, 0.0
        %v4488 = vmax.f32 %v4159, 0.0
        %v4489 = vmax.f32 %v4163, 0.0
        %v4490 = vmax.f32 %v4165, 0.0
        %v4491 = vmax.f32 %v4167, 0.0
        %v4492 = vmax.f32 %v4169, 0.0
        %v4493 = vmax.f32 %v4173, 0.0
        %v4494 = vmax.f32 %v4175, 0.0
        %v4495 = vmax.f32 %v4177, 0.0
        %v4496 = vmax.f32 %v4179, 0.0
        %v4497 = vmax.f32 %v4183, 0.0
        %v4498 = vmax.f32 %v4185, 0.0
        %v4499 = vmax.f32 %v4187, 0.0
        %v4500 = vmax.f32 %v4189, 0.0
        %v4501 = vmax.f32 %v4193, 0.0
        %v4502 = vmax.f32 %v4195, 0.0
        %v4503 = vmax.f32 %v4197, 0.0
        %v4504 = vmax.f32 %v4199, 0.0
        %v4505 = vmax.f32 %v4203, 0.0
        %v4506 = vmax.f32 %v4205, 0.0
        %v4507 = vmax.f32 %v4207, 0.0
        %v4508 = vmax.f32 %v4209, 0.0
        %v4509 = vmax.f32 %v4213, 0.0
        %v4510 = vmax.f32 %v4215, 0.0
        %v4511 = vmax.f32 %v4217, 0.0
        %v4512 = vmax.f32 %v4219, 0.0
        %v4513 = vmax.f32 %v4223, 0.0
        %v4514 = vmax.f32 %v4225, 0.0
        %v4515 = vmax.f32 %v4227, 0.0
        %v4516 = vmax.f32 %v4229, 0.0
        %v4517 = vmax.f32 %v4233, 0.0
        %v4518 = vmax.f32 %v4235, 0.0
        %v4519 = vmax.f32 %v4237, 0.0
        %v4520 = vmax.f32 %v4239, 0.0
        %v4521 = vmax.f32 %v4243, 0.0
        %v4522 = vmax.f32 %v4245, 0.0
        %v4523 = vmax.f32 %v4247, 0.0
        %v4524 = vmax.f32 %v4249, 0.0
        %v4525 = vmax.f32 %v4253, 0.0
        %v4526 = vmax.f32 %v4255, 0.0
        %v4527 = vmax.f32 %v4257, 0.0
        %v4528 = vmax.f32 %v4259, 0.0
        %v4529 = vmax.f32 %v4263, 0.0
        %v4530 = vmax.f32 %v4265, 0.0
        %v4531 = vmax.f32 %v4267, 0.0
        %v4532 = vmax.f32 %v4269, 0.0
        %v4533 = vmax.f32 %v4273, 0.0
        %v4534 = vmax.f32 %v4275, 0.0
        %v4535 = vmax.f32 %v4277, 0.0
        %v4536 = vmax.f32 %v4279, 0.0
        %v4537 = vld [vmem:[%s773] sm:$0xff]
        %v4538 = vld [vmem:[%s773 + $0x8] sm:$0xff]
        %v4539 = vld [vmem:[%s773 + $0x10] sm:$0xff]
        %v4540 = vld [vmem:[%s773 + $0x18] sm:$0xff]
        %v4541 = vld [vmem:[%s773 + $0x20] sm:$0xff]
        %v4542 = vld [vmem:[%s773 + $0x28] sm:$0xff]
        %v4543 = vld [vmem:[%s773 + $0x30] sm:$0xff]
        %v4544 = vld [vmem:[%s773 + $0x38] sm:$0xff]
        %v4545 = vld [vmem:[%s773 + $0x40] sm:$0xff]
        %v4546 = vld [vmem:[%s773 + $0x48] sm:$0xff]
        %v4547 = vld [vmem:[%s773 + $0x50] sm:$0xff]
        %v4548 = vld [vmem:[%s773 + $0x58] sm:$0xff]
        %v4549 = vld [vmem:[%s773 + $0x60] sm:$0xff]
        %v4550 = vld [vmem:[%s773 + $0x68] sm:$0xff]
        %v4551 = vld [vmem:[%s773 + $0x70] sm:$0xff]
        %v4552 = vld [vmem:[%s773 + $0x78] sm:$0xff]
        %v4553 = vld [vmem:[%s773 + $0x80] sm:$0xff]
        %v4554 = vld [vmem:[%s773 + $0x88] sm:$0xff]
        %v4555 = vld [vmem:[%s773 + $0x90] sm:$0xff]
        %v4556 = vld [vmem:[%s773 + $0x98] sm:$0xff]
        %v4557 = vld [vmem:[%s773 + $0xa0] sm:$0xff]
        %v4558 = vld [vmem:[%s773 + $0xa8] sm:$0xff]
        %v4559 = vld [vmem:[%s773 + $0xb0] sm:$0xff]
        %v4560 = vld [vmem:[%s773 + $0xb8] sm:$0xff]
        %v4561 = vld [vmem:[%s773 + $0xc0] sm:$0xff]
        %v4562 = vld [vmem:[%s773 + $0xc8] sm:$0xff]
        %v4563 = vld [vmem:[%s773 + $0xd0] sm:$0xff]
        %v4564 = vld [vmem:[%s773 + $0xd8] sm:$0xff]
        %v4565 = vld [vmem:[%s773 + $0xe0] sm:$0xff]
        %v4566 = vld [vmem:[%s773 + $0xe8] sm:$0xff]
        %v4567 = vld [vmem:[%s773 + $0xf0] sm:$0xff]
        %v4568 = vld [vmem:[%s773 + $0xf8] sm:$0xff]
        %4570 = vset.pattern.permute.xlu0 0
        %4571 = vperm.xlu0 %4570, %v4537
        %v4572 = vpop.permute.xlu0 %4571
        %4575 = vset.pattern.permute.xlu0 0
        %4576 = vperm.xlu0 %4575, %v4538
        %v4577 = vpop.permute.xlu0 %4576
        %4580 = vset.pattern.permute.xlu0 0
        %4581 = vperm.xlu0 %4580, %v4539
        %v4582 = vpop.permute.xlu0 %4581
        %4585 = vset.pattern.permute.xlu0 0
        %4586 = vperm.xlu0 %4585, %v4540
        %v4587 = vpop.permute.xlu0 %4586
        %4590 = vset.pattern.permute.xlu0 0
        %4591 = vperm.xlu0 %4590, %v4541
        %v4592 = vpop.permute.xlu0 %4591
        %4595 = vset.pattern.permute.xlu0 0
        %4596 = vperm.xlu0 %4595, %v4542
        %v4597 = vpop.permute.xlu0 %4596
        %4600 = vset.pattern.permute.xlu0 0
        %4601 = vperm.xlu0 %4600, %v4543
        %v4602 = vpop.permute.xlu0 %4601
        %4605 = vset.pattern.permute.xlu0 0
        %4606 = vperm.xlu0 %4605, %v4544
        %v4607 = vpop.permute.xlu0 %4606
        %4610 = vset.pattern.permute.xlu0 0
        %4611 = vperm.xlu0 %4610, %v4545
        %v4612 = vpop.permute.xlu0 %4611
        %4615 = vset.pattern.permute.xlu0 0
        %4616 = vperm.xlu0 %4615, %v4546
        %v4617 = vpop.permute.xlu0 %4616
        %4620 = vset.pattern.permute.xlu0 0
        %4621 = vperm.xlu0 %4620, %v4547
        %v4622 = vpop.permute.xlu0 %4621
        %4625 = vset.pattern.permute.xlu0 0
        %4626 = vperm.xlu0 %4625, %v4548
        %v4627 = vpop.permute.xlu0 %4626
        %4630 = vset.pattern.permute.xlu0 0
        %4631 = vperm.xlu0 %4630, %v4549
        %v4632 = vpop.permute.xlu0 %4631
        %4635 = vset.pattern.permute.xlu0 0
        %4636 = vperm.xlu0 %4635, %v4550
        %v4637 = vpop.permute.xlu0 %4636
        %4640 = vset.pattern.permute.xlu0 0
        %4641 = vperm.xlu0 %4640, %v4551
        %v4642 = vpop.permute.xlu0 %4641
        %4645 = vset.pattern.permute.xlu0 0
        %4646 = vperm.xlu0 %4645, %v4552
        %v4647 = vpop.permute.xlu0 %4646
        %4650 = vset.pattern.permute.xlu0 0
        %4651 = vperm.xlu0 %4650, %v4553
        %v4652 = vpop.permute.xlu0 %4651
        %4655 = vset.pattern.permute.xlu0 0
        %4656 = vperm.xlu0 %4655, %v4554
        %v4657 = vpop.permute.xlu0 %4656
        %4660 = vset.pattern.permute.xlu0 0
        %4661 = vperm.xlu0 %4660, %v4555
        %v4662 = vpop.permute.xlu0 %4661
        %4665 = vset.pattern.permute.xlu0 0
        %4666 = vperm.xlu0 %4665, %v4556
        %v4667 = vpop.permute.xlu0 %4666
        %4670 = vset.pattern.permute.xlu0 0
        %4671 = vperm.xlu0 %4670, %v4557
        %v4672 = vpop.permute.xlu0 %4671
        %4675 = vset.pattern.permute.xlu0 0
        %4676 = vperm.xlu0 %4675, %v4558
        %v4677 = vpop.permute.xlu0 %4676
        %4680 = vset.pattern.permute.xlu0 0
        %4681 = vperm.xlu0 %4680, %v4559
        %v4682 = vpop.permute.xlu0 %4681
        %4685 = vset.pattern.permute.xlu0 0
        %4686 = vperm.xlu0 %4685, %v4560
        %v4687 = vpop.permute.xlu0 %4686
        %4690 = vset.pattern.permute.xlu0 0
        %4691 = vperm.xlu0 %4690, %v4561
        %v4692 = vpop.permute.xlu0 %4691
        %4695 = vset.pattern.permute.xlu0 0
        %4696 = vperm.xlu0 %4695, %v4562
        %v4697 = vpop.permute.xlu0 %4696
        %4700 = vset.pattern.permute.xlu0 0
        %4701 = vperm.xlu0 %4700, %v4563
        %v4702 = vpop.permute.xlu0 %4701
        %4705 = vset.pattern.permute.xlu0 0
        %4706 = vperm.xlu0 %4705, %v4564
        %v4707 = vpop.permute.xlu0 %4706
        %4710 = vset.pattern.permute.xlu0 0
        %4711 = vperm.xlu0 %4710, %v4565
        %v4712 = vpop.permute.xlu0 %4711
        %4715 = vset.pattern.permute.xlu0 0
        %4716 = vperm.xlu0 %4715, %v4566
        %v4717 = vpop.permute.xlu0 %4716
        %4720 = vset.pattern.permute.xlu0 0
        %4721 = vperm.xlu0 %4720, %v4567
        %v4722 = vpop.permute.xlu0 %4721
        %4725 = vset.pattern.permute.xlu0 0
        %4726 = vperm.xlu0 %4725, %v4568
        %v4727 = vpop.permute.xlu0 %4726
        %4729 = vst [vmem:[%s758] sm:$0xff] %v4572
        %4730 = vst [vmem:[%s758 + $0x8] sm:$0xff] %v4572
        %4731 = vst [vmem:[%s758 + $0x10] sm:$0xff] %v4577
        %4732 = vst [vmem:[%s758 + $0x18] sm:$0xff] %v4577
        %4733 = vst [vmem:[%s758 + $0x20] sm:$0xff] %v4582
        %4734 = vst [vmem:[%s758 + $0x28] sm:$0xff] %v4582
        %4735 = vst [vmem:[%s758 + $0x30] sm:$0xff] %v4587
        %4736 = vst [vmem:[%s758 + $0x38] sm:$0xff] %v4587
        %4737 = vst [vmem:[%s758 + $0x40] sm:$0xff] %v4592
        %4738 = vst [vmem:[%s758 + $0x48] sm:$0xff] %v4592
        %4739 = vst [vmem:[%s758 + $0x50] sm:$0xff] %v4597
        %4740 = vst [vmem:[%s758 + $0x58] sm:$0xff] %v4597
        %4741 = vst [vmem:[%s758 + $0x60] sm:$0xff] %v4602
        %4742 = vst [vmem:[%s758 + $0x68] sm:$0xff] %v4602
        %4743 = vst [vmem:[%s758 + $0x70] sm:$0xff] %v4607
        %4744 = vst [vmem:[%s758 + $0x78] sm:$0xff] %v4607
        %4745 = vst [vmem:[%s758 + $0x80] sm:$0xff] %v4612
        %4746 = vst [vmem:[%s758 + $0x88] sm:$0xff] %v4612
        %4747 = vst [vmem:[%s758 + $0x90] sm:$0xff] %v4617
        %4748 = vst [vmem:[%s758 + $0x98] sm:$0xff] %v4617
        %4749 = vst [vmem:[%s758 + $0xa0] sm:$0xff] %v4622
        %4750 = vst [vmem:[%s758 + $0xa8] sm:$0xff] %v4622
        %4751 = vst [vmem:[%s758 + $0xb0] sm:$0xff] %v4627
        %4752 = vst [vmem:[%s758 + $0xb8] sm:$0xff] %v4627
        %4753 = vst [vmem:[%s758 + $0xc0] sm:$0xff] %v4632
        %4754 = vst [vmem:[%s758 + $0xc8] sm:$0xff] %v4632
        %4755 = vst [vmem:[%s758 + $0xd0] sm:$0xff] %v4637
        %4756 = vst [vmem:[%s758 + $0xd8] sm:$0xff] %v4637
        %4757 = vst [vmem:[%s758 + $0xe0] sm:$0xff] %v4642
        %4758 = vst [vmem:[%s758 + $0xe8] sm:$0xff] %v4642
        %4759 = vst [vmem:[%s758 + $0xf0] sm:$0xff] %v4647
        %4760 = vst [vmem:[%s758 + $0xf8] sm:$0xff] %v4647
        %4761 = vst [vmem:[%s758 + $0x100] sm:$0xff] %v4652
        %4762 = vst [vmem:[%s758 + $0x108] sm:$0xff] %v4652
        %4763 = vst [vmem:[%s758 + $0x110] sm:$0xff] %v4657
        %4764 = vst [vmem:[%s758 + $0x118] sm:$0xff] %v4657
        %4765 = vst [vmem:[%s758 + $0x120] sm:$0xff] %v4662
        %4766 = vst [vmem:[%s758 + $0x128] sm:$0xff] %v4662
        %4767 = vst [vmem:[%s758 + $0x130] sm:$0xff] %v4667
        %4768 = vst [vmem:[%s758 + $0x138] sm:$0xff] %v4667
        %4769 = vst [vmem:[%s758 + $0x140] sm:$0xff] %v4672
        %4770 = vst [vmem:[%s758 + $0x148] sm:$0xff] %v4672
        %4771 = vst [vmem:[%s758 + $0x150] sm:$0xff] %v4677
        %4772 = vst [vmem:[%s758 + $0x158] sm:$0xff] %v4677
        %4773 = vst [vmem:[%s758 + $0x160] sm:$0xff] %v4682
        %4774 = vst [vmem:[%s758 + $0x168] sm:$0xff] %v4682
        %4775 = vst [vmem:[%s758 + $0x170] sm:$0xff] %v4687
        %4776 = vst [vmem:[%s758 + $0x178] sm:$0xff] %v4687
        %4777 = vst [vmem:[%s758 + $0x180] sm:$0xff] %v4692
        %4778 = vst [vmem:[%s758 + $0x188] sm:$0xff] %v4692
        %4779 = vst [vmem:[%s758 + $0x190] sm:$0xff] %v4697
        %4780 = vst [vmem:[%s758 + $0x198] sm:$0xff] %v4697
        %4781 = vst [vmem:[%s758 + $0x1a0] sm:$0xff] %v4702
        %4782 = vst [vmem:[%s758 + $0x1a8] sm:$0xff] %v4702
        %4783 = vst [vmem:[%s758 + $0x1b0] sm:$0xff] %v4707
        %4784 = vst [vmem:[%s758 + $0x1b8] sm:$0xff] %v4707
        %4785 = vst [vmem:[%s758 + $0x1c0] sm:$0xff] %v4712
        %4786 = vst [vmem:[%s758 + $0x1c8] sm:$0xff] %v4712
        %4787 = vst [vmem:[%s758 + $0x1d0] sm:$0xff] %v4717
        %4788 = vst [vmem:[%s758 + $0x1d8] sm:$0xff] %v4717
        %4789 = vst [vmem:[%s758 + $0x1e0] sm:$0xff] %v4722
        %4790 = vst [vmem:[%s758 + $0x1e8] sm:$0xff] %v4722
        %4791 = vst [vmem:[%s758 + $0x1f0] sm:$0xff] %v4727
        %4792 = vst [vmem:[%s758 + $0x1f8] sm:$0xff] %v4727
        %4793 = vst [vmem:[%s758 + $0x200] sm:$0xff] %v4281
        %4794 = vst [vmem:[%s758 + $0x208] sm:$0xff] %v4282
        %4795 = vst [vmem:[%s758 + $0x210] sm:$0xff] %v4283
        %4796 = vst [vmem:[%s758 + $0x218] sm:$0xff] %v4284
        %4797 = vst [vmem:[%s758 + $0x220] sm:$0xff] %v4285
        %4798 = vst [vmem:[%s758 + $0x228] sm:$0xff] %v4286
        %4799 = vst [vmem:[%s758 + $0x230] sm:$0xff] %v4287
        %4800 = vst [vmem:[%s758 + $0x238] sm:$0xff] %v4288
        %4801 = vst [vmem:[%s758 + $0x240] sm:$0xff] %v4289
        %4802 = vst [vmem:[%s758 + $0x248] sm:$0xff] %v4290
        %4803 = vst [vmem:[%s758 + $0x250] sm:$0xff] %v4291
        %4804 = vst [vmem:[%s758 + $0x258] sm:$0xff] %v4292
        %4805 = vst [vmem:[%s758 + $0x260] sm:$0xff] %v4293
        %4806 = vst [vmem:[%s758 + $0x268] sm:$0xff] %v4294
        %4807 = vst [vmem:[%s758 + $0x270] sm:$0xff] %v4295
        %4808 = vst [vmem:[%s758 + $0x278] sm:$0xff] %v4296
        %4809 = vst [vmem:[%s758 + $0x280] sm:$0xff] %v4297
        %4810 = vst [vmem:[%s758 + $0x288] sm:$0xff] %v4298
        %4811 = vst [vmem:[%s758 + $0x290] sm:$0xff] %v4299
        %4812 = vst [vmem:[%s758 + $0x298] sm:$0xff] %v4300
        %4813 = vst [vmem:[%s758 + $0x2a0] sm:$0xff] %v4301
        %4814 = vst [vmem:[%s758 + $0x2a8] sm:$0xff] %v4302
        %4815 = vst [vmem:[%s758 + $0x2b0] sm:$0xff] %v4303
        %4816 = vst [vmem:[%s758 + $0x2b8] sm:$0xff] %v4304
        %4817 = vst [vmem:[%s758 + $0x2c0] sm:$0xff] %v4305
        %4818 = vst [vmem:[%s758 + $0x2c8] sm:$0xff] %v4306
        %4819 = vst [vmem:[%s758 + $0x2d0] sm:$0xff] %v4307
        %4820 = vst [vmem:[%s758 + $0x2d8] sm:$0xff] %v4308
        %4821 = vst [vmem:[%s758 + $0x2e0] sm:$0xff] %v4309
        %4822 = vst [vmem:[%s758 + $0x2e8] sm:$0xff] %v4310
        %4823 = vst [vmem:[%s758 + $0x2f0] sm:$0xff] %v4311
        %4824 = vst [vmem:[%s758 + $0x2f8] sm:$0xff] %v4312
        %4825 = vst [vmem:[%s758 + $0x300] sm:$0xff] %v4313
        %4826 = vst [vmem:[%s758 + $0x308] sm:$0xff] %v4314
        %4827 = vst [vmem:[%s758 + $0x310] sm:$0xff] %v4315
        %4828 = vst [vmem:[%s758 + $0x318] sm:$0xff] %v4316
        %4829 = vst [vmem:[%s758 + $0x320] sm:$0xff] %v4317
        %4830 = vst [vmem:[%s758 + $0x328] sm:$0xff] %v4318
        %4831 = vst [vmem:[%s758 + $0x330] sm:$0xff] %v4319
        %4832 = vst [vmem:[%s758 + $0x338] sm:$0xff] %v4320
        %4833 = vst [vmem:[%s758 + $0x340] sm:$0xff] %v4321
        %4834 = vst [vmem:[%s758 + $0x348] sm:$0xff] %v4322
        %4835 = vst [vmem:[%s758 + $0x350] sm:$0xff] %v4323
        %4836 = vst [vmem:[%s758 + $0x358] sm:$0xff] %v4324
        %4837 = vst [vmem:[%s758 + $0x360] sm:$0xff] %v4325
        %4838 = vst [vmem:[%s758 + $0x368] sm:$0xff] %v4326
        %4839 = vst [vmem:[%s758 + $0x370] sm:$0xff] %v4327
        %4840 = vst [vmem:[%s758 + $0x378] sm:$0xff] %v4328
        %4841 = vst [vmem:[%s758 + $0x380] sm:$0xff] %v4329
        %4842 = vst [vmem:[%s758 + $0x388] sm:$0xff] %v4330
        %4843 = vst [vmem:[%s758 + $0x390] sm:$0xff] %v4331
        %4844 = vst [vmem:[%s758 + $0x398] sm:$0xff] %v4332
        %4845 = vst [vmem:[%s758 + $0x3a0] sm:$0xff] %v4333
        %4846 = vst [vmem:[%s758 + $0x3a8] sm:$0xff] %v4334
        %4847 = vst [vmem:[%s758 + $0x3b0] sm:$0xff] %v4335
        %4848 = vst [vmem:[%s758 + $0x3b8] sm:$0xff] %v4336
        %4849 = vst [vmem:[%s758 + $0x3c0] sm:$0xff] %v4337
        %4850 = vst [vmem:[%s758 + $0x3c8] sm:$0xff] %v4338
        %4851 = vst [vmem:[%s758 + $0x3d0] sm:$0xff] %v4339
        %4852 = vst [vmem:[%s758 + $0x3d8] sm:$0xff] %v4340
        %4853 = vst [vmem:[%s758 + $0x3e0] sm:$0xff] %v4341
        %4854 = vst [vmem:[%s758 + $0x3e8] sm:$0xff] %v4342
        %4855 = vst [vmem:[%s758 + $0x3f0] sm:$0xff] %v4343
        %4856 = vst [vmem:[%s758 + $0x3f8] sm:$0xff] %v4344
        %4857 = vst [vmem:[%s758 + $0x400] sm:$0xff] %v4345
        %4858 = vst [vmem:[%s758 + $0x408] sm:$0xff] %v4346
        %4859 = vst [vmem:[%s758 + $0x410] sm:$0xff] %v4347
        %4860 = vst [vmem:[%s758 + $0x418] sm:$0xff] %v4348
        %4861 = vst [vmem:[%s758 + $0x420] sm:$0xff] %v4349
        %4862 = vst [vmem:[%s758 + $0x428] sm:$0xff] %v4350
        %4863 = vst [vmem:[%s758 + $0x430] sm:$0xff] %v4351
        %4864 = vst [vmem:[%s758 + $0x438] sm:$0xff] %v4352
        %4865 = vst [vmem:[%s758 + $0x440] sm:$0xff] %v4353
        %4866 = vst [vmem:[%s758 + $0x448] sm:$0xff] %v4354
        %4867 = vst [vmem:[%s758 + $0x450] sm:$0xff] %v4355
        %4868 = vst [vmem:[%s758 + $0x458] sm:$0xff] %v4356
        %4869 = vst [vmem:[%s758 + $0x460] sm:$0xff] %v4357
        %4870 = vst [vmem:[%s758 + $0x468] sm:$0xff] %v4358
        %4871 = vst [vmem:[%s758 + $0x470] sm:$0xff] %v4359
        %4872 = vst [vmem:[%s758 + $0x478] sm:$0xff] %v4360
        %4873 = vst [vmem:[%s758 + $0x480] sm:$0xff] %v4361
        %4874 = vst [vmem:[%s758 + $0x488] sm:$0xff] %v4362
        %4875 = vst [vmem:[%s758 + $0x490] sm:$0xff] %v4363
        %4876 = vst [vmem:[%s758 + $0x498] sm:$0xff] %v4364
        %4877 = vst [vmem:[%s758 + $0x4a0] sm:$0xff] %v4365
        %4878 = vst [vmem:[%s758 + $0x4a8] sm:$0xff] %v4366
        %4879 = vst [vmem:[%s758 + $0x4b0] sm:$0xff] %v4367
        %4880 = vst [vmem:[%s758 + $0x4b8] sm:$0xff] %v4368
        %4881 = vst [vmem:[%s758 + $0x4c0] sm:$0xff] %v4369
        %4882 = vst [vmem:[%s758 + $0x4c8] sm:$0xff] %v4370
        %4883 = vst [vmem:[%s758 + $0x4d0] sm:$0xff] %v4371
        %4884 = vst [vmem:[%s758 + $0x4d8] sm:$0xff] %v4372
        %4885 = vst [vmem:[%s758 + $0x4e0] sm:$0xff] %v4373
        %4886 = vst [vmem:[%s758 + $0x4e8] sm:$0xff] %v4374
        %4887 = vst [vmem:[%s758 + $0x4f0] sm:$0xff] %v4375
        %4888 = vst [vmem:[%s758 + $0x4f8] sm:$0xff] %v4376
        %4889 = vst [vmem:[%s758 + $0x500] sm:$0xff] %v4377
        %4890 = vst [vmem:[%s758 + $0x508] sm:$0xff] %v4378
        %4891 = vst [vmem:[%s758 + $0x510] sm:$0xff] %v4379
        %4892 = vst [vmem:[%s758 + $0x518] sm:$0xff] %v4380
        %4893 = vst [vmem:[%s758 + $0x520] sm:$0xff] %v4381
        %4894 = vst [vmem:[%s758 + $0x528] sm:$0xff] %v4382
        %4895 = vst [vmem:[%s758 + $0x530] sm:$0xff] %v4383
        %4896 = vst [vmem:[%s758 + $0x538] sm:$0xff] %v4384
        %4897 = vst [vmem:[%s758 + $0x540] sm:$0xff] %v4385
        %4898 = vst [vmem:[%s758 + $0x548] sm:$0xff] %v4386
        %4899 = vst [vmem:[%s758 + $0x550] sm:$0xff] %v4387
        %4900 = vst [vmem:[%s758 + $0x558] sm:$0xff] %v4388
        %4901 = vst [vmem:[%s758 + $0x560] sm:$0xff] %v4389
        %4902 = vst [vmem:[%s758 + $0x568] sm:$0xff] %v4390
        %4903 = vst [vmem:[%s758 + $0x570] sm:$0xff] %v4391
        %4904 = vst [vmem:[%s758 + $0x578] sm:$0xff] %v4392
        %4905 = vst [vmem:[%s758 + $0x580] sm:$0xff] %v4393
        %4906 = vst [vmem:[%s758 + $0x588] sm:$0xff] %v4394
        %4907 = vst [vmem:[%s758 + $0x590] sm:$0xff] %v4395
        %4908 = vst [vmem:[%s758 + $0x598] sm:$0xff] %v4396
        %4909 = vst [vmem:[%s758 + $0x5a0] sm:$0xff] %v4397
        %4910 = vst [vmem:[%s758 + $0x5a8] sm:$0xff] %v4398
        %4911 = vst [vmem:[%s758 + $0x5b0] sm:$0xff] %v4399
        %4912 = vst [vmem:[%s758 + $0x5b8] sm:$0xff] %v4400
        %4913 = vst [vmem:[%s758 + $0x5c0] sm:$0xff] %v4401
        %4914 = vst [vmem:[%s758 + $0x5c8] sm:$0xff] %v4402
        %4915 = vst [vmem:[%s758 + $0x5d0] sm:$0xff] %v4403
        %4916 = vst [vmem:[%s758 + $0x5d8] sm:$0xff] %v4404
        %4917 = vst [vmem:[%s758 + $0x5e0] sm:$0xff] %v4405
        %4918 = vst [vmem:[%s758 + $0x5e8] sm:$0xff] %v4406
        %4919 = vst [vmem:[%s758 + $0x5f0] sm:$0xff] %v4407
        %4920 = vst [vmem:[%s758 + $0x5f8] sm:$0xff] %v4408
        %4921 = vst [vmem:[%s758 + $0x600] sm:$0xff] %v4409
        %4922 = vst [vmem:[%s758 + $0x608] sm:$0xff] %v4410
        %4923 = vst [vmem:[%s758 + $0x610] sm:$0xff] %v4411
        %4924 = vst [vmem:[%s758 + $0x618] sm:$0xff] %v4412
        %4925 = vst [vmem:[%s758 + $0x620] sm:$0xff] %v4413
        %4926 = vst [vmem:[%s758 + $0x628] sm:$0xff] %v4414
        %4927 = vst [vmem:[%s758 + $0x630] sm:$0xff] %v4415
        %4928 = vst [vmem:[%s758 + $0x638] sm:$0xff] %v4416
        %4929 = vst [vmem:[%s758 + $0x640] sm:$0xff] %v4417
        %4930 = vst [vmem:[%s758 + $0x648] sm:$0xff] %v4418
        %4931 = vst [vmem:[%s758 + $0x650] sm:$0xff] %v4419
        %4932 = vst [vmem:[%s758 + $0x658] sm:$0xff] %v4420
        %4933 = vst [vmem:[%s758 + $0x660] sm:$0xff] %v4421
        %4934 = vst [vmem:[%s758 + $0x668] sm:$0xff] %v4422
        %4935 = vst [vmem:[%s758 + $0x670] sm:$0xff] %v4423
        %4936 = vst [vmem:[%s758 + $0x678] sm:$0xff] %v4424
        %4937 = vst [vmem:[%s758 + $0x680] sm:$0xff] %v4425
        %4938 = vst [vmem:[%s758 + $0x688] sm:$0xff] %v4426
        %4939 = vst [vmem:[%s758 + $0x690] sm:$0xff] %v4427
        %4940 = vst [vmem:[%s758 + $0x698] sm:$0xff] %v4428
        %4941 = vst [vmem:[%s758 + $0x6a0] sm:$0xff] %v4429
        %4942 = vst [vmem:[%s758 + $0x6a8] sm:$0xff] %v4430
        %4943 = vst [vmem:[%s758 + $0x6b0] sm:$0xff] %v4431
        %4944 = vst [vmem:[%s758 + $0x6b8] sm:$0xff] %v4432
        %4945 = vst [vmem:[%s758 + $0x6c0] sm:$0xff] %v4433
        %4946 = vst [vmem:[%s758 + $0x6c8] sm:$0xff] %v4434
        %4947 = vst [vmem:[%s758 + $0x6d0] sm:$0xff] %v4435
        %4948 = vst [vmem:[%s758 + $0x6d8] sm:$0xff] %v4436
        %4949 = vst [vmem:[%s758 + $0x6e0] sm:$0xff] %v4437
        %4950 = vst [vmem:[%s758 + $0x6e8] sm:$0xff] %v4438
        %4951 = vst [vmem:[%s758 + $0x6f0] sm:$0xff] %v4439
        %4952 = vst [vmem:[%s758 + $0x6f8] sm:$0xff] %v4440
        %4953 = vst [vmem:[%s758 + $0x700] sm:$0xff] %v4441
        %4954 = vst [vmem:[%s758 + $0x708] sm:$0xff] %v4442
        %4955 = vst [vmem:[%s758 + $0x710] sm:$0xff] %v4443
        %4956 = vst [vmem:[%s758 + $0x718] sm:$0xff] %v4444
        %4957 = vst [vmem:[%s758 + $0x720] sm:$0xff] %v4445
        %4958 = vst [vmem:[%s758 + $0x728] sm:$0xff] %v4446
        %4959 = vst [vmem:[%s758 + $0x730] sm:$0xff] %v4447
        %4960 = vst [vmem:[%s758 + $0x738] sm:$0xff] %v4448
        %4961 = vst [vmem:[%s758 + $0x740] sm:$0xff] %v4449
        %4962 = vst [vmem:[%s758 + $0x748] sm:$0xff] %v4450
        %4963 = vst [vmem:[%s758 + $0x750] sm:$0xff] %v4451
        %4964 = vst [vmem:[%s758 + $0x758] sm:$0xff] %v4452
        %4965 = vst [vmem:[%s758 + $0x760] sm:$0xff] %v4453
        %4966 = vst [vmem:[%s758 + $0x768] sm:$0xff] %v4454
        %4967 = vst [vmem:[%s758 + $0x770] sm:$0xff] %v4455
        %4968 = vst [vmem:[%s758 + $0x778] sm:$0xff] %v4456
        %4969 = vst [vmem:[%s758 + $0x780] sm:$0xff] %v4457
        %4970 = vst [vmem:[%s758 + $0x788] sm:$0xff] %v4458
        %4971 = vst [vmem:[%s758 + $0x790] sm:$0xff] %v4459
        %4972 = vst [vmem:[%s758 + $0x798] sm:$0xff] %v4460
        %4973 = vst [vmem:[%s758 + $0x7a0] sm:$0xff] %v4461
        %4974 = vst [vmem:[%s758 + $0x7a8] sm:$0xff] %v4462
        %4975 = vst [vmem:[%s758 + $0x7b0] sm:$0xff] %v4463
        %4976 = vst [vmem:[%s758 + $0x7b8] sm:$0xff] %v4464
        %4977 = vst [vmem:[%s758 + $0x7c0] sm:$0xff] %v4465
        %4978 = vst [vmem:[%s758 + $0x7c8] sm:$0xff] %v4466
        %4979 = vst [vmem:[%s758 + $0x7d0] sm:$0xff] %v4467
        %4980 = vst [vmem:[%s758 + $0x7d8] sm:$0xff] %v4468
        %4981 = vst [vmem:[%s758 + $0x7e0] sm:$0xff] %v4469
        %4982 = vst [vmem:[%s758 + $0x7e8] sm:$0xff] %v4470
        %4983 = vst [vmem:[%s758 + $0x7f0] sm:$0xff] %v4471
        %4984 = vst [vmem:[%s758 + $0x7f8] sm:$0xff] %v4472
        %4985 = vst [vmem:[%s758 + $0x800] sm:$0xff] %v4473
        %4986 = vst [vmem:[%s758 + $0x808] sm:$0xff] %v4474
        %4987 = vst [vmem:[%s758 + $0x810] sm:$0xff] %v4475
        %4988 = vst [vmem:[%s758 + $0x818] sm:$0xff] %v4476
        %4989 = vst [vmem:[%s758 + $0x820] sm:$0xff] %v4477
        %4990 = vst [vmem:[%s758 + $0x828] sm:$0xff] %v4478
        %4991 = vst [vmem:[%s758 + $0x830] sm:$0xff] %v4479
        %4992 = vst [vmem:[%s758 + $0x838] sm:$0xff] %v4480
        %4993 = vst [vmem:[%s758 + $0x840] sm:$0xff] %v4481
        %4994 = vst [vmem:[%s758 + $0x848] sm:$0xff] %v4482
        %4995 = vst [vmem:[%s758 + $0x850] sm:$0xff] %v4483
        %4996 = vst [vmem:[%s758 + $0x858] sm:$0xff] %v4484
        %4997 = vst [vmem:[%s758 + $0x860] sm:$0xff] %v4485
        %4998 = vst [vmem:[%s758 + $0x868] sm:$0xff] %v4486
        %4999 = vst [vmem:[%s758 + $0x870] sm:$0xff] %v4487
        %5000 = vst [vmem:[%s758 + $0x878] sm:$0xff] %v4488
        %5001 = vst [vmem:[%s758 + $0x880] sm:$0xff] %v4489
        %5002 = vst [vmem:[%s758 + $0x888] sm:$0xff] %v4490
        %5003 = vst [vmem:[%s758 + $0x890] sm:$0xff] %v4491
        %5004 = vst [vmem:[%s758 + $0x898] sm:$0xff] %v4492
        %5005 = vst [vmem:[%s758 + $0x8a0] sm:$0xff] %v4493
        %5006 = vst [vmem:[%s758 + $0x8a8] sm:$0xff] %v4494
        %5007 = vst [vmem:[%s758 + $0x8b0] sm:$0xff] %v4495
        %5008 = vst [vmem:[%s758 + $0x8b8] sm:$0xff] %v4496
        %5009 = vst [vmem:[%s758 + $0x8c0] sm:$0xff] %v4497
        %5010 = vst [vmem:[%s758 + $0x8c8] sm:$0xff] %v4498
        %5011 = vst [vmem:[%s758 + $0x8d0] sm:$0xff] %v4499
        %5012 = vst [vmem:[%s758 + $0x8d8] sm:$0xff] %v4500
        %5013 = vst [vmem:[%s758 + $0x8e0] sm:$0xff] %v4501
        %5014 = vst [vmem:[%s758 + $0x8e8] sm:$0xff] %v4502
        %5015 = vst [vmem:[%s758 + $0x8f0] sm:$0xff] %v4503
        %5016 = vst [vmem:[%s758 + $0x8f8] sm:$0xff] %v4504
        %5017 = vst [vmem:[%s758 + $0x900] sm:$0xff] %v4505
        %5018 = vst [vmem:[%s758 + $0x908] sm:$0xff] %v4506
        %5019 = vst [vmem:[%s758 + $0x910] sm:$0xff] %v4507
        %5020 = vst [vmem:[%s758 + $0x918] sm:$0xff] %v4508
        %5021 = vst [vmem:[%s758 + $0x920] sm:$0xff] %v4509
        %5022 = vst [vmem:[%s758 + $0x928] sm:$0xff] %v4510
        %5023 = vst [vmem:[%s758 + $0x930] sm:$0xff] %v4511
        %5024 = vst [vmem:[%s758 + $0x938] sm:$0xff] %v4512
        %5025 = vst [vmem:[%s758 + $0x940] sm:$0xff] %v4513
        %5026 = vst [vmem:[%s758 + $0x948] sm:$0xff] %v4514
        %5027 = vst [vmem:[%s758 + $0x950] sm:$0xff] %v4515
        %5028 = vst [vmem:[%s758 + $0x958] sm:$0xff] %v4516
        %5029 = vst [vmem:[%s758 + $0x960] sm:$0xff] %v4517
        %5030 = vst [vmem:[%s758 + $0x968] sm:$0xff] %v4518
        %5031 = vst [vmem:[%s758 + $0x970] sm:$0xff] %v4519
        %5032 = vst [vmem:[%s758 + $0x978] sm:$0xff] %v4520
        %5033 = vst [vmem:[%s758 + $0x980] sm:$0xff] %v4521
        %5034 = vst [vmem:[%s758 + $0x988] sm:$0xff] %v4522
        %5035 = vst [vmem:[%s758 + $0x990] sm:$0xff] %v4523
        %5036 = vst [vmem:[%s758 + $0x998] sm:$0xff] %v4524
        %5037 = vst [vmem:[%s758 + $0x9a0] sm:$0xff] %v4525
        %5038 = vst [vmem:[%s758 + $0x9a8] sm:$0xff] %v4526
        %5039 = vst [vmem:[%s758 + $0x9b0] sm:$0xff] %v4527
        %5040 = vst [vmem:[%s758 + $0x9b8] sm:$0xff] %v4528
        %5041 = vst [vmem:[%s758 + $0x9c0] sm:$0xff] %v4529
        %5042 = vst [vmem:[%s758 + $0x9c8] sm:$0xff] %v4530
        %5043 = vst [vmem:[%s758 + $0x9d0] sm:$0xff] %v4531
        %5044 = vst [vmem:[%s758 + $0x9d8] sm:$0xff] %v4532
        %5045 = vst [vmem:[%s758 + $0x9e0] sm:$0xff] %v4533
        %5046 = vst [vmem:[%s758 + $0x9e8] sm:$0xff] %v4534
        %5047 = vst [vmem:[%s758 + $0x9f0] sm:$0xff] %v4535
        %5048 = vst [vmem:[%s758 + $0x9f8] sm:$0xff] %v4536
        %s5049 = sand.u32 %s408, 1
        %s5050 = scalar_lea.sflag [#allocation4], %s5049
        %s5051 = sand.u32 %s408, 1
        %s5052 = smul.addr %s5051, 2560
        %s5053 = scalar_lea.vmem [#allocation25], %s5052
        // Predicated region
        $region141: #{pointnetfeat_desc.3} parent=83 // pred_check
          %p5054 = pneg %p418
        $region142: #{pointnetfeat_desc.3} parent=83 // pred_check_branch
          %5056 = sbr.rel (%p5054) target = $region144
        $region143: #{pointnetfeat_desc.3} parent=83 // pred_region
          %s5057 = smul.u32 2, %s43
          %s5059 = ssub.s32 40960, 40960
          %5060 = vsyncadd %s5050, %s5059
          %s5061 = smul.addr %s42, 640
          %s5062 = sadd.s32 %s5057, %s5061
          %s5063 = smul.addr %s5062, 128
          %s5064 = scalar_lea.hbm %s16, %s5063
          %s5065 = sshll.u32 %s5053, 4
          %s5066 = int_to_ptr.vmem [resolvable:$true] %s5065
          %5071 = dma.vmem_to_hbm [thread:$0]  %s5066, 40960, %s5064, %s5050, 256, 512, 16
        $region144: #{pointnetfeat_desc.3} parent=83 // pred_fallthru
          _
      $region84: #{pointnetfeat_desc.3} parent=5 // pred_fallthru
        _
      %p5072 = scmp.le.s32.totalorder 2, %s33
      // Predicated region
      $region145: #{pointnetfeat_desc.3} parent=5 // pred_check
        %p5073 = pneg %p5072
      $region146: #{pointnetfeat_desc.3} parent=5 // pred_check_branch
        %5075 = sbr.rel (%p5073) target = $region148
      $region147: #{pointnetfeat_desc.3} parent=5 // pred_region
        %s5076 = ssub.s32 %s33, 2
        // Predicated region
        $region149: #{pointnetfeat_desc.3} parent=147 // pred_check
          %p5077 = pneg %p424
        $region150: #{pointnetfeat_desc.3} parent=147 // pred_check_branch
          %5079 = sbr.rel (%p5077) target = $region152
        $region151: #{pointnetfeat_desc.3} parent=147 // pred_region
          %s5080 = sand.u32 %s409, 1
          %s5081 = scalar_lea.sflag [#allocation4], %s5080
          %s5082 = sand.u32 %s409, 1
          %s5083 = smul.addr %s5082, 2560
          %s5084 = scalar_lea.vmem [#allocation25], %s5083
          %5085 = dma.done %s5081, 40960
        $region152: #{pointnetfeat_desc.3} parent=147 // pred_fallthru
          _
      $region148: #{pointnetfeat_desc.3} parent=5 // pred_fallthru
        _
    $region6: #{pointnetfeat_desc.3} parent=1 // loop_footer
      %s37 = sadd.s32 1, %s33
    $region7: #{pointnetfeat_desc.3} parent=1 // loop_footer_branch
      %32 = sbr.rel target = $region3
    $region8: #{pointnetfeat_desc.3} parent=1 // loop_exit
      _
    %5086 = vsyncpa [#allocation3], 1
    %s5087 = scalar_lea.sflag [#allocation3], 1
    %5088 = vsyncpa %s5087, 1
    %5089 = vsyncpa [#allocation6], 1
    %5090 = vsyncpa [#allocation9], 1
    %5091 = vsyncpa [#allocation12], 1
    %5092 = vsyncpa [#allocation15], 1
    %5093 = vsyncpa [#allocation18], 1
    %5094 = vsyncpa [#allocation21], 1
    %5095 = vsyncpa [#allocation24], 1
    %5096 = vsyncpa [#allocation4], 1
    %s5097 = scalar_lea.sflag [#allocation4], 1
    %5098 = vsyncpa %s5097, 1

</llo_original>
